<compile_context>
chip_gen: v7x
topology: tpu7x:2x2x1
jax: 0.10.0
libtpu: 0.0.40
codegen_flags: <defaults>
</compile_context>

<pallas_src>
import jax
import jax.numpy as jnp
from jax.experimental import pallas as pl
from jax.experimental.pallas import tpu as pltpu


def pointnet_kernel(x_ref, w12_ref, b12_ref, w3_ref, b3_ref, o_ref, acc_ref):
    """Grid = (B, S, N_steps).  Point axis (last) is a running-max reduction.

    x_ref   : (1, C_in, TN)  NCW tile straight from PyTorch layout (f32, lane-dense points)
    w12_ref : (C_mid, C_in)  fused shallow+conv1 weight (f32, used on the VPU)
    b12_ref : (C_mid, 1)     fused bias (f32)
    w3_ref  : (C_out, C_mid) second base conv weight (bf16 by default -> MXU)
    b3_ref  : (1, C_out)     second bias (f32), added once after the max
    o_ref   : (1, 1, 1, C_out) per-(batch, core-split) global max, lane-dense
    acc_ref : (C_out, STRIPE) f32 running-max accumulator
    """
    p = pl.program_id(2)

    @pl.when(p == 0)
    def _():
        acc_ref[...] = jnp.full_like(acc_ref, -jnp.inf)

    x = x_ref[0]                                   # (C_in, TN) f32
    c_in, tn = x.shape
    c_mid = b12_ref.shape[0]

    # Fused (shallow conv+BN) o (first base conv+BN): K = C_in is tiny, so do it
    # as C_in unrolled broadcast MACs on the VPU (the MXU would pad K to 128/256
    # and waste nearly a full dot's worth of MXU slots).  The bias b12 is folded
    # in as the accumulator init -> no separate bias add pass.
    w12 = w12_ref[...]                             # (C_mid, C_in) f32
    h = jnp.broadcast_to(b12_ref[...], (c_mid, tn))
    for c in range(c_in):                          # static unroll, C_in ~ 3-4
        h = h + w12[:, c:c + 1] * x[c:c + 1, :]    # (C_mid,1)*(1,TN) -> (C_mid,TN)
    h2 = jnp.maximum(h, 0.0)                       # ReLU, f32

    # Second base conv (+BN folded): the dominant dot.  bf16 on the MXU by
    # default, f32 accumulation; its bias is deferred past the max.
    h3 = jnp.dot(w3_ref[...], h2.astype(w3_ref.dtype),
                 preferred_element_type=jnp.float32)          # (C_out, TN) f32

    # Running max over points: elementwise VPU max against lane-wide stripes.
    # The single expensive cross-lane reduce is deferred to once per batch.
    stripe = acc_ref.shape[1]
    acc = acc_ref[...]
    for j in range(h3.shape[1] // stripe):
        acc = jnp.maximum(acc, h3[:, j * stripe:(j + 1) * stripe])
    acc_ref[...] = acc

    @pl.when(p == pl.num_programs(2) - 1)
    def _():
        # One XLU transpose + sublane reduce per (batch, core-split); b3 is a
        # per-channel constant so adding it after the max is exactly equivalent.
        acc_t = jnp.transpose(acc_ref[...], (1, 0))            # (STRIPE, C_out)
        gmax = jnp.max(acc_t, axis=0, keepdims=True)           # (1, C_out) lane-dense
        o_ref[0, 0] = (gmax + b3_ref[...]).astype(o_ref.dtype)


def fold_conv_bn(w, b, gamma, beta, mean, var, eps=1e-5):
    """Fold inference-mode BatchNorm1d into a kernel-size-1 Conv1d.

    w: (C_out, C_in) conv weight (kernel dim squeezed), b: (C_out,)
    Returns (W', b') so that  y = x @ W' + b'  with x in (N, C_in) layout.
    """
    scale = gamma / jnp.sqrt(var + eps)
    w_eff = (w * scale[:, None]).T               # (C_in, C_out)
    b_eff = (b - mean) * scale + beta            # (C_out,)
    return w_eff.astype(jnp.float32), b_eff.astype(jnp.float32)


def _choose_tiling(n_points, batch, tn_cap, point_split):
    """Pick (core_split S, point tile TN, steps per core)."""
    # v7x has 2 TensorCores; with B == 1 the batch "parallel" axis can't shard,
    # so split the point axis across cores instead.
    if point_split is None:
        point_split = 2 if batch == 1 else 1
    if point_split > 1 and (n_points % (point_split * 128) != 0):
        point_split = 1
    m = n_points // point_split                  # points per core
    if m % 128 == 0:
        cap = min(tn_cap, m)
        cap -= cap % 128
        tn = m                                   # overwritten below (cap >= 128)
        for cand in range(cap, 127, -128):
            if m % cand == 0:
                tn = cand
                break
    else:
        tn = m                                   # ragged fallback: one tile per core
    return point_split, tn, m // tn


def pointnetfeat_forward(x, params, *, tn=4096, compute_dtype=jnp.bfloat16,
                         point_split=None):
    """x: (B, 1, C_in, N) float32.  Returns (B, 1, C_out) float32.

    tn: point-tile cap (largest lane-aligned divisor of the per-core point count
        <= tn is used).  compute_dtype: dtype of the dominant MXU dot (bf16 by
        default on all gens; accumulation and elementwise math stay f32).
    """
    (w1, b1), (w2, b2), (w3, b3) = params        # per-layer BN-folded params
    c_in = w1.shape[0]
    c_mid = w2.shape[1]
    c_out = w3.shape[1]

    # Fuse shallow layer into the first base conv (no activation between them).
    w12 = w1 @ w2                                # (C_in, C_mid), f32
    b12 = b1 @ w2 + b2                           # (C_mid,)

    x = jnp.squeeze(x, axis=1)                   # (B, C_in, N) — NCW, no transpose/cast
    B, _, N = x.shape

    S, tile_n, np_steps = _choose_tiling(N, B, tn, point_split)
    stripe = 128 if tile_n % 128 == 0 else tile_n

    # Transposed weights so in-kernel math is W @ X (channels on sublanes,
    # points lane-dense).  Only w3 feeds the MXU and gets the compute dtype.
    w12_t = w12.T.astype(jnp.float32)            # (C_mid, C_in)  — VPU path, f32
    b12c = b12[:, None].astype(jnp.float32)      # (C_mid, 1)
    w3_t = w3.T.astype(compute_dtype)            # (C_out, C_mid) — MXU path
    b3r = b3[None, :].astype(jnp.float32)        # (1, C_out) lane-dense row

    def wmap(b, s, p):
        return (0, 0)

    out = pl.pallas_call(
        pointnet_kernel,
        out_shape=jax.ShapeDtypeStruct((B, S, 1, c_out), jnp.float32),
        grid_spec=pltpu.PrefetchScalarGridSpec(
            num_scalar_prefetch=0,
            grid=(B, S, np_steps),
            in_specs=[
                pl.BlockSpec((1, c_in, tile_n),
                             lambda b, s, p: (b, 0, s * np_steps + p)),
                pl.BlockSpec((c_mid, c_in), wmap),
                pl.BlockSpec((c_mid, 1), wmap),
                pl.BlockSpec((c_out, c_mid), wmap),
                pl.BlockSpec((1, c_out), wmap),
            ],
            out_specs=pl.BlockSpec((1, 1, 1, c_out),
                                   lambda b, s, p: (b, s, 0, 0)),
            scratch_shapes=[pltpu.VMEM((c_out, stripe), jnp.float32)],
        ),
        compiler_params=pltpu.CompilerParams(
            dimension_semantics=("parallel", "parallel", "arbitrary")),
    )(x, w12_t, b12c, w3_t, b3r)

    # Combine the per-core partial maxima (b3 commutes with max, already added).
    return jnp.max(out, axis=1)                  # (B, 1, C_out)


def make_params(key, input_dim, shallow_dim, mid_dim, out_dim):
    """Deterministic synthetic parameters matching PointNetfeat.__init__ shapes."""
    ks = jax.random.split(key, 6)

    def conv(kw, kb, cin, cout):
        w = jax.random.normal(kw, (cout, cin), jnp.float32) * 0.1   # Conv1d weight (k=1 squeezed)
        b = jax.random.normal(kb, (cout,), jnp.float32) * 0.01
        return w, b

    def bn(cout, seed):
        g = 1.0 + 0.05 * jnp.sin(jnp.arange(cout, dtype=jnp.float32) + seed)
        beta = 0.01 * jnp.cos(jnp.arange(cout, dtype=jnp.float32) + seed)
        mean = 0.02 * jnp.sin(jnp.arange(cout, dtype=jnp.float32) * 0.5 + seed)
        var = 1.0 + 0.1 * jnp.cos(jnp.arange(cout, dtype=jnp.float32) * 0.3 + seed) ** 2
        return g, beta, mean, var

    w1, b1 = conv(ks[0], ks[1], input_dim, shallow_dim)
    w2, b2 = conv(ks[2], ks[3], shallow_dim, mid_dim)
    w3, b3 = conv(ks[4], ks[5], mid_dim, out_dim)

    p1 = fold_conv_bn(w1, b1, *bn(shallow_dim, 1.0))
    p2 = fold_conv_bn(w2, b2, *bn(mid_dim, 2.0))
    p3 = fold_conv_bn(w3, b3, *bn(out_dim, 3.0))
    return (p1, p2, p3)


# TODO(synk): global_feat=False branch (per-point feature concat) is not implemented;
# the given forward() only returns a value on the global_feat=True path.

if __name__ == "__main__":
    # Shapes consistent with the module's forward: x: (B, 1, input_dim, N).
    # out_dim/mid_dim lane-friendly (128); N a multiple of 128 so the big-tile
    # path and the multi-step running-max reduction are both exercised.
    B, input_dim, shallow_dim, mid_dim, out_dim, n_pts = 2, 4, 64, 128, 128, 8192

    key = jax.random.PRNGKey(0)
    kx, kp = jax.random.split(key)
    x = jax.random.normal(kx, (B, 1, input_dim, n_pts), jnp.float32)
    params = make_params(kp, input_dim, shallow_dim, mid_dim, out_dim)

    # Plain-JAX reference of the original (unfused) layer sequence.
    (w1, b1), (w2, b2), (w3, b3) = params
    xr = jnp.transpose(jnp.squeeze(x, 1), (0, 2, 1))         # (B, N, C_in)
    h1 = xr @ w1 + b1
    h2 = jnp.maximum(h1 @ w2 + b2, 0.0)
    h3 = h2 @ w3 + b3
    ref = jnp.max(h3, axis=1, keepdims=True)                 # (B, 1, C_out)

    # 1) Default path: bf16 MXU dot, tn capped at 4096 -> 2 point steps per batch.
    out = jax.block_until_ready(pointnetfeat_forward(x, params))
    assert out.shape == (B, 1, out_dim), out.shape
    assert jnp.allclose(out, ref, atol=5e-2, rtol=5e-2)

    # 2) f32 MXU path with a smaller tile (4 point steps): near-exact vs reference.
    out_f32 = jax.block_until_ready(
        pointnetfeat_forward(x, params, tn=2048, compute_dtype=jnp.float32))
    assert jnp.allclose(out_f32, ref, atol=1e-4, rtol=1e-4)

    # 3) B == 1: point axis split across the two v7x TensorCores (partial maxima
    #    combined in the wrapper); still correct on single-core chips.
    out_b1 = jax.block_until_ready(pointnetfeat_forward(x[:1], params))
    assert out_b1.shape == (1, 1, out_dim), out_b1.shape
    assert jnp.allclose(out_b1, ref[:1], atol=5e-2, rtol=5e-2)

    print("KERNEL_OK")
</pallas_src>

<mosaic_0001>
module attributes {stable_mosaic.version = 11 : i64} {
  func.func @pointnet_kernel(%arg0: i32, %arg1: i32, %arg2: i32, %arg3: memref<1x4x4096xf32, #tpu.memory_space<vmem>>, %arg4: memref<128x4xf32, #tpu.memory_space<vmem>>, %arg5: memref<128x1xf32, #tpu.memory_space<vmem>>, %arg6: memref<128x128xbf16, #tpu.memory_space<vmem>>, %arg7: memref<1x128xf32, #tpu.memory_space<vmem>>, %arg8: memref<1x1x1x128xf32, #tpu.memory_space<vmem>>, %arg9: memref<128x128xf32, #tpu.memory_space<vmem>>) attributes {dimension_semantics = [#tpu.dimension_semantics<parallel>, #tpu.dimension_semantics<parallel>, #tpu.dimension_semantics<arbitrary>], iteration_bounds = array<i64: 2, 1, 2>, scalar_prefetch = 0 : i64, scratch_operands = 1 : i64, tpu.core_type = #tpu.core_type<tc>, window_params = [{transform_indices = @transform_0, window_bounds = array<i64: 1, 4, 4096>}, {pipeline_mode = #tpu.pipeline_mode<synchronous>, transform_indices = @transform_1, window_bounds = array<i64: 128, 4>}, {pipeline_mode = #tpu.pipeline_mode<synchronous>, transform_indices = @transform_2, window_bounds = array<i64: 128, 1>}, {pipeline_mode = #tpu.pipeline_mode<synchronous>, transform_indices = @transform_3, window_bounds = array<i64: 128, 128>}, {pipeline_mode = #tpu.pipeline_mode<synchronous>, transform_indices = @transform_4, window_bounds = array<i64: 1, 128>}, {transform_indices = @transform_5, window_bounds = array<i64: 1, 1, 1, 128>}]} {
    %c0_i32 = arith.constant 0 : i32
    %0 = arith.cmpi eq, %arg2, %c0_i32 : i32
    %1 = arith.extui %0 : i1 to i32
    %c0_i32_0 = arith.constant 0 : i32
    %2 = arith.cmpi ne, %1, %c0_i32_0 : i32
    scf.if %2 {
      %cst_15 = arith.constant 0xFF800000 : f32
      %107 = vector.broadcast %cst_15 : f32 to vector<128x128xf32>
      %c0_16 = arith.constant 0 : index
      %c0_17 = arith.constant 0 : index
      %108 = vector.load %arg9[%c0_16, %c0_17] : memref<128x128xf32, #tpu.memory_space<vmem>>, vector<128x128xf32>
      tpu.vector_store %arg9[%c0_16, %c0_17], %107 {strides = array<i32>} : memref<128x128xf32, #tpu.memory_space<vmem>>, vector<128x128xf32>,
    } else {
    }
    %c0 = arith.constant 0 : index
    %c0_1 = arith.constant 0 : index
    %c0_2 = arith.constant 0 : index
    %3 = vector.load %arg3[%c0, %c0_1, %c0_2] : memref<1x4x4096xf32, #tpu.memory_space<vmem>>, vector<1x4x4096xf32>
    %4 = vector.shape_cast %3 : vector<1x4x4096xf32> to vector<4x4096xf32>
    %c0_3 = arith.constant 0 : index
    %c0_4 = arith.constant 0 : index
    %5 = vector.load %arg4[%c0_3, %c0_4] : memref<128x4xf32, #tpu.memory_space<vmem>>, vector<128x4xf32>
    %c0_5 = arith.constant 0 : index
    %c0_6 = arith.constant 0 : index
    %6 = vector.load %arg5[%c0_5, %c0_6] : memref<128x1xf32, #tpu.memory_space<vmem>>, vector<128x1xf32>
    %7 = vector.shape_cast %6 : vector<128x1xf32> to vector<128x1xf32>
    %8 = vector.broadcast %7 : vector<128x1xf32> to vector<128x4096xf32>
    %9 = vector.extract_strided_slice %5 {offsets = [0, 0], sizes = [128, 1], strides = [1, 1]} : vector<128x4xf32> to vector<128x1xf32>
    %10 = vector.extract_strided_slice %4 {offsets = [0, 0], sizes = [1, 4096], strides = [1, 1]} : vector<4x4096xf32> to vector<1x4096xf32>
    %11 = vector.broadcast %9 : vector<128x1xf32> to vector<128x4096xf32>
    %12 = vector.broadcast %10 : vector<1x4096xf32> to vector<128x4096xf32>
    %13 = arith.mulf %11, %12 : vector<128x4096xf32>
    %14 = arith.addf %8, %13 : vector<128x4096xf32>
    %15 = vector.extract_strided_slice %5 {offsets = [0, 1], sizes = [128, 1], strides = [1, 1]} : vector<128x4xf32> to vector<128x1xf32>
    %16 = vector.extract_strided_slice %4 {offsets = [1, 0], sizes = [1, 4096], strides = [1, 1]} : vector<4x4096xf32> to vector<1x4096xf32>
    %17 = vector.broadcast %15 : vector<128x1xf32> to vector<128x4096xf32>
    %18 = vector.broadcast %16 : vector<1x4096xf32> to vector<128x4096xf32>
    %19 = arith.mulf %17, %18 : vector<128x4096xf32>
    %20 = arith.addf %14, %19 : vector<128x4096xf32>
    %21 = vector.extract_strided_slice %5 {offsets = [0, 2], sizes = [128, 1], strides = [1, 1]} : vector<128x4xf32> to vector<128x1xf32>
    %22 = vector.extract_strided_slice %4 {offsets = [2, 0], sizes = [1, 4096], strides = [1, 1]} : vector<4x4096xf32> to vector<1x4096xf32>
    %23 = vector.broadcast %21 : vector<128x1xf32> to vector<128x4096xf32>
    %24 = vector.broadcast %22 : vector<1x4096xf32> to vector<128x4096xf32>
    %25 = arith.mulf %23, %24 : vector<128x4096xf32>
    %26 = arith.addf %20, %25 : vector<128x4096xf32>
    %27 = vector.extract_strided_slice %5 {offsets = [0, 3], sizes = [128, 1], strides = [1, 1]} : vector<128x4xf32> to vector<128x1xf32>
    %28 = vector.extract_strided_slice %4 {offsets = [3, 0], sizes = [1, 4096], strides = [1, 1]} : vector<4x4096xf32> to vector<1x4096xf32>
    %29 = vector.broadcast %27 : vector<128x1xf32> to vector<128x4096xf32>
    %30 = vector.broadcast %28 : vector<1x4096xf32> to vector<128x4096xf32>
    %31 = arith.mulf %29, %30 : vector<128x4096xf32>
    %32 = arith.addf %26, %31 : vector<128x4096xf32>
    %cst = arith.constant 0.000000e+00 : f32
    %33 = vector.broadcast %cst : f32 to vector<128x4096xf32>
    %34 = arith.maximumf %32, %33 : vector<128x4096xf32>
    %c0_7 = arith.constant 0 : index
    %c0_8 = arith.constant 0 : index
    %35 = vector.load %arg6[%c0_7, %c0_8] : memref<128x128xbf16, #tpu.memory_space<vmem>>, vector<128x128xbf16>
    %36 = arith.truncf %34 : vector<128x4096xf32> to vector<128x4096xbf16>
    %cst_9 = arith.constant dense<0.000000e+00> : vector<128x4096xf32>
    %37 = tpu.matmul %35, %36, %cst_9 {dimension_numbers = #tpu.dot_dimension_numbers<[1], [0], [0], [1], [0, 0, 1, 1], [], []>} : vector<128x128xbf16>, vector<128x4096xbf16>, vector<128x4096xf32> -> vector<128x4096xf32>
    %c0_10 = arith.constant 0 : index
    %c0_11 = arith.constant 0 : index
    %38 = vector.load %arg9[%c0_10, %c0_11] : memref<128x128xf32, #tpu.memory_space<vmem>>, vector<128x128xf32>
    %39 = vector.extract_strided_slice %37 {offsets = [0, 0], sizes = [128, 128], strides = [1, 1]} : vector<128x4096xf32> to vector<128x128xf32>
    %40 = arith.maximumf %38, %39 : vector<128x128xf32>
    %41 = vector.extract_strided_slice %37 {offsets = [0, 128], sizes = [128, 128], strides = [1, 1]} : vector<128x4096xf32> to vector<128x128xf32>
    %42 = arith.maximumf %40, %41 : vector<128x128xf32>
    %43 = vector.extract_strided_slice %37 {offsets = [0, 256], sizes = [128, 128], strides = [1, 1]} : vector<128x4096xf32> to vector<128x128xf32>
    %44 = arith.maximumf %42, %43 : vector<128x128xf32>
    %45 = vector.extract_strided_slice %37 {offsets = [0, 384], sizes = [128, 128], strides = [1, 1]} : vector<128x4096xf32> to vector<128x128xf32>
    %46 = arith.maximumf %44, %45 : vector<128x128xf32>
    %47 = vector.extract_strided_slice %37 {offsets = [0, 512], sizes = [128, 128], strides = [1, 1]} : vector<128x4096xf32> to vector<128x128xf32>
    %48 = arith.maximumf %46, %47 : vector<128x128xf32>
    %49 = vector.extract_strided_slice %37 {offsets = [0, 640], sizes = [128, 128], strides = [1, 1]} : vector<128x4096xf32> to vector<128x128xf32>
    %50 = arith.maximumf %48, %49 : vector<128x128xf32>
    %51 = vector.extract_strided_slice %37 {offsets = [0, 768], sizes = [128, 128], strides = [1, 1]} : vector<128x4096xf32> to vector<128x128xf32>
    %52 = arith.maximumf %50, %51 : vector<128x128xf32>
    %53 = vector.extract_strided_slice %37 {offsets = [0, 896], sizes = [128, 128], strides = [1, 1]} : vector<128x4096xf32> to vector<128x128xf32>
    %54 = arith.maximumf %52, %53 : vector<128x128xf32>
    %55 = vector.extract_strided_slice %37 {offsets = [0, 1024], sizes = [128, 128], strides = [1, 1]} : vector<128x4096xf32> to vector<128x128xf32>
    %56 = arith.maximumf %54, %55 : vector<128x128xf32>
    %57 = vector.extract_strided_slice %37 {offsets = [0, 1152], sizes = [128, 128], strides = [1, 1]} : vector<128x4096xf32> to vector<128x128xf32>
    %58 = arith.maximumf %56, %57 : vector<128x128xf32>
    %59 = vector.extract_strided_slice %37 {offsets = [0, 1280], sizes = [128, 128], strides = [1, 1]} : vector<128x4096xf32> to vector<128x128xf32>
    %60 = arith.maximumf %58, %59 : vector<128x128xf32>
    %61 = vector.extract_strided_slice %37 {offsets = [0, 1408], sizes = [128, 128], strides = [1, 1]} : vector<128x4096xf32> to vector<128x128xf32>
    %62 = arith.maximumf %60, %61 : vector<128x128xf32>
    %63 = vector.extract_strided_slice %37 {offsets = [0, 1536], sizes = [128, 128], strides = [1, 1]} : vector<128x4096xf32> to vector<128x128xf32>
    %64 = arith.maximumf %62, %63 : vector<128x128xf32>
    %65 = vector.extract_strided_slice %37 {offsets = [0, 1664], sizes = [128, 128], strides = [1, 1]} : vector<128x4096xf32> to vector<128x128xf32>
    %66 = arith.maximumf %64, %65 : vector<128x128xf32>
    %67 = vector.extract_strided_slice %37 {offsets = [0, 1792], sizes = [128, 128], strides = [1, 1]} : vector<128x4096xf32> to vector<128x128xf32>
    %68 = arith.maximumf %66, %67 : vector<128x128xf32>
    %69 = vector.extract_strided_slice %37 {offsets = [0, 1920], sizes = [128, 128], strides = [1, 1]} : vector<128x4096xf32> to vector<128x128xf32>
    %70 = arith.maximumf %68, %69 : vector<128x128xf32>
    %71 = vector.extract_strided_slice %37 {offsets = [0, 2048], sizes = [128, 128], strides = [1, 1]} : vector<128x4096xf32> to vector<128x128xf32>
    %72 = arith.maximumf %70, %71 : vector<128x128xf32>
    %73 = vector.extract_strided_slice %37 {offsets = [0, 2176], sizes = [128, 128], strides = [1, 1]} : vector<128x4096xf32> to vector<128x128xf32>
    %74 = arith.maximumf %72, %73 : vector<128x128xf32>
    %75 = vector.extract_strided_slice %37 {offsets = [0, 2304], sizes = [128, 128], strides = [1, 1]} : vector<128x4096xf32> to vector<128x128xf32>
    %76 = arith.maximumf %74, %75 : vector<128x128xf32>
    %77 = vector.extract_strided_slice %37 {offsets = [0, 2432], sizes = [128, 128], strides = [1, 1]} : vector<128x4096xf32> to vector<128x128xf32>
    %78 = arith.maximumf %76, %77 : vector<128x128xf32>
    %79 = vector.extract_strided_slice %37 {offsets = [0, 2560], sizes = [128, 128], strides = [1, 1]} : vector<128x4096xf32> to vector<128x128xf32>
    %80 = arith.maximumf %78, %79 : vector<128x128xf32>
    %81 = vector.extract_strided_slice %37 {offsets = [0, 2688], sizes = [128, 128], strides = [1, 1]} : vector<128x4096xf32> to vector<128x128xf32>
    %82 = arith.maximumf %80, %81 : vector<128x128xf32>
    %83 = vector.extract_strided_slice %37 {offsets = [0, 2816], sizes = [128, 128], strides = [1, 1]} : vector<128x4096xf32> to vector<128x128xf32>
    %84 = arith.maximumf %82, %83 : vector<128x128xf32>
    %85 = vector.extract_strided_slice %37 {offsets = [0, 2944], sizes = [128, 128], strides = [1, 1]} : vector<128x4096xf32> to vector<128x128xf32>
    %86 = arith.maximumf %84, %85 : vector<128x128xf32>
    %87 = vector.extract_strided_slice %37 {offsets = [0, 3072], sizes = [128, 128], strides = [1, 1]} : vector<128x4096xf32> to vector<128x128xf32>
    %88 = arith.maximumf %86, %87 : vector<128x128xf32>
    %89 = vector.extract_strided_slice %37 {offsets = [0, 3200], sizes = [128, 128], strides = [1, 1]} : vector<128x4096xf32> to vector<128x128xf32>
    %90 = arith.maximumf %88, %89 : vector<128x128xf32>
    %91 = vector.extract_strided_slice %37 {offsets = [0, 3328], sizes = [128, 128], strides = [1, 1]} : vector<128x4096xf32> to vector<128x128xf32>
    %92 = arith.maximumf %90, %91 : vector<128x128xf32>
    %93 = vector.extract_strided_slice %37 {offsets = [0, 3456], sizes = [128, 128], strides = [1, 1]} : vector<128x4096xf32> to vector<128x128xf32>
    %94 = arith.maximumf %92, %93 : vector<128x128xf32>
    %95 = vector.extract_strided_slice %37 {offsets = [0, 3584], sizes = [128, 128], strides = [1, 1]} : vector<128x4096xf32> to vector<128x128xf32>
    %96 = arith.maximumf %94, %95 : vector<128x128xf32>
    %97 = vector.extract_strided_slice %37 {offsets = [0, 3712], sizes = [128, 128], strides = [1, 1]} : vector<128x4096xf32> to vector<128x128xf32>
    %98 = arith.maximumf %96, %97 : vector<128x128xf32>
    %99 = vector.extract_strided_slice %37 {offsets = [0, 3840], sizes = [128, 128], strides = [1, 1]} : vector<128x4096xf32> to vector<128x128xf32>
    %100 = arith.maximumf %98, %99 : vector<128x128xf32>
    %101 = vector.extract_strided_slice %37 {offsets = [0, 3968], sizes = [128, 128], strides = [1, 1]} : vector<128x4096xf32> to vector<128x128xf32>
    %102 = arith.maximumf %100, %101 : vector<128x128xf32>
    %c0_12 = arith.constant 0 : index
    %c0_13 = arith.constant 0 : index
    %103 = vector.load %arg9[%c0_12, %c0_13] : memref<128x128xf32, #tpu.memory_space<vmem>>, vector<128x128xf32>
    tpu.vector_store %arg9[%c0_12, %c0_13], %102 {strides = array<i32>} : memref<128x128xf32, #tpu.memory_space<vmem>>, vector<128x128xf32>,
    %c1_i32 = arith.constant 1 : i32
    %104 = arith.cmpi eq, %arg2, %c1_i32 : i32
    %105 = arith.extui %104 : i1 to i32
    %c0_i32_14 = arith.constant 0 : i32
    %106 = arith.cmpi ne, %105, %c0_i32_14 : i32
    scf.if %106 {
      %c0_15 = arith.constant 0 : index
      %c0_16 = arith.constant 0 : index
      %107 = vector.load %arg9[%c0_15, %c0_16] : memref<128x128xf32, #tpu.memory_space<vmem>>, vector<128x128xf32>
      %108 = tpu.transpose %107, [1, 0] : vector<128x128xf32> -> vector<128x128xf32>
      %cst_17 = arith.constant dense<0xFF800000> : vector<128xf32>
      %109 = vector.multi_reduction <maximumf>, %108, %cst_17 [0] : vector<128x128xf32> to vector<128xf32>
      %110 = vector.shape_cast %109 : vector<128xf32> to vector<1x128xf32>
      %c0_18 = arith.constant 0 : index
      %c0_19 = arith.constant 0 : index
      %111 = vector.load %arg7[%c0_18, %c0_19] : memref<1x128xf32, #tpu.memory_space<vmem>>, vector<1x128xf32>
      %112 = arith.addf %110, %111 : vector<1x128xf32>
      %c0_20 = arith.constant 0 : index
      %c0_21 = arith.constant 0 : index
      %c0_22 = arith.constant 0 : index
      %c0_23 = arith.constant 0 : index
      %113 = vector.load %arg8[%c0_20, %c0_21, %c0_22, %c0_23] : memref<1x1x1x128xf32, #tpu.memory_space<vmem>>, vector<1x1x1x128xf32>
      %114 = vector.shape_cast %113 : vector<1x1x1x128xf32> to vector<1x128xf32>
      %115 = vector.shape_cast %112 : vector<1x128xf32> to vector<1x1x1x128xf32>
      tpu.vector_store %arg8[%c0_20, %c0_21, %c0_22, %c0_23], %115 {strides = array<i32>} : memref<1x1x1x128xf32, #tpu.memory_space<vmem>>, vector<1x1x1x128xf32>,
    } else {
    }
    return
  }
  func.func @transform_0(%arg0: i32, %arg1: i32, %arg2: i32) -> (i32, i32, i32) {
    %c2_i32 = arith.constant 2 : i32
    %0 = arith.muli %arg1, %c2_i32 : i32
    %1 = arith.addi %0, %arg2 : i32
    %c0_i32 = arith.constant 0 : i32
    %c0_i32_0 = arith.constant 0 : i32
    return %arg0, %c0_i32, %1 : i32, i32, i32
  }
  func.func @transform_1(%arg0: i32, %arg1: i32, %arg2: i32) -> (i32, i32) {
    %c0_i32 = arith.constant 0 : i32
    %c0_i32_0 = arith.constant 0 : i32
    %c0_i32_1 = arith.constant 0 : i32
    return %c0_i32, %c0_i32_0 : i32, i32
  }
  func.func @transform_2(%arg0: i32, %arg1: i32, %arg2: i32) -> (i32, i32) {
    %c0_i32 = arith.constant 0 : i32
    %c0_i32_0 = arith.constant 0 : i32
    %c0_i32_1 = arith.constant 0 : i32
    return %c0_i32, %c0_i32_0 : i32, i32
  }
  func.func @transform_3(%arg0: i32, %arg1: i32, %arg2: i32) -> (i32, i32) {
    %c0_i32 = arith.constant 0 : i32
    %c0_i32_0 = arith.constant 0 : i32
    %c0_i32_1 = arith.constant 0 : i32
    return %c0_i32, %c0_i32_0 : i32, i32
  }
  func.func @transform_4(%arg0: i32, %arg1: i32, %arg2: i32) -> (i32, i32) {
    %c0_i32 = arith.constant 0 : i32
    %c0_i32_0 = arith.constant 0 : i32
    %c0_i32_1 = arith.constant 0 : i32
    return %c0_i32, %c0_i32_0 : i32, i32
  }
  func.func @transform_5(%arg0: i32, %arg1: i32, %arg2: i32) -> (i32, i32, i32, i32) {
    %c0_i32 = arith.constant 0 : i32
    %c0_i32_0 = arith.constant 0 : i32
    %c0_i32_1 = arith.constant 0 : i32
    return %arg0, %arg1, %c0_i32, %c0_i32_0 : i32, i32, i32, i32
  }
}

</mosaic_0001>

<llo_original>
// kernel: tpu_custom_call.1
$region0: #{tpu_custom_call.1}
  #allocation0 [shape = 'u32[]', space=smem, size = 0x4, offset = 0x4, fixed_abs, tag = 'smem constant byte address 0x4 - core index']
  #allocation1 [shape = 'u32[144,128]{1,0:T(1,128)}', space=vmem, size = 0x12000, scoped, tag = 'internal scratch']
  #allocation2 [shape = 'f32[128,128]{1,0:T(8,128)}', space=vmem, size = 0x10000, scoped, tag = 'scratch operand']
  %s0 = inlined_call_operand.hbm [shape: f32[2,4,8192], index: 0, kind: input, shape index: {}]
  %s1 = inlined_call_operand.vmem [shape: f32[128,4], index: 1, kind: input, shape index: {}]
  %s2 = inlined_call_operand.vmem [shape: f32[128,1], index: 2, kind: input, shape index: {}]
  %s3 = inlined_call_operand.vmem [shape: bf16[128,128], index: 3, kind: input, shape index: {}]
  %s4 = inlined_call_operand.vmem [shape: f32[1,128], index: 4, kind: input, shape index: {}]
  %s5 = inlined_call_operand.hbm [shape: f32[2,1,1,128], index: 5, kind: output, shape index: {}]
  %s6 = sld [smem:[#allocation0]]
  $region65: #{tpu_custom_call.1} parent=0
    _
  %s8 = ssub.s32 1, %s6
  %s9 = scalar_select 0, %s8, %s6
  $region1: #{tpu_custom_call.1} parent=0
    #allocation3 [shape = 'u8[131072]{0}', space=vmem, size = 0x20000, scoped, tag = 'input window, operand 0']
    #allocation4 [shape = 's32[2]{0}', space=sflag, size = 0x8, scoped, tag = 'scoped memory for tpu_custom_call.1']
    #allocation5 [shape = 's32[2]{0}', space=sflag, size = 0x8, scoped, tag = 'scoped memory for tpu_custom_call.1']
    #allocation6 [shape = 'u8[1024]{0}', space=vmem, size = 0x400, scoped, tag = 'output window, operand 0']
    %10 = vsyncpa [#allocation4], 0
    %s11 = scalar_lea.sflag [#allocation4], 1
    %12 = vsyncpa %s11, 0
    %13 = vsyncpa [#allocation5], 0
    %s14 = scalar_lea.sflag [#allocation5], 1
    %15 = vsyncpa %s14, 0
    loop: start=0, step=1, limit=6
    $region2: #{tpu_custom_call.1} parent=1 // loop_pre_header
      _
    $region3: #{tpu_custom_call.1} parent=1 // loop_header
      %s17 = sphi 0, %s21
      %p18 = scmp.ge.s32.totalorder %s17, 6
      %s24 = sphi 0, %s43
      %s25 = sphi 0, %s39
      %s26 = sphi 0, %s35
      %s27 = sphi 0, %s24
      %s28 = sphi 0, %s25
      %s29 = sphi 0, %s26
      %s30 = sphi 0, %s27
      %s31 = sphi 0, %s28
      %s32 = sphi 0, %s29
      %s52 = sphi 0, %s54
      %s55 = sphi 0, %s52
      %s56 = sphi 0, %s55
      %s72 = sphi 0, %s56
      %s76 = sphi 0, %s76
      %s78 = sphi 0, %s76
      %s79 = sphi 0, %s78
      %s93 = sphi 0, %s79
      %s97 = sphi 0, %s97
      %s99 = sphi 0, %s97
      %s100 = sphi 0, %s99
      %s114 = sphi 0, %s100
      %s118 = sphi 0, %s118
      %s120 = sphi 0, %s118
      %s121 = sphi 0, %s120
      %s135 = sphi 0, %s121
      %s139 = sphi 0, %s139
      %s141 = sphi 0, %s139
      %s142 = sphi 0, %s141
      %s156 = sphi 0, %s142
      %s164 = sphi 0, %s166
      %s167 = sphi 0, %s164
      %s168 = sphi 0, %s167
      %s184 = sphi 0, %s168
    $region4: #{tpu_custom_call.1} parent=1 // loop_header_branch
      %20 = sbr.rel (%p18) target = $region8
    $region5: #{tpu_custom_call.1} parent=1 // loop_body
      %s22 = ssub.s32 %s17, 1
      %s23 = ssub.s32 %s17, 2
      %s33 = sadd.s32 1, %s26
      %p34 = scmp.ge.s32.totalorder %s33, 2
      %s35 = scalar_select %p34, 0, %s33
      %s36 = sadd.s32 1, %s25
      %s37 = scalar_select %p34, %s36, %s25
      %p38 = scmp.ge.s32.totalorder %s37, 1
      %s39 = scalar_select %p38, 0, %s37
      %s40 = sadd.s32 1, %s24
      %s41 = scalar_select %p38, %s40, %s24
      %p42 = scmp.ge.s32.totalorder %s41, 2
      %s43 = scalar_select %p42, 0, %s41
      %s44 = smul.u32 %s25, 2
      %s45 = sadd.s32 %s44, %s26
      %s46 = smul.u32 %s39, 2
      %s47 = sadd.s32 %s46, %s35
      %s48 = ssub.s32 %s24, %s43
      %s49 = ssub.s32 %s45, %s47
      %s50 = sor.u32 %s48, %s49
      %p51 = scmp.eq.s32.totalorder %s50, 0
      %s53 = sadd.s32 %s52, 1
      %s54 = scalar_select %p51, %s52, %s53
      %p57 = pneg %p51
      %p58 = scmp.eq.s32.totalorder %s17, 3
      %p59 = por %p57, %p58
      %p60 = scmp.ne.s32.totalorder %s52, %s55
      %p61 = scmp.eq.s32.totalorder %s17, 0
      %p62 = por %p60, %p61
      %p63 = scmp.ne.s32.totalorder %s52, %s55
      %p64 = scmp.eq.s32.totalorder %s22, 3
      %p65 = por %p63, %p64
      %p66 = scmp.ne.s32.totalorder %s55, %s56
      %p67 = scmp.eq.s32.totalorder %s22, 0
      %p68 = por %p66, %p67
      %p69 = scmp.ne.s32.totalorder %s55, %s56
      %p70 = scmp.eq.s32.totalorder %s23, 3
      %p71 = por %p69, %p70
      %p73 = scmp.ne.s32.totalorder %s56, %s72
      %p74 = scmp.eq.s32.totalorder %s23, 0
      %p75 = por %p73, %p74
      %s77 = sadd.s32 %s76, 1
      %p80 = scmp.eq.s32.totalorder %s17, 3
      %p81 = scmp.ne.s32.totalorder %s76, %s78
      %p82 = scmp.eq.s32.totalorder %s17, 0
      %p83 = por %p81, %p82
      %p84 = scmp.ne.s32.totalorder %s76, %s78
      %p85 = scmp.eq.s32.totalorder %s22, 3
      %p86 = por %p84, %p85
      %p87 = scmp.ne.s32.totalorder %s78, %s79
      %p88 = scmp.eq.s32.totalorder %s22, 0
      %p89 = por %p87, %p88
      %p90 = scmp.ne.s32.totalorder %s78, %s79
      %p91 = scmp.eq.s32.totalorder %s23, 3
      %p92 = por %p90, %p91
      %p94 = scmp.ne.s32.totalorder %s79, %s93
      %p95 = scmp.eq.s32.totalorder %s23, 0
      %p96 = por %p94, %p95
      %s98 = sadd.s32 %s97, 1
      %p101 = scmp.eq.s32.totalorder %s17, 3
      %p102 = scmp.ne.s32.totalorder %s97, %s99
      %p103 = scmp.eq.s32.totalorder %s17, 0
      %p104 = por %p102, %p103
      %p105 = scmp.ne.s32.totalorder %s97, %s99
      %p106 = scmp.eq.s32.totalorder %s22, 3
      %p107 = por %p105, %p106
      %p108 = scmp.ne.s32.totalorder %s99, %s100
      %p109 = scmp.eq.s32.totalorder %s22, 0
      %p110 = por %p108, %p109
      %p111 = scmp.ne.s32.totalorder %s99, %s100
      %p112 = scmp.eq.s32.totalorder %s23, 3
      %p113 = por %p111, %p112
      %p115 = scmp.ne.s32.totalorder %s100, %s114
      %p116 = scmp.eq.s32.totalorder %s23, 0
      %p117 = por %p115, %p116
      %s119 = sadd.s32 %s118, 1
      %p122 = scmp.eq.s32.totalorder %s17, 3
      %p123 = scmp.ne.s32.totalorder %s118, %s120
      %p124 = scmp.eq.s32.totalorder %s17, 0
      %p125 = por %p123, %p124
      %p126 = scmp.ne.s32.totalorder %s118, %s120
      %p127 = scmp.eq.s32.totalorder %s22, 3
      %p128 = por %p126, %p127
      %p129 = scmp.ne.s32.totalorder %s120, %s121
      %p130 = scmp.eq.s32.totalorder %s22, 0
      %p131 = por %p129, %p130
      %p132 = scmp.ne.s32.totalorder %s120, %s121
      %p133 = scmp.eq.s32.totalorder %s23, 3
      %p134 = por %p132, %p133
      %p136 = scmp.ne.s32.totalorder %s121, %s135
      %p137 = scmp.eq.s32.totalorder %s23, 0
      %p138 = por %p136, %p137
      %s140 = sadd.s32 %s139, 1
      %p143 = scmp.eq.s32.totalorder %s17, 3
      %p144 = scmp.ne.s32.totalorder %s139, %s141
      %p145 = scmp.eq.s32.totalorder %s17, 0
      %p146 = por %p144, %p145
      %p147 = scmp.ne.s32.totalorder %s139, %s141
      %p148 = scmp.eq.s32.totalorder %s22, 3
      %p149 = por %p147, %p148
      %p150 = scmp.ne.s32.totalorder %s141, %s142
      %p151 = scmp.eq.s32.totalorder %s22, 0
      %p152 = por %p150, %p151
      %p153 = scmp.ne.s32.totalorder %s141, %s142
      %p154 = scmp.eq.s32.totalorder %s23, 3
      %p155 = por %p153, %p154
      %p157 = scmp.ne.s32.totalorder %s142, %s156
      %p158 = scmp.eq.s32.totalorder %s23, 0
      %p159 = por %p157, %p158
      %s160 = ssub.s32 %s24, %s43
      %s161 = ssub.s32 %s25, %s39
      %s162 = sor.u32 %s160, %s161
      %p163 = scmp.eq.s32.totalorder %s162, 0
      %s165 = sadd.s32 %s164, 1
      %s166 = scalar_select %p163, %s164, %s165
      %p169 = pneg %p163
      %p170 = scmp.eq.s32.totalorder %s17, 3
      %p171 = por %p169, %p170
      %p172 = scmp.ne.s32.totalorder %s164, %s167
      %p173 = scmp.eq.s32.totalorder %s17, 0
      %p174 = por %p172, %p173
      %p175 = scmp.ne.s32.totalorder %s164, %s167
      %p176 = scmp.eq.s32.totalorder %s22, 3
      %p177 = por %p175, %p176
      %p178 = scmp.ne.s32.totalorder %s167, %s168
      %p179 = scmp.eq.s32.totalorder %s22, 0
      %p180 = por %p178, %p179
      %p181 = scmp.ne.s32.totalorder %s167, %s168
      %p182 = scmp.eq.s32.totalorder %s23, 3
      %p183 = por %p181, %p182
      %p185 = scmp.ne.s32.totalorder %s168, %s184
      %p186 = scmp.eq.s32.totalorder %s23, 0
      %p187 = por %p185, %p186
      %p188 = scmp.le.s32.totalorder 1, %s17
      %p189 = scmp.lt.s32.totalorder %s17, 5
      %p190 = pnand %p188, %p189
      %p191 = pneg %p190
      // Predicated region
      $region9: #{tpu_custom_call.1} parent=5 // pred_check
        _
      $region10: #{tpu_custom_call.1} parent=5 // pred_check_branch
        %193 = sbr.rel (%p190) target = $region12
      $region11: #{tpu_custom_call.1} parent=5 // pred_region
        %s194 = ssub.s32 %s17, 1
        // Predicated region
        $region13: #{tpu_custom_call.1} parent=11 // pred_check
          %p195 = pneg %p89
        $region14: #{tpu_custom_call.1} parent=11 // pred_check_branch
          %197 = sbr.rel (%p195) target = $region16
        $region15: #{tpu_custom_call.1} parent=11 // pred_region
          _
        $region16: #{tpu_custom_call.1} parent=11 // pred_fallthru
          _
        // Predicated region
        $region17: #{tpu_custom_call.1} parent=11 // pred_check
          %p198 = pneg %p110
        $region18: #{tpu_custom_call.1} parent=11 // pred_check_branch
          %200 = sbr.rel (%p198) target = $region20
        $region19: #{tpu_custom_call.1} parent=11 // pred_region
          _
        $region20: #{tpu_custom_call.1} parent=11 // pred_fallthru
          _
        // Predicated region
        $region21: #{tpu_custom_call.1} parent=11 // pred_check
          %p201 = pneg %p131
        $region22: #{tpu_custom_call.1} parent=11 // pred_check_branch
          %203 = sbr.rel (%p201) target = $region24
        $region23: #{tpu_custom_call.1} parent=11 // pred_region
          _
        $region24: #{tpu_custom_call.1} parent=11 // pred_fallthru
          _
        // Predicated region
        $region25: #{tpu_custom_call.1} parent=11 // pred_check
          %p204 = pneg %p152
        $region26: #{tpu_custom_call.1} parent=11 // pred_check_branch
          %206 = sbr.rel (%p204) target = $region28
        $region27: #{tpu_custom_call.1} parent=11 // pred_region
          _
        $region28: #{tpu_custom_call.1} parent=11 // pred_fallthru
          _
      $region12: #{tpu_custom_call.1} parent=5 // pred_fallthru
        _
      %p207 = scmp.lt.s32.totalorder %s17, 4
      // Predicated region
      $region29: #{tpu_custom_call.1} parent=5 // pred_check
        %p208 = pneg %p207
      $region30: #{tpu_custom_call.1} parent=5 // pred_check_branch
        %210 = sbr.rel (%p208) target = $region32
      $region31: #{tpu_custom_call.1} parent=5 // pred_region
        // Predicated region
        $region33: #{tpu_custom_call.1} parent=31 // pred_check
          %p211 = pneg %p62
        $region34: #{tpu_custom_call.1} parent=31 // pred_check_branch
          %213 = sbr.rel (%p211) target = $region36
        $region35: #{tpu_custom_call.1} parent=31 // pred_region
          %s214 = sand.u32 %s52, 1
          %s215 = scalar_lea.sflag [#allocation4], %s214
          %s216 = sand.u32 %s52, 1
          %s217 = smul.addr %s216, 128
          %s218 = scalar_lea.vmem [#allocation3], %s217
          %s219 = smul.u32 %s25, 2
          %s220 = sadd.s32 %s219, %s26
          %s221 = smul.u32 32, %s220
          %s223 = ssub.s32 2048, 2048
          %224 = vsyncadd %s215, %s223
          %s225 = smul.addr %s24, 64
          %s226 = sadd.s32 %s221, %s225
          %s227 = smul.addr %s226, 64
          %s228 = scalar_lea.hbm %s0, %s227
          %s230 = sshll.u32 %s218, 4
          %s231 = int_to_ptr.vmem [resolvable:$true] %s230
          %233 = dma.hbm_to_vmem [thread:$0]  %s228, 2048, %s231, %s215
        $region36: #{tpu_custom_call.1} parent=31 // pred_fallthru
          _
      $region32: #{tpu_custom_call.1} parent=5 // pred_fallthru
        _
      %p234 = scmp.le.s32.totalorder 1, %s17
      %p235 = scmp.lt.s32.totalorder %s17, 5
      %p236 = pnand %p234, %p235
      %p237 = pneg %p236
      // Predicated region
      $region37: #{tpu_custom_call.1} parent=5 // pred_check
        _
      $region38: #{tpu_custom_call.1} parent=5 // pred_check_branch
        %239 = sbr.rel (%p236) target = $region40
      $region39: #{tpu_custom_call.1} parent=5 // pred_region
        %s240 = ssub.s32 %s17, 1
        %s241 = sand.u32 %s55, 1
        %s242 = scalar_lea.sflag [#allocation4], %s241
        %s243 = sand.u32 %s55, 1
        %s244 = smul.addr %s243, 128
        %s245 = scalar_lea.vmem [#allocation3], %s244
        // Predicated region
        $region41: #{tpu_custom_call.1} parent=39 // pred_check
          %p246 = pneg %p68
        $region42: #{tpu_custom_call.1} parent=39 // pred_check_branch
          %248 = sbr.rel (%p246) target = $region44
        $region43: #{tpu_custom_call.1} parent=39 // pred_region
          %249 = dma.done %s242, 2048
        $region44: #{tpu_custom_call.1} parent=39 // pred_fallthru
          _
        %s250 = sand.u32 %s55, 1
        %s251 = scalar_lea.sflag [#allocation4], %s250
        %s252 = sand.u32 %s55, 1
        %s253 = smul.addr %s252, 128
        %s254 = scalar_lea.vmem [#allocation3], %s253
        %p255 = pneg %p68
        %p256 = pneg %p65
        %p257 = pneg %p89
        %p258 = pneg %p86
        %p259 = pneg %p110
        %p260 = pneg %p107
        %p261 = pneg %p131
        %p262 = pneg %p128
        %p263 = pneg %p152
        %p264 = pneg %p149
        %p265 = pneg %p180
        %p266 = pneg %p177
        %s267 = sand.u32 %s167, 1
        %s268 = scalar_lea.sflag [#allocation5], %s267
        %s269 = sand.u32 %s167, 1
        %s270 = scalar_lea.vmem [#allocation6], %s269
        %s271 = smul.u32 %s28, 2
        %s272 = sadd.s32 %s271, %s29
        %s273 = smul.u32 32, %s272
        %p275 = scmp.eq.s32.totalorder %s29, 0
        // Predicated region
        $region45: #{tpu_custom_call.1} parent=39 // pred_check
          %p276 = pneg %p275
        $region46: #{tpu_custom_call.1} parent=39 // pred_check_branch
          %278 = sbr.rel (%p276) target = $region48
        $region47: #{tpu_custom_call.1} parent=39 // pred_region
          %279 = vst [vmem:[#allocation2] sm:$0xff] -inf
          %280 = vst [vmem:[#allocation2 + $0x8] sm:$0xff] -inf
          %281 = vst [vmem:[#allocation2 + $0x10] sm:$0xff] -inf
          %282 = vst [vmem:[#allocation2 + $0x18] sm:$0xff] -inf
          %283 = vst [vmem:[#allocation2 + $0x20] sm:$0xff] -inf
          %284 = vst [vmem:[#allocation2 + $0x28] sm:$0xff] -inf
          %285 = vst [vmem:[#allocation2 + $0x30] sm:$0xff] -inf
          %286 = vst [vmem:[#allocation2 + $0x38] sm:$0xff] -inf
          %287 = vst [vmem:[#allocation2 + $0x40] sm:$0xff] -inf
          %288 = vst [vmem:[#allocation2 + $0x48] sm:$0xff] -inf
          %289 = vst [vmem:[#allocation2 + $0x50] sm:$0xff] -inf
          %290 = vst [vmem:[#allocation2 + $0x58] sm:$0xff] -inf
          %291 = vst [vmem:[#allocation2 + $0x60] sm:$0xff] -inf
          %292 = vst [vmem:[#allocation2 + $0x68] sm:$0xff] -inf
          %293 = vst [vmem:[#allocation2 + $0x70] sm:$0xff] -inf
          %294 = vst [vmem:[#allocation2 + $0x78] sm:$0xff] -inf
        $region48: #{tpu_custom_call.1} parent=39 // pred_fallthru
          _
        %v295 = vld [vmem:[%s245] sm:$0xff]
        %v296 = vld [vmem:[%s245 + $0x8] sm:$0xff]
        %v297 = vld [vmem:[%s245 + $0x10] sm:$0xff]
        %v298 = vld [vmem:[%s245 + $0x18] sm:$0xff]
        %v299 = vld [vmem:[%s245 + $0x20] sm:$0xff]
        %v300 = vld [vmem:[%s245 + $0x28] sm:$0xff]
        %v301 = vld [vmem:[%s245 + $0x30] sm:$0xff]
        %v302 = vld [vmem:[%s245 + $0x38] sm:$0xff]
        %v303 = vld [vmem:[%s245 + $0x40] sm:$0xff]
        %v304 = vld [vmem:[%s245 + $0x48] sm:$0xff]
        %v305 = vld [vmem:[%s245 + $0x50] sm:$0xff]
        %v306 = vld [vmem:[%s245 + $0x58] sm:$0xff]
        %v307 = vld [vmem:[%s245 + $0x60] sm:$0xff]
        %v308 = vld [vmem:[%s245 + $0x68] sm:$0xff]
        %v309 = vld [vmem:[%s245 + $0x70] sm:$0xff]
        %v310 = vld [vmem:[%s245 + $0x78] sm:$0xff]
        %v311 = vld [vmem:[%s1] sm:$0xff]
        %v312 = vld [vmem:[%s1 + $0x8] sm:$0xff]
        %v313 = vld [vmem:[%s1 + $0x10] sm:$0xff]
        %v314 = vld [vmem:[%s1 + $0x18] sm:$0xff]
        %v315 = vld [vmem:[%s1 + $0x20] sm:$0xff]
        %v316 = vld [vmem:[%s1 + $0x28] sm:$0xff]
        %v317 = vld [vmem:[%s1 + $0x30] sm:$0xff]
        %v318 = vld [vmem:[%s1 + $0x38] sm:$0xff]
        %v319 = vld [vmem:[%s1 + $0x40] sm:$0xff]
        %v320 = vld [vmem:[%s1 + $0x48] sm:$0xff]
        %v321 = vld [vmem:[%s1 + $0x50] sm:$0xff]
        %v322 = vld [vmem:[%s1 + $0x58] sm:$0xff]
        %v323 = vld [vmem:[%s1 + $0x60] sm:$0xff]
        %v324 = vld [vmem:[%s1 + $0x68] sm:$0xff]
        %v325 = vld [vmem:[%s1 + $0x70] sm:$0xff]
        %v326 = vld [vmem:[%s1 + $0x78] sm:$0xff]
        %v327 = vld [vmem:[%s2] sm:$0xff]
        %v328 = vld [vmem:[%s2 + $0x8] sm:$0xff]
        %v329 = vld [vmem:[%s2 + $0x10] sm:$0xff]
        %v330 = vld [vmem:[%s2 + $0x18] sm:$0xff]
        %v331 = vld [vmem:[%s2 + $0x20] sm:$0xff]
        %v332 = vld [vmem:[%s2 + $0x28] sm:$0xff]
        %v333 = vld [vmem:[%s2 + $0x30] sm:$0xff]
        %v334 = vld [vmem:[%s2 + $0x38] sm:$0xff]
        %v335 = vld [vmem:[%s2 + $0x40] sm:$0xff]
        %v336 = vld [vmem:[%s2 + $0x48] sm:$0xff]
        %v337 = vld [vmem:[%s2 + $0x50] sm:$0xff]
        %v338 = vld [vmem:[%s2 + $0x58] sm:$0xff]
        %v339 = vld [vmem:[%s2 + $0x60] sm:$0xff]
        %v340 = vld [vmem:[%s2 + $0x68] sm:$0xff]
        %v341 = vld [vmem:[%s2 + $0x70] sm:$0xff]
        %v342 = vld [vmem:[%s2 + $0x78] sm:$0xff]
        %344 = vset.pattern.permute.xlu0 0
        %345 = vperm.xlu0 %344, %v327
        %v346 = vpop.permute.xlu0 %345
        %349 = vset.pattern.permute.xlu0 0
        %350 = vperm.xlu0 %349, %v328
        %v351 = vpop.permute.xlu0 %350
        %354 = vset.pattern.permute.xlu0 0
        %355 = vperm.xlu0 %354, %v329
        %v356 = vpop.permute.xlu0 %355
        %359 = vset.pattern.permute.xlu0 0
        %360 = vperm.xlu0 %359, %v330
        %v361 = vpop.permute.xlu0 %360
        %364 = vset.pattern.permute.xlu0 0
        %365 = vperm.xlu0 %364, %v331
        %v366 = vpop.permute.xlu0 %365
        %369 = vset.pattern.permute.xlu0 0
        %370 = vperm.xlu0 %369, %v332
        %v371 = vpop.permute.xlu0 %370
        %374 = vset.pattern.permute.xlu0 0
        %375 = vperm.xlu0 %374, %v333
        %v376 = vpop.permute.xlu0 %375
        %379 = vset.pattern.permute.xlu0 0
        %380 = vperm.xlu0 %379, %v334
        %v381 = vpop.permute.xlu0 %380
        %384 = vset.pattern.permute.xlu0 0
        %385 = vperm.xlu0 %384, %v335
        %v386 = vpop.permute.xlu0 %385
        %389 = vset.pattern.permute.xlu0 0
        %390 = vperm.xlu0 %389, %v336
        %v391 = vpop.permute.xlu0 %390
        %394 = vset.pattern.permute.xlu0 0
        %395 = vperm.xlu0 %394, %v337
        %v396 = vpop.permute.xlu0 %395
        %399 = vset.pattern.permute.xlu0 0
        %400 = vperm.xlu0 %399, %v338
        %v401 = vpop.permute.xlu0 %400
        %404 = vset.pattern.permute.xlu0 0
        %405 = vperm.xlu0 %404, %v339
        %v406 = vpop.permute.xlu0 %405
        %409 = vset.pattern.permute.xlu0 0
        %410 = vperm.xlu0 %409, %v340
        %v411 = vpop.permute.xlu0 %410
        %414 = vset.pattern.permute.xlu0 0
        %415 = vperm.xlu0 %414, %v341
        %v416 = vpop.permute.xlu0 %415
        %419 = vset.pattern.permute.xlu0 0
        %420 = vperm.xlu0 %419, %v342
        %v421 = vpop.permute.xlu0 %420
        %424 = vset.pattern.permute.xlu0 0
        %425 = vperm.xlu0 %424, %v311
        %v426 = vpop.permute.xlu0 %425
        %429 = vset.pattern.permute.xlu0 0
        %430 = vperm.xlu0 %429, %v312
        %v431 = vpop.permute.xlu0 %430
        %434 = vset.pattern.permute.xlu0 0
        %435 = vperm.xlu0 %434, %v313
        %v436 = vpop.permute.xlu0 %435
        %439 = vset.pattern.permute.xlu0 0
        %440 = vperm.xlu0 %439, %v314
        %v441 = vpop.permute.xlu0 %440
        %444 = vset.pattern.permute.xlu0 0
        %445 = vperm.xlu0 %444, %v315
        %v446 = vpop.permute.xlu0 %445
        %449 = vset.pattern.permute.xlu0 0
        %450 = vperm.xlu0 %449, %v316
        %v451 = vpop.permute.xlu0 %450
        %454 = vset.pattern.permute.xlu0 0
        %455 = vperm.xlu0 %454, %v317
        %v456 = vpop.permute.xlu0 %455
        %459 = vset.pattern.permute.xlu0 0
        %460 = vperm.xlu0 %459, %v318
        %v461 = vpop.permute.xlu0 %460
        %464 = vset.pattern.permute.xlu0 0
        %465 = vperm.xlu0 %464, %v319
        %v466 = vpop.permute.xlu0 %465
        %469 = vset.pattern.permute.xlu0 0
        %470 = vperm.xlu0 %469, %v320
        %v471 = vpop.permute.xlu0 %470
        %474 = vset.pattern.permute.xlu0 0
        %475 = vperm.xlu0 %474, %v321
        %v476 = vpop.permute.xlu0 %475
        %479 = vset.pattern.permute.xlu0 0
        %480 = vperm.xlu0 %479, %v322
        %v481 = vpop.permute.xlu0 %480
        %484 = vset.pattern.permute.xlu0 0
        %485 = vperm.xlu0 %484, %v323
        %v486 = vpop.permute.xlu0 %485
        %489 = vset.pattern.permute.xlu0 0
        %490 = vperm.xlu0 %489, %v324
        %v491 = vpop.permute.xlu0 %490
        %494 = vset.pattern.permute.xlu0 0
        %495 = vperm.xlu0 %494, %v325
        %v496 = vpop.permute.xlu0 %495
        %499 = vset.pattern.permute.xlu0 0
        %500 = vperm.xlu0 %499, %v326
        %v501 = vpop.permute.xlu0 %500
        %v519 = vlaneseq
        %v520 = vshrl.u32 %v519, 7
        %v521 = vsub.s32 0, %v520
        %v522 = vrot.slane %v295, %v521
        %v523 = vlaneseq
        %v524 = vshrl.u32 %v523, 7
        %v525 = vsub.s32 4, %v524
        %v526 = vrot.slane %v295, %v525
        %v527 = vlaneseq
        %v528 = vshrl.u32 %v527, 7
        %v529 = vsub.s32 0, %v528
        %v530 = vrot.slane %v296, %v529
        %v531 = vlaneseq
        %v532 = vshrl.u32 %v531, 7
        %v533 = vsub.s32 4, %v532
        %v534 = vrot.slane %v296, %v533
        %v535 = vlaneseq
        %v536 = vshrl.u32 %v535, 7
        %v537 = vsub.s32 0, %v536
        %v538 = vrot.slane %v297, %v537
        %v539 = vlaneseq
        %v540 = vshrl.u32 %v539, 7
        %v541 = vsub.s32 4, %v540
        %v542 = vrot.slane %v297, %v541
        %v543 = vlaneseq
        %v544 = vshrl.u32 %v543, 7
        %v545 = vsub.s32 0, %v544
        %v546 = vrot.slane %v298, %v545
        %v547 = vlaneseq
        %v548 = vshrl.u32 %v547, 7
        %v549 = vsub.s32 4, %v548
        %v550 = vrot.slane %v298, %v549
        %v551 = vlaneseq
        %v552 = vshrl.u32 %v551, 7
        %v553 = vsub.s32 0, %v552
        %v554 = vrot.slane %v299, %v553
        %v555 = vlaneseq
        %v556 = vshrl.u32 %v555, 7
        %v557 = vsub.s32 4, %v556
        %v558 = vrot.slane %v299, %v557
        %v559 = vlaneseq
        %v560 = vshrl.u32 %v559, 7
        %v561 = vsub.s32 0, %v560
        %v562 = vrot.slane %v300, %v561
        %v563 = vlaneseq
        %v564 = vshrl.u32 %v563, 7
        %v565 = vsub.s32 4, %v564
        %v566 = vrot.slane %v300, %v565
        %v567 = vlaneseq
        %v568 = vshrl.u32 %v567, 7
        %v569 = vsub.s32 0, %v568
        %v570 = vrot.slane %v301, %v569
        %v571 = vlaneseq
        %v572 = vshrl.u32 %v571, 7
        %v573 = vsub.s32 4, %v572
        %v574 = vrot.slane %v301, %v573
        %v575 = vlaneseq
        %v576 = vshrl.u32 %v575, 7
        %v577 = vsub.s32 0, %v576
        %v578 = vrot.slane %v302, %v577
        %v579 = vlaneseq
        %v580 = vshrl.u32 %v579, 7
        %v581 = vsub.s32 4, %v580
        %v582 = vrot.slane %v302, %v581
        %v583 = vlaneseq
        %v584 = vshrl.u32 %v583, 7
        %v585 = vsub.s32 0, %v584
        %v586 = vrot.slane %v303, %v585
        %v587 = vlaneseq
        %v588 = vshrl.u32 %v587, 7
        %v589 = vsub.s32 4, %v588
        %v590 = vrot.slane %v303, %v589
        %v591 = vlaneseq
        %v592 = vshrl.u32 %v591, 7
        %v593 = vsub.s32 0, %v592
        %v594 = vrot.slane %v304, %v593
        %v595 = vlaneseq
        %v596 = vshrl.u32 %v595, 7
        %v597 = vsub.s32 4, %v596
        %v598 = vrot.slane %v304, %v597
        %v599 = vlaneseq
        %v600 = vshrl.u32 %v599, 7
        %v601 = vsub.s32 0, %v600
        %v602 = vrot.slane %v305, %v601
        %v603 = vlaneseq
        %v604 = vshrl.u32 %v603, 7
        %v605 = vsub.s32 4, %v604
        %v606 = vrot.slane %v305, %v605
        %v607 = vlaneseq
        %v608 = vshrl.u32 %v607, 7
        %v609 = vsub.s32 0, %v608
        %v610 = vrot.slane %v306, %v609
        %v611 = vlaneseq
        %v612 = vshrl.u32 %v611, 7
        %v613 = vsub.s32 4, %v612
        %v614 = vrot.slane %v306, %v613
        %v615 = vlaneseq
        %v616 = vshrl.u32 %v615, 7
        %v617 = vsub.s32 0, %v616
        %v618 = vrot.slane %v307, %v617
        %v619 = vlaneseq
        %v620 = vshrl.u32 %v619, 7
        %v621 = vsub.s32 4, %v620
        %v622 = vrot.slane %v307, %v621
        %v623 = vlaneseq
        %v624 = vshrl.u32 %v623, 7
        %v625 = vsub.s32 0, %v624
        %v626 = vrot.slane %v308, %v625
        %v627 = vlaneseq
        %v628 = vshrl.u32 %v627, 7
        %v629 = vsub.s32 4, %v628
        %v630 = vrot.slane %v308, %v629
        %v631 = vlaneseq
        %v632 = vshrl.u32 %v631, 7
        %v633 = vsub.s32 0, %v632
        %v634 = vrot.slane %v309, %v633
        %v635 = vlaneseq
        %v636 = vshrl.u32 %v635, 7
        %v637 = vsub.s32 4, %v636
        %v638 = vrot.slane %v309, %v637
        %v639 = vlaneseq
        %v640 = vshrl.u32 %v639, 7
        %v641 = vsub.s32 0, %v640
        %v642 = vrot.slane %v310, %v641
        %v643 = vlaneseq
        %v644 = vshrl.u32 %v643, 7
        %v645 = vsub.s32 4, %v644
        %v646 = vrot.slane %v310, %v645
        %v679 = vlaneseq
        %v680 = vshrl.u32 %v679, 7
        %v681 = vsub.s32 0, %v680
        %v682 = vrot.slane %v522, %v681
        %v683 = vlaneseq
        %v684 = vshrl.u32 %v683, 7
        %v685 = vsub.s32 0, %v684
        %v686 = vrot.slane %v526, %v685
        %v687 = vlaneseq
        %v688 = vshrl.u32 %v687, 7
        %v689 = vsub.s32 0, %v688
        %v690 = vrot.slane %v530, %v689
        %v691 = vlaneseq
        %v692 = vshrl.u32 %v691, 7
        %v693 = vsub.s32 0, %v692
        %v694 = vrot.slane %v534, %v693
        %v695 = vlaneseq
        %v696 = vshrl.u32 %v695, 7
        %v697 = vsub.s32 0, %v696
        %v698 = vrot.slane %v538, %v697
        %v699 = vlaneseq
        %v700 = vshrl.u32 %v699, 7
        %v701 = vsub.s32 0, %v700
        %v702 = vrot.slane %v542, %v701
        %v703 = vlaneseq
        %v704 = vshrl.u32 %v703, 7
        %v705 = vsub.s32 0, %v704
        %v706 = vrot.slane %v546, %v705
        %v707 = vlaneseq
        %v708 = vshrl.u32 %v707, 7
        %v709 = vsub.s32 0, %v708
        %v710 = vrot.slane %v550, %v709
        %v711 = vlaneseq
        %v712 = vshrl.u32 %v711, 7
        %v713 = vsub.s32 0, %v712
        %v714 = vrot.slane %v554, %v713
        %v715 = vlaneseq
        %v716 = vshrl.u32 %v715, 7
        %v717 = vsub.s32 0, %v716
        %v718 = vrot.slane %v558, %v717
        %v719 = vlaneseq
        %v720 = vshrl.u32 %v719, 7
        %v721 = vsub.s32 0, %v720
        %v722 = vrot.slane %v562, %v721
        %v723 = vlaneseq
        %v724 = vshrl.u32 %v723, 7
        %v725 = vsub.s32 0, %v724
        %v726 = vrot.slane %v566, %v725
        %v727 = vlaneseq
        %v728 = vshrl.u32 %v727, 7
        %v729 = vsub.s32 0, %v728
        %v730 = vrot.slane %v570, %v729
        %v731 = vlaneseq
        %v732 = vshrl.u32 %v731, 7
        %v733 = vsub.s32 0, %v732
        %v734 = vrot.slane %v574, %v733
        %v735 = vlaneseq
        %v736 = vshrl.u32 %v735, 7
        %v737 = vsub.s32 0, %v736
        %v738 = vrot.slane %v578, %v737
        %v739 = vlaneseq
        %v740 = vshrl.u32 %v739, 7
        %v741 = vsub.s32 0, %v740
        %v742 = vrot.slane %v582, %v741
        %v743 = vlaneseq
        %v744 = vshrl.u32 %v743, 7
        %v745 = vsub.s32 0, %v744
        %v746 = vrot.slane %v586, %v745
        %v747 = vlaneseq
        %v748 = vshrl.u32 %v747, 7
        %v749 = vsub.s32 0, %v748
        %v750 = vrot.slane %v590, %v749
        %v751 = vlaneseq
        %v752 = vshrl.u32 %v751, 7
        %v753 = vsub.s32 0, %v752
        %v754 = vrot.slane %v594, %v753
        %v755 = vlaneseq
        %v756 = vshrl.u32 %v755, 7
        %v757 = vsub.s32 0, %v756
        %v758 = vrot.slane %v598, %v757
        %v759 = vlaneseq
        %v760 = vshrl.u32 %v759, 7
        %v761 = vsub.s32 0, %v760
        %v762 = vrot.slane %v602, %v761
        %v763 = vlaneseq
        %v764 = vshrl.u32 %v763, 7
        %v765 = vsub.s32 0, %v764
        %v766 = vrot.slane %v606, %v765
        %v767 = vlaneseq
        %v768 = vshrl.u32 %v767, 7
        %v769 = vsub.s32 0, %v768
        %v770 = vrot.slane %v610, %v769
        %v771 = vlaneseq
        %v772 = vshrl.u32 %v771, 7
        %v773 = vsub.s32 0, %v772
        %v774 = vrot.slane %v614, %v773
        %v775 = vlaneseq
        %v776 = vshrl.u32 %v775, 7
        %v777 = vsub.s32 0, %v776
        %v778 = vrot.slane %v618, %v777
        %v779 = vlaneseq
        %v780 = vshrl.u32 %v779, 7
        %v781 = vsub.s32 0, %v780
        %v782 = vrot.slane %v622, %v781
        %v783 = vlaneseq
        %v784 = vshrl.u32 %v783, 7
        %v785 = vsub.s32 0, %v784
        %v786 = vrot.slane %v626, %v785
        %v787 = vlaneseq
        %v788 = vshrl.u32 %v787, 7
        %v789 = vsub.s32 0, %v788
        %v790 = vrot.slane %v630, %v789
        %v791 = vlaneseq
        %v792 = vshrl.u32 %v791, 7
        %v793 = vsub.s32 0, %v792
        %v794 = vrot.slane %v634, %v793
        %v795 = vlaneseq
        %v796 = vshrl.u32 %v795, 7
        %v797 = vsub.s32 0, %v796
        %v798 = vrot.slane %v638, %v797
        %v799 = vlaneseq
        %v800 = vshrl.u32 %v799, 7
        %v801 = vsub.s32 0, %v800
        %v802 = vrot.slane %v642, %v801
        %v803 = vlaneseq
        %v804 = vshrl.u32 %v803, 7
        %v805 = vsub.s32 0, %v804
        %v806 = vrot.slane %v646, %v805
        %v807 = vmul.f32 %v426, %v682
        %v808 = vmul.f32 %v426, %v686
        %v809 = vmul.f32 %v426, %v690
        %v810 = vmul.f32 %v426, %v694
        %v811 = vmul.f32 %v426, %v698
        %v812 = vmul.f32 %v426, %v702
        %v813 = vmul.f32 %v426, %v706
        %v814 = vmul.f32 %v426, %v710
        %v815 = vmul.f32 %v426, %v714
        %v816 = vmul.f32 %v426, %v718
        %v817 = vmul.f32 %v426, %v722
        %v818 = vmul.f32 %v426, %v726
        %v819 = vmul.f32 %v426, %v730
        %v820 = vmul.f32 %v426, %v734
        %v821 = vmul.f32 %v426, %v738
        %v822 = vmul.f32 %v426, %v742
        %v823 = vmul.f32 %v426, %v746
        %v824 = vmul.f32 %v426, %v750
        %v825 = vmul.f32 %v426, %v754
        %v826 = vmul.f32 %v426, %v758
        %v827 = vmul.f32 %v426, %v762
        %v828 = vmul.f32 %v426, %v766
        %v829 = vmul.f32 %v426, %v770
        %v830 = vmul.f32 %v426, %v774
        %v831 = vmul.f32 %v426, %v778
        %v832 = vmul.f32 %v426, %v782
        %v833 = vmul.f32 %v426, %v786
        %v834 = vmul.f32 %v426, %v790
        %v835 = vmul.f32 %v426, %v794
        %v836 = vmul.f32 %v426, %v798
        %v837 = vmul.f32 %v426, %v802
        %v838 = vmul.f32 %v426, %v806
        %v839 = vmul.f32 %v431, %v682
        %v840 = vmul.f32 %v431, %v686
        %v841 = vmul.f32 %v431, %v690
        %v842 = vmul.f32 %v431, %v694
        %v843 = vmul.f32 %v431, %v698
        %v844 = vmul.f32 %v431, %v702
        %v845 = vmul.f32 %v431, %v706
        %v846 = vmul.f32 %v431, %v710
        %v847 = vmul.f32 %v431, %v714
        %v848 = vmul.f32 %v431, %v718
        %v849 = vmul.f32 %v431, %v722
        %v850 = vmul.f32 %v431, %v726
        %v851 = vmul.f32 %v431, %v730
        %v852 = vmul.f32 %v431, %v734
        %v853 = vmul.f32 %v431, %v738
        %v854 = vmul.f32 %v431, %v742
        %v855 = vmul.f32 %v431, %v746
        %v856 = vmul.f32 %v431, %v750
        %v857 = vmul.f32 %v431, %v754
        %v858 = vmul.f32 %v431, %v758
        %v859 = vmul.f32 %v431, %v762
        %v860 = vmul.f32 %v431, %v766
        %v861 = vmul.f32 %v431, %v770
        %v862 = vmul.f32 %v431, %v774
        %v863 = vmul.f32 %v431, %v778
        %v864 = vmul.f32 %v431, %v782
        %v865 = vmul.f32 %v431, %v786
        %v866 = vmul.f32 %v431, %v790
        %v867 = vmul.f32 %v431, %v794
        %v868 = vmul.f32 %v431, %v798
        %v869 = vmul.f32 %v431, %v802
        %v870 = vmul.f32 %v431, %v806
        %v871 = vmul.f32 %v436, %v682
        %v872 = vmul.f32 %v436, %v686
        %v873 = vmul.f32 %v436, %v690
        %v874 = vmul.f32 %v436, %v694
        %v875 = vmul.f32 %v436, %v698
        %v876 = vmul.f32 %v436, %v702
        %v877 = vmul.f32 %v436, %v706
        %v878 = vmul.f32 %v436, %v710
        %v879 = vmul.f32 %v436, %v714
        %v880 = vmul.f32 %v436, %v718
        %v881 = vmul.f32 %v436, %v722
        %v882 = vmul.f32 %v436, %v726
        %v883 = vmul.f32 %v436, %v730
        %v884 = vmul.f32 %v436, %v734
        %v885 = vmul.f32 %v436, %v738
        %v886 = vmul.f32 %v436, %v742
        %v887 = vmul.f32 %v436, %v746
        %v888 = vmul.f32 %v436, %v750
        %v889 = vmul.f32 %v436, %v754
        %v890 = vmul.f32 %v436, %v758
        %v891 = vmul.f32 %v436, %v762
        %v892 = vmul.f32 %v436, %v766
        %v893 = vmul.f32 %v436, %v770
        %v894 = vmul.f32 %v436, %v774
        %v895 = vmul.f32 %v436, %v778
        %v896 = vmul.f32 %v436, %v782
        %v897 = vmul.f32 %v436, %v786
        %v898 = vmul.f32 %v436, %v790
        %v899 = vmul.f32 %v436, %v794
        %v900 = vmul.f32 %v436, %v798
        %v901 = vmul.f32 %v436, %v802
        %v902 = vmul.f32 %v436, %v806
        %v903 = vmul.f32 %v441, %v682
        %v904 = vmul.f32 %v441, %v686
        %v905 = vmul.f32 %v441, %v690
        %v906 = vmul.f32 %v441, %v694
        %v907 = vmul.f32 %v441, %v698
        %v908 = vmul.f32 %v441, %v702
        %v909 = vmul.f32 %v441, %v706
        %v910 = vmul.f32 %v441, %v710
        %v911 = vmul.f32 %v441, %v714
        %v912 = vmul.f32 %v441, %v718
        %v913 = vmul.f32 %v441, %v722
        %v914 = vmul.f32 %v441, %v726
        %v915 = vmul.f32 %v441, %v730
        %v916 = vmul.f32 %v441, %v734
        %v917 = vmul.f32 %v441, %v738
        %v918 = vmul.f32 %v441, %v742
        %v919 = vmul.f32 %v441, %v746
        %v920 = vmul.f32 %v441, %v750
        %v921 = vmul.f32 %v441, %v754
        %v922 = vmul.f32 %v441, %v758
        %v923 = vmul.f32 %v441, %v762
        %v924 = vmul.f32 %v441, %v766
        %v925 = vmul.f32 %v441, %v770
        %v926 = vmul.f32 %v441, %v774
        %v927 = vmul.f32 %v441, %v778
        %v928 = vmul.f32 %v441, %v782
        %v929 = vmul.f32 %v441, %v786
        %v930 = vmul.f32 %v441, %v790
        %v931 = vmul.f32 %v441, %v794
        %v932 = vmul.f32 %v441, %v798
        %v933 = vmul.f32 %v441, %v802
        %v934 = vmul.f32 %v441, %v806
        %v935 = vmul.f32 %v446, %v682
        %v936 = vmul.f32 %v446, %v686
        %v937 = vmul.f32 %v446, %v690
        %v938 = vmul.f32 %v446, %v694
        %v939 = vmul.f32 %v446, %v698
        %v940 = vmul.f32 %v446, %v702
        %v941 = vmul.f32 %v446, %v706
        %v942 = vmul.f32 %v446, %v710
        %v943 = vmul.f32 %v446, %v714
        %v944 = vmul.f32 %v446, %v718
        %v945 = vmul.f32 %v446, %v722
        %v946 = vmul.f32 %v446, %v726
        %v947 = vmul.f32 %v446, %v730
        %v948 = vmul.f32 %v446, %v734
        %v949 = vmul.f32 %v446, %v738
        %v950 = vmul.f32 %v446, %v742
        %v951 = vmul.f32 %v446, %v746
        %v952 = vmul.f32 %v446, %v750
        %v953 = vmul.f32 %v446, %v754
        %v954 = vmul.f32 %v446, %v758
        %v955 = vmul.f32 %v446, %v762
        %v956 = vmul.f32 %v446, %v766
        %v957 = vmul.f32 %v446, %v770
        %v958 = vmul.f32 %v446, %v774
        %v959 = vmul.f32 %v446, %v778
        %v960 = vmul.f32 %v446, %v782
        %v961 = vmul.f32 %v446, %v786
        %v962 = vmul.f32 %v446, %v790
        %v963 = vmul.f32 %v446, %v794
        %v964 = vmul.f32 %v446, %v798
        %v965 = vmul.f32 %v446, %v802
        %v966 = vmul.f32 %v446, %v806
        %v967 = vmul.f32 %v451, %v682
        %v968 = vmul.f32 %v451, %v686
        %v969 = vmul.f32 %v451, %v690
        %v970 = vmul.f32 %v451, %v694
        %v971 = vmul.f32 %v451, %v698
        %v972 = vmul.f32 %v451, %v702
        %v973 = vmul.f32 %v451, %v706
        %v974 = vmul.f32 %v451, %v710
        %v975 = vmul.f32 %v451, %v714
        %v976 = vmul.f32 %v451, %v718
        %v977 = vmul.f32 %v451, %v722
        %v978 = vmul.f32 %v451, %v726
        %v979 = vmul.f32 %v451, %v730
        %v980 = vmul.f32 %v451, %v734
        %v981 = vmul.f32 %v451, %v738
        %v982 = vmul.f32 %v451, %v742
        %v983 = vmul.f32 %v451, %v746
        %v984 = vmul.f32 %v451, %v750
        %v985 = vmul.f32 %v451, %v754
        %v986 = vmul.f32 %v451, %v758
        %v987 = vmul.f32 %v451, %v762
        %v988 = vmul.f32 %v451, %v766
        %v989 = vmul.f32 %v451, %v770
        %v990 = vmul.f32 %v451, %v774
        %v991 = vmul.f32 %v451, %v778
        %v992 = vmul.f32 %v451, %v782
        %v993 = vmul.f32 %v451, %v786
        %v994 = vmul.f32 %v451, %v790
        %v995 = vmul.f32 %v451, %v794
        %v996 = vmul.f32 %v451, %v798
        %v997 = vmul.f32 %v451, %v802
        %v998 = vmul.f32 %v451, %v806
        %v999 = vmul.f32 %v456, %v682
        %v1000 = vmul.f32 %v456, %v686
        %v1001 = vmul.f32 %v456, %v690
        %v1002 = vmul.f32 %v456, %v694
        %v1003 = vmul.f32 %v456, %v698
        %v1004 = vmul.f32 %v456, %v702
        %v1005 = vmul.f32 %v456, %v706
        %v1006 = vmul.f32 %v456, %v710
        %v1007 = vmul.f32 %v456, %v714
        %v1008 = vmul.f32 %v456, %v718
        %v1009 = vmul.f32 %v456, %v722
        %v1010 = vmul.f32 %v456, %v726
        %v1011 = vmul.f32 %v456, %v730
        %v1012 = vmul.f32 %v456, %v734
        %v1013 = vmul.f32 %v456, %v738
        %v1014 = vmul.f32 %v456, %v742
        %v1015 = vmul.f32 %v456, %v746
        %v1016 = vmul.f32 %v456, %v750
        %v1017 = vmul.f32 %v456, %v754
        %v1018 = vmul.f32 %v456, %v758
        %v1019 = vmul.f32 %v456, %v762
        %v1020 = vmul.f32 %v456, %v766
        %v1021 = vmul.f32 %v456, %v770
        %v1022 = vmul.f32 %v456, %v774
        %v1023 = vmul.f32 %v456, %v778
        %v1024 = vmul.f32 %v456, %v782
        %v1025 = vmul.f32 %v456, %v786
        %v1026 = vmul.f32 %v456, %v790
        %v1027 = vmul.f32 %v456, %v794
        %v1028 = vmul.f32 %v456, %v798
        %v1029 = vmul.f32 %v456, %v802
        %v1030 = vmul.f32 %v456, %v806
        %v1031 = vmul.f32 %v461, %v682
        %v1032 = vmul.f32 %v461, %v686
        %v1033 = vmul.f32 %v461, %v690
        %v1034 = vmul.f32 %v461, %v694
        %v1035 = vmul.f32 %v461, %v698
        %v1036 = vmul.f32 %v461, %v702
        %v1037 = vmul.f32 %v461, %v706
        %v1038 = vmul.f32 %v461, %v710
        %v1039 = vmul.f32 %v461, %v714
        %v1040 = vmul.f32 %v461, %v718
        %v1041 = vmul.f32 %v461, %v722
        %v1042 = vmul.f32 %v461, %v726
        %v1043 = vmul.f32 %v461, %v730
        %v1044 = vmul.f32 %v461, %v734
        %v1045 = vmul.f32 %v461, %v738
        %v1046 = vmul.f32 %v461, %v742
        %v1047 = vmul.f32 %v461, %v746
        %v1048 = vmul.f32 %v461, %v750
        %v1049 = vmul.f32 %v461, %v754
        %v1050 = vmul.f32 %v461, %v758
        %v1051 = vmul.f32 %v461, %v762
        %v1052 = vmul.f32 %v461, %v766
        %v1053 = vmul.f32 %v461, %v770
        %v1054 = vmul.f32 %v461, %v774
        %v1055 = vmul.f32 %v461, %v778
        %v1056 = vmul.f32 %v461, %v782
        %v1057 = vmul.f32 %v461, %v786
        %v1058 = vmul.f32 %v461, %v790
        %v1059 = vmul.f32 %v461, %v794
        %v1060 = vmul.f32 %v461, %v798
        %v1061 = vmul.f32 %v461, %v802
        %v1062 = vmul.f32 %v461, %v806
        %v1063 = vmul.f32 %v466, %v682
        %v1064 = vmul.f32 %v466, %v686
        %v1065 = vmul.f32 %v466, %v690
        %v1066 = vmul.f32 %v466, %v694
        %v1067 = vmul.f32 %v466, %v698
        %v1068 = vmul.f32 %v466, %v702
        %v1069 = vmul.f32 %v466, %v706
        %v1070 = vmul.f32 %v466, %v710
        %v1071 = vmul.f32 %v466, %v714
        %v1072 = vmul.f32 %v466, %v718
        %v1073 = vmul.f32 %v466, %v722
        %v1074 = vmul.f32 %v466, %v726
        %v1075 = vmul.f32 %v466, %v730
        %v1076 = vmul.f32 %v466, %v734
        %v1077 = vmul.f32 %v466, %v738
        %v1078 = vmul.f32 %v466, %v742
        %v1079 = vmul.f32 %v466, %v746
        %v1080 = vmul.f32 %v466, %v750
        %v1081 = vmul.f32 %v466, %v754
        %v1082 = vmul.f32 %v466, %v758
        %v1083 = vmul.f32 %v466, %v762
        %v1084 = vmul.f32 %v466, %v766
        %v1085 = vmul.f32 %v466, %v770
        %v1086 = vmul.f32 %v466, %v774
        %v1087 = vmul.f32 %v466, %v778
        %v1088 = vmul.f32 %v466, %v782
        %v1089 = vmul.f32 %v466, %v786
        %v1090 = vmul.f32 %v466, %v790
        %v1091 = vmul.f32 %v466, %v794
        %v1092 = vmul.f32 %v466, %v798
        %v1093 = vmul.f32 %v466, %v802
        %v1094 = vmul.f32 %v466, %v806
        %v1095 = vmul.f32 %v471, %v682
        %v1096 = vmul.f32 %v471, %v686
        %v1097 = vmul.f32 %v471, %v690
        %v1098 = vmul.f32 %v471, %v694
        %v1099 = vmul.f32 %v471, %v698
        %v1100 = vmul.f32 %v471, %v702
        %v1101 = vmul.f32 %v471, %v706
        %v1102 = vmul.f32 %v471, %v710
        %v1103 = vmul.f32 %v471, %v714
        %v1104 = vmul.f32 %v471, %v718
        %v1105 = vmul.f32 %v471, %v722
        %v1106 = vmul.f32 %v471, %v726
        %v1107 = vmul.f32 %v471, %v730
        %v1108 = vmul.f32 %v471, %v734
        %v1109 = vmul.f32 %v471, %v738
        %v1110 = vmul.f32 %v471, %v742
        %v1111 = vmul.f32 %v471, %v746
        %v1112 = vmul.f32 %v471, %v750
        %v1113 = vmul.f32 %v471, %v754
        %v1114 = vmul.f32 %v471, %v758
        %v1115 = vmul.f32 %v471, %v762
        %v1116 = vmul.f32 %v471, %v766
        %v1117 = vmul.f32 %v471, %v770
        %v1118 = vmul.f32 %v471, %v774
        %v1119 = vmul.f32 %v471, %v778
        %v1120 = vmul.f32 %v471, %v782
        %v1121 = vmul.f32 %v471, %v786
        %v1122 = vmul.f32 %v471, %v790
        %v1123 = vmul.f32 %v471, %v794
        %v1124 = vmul.f32 %v471, %v798
        %v1125 = vmul.f32 %v471, %v802
        %v1126 = vmul.f32 %v471, %v806
        %v1127 = vmul.f32 %v476, %v682
        %v1128 = vmul.f32 %v476, %v686
        %v1129 = vmul.f32 %v476, %v690
        %v1130 = vmul.f32 %v476, %v694
        %v1131 = vmul.f32 %v476, %v698
        %v1132 = vmul.f32 %v476, %v702
        %v1133 = vmul.f32 %v476, %v706
        %v1134 = vmul.f32 %v476, %v710
        %v1135 = vmul.f32 %v476, %v714
        %v1136 = vmul.f32 %v476, %v718
        %v1137 = vmul.f32 %v476, %v722
        %v1138 = vmul.f32 %v476, %v726
        %v1139 = vmul.f32 %v476, %v730
        %v1140 = vmul.f32 %v476, %v734
        %v1141 = vmul.f32 %v476, %v738
        %v1142 = vmul.f32 %v476, %v742
        %v1143 = vmul.f32 %v476, %v746
        %v1144 = vmul.f32 %v476, %v750
        %v1145 = vmul.f32 %v476, %v754
        %v1146 = vmul.f32 %v476, %v758
        %v1147 = vmul.f32 %v476, %v762
        %v1148 = vmul.f32 %v476, %v766
        %v1149 = vmul.f32 %v476, %v770
        %v1150 = vmul.f32 %v476, %v774
        %v1151 = vmul.f32 %v476, %v778
        %v1152 = vmul.f32 %v476, %v782
        %v1153 = vmul.f32 %v476, %v786
        %v1154 = vmul.f32 %v476, %v790
        %v1155 = vmul.f32 %v476, %v794
        %v1156 = vmul.f32 %v476, %v798
        %v1157 = vmul.f32 %v476, %v802
        %v1158 = vmul.f32 %v476, %v806
        %v1159 = vmul.f32 %v481, %v682
        %v1160 = vmul.f32 %v481, %v686
        %v1161 = vmul.f32 %v481, %v690
        %v1162 = vmul.f32 %v481, %v694
        %v1163 = vmul.f32 %v481, %v698
        %v1164 = vmul.f32 %v481, %v702
        %v1165 = vmul.f32 %v481, %v706
        %v1166 = vmul.f32 %v481, %v710
        %v1167 = vmul.f32 %v481, %v714
        %v1168 = vmul.f32 %v481, %v718
        %v1169 = vmul.f32 %v481, %v722
        %v1170 = vmul.f32 %v481, %v726
        %v1171 = vmul.f32 %v481, %v730
        %v1172 = vmul.f32 %v481, %v734
        %v1173 = vmul.f32 %v481, %v738
        %v1174 = vmul.f32 %v481, %v742
        %v1175 = vmul.f32 %v481, %v746
        %v1176 = vmul.f32 %v481, %v750
        %v1177 = vmul.f32 %v481, %v754
        %v1178 = vmul.f32 %v481, %v758
        %v1179 = vmul.f32 %v481, %v762
        %v1180 = vmul.f32 %v481, %v766
        %v1181 = vmul.f32 %v481, %v770
        %v1182 = vmul.f32 %v481, %v774
        %v1183 = vmul.f32 %v481, %v778
        %v1184 = vmul.f32 %v481, %v782
        %v1185 = vmul.f32 %v481, %v786
        %v1186 = vmul.f32 %v481, %v790
        %v1187 = vmul.f32 %v481, %v794
        %v1188 = vmul.f32 %v481, %v798
        %v1189 = vmul.f32 %v481, %v802
        %v1190 = vmul.f32 %v481, %v806
        %v1191 = vmul.f32 %v486, %v682
        %v1192 = vmul.f32 %v486, %v686
        %v1193 = vmul.f32 %v486, %v690
        %v1194 = vmul.f32 %v486, %v694
        %v1195 = vmul.f32 %v486, %v698
        %v1196 = vmul.f32 %v486, %v702
        %v1197 = vmul.f32 %v486, %v706
        %v1198 = vmul.f32 %v486, %v710
        %v1199 = vmul.f32 %v486, %v714
        %v1200 = vmul.f32 %v486, %v718
        %v1201 = vmul.f32 %v486, %v722
        %v1202 = vmul.f32 %v486, %v726
        %v1203 = vmul.f32 %v486, %v730
        %v1204 = vmul.f32 %v486, %v734
        %v1205 = vmul.f32 %v486, %v738
        %v1206 = vmul.f32 %v486, %v742
        %v1207 = vmul.f32 %v486, %v746
        %v1208 = vmul.f32 %v486, %v750
        %v1209 = vmul.f32 %v486, %v754
        %v1210 = vmul.f32 %v486, %v758
        %v1211 = vmul.f32 %v486, %v762
        %v1212 = vmul.f32 %v486, %v766
        %v1213 = vmul.f32 %v486, %v770
        %v1214 = vmul.f32 %v486, %v774
        %v1215 = vmul.f32 %v486, %v778
        %v1216 = vmul.f32 %v486, %v782
        %v1217 = vmul.f32 %v486, %v786
        %v1218 = vmul.f32 %v486, %v790
        %v1219 = vmul.f32 %v486, %v794
        %v1220 = vmul.f32 %v486, %v798
        %v1221 = vmul.f32 %v486, %v802
        %v1222 = vmul.f32 %v486, %v806
        %v1223 = vmul.f32 %v491, %v682
        %v1224 = vmul.f32 %v491, %v686
        %v1225 = vmul.f32 %v491, %v690
        %v1226 = vmul.f32 %v491, %v694
        %v1227 = vmul.f32 %v491, %v698
        %v1228 = vmul.f32 %v491, %v702
        %v1229 = vmul.f32 %v491, %v706
        %v1230 = vmul.f32 %v491, %v710
        %v1231 = vmul.f32 %v491, %v714
        %v1232 = vmul.f32 %v491, %v718
        %v1233 = vmul.f32 %v491, %v722
        %v1234 = vmul.f32 %v491, %v726
        %v1235 = vmul.f32 %v491, %v730
        %v1236 = vmul.f32 %v491, %v734
        %v1237 = vmul.f32 %v491, %v738
        %v1238 = vmul.f32 %v491, %v742
        %v1239 = vmul.f32 %v491, %v746
        %v1240 = vmul.f32 %v491, %v750
        %v1241 = vmul.f32 %v491, %v754
        %v1242 = vmul.f32 %v491, %v758
        %v1243 = vmul.f32 %v491, %v762
        %v1244 = vmul.f32 %v491, %v766
        %v1245 = vmul.f32 %v491, %v770
        %v1246 = vmul.f32 %v491, %v774
        %v1247 = vmul.f32 %v491, %v778
        %v1248 = vmul.f32 %v491, %v782
        %v1249 = vmul.f32 %v491, %v786
        %v1250 = vmul.f32 %v491, %v790
        %v1251 = vmul.f32 %v491, %v794
        %v1252 = vmul.f32 %v491, %v798
        %v1253 = vmul.f32 %v491, %v802
        %v1254 = vmul.f32 %v491, %v806
        %v1255 = vmul.f32 %v496, %v682
        %v1256 = vmul.f32 %v496, %v686
        %v1257 = vmul.f32 %v496, %v690
        %v1258 = vmul.f32 %v496, %v694
        %v1259 = vmul.f32 %v496, %v698
        %v1260 = vmul.f32 %v496, %v702
        %v1261 = vmul.f32 %v496, %v706
        %v1262 = vmul.f32 %v496, %v710
        %v1263 = vmul.f32 %v496, %v714
        %v1264 = vmul.f32 %v496, %v718
        %v1265 = vmul.f32 %v496, %v722
        %v1266 = vmul.f32 %v496, %v726
        %v1267 = vmul.f32 %v496, %v730
        %v1268 = vmul.f32 %v496, %v734
        %v1269 = vmul.f32 %v496, %v738
        %v1270 = vmul.f32 %v496, %v742
        %v1271 = vmul.f32 %v496, %v746
        %v1272 = vmul.f32 %v496, %v750
        %v1273 = vmul.f32 %v496, %v754
        %v1274 = vmul.f32 %v496, %v758
        %v1275 = vmul.f32 %v496, %v762
        %v1276 = vmul.f32 %v496, %v766
        %v1277 = vmul.f32 %v496, %v770
        %v1278 = vmul.f32 %v496, %v774
        %v1279 = vmul.f32 %v496, %v778
        %v1280 = vmul.f32 %v496, %v782
        %v1281 = vmul.f32 %v496, %v786
        %v1282 = vmul.f32 %v496, %v790
        %v1283 = vmul.f32 %v496, %v794
        %v1284 = vmul.f32 %v496, %v798
        %v1285 = vmul.f32 %v496, %v802
        %v1286 = vmul.f32 %v496, %v806
        %v1287 = vmul.f32 %v501, %v682
        %v1288 = vmul.f32 %v501, %v686
        %v1289 = vmul.f32 %v501, %v690
        %v1290 = vmul.f32 %v501, %v694
        %v1291 = vmul.f32 %v501, %v698
        %v1292 = vmul.f32 %v501, %v702
        %v1293 = vmul.f32 %v501, %v706
        %v1294 = vmul.f32 %v501, %v710
        %v1295 = vmul.f32 %v501, %v714
        %v1296 = vmul.f32 %v501, %v718
        %v1297 = vmul.f32 %v501, %v722
        %v1298 = vmul.f32 %v501, %v726
        %v1299 = vmul.f32 %v501, %v730
        %v1300 = vmul.f32 %v501, %v734
        %v1301 = vmul.f32 %v501, %v738
        %v1302 = vmul.f32 %v501, %v742
        %v1303 = vmul.f32 %v501, %v746
        %v1304 = vmul.f32 %v501, %v750
        %v1305 = vmul.f32 %v501, %v754
        %v1306 = vmul.f32 %v501, %v758
        %v1307 = vmul.f32 %v501, %v762
        %v1308 = vmul.f32 %v501, %v766
        %v1309 = vmul.f32 %v501, %v770
        %v1310 = vmul.f32 %v501, %v774
        %v1311 = vmul.f32 %v501, %v778
        %v1312 = vmul.f32 %v501, %v782
        %v1313 = vmul.f32 %v501, %v786
        %v1314 = vmul.f32 %v501, %v790
        %v1315 = vmul.f32 %v501, %v794
        %v1316 = vmul.f32 %v501, %v798
        %v1317 = vmul.f32 %v501, %v802
        %v1318 = vmul.f32 %v501, %v806
        %v1319 = vadd.f32 %v346, %v807
        %v1320 = vadd.f32 %v346, %v808
        %v1321 = vadd.f32 %v346, %v809
        %v1322 = vadd.f32 %v346, %v810
        %v1323 = vadd.f32 %v346, %v811
        %v1324 = vadd.f32 %v346, %v812
        %v1325 = vadd.f32 %v346, %v813
        %v1326 = vadd.f32 %v346, %v814
        %v1327 = vadd.f32 %v346, %v815
        %v1328 = vadd.f32 %v346, %v816
        %v1329 = vadd.f32 %v346, %v817
        %v1330 = vadd.f32 %v346, %v818
        %v1331 = vadd.f32 %v346, %v819
        %v1332 = vadd.f32 %v346, %v820
        %v1333 = vadd.f32 %v346, %v821
        %v1334 = vadd.f32 %v346, %v822
        %v1335 = vadd.f32 %v346, %v823
        %v1336 = vadd.f32 %v346, %v824
        %v1337 = vadd.f32 %v346, %v825
        %v1338 = vadd.f32 %v346, %v826
        %v1339 = vadd.f32 %v346, %v827
        %v1340 = vadd.f32 %v346, %v828
        %v1341 = vadd.f32 %v346, %v829
        %v1342 = vadd.f32 %v346, %v830
        %v1343 = vadd.f32 %v346, %v831
        %v1344 = vadd.f32 %v346, %v832
        %v1345 = vadd.f32 %v346, %v833
        %v1346 = vadd.f32 %v346, %v834
        %v1347 = vadd.f32 %v346, %v835
        %v1348 = vadd.f32 %v346, %v836
        %v1349 = vadd.f32 %v346, %v837
        %v1350 = vadd.f32 %v346, %v838
        %v1351 = vadd.f32 %v351, %v839
        %v1352 = vadd.f32 %v351, %v840
        %v1353 = vadd.f32 %v351, %v841
        %v1354 = vadd.f32 %v351, %v842
        %v1355 = vadd.f32 %v351, %v843
        %v1356 = vadd.f32 %v351, %v844
        %v1357 = vadd.f32 %v351, %v845
        %v1358 = vadd.f32 %v351, %v846
        %v1359 = vadd.f32 %v351, %v847
        %v1360 = vadd.f32 %v351, %v848
        %v1361 = vadd.f32 %v351, %v849
        %v1362 = vadd.f32 %v351, %v850
        %v1363 = vadd.f32 %v351, %v851
        %v1364 = vadd.f32 %v351, %v852
        %v1365 = vadd.f32 %v351, %v853
        %v1366 = vadd.f32 %v351, %v854
        %v1367 = vadd.f32 %v351, %v855
        %v1368 = vadd.f32 %v351, %v856
        %v1369 = vadd.f32 %v351, %v857
        %v1370 = vadd.f32 %v351, %v858
        %v1371 = vadd.f32 %v351, %v859
        %v1372 = vadd.f32 %v351, %v860
        %v1373 = vadd.f32 %v351, %v861
        %v1374 = vadd.f32 %v351, %v862
        %v1375 = vadd.f32 %v351, %v863
        %v1376 = vadd.f32 %v351, %v864
        %v1377 = vadd.f32 %v351, %v865
        %v1378 = vadd.f32 %v351, %v866
        %v1379 = vadd.f32 %v351, %v867
        %v1380 = vadd.f32 %v351, %v868
        %v1381 = vadd.f32 %v351, %v869
        %v1382 = vadd.f32 %v351, %v870
        %v1383 = vadd.f32 %v356, %v871
        %v1384 = vadd.f32 %v356, %v872
        %v1385 = vadd.f32 %v356, %v873
        %v1386 = vadd.f32 %v356, %v874
        %v1387 = vadd.f32 %v356, %v875
        %v1388 = vadd.f32 %v356, %v876
        %v1389 = vadd.f32 %v356, %v877
        %v1390 = vadd.f32 %v356, %v878
        %v1391 = vadd.f32 %v356, %v879
        %v1392 = vadd.f32 %v356, %v880
        %v1393 = vadd.f32 %v356, %v881
        %v1394 = vadd.f32 %v356, %v882
        %v1395 = vadd.f32 %v356, %v883
        %v1396 = vadd.f32 %v356, %v884
        %v1397 = vadd.f32 %v356, %v885
        %v1398 = vadd.f32 %v356, %v886
        %v1399 = vadd.f32 %v356, %v887
        %v1400 = vadd.f32 %v356, %v888
        %v1401 = vadd.f32 %v356, %v889
        %v1402 = vadd.f32 %v356, %v890
        %v1403 = vadd.f32 %v356, %v891
        %v1404 = vadd.f32 %v356, %v892
        %v1405 = vadd.f32 %v356, %v893
        %v1406 = vadd.f32 %v356, %v894
        %v1407 = vadd.f32 %v356, %v895
        %v1408 = vadd.f32 %v356, %v896
        %v1409 = vadd.f32 %v356, %v897
        %v1410 = vadd.f32 %v356, %v898
        %v1411 = vadd.f32 %v356, %v899
        %v1412 = vadd.f32 %v356, %v900
        %v1413 = vadd.f32 %v356, %v901
        %v1414 = vadd.f32 %v356, %v902
        %v1415 = vadd.f32 %v361, %v903
        %v1416 = vadd.f32 %v361, %v904
        %v1417 = vadd.f32 %v361, %v905
        %v1418 = vadd.f32 %v361, %v906
        %v1419 = vadd.f32 %v361, %v907
        %v1420 = vadd.f32 %v361, %v908
        %v1421 = vadd.f32 %v361, %v909
        %v1422 = vadd.f32 %v361, %v910
        %v1423 = vadd.f32 %v361, %v911
        %v1424 = vadd.f32 %v361, %v912
        %v1425 = vadd.f32 %v361, %v913
        %v1426 = vadd.f32 %v361, %v914
        %v1427 = vadd.f32 %v361, %v915
        %v1428 = vadd.f32 %v361, %v916
        %v1429 = vadd.f32 %v361, %v917
        %v1430 = vadd.f32 %v361, %v918
        %v1431 = vadd.f32 %v361, %v919
        %v1432 = vadd.f32 %v361, %v920
        %v1433 = vadd.f32 %v361, %v921
        %v1434 = vadd.f32 %v361, %v922
        %v1435 = vadd.f32 %v361, %v923
        %v1436 = vadd.f32 %v361, %v924
        %v1437 = vadd.f32 %v361, %v925
        %v1438 = vadd.f32 %v361, %v926
        %v1439 = vadd.f32 %v361, %v927
        %v1440 = vadd.f32 %v361, %v928
        %v1441 = vadd.f32 %v361, %v929
        %v1442 = vadd.f32 %v361, %v930
        %v1443 = vadd.f32 %v361, %v931
        %v1444 = vadd.f32 %v361, %v932
        %v1445 = vadd.f32 %v361, %v933
        %v1446 = vadd.f32 %v361, %v934
        %v1447 = vadd.f32 %v366, %v935
        %v1448 = vadd.f32 %v366, %v936
        %v1449 = vadd.f32 %v366, %v937
        %v1450 = vadd.f32 %v366, %v938
        %v1451 = vadd.f32 %v366, %v939
        %v1452 = vadd.f32 %v366, %v940
        %v1453 = vadd.f32 %v366, %v941
        %v1454 = vadd.f32 %v366, %v942
        %v1455 = vadd.f32 %v366, %v943
        %v1456 = vadd.f32 %v366, %v944
        %v1457 = vadd.f32 %v366, %v945
        %v1458 = vadd.f32 %v366, %v946
        %v1459 = vadd.f32 %v366, %v947
        %v1460 = vadd.f32 %v366, %v948
        %v1461 = vadd.f32 %v366, %v949
        %v1462 = vadd.f32 %v366, %v950
        %v1463 = vadd.f32 %v366, %v951
        %v1464 = vadd.f32 %v366, %v952
        %v1465 = vadd.f32 %v366, %v953
        %v1466 = vadd.f32 %v366, %v954
        %v1467 = vadd.f32 %v366, %v955
        %v1468 = vadd.f32 %v366, %v956
        %v1469 = vadd.f32 %v366, %v957
        %v1470 = vadd.f32 %v366, %v958
        %v1471 = vadd.f32 %v366, %v959
        %v1472 = vadd.f32 %v366, %v960
        %v1473 = vadd.f32 %v366, %v961
        %v1474 = vadd.f32 %v366, %v962
        %v1475 = vadd.f32 %v366, %v963
        %v1476 = vadd.f32 %v366, %v964
        %v1477 = vadd.f32 %v366, %v965
        %v1478 = vadd.f32 %v366, %v966
        %v1479 = vadd.f32 %v371, %v967
        %v1480 = vadd.f32 %v371, %v968
        %v1481 = vadd.f32 %v371, %v969
        %v1482 = vadd.f32 %v371, %v970
        %v1483 = vadd.f32 %v371, %v971
        %v1484 = vadd.f32 %v371, %v972
        %v1485 = vadd.f32 %v371, %v973
        %v1486 = vadd.f32 %v371, %v974
        %v1487 = vadd.f32 %v371, %v975
        %v1488 = vadd.f32 %v371, %v976
        %v1489 = vadd.f32 %v371, %v977
        %v1490 = vadd.f32 %v371, %v978
        %v1491 = vadd.f32 %v371, %v979
        %v1492 = vadd.f32 %v371, %v980
        %v1493 = vadd.f32 %v371, %v981
        %v1494 = vadd.f32 %v371, %v982
        %v1495 = vadd.f32 %v371, %v983
        %v1496 = vadd.f32 %v371, %v984
        %v1497 = vadd.f32 %v371, %v985
        %v1498 = vadd.f32 %v371, %v986
        %v1499 = vadd.f32 %v371, %v987
        %v1500 = vadd.f32 %v371, %v988
        %v1501 = vadd.f32 %v371, %v989
        %v1502 = vadd.f32 %v371, %v990
        %v1503 = vadd.f32 %v371, %v991
        %v1504 = vadd.f32 %v371, %v992
        %v1505 = vadd.f32 %v371, %v993
        %v1506 = vadd.f32 %v371, %v994
        %v1507 = vadd.f32 %v371, %v995
        %v1508 = vadd.f32 %v371, %v996
        %v1509 = vadd.f32 %v371, %v997
        %v1510 = vadd.f32 %v371, %v998
        %v1511 = vadd.f32 %v376, %v999
        %v1512 = vadd.f32 %v376, %v1000
        %v1513 = vadd.f32 %v376, %v1001
        %v1514 = vadd.f32 %v376, %v1002
        %v1515 = vadd.f32 %v376, %v1003
        %v1516 = vadd.f32 %v376, %v1004
        %v1517 = vadd.f32 %v376, %v1005
        %v1518 = vadd.f32 %v376, %v1006
        %v1519 = vadd.f32 %v376, %v1007
        %v1520 = vadd.f32 %v376, %v1008
        %v1521 = vadd.f32 %v376, %v1009
        %v1522 = vadd.f32 %v376, %v1010
        %v1523 = vadd.f32 %v376, %v1011
        %v1524 = vadd.f32 %v376, %v1012
        %v1525 = vadd.f32 %v376, %v1013
        %v1526 = vadd.f32 %v376, %v1014
        %v1527 = vadd.f32 %v376, %v1015
        %v1528 = vadd.f32 %v376, %v1016
        %v1529 = vadd.f32 %v376, %v1017
        %v1530 = vadd.f32 %v376, %v1018
        %v1531 = vadd.f32 %v376, %v1019
        %v1532 = vadd.f32 %v376, %v1020
        %v1533 = vadd.f32 %v376, %v1021
        %v1534 = vadd.f32 %v376, %v1022
        %v1535 = vadd.f32 %v376, %v1023
        %v1536 = vadd.f32 %v376, %v1024
        %v1537 = vadd.f32 %v376, %v1025
        %v1538 = vadd.f32 %v376, %v1026
        %v1539 = vadd.f32 %v376, %v1027
        %v1540 = vadd.f32 %v376, %v1028
        %v1541 = vadd.f32 %v376, %v1029
        %v1542 = vadd.f32 %v376, %v1030
        %v1543 = vadd.f32 %v381, %v1031
        %v1544 = vadd.f32 %v381, %v1032
        %v1545 = vadd.f32 %v381, %v1033
        %v1546 = vadd.f32 %v381, %v1034
        %v1547 = vadd.f32 %v381, %v1035
        %v1548 = vadd.f32 %v381, %v1036
        %v1549 = vadd.f32 %v381, %v1037
        %v1550 = vadd.f32 %v381, %v1038
        %v1551 = vadd.f32 %v381, %v1039
        %v1552 = vadd.f32 %v381, %v1040
        %v1553 = vadd.f32 %v381, %v1041
        %v1554 = vadd.f32 %v381, %v1042
        %v1555 = vadd.f32 %v381, %v1043
        %v1556 = vadd.f32 %v381, %v1044
        %v1557 = vadd.f32 %v381, %v1045
        %v1558 = vadd.f32 %v381, %v1046
        %v1559 = vadd.f32 %v381, %v1047
        %v1560 = vadd.f32 %v381, %v1048
        %v1561 = vadd.f32 %v381, %v1049
        %v1562 = vadd.f32 %v381, %v1050
        %v1563 = vadd.f32 %v381, %v1051
        %v1564 = vadd.f32 %v381, %v1052
        %v1565 = vadd.f32 %v381, %v1053
        %v1566 = vadd.f32 %v381, %v1054
        %v1567 = vadd.f32 %v381, %v1055
        %v1568 = vadd.f32 %v381, %v1056
        %v1569 = vadd.f32 %v381, %v1057
        %v1570 = vadd.f32 %v381, %v1058
        %v1571 = vadd.f32 %v381, %v1059
        %v1572 = vadd.f32 %v381, %v1060
        %v1573 = vadd.f32 %v381, %v1061
        %v1574 = vadd.f32 %v381, %v1062
        %v1575 = vadd.f32 %v386, %v1063
        %v1576 = vadd.f32 %v386, %v1064
        %v1577 = vadd.f32 %v386, %v1065
        %v1578 = vadd.f32 %v386, %v1066
        %v1579 = vadd.f32 %v386, %v1067
        %v1580 = vadd.f32 %v386, %v1068
        %v1581 = vadd.f32 %v386, %v1069
        %v1582 = vadd.f32 %v386, %v1070
        %v1583 = vadd.f32 %v386, %v1071
        %v1584 = vadd.f32 %v386, %v1072
        %v1585 = vadd.f32 %v386, %v1073
        %v1586 = vadd.f32 %v386, %v1074
        %v1587 = vadd.f32 %v386, %v1075
        %v1588 = vadd.f32 %v386, %v1076
        %v1589 = vadd.f32 %v386, %v1077
        %v1590 = vadd.f32 %v386, %v1078
        %v1591 = vadd.f32 %v386, %v1079
        %v1592 = vadd.f32 %v386, %v1080
        %v1593 = vadd.f32 %v386, %v1081
        %v1594 = vadd.f32 %v386, %v1082
        %v1595 = vadd.f32 %v386, %v1083
        %v1596 = vadd.f32 %v386, %v1084
        %v1597 = vadd.f32 %v386, %v1085
        %v1598 = vadd.f32 %v386, %v1086
        %v1599 = vadd.f32 %v386, %v1087
        %v1600 = vadd.f32 %v386, %v1088
        %v1601 = vadd.f32 %v386, %v1089
        %v1602 = vadd.f32 %v386, %v1090
        %v1603 = vadd.f32 %v386, %v1091
        %v1604 = vadd.f32 %v386, %v1092
        %v1605 = vadd.f32 %v386, %v1093
        %v1606 = vadd.f32 %v386, %v1094
        %v1607 = vadd.f32 %v391, %v1095
        %v1608 = vadd.f32 %v391, %v1096
        %v1609 = vadd.f32 %v391, %v1097
        %v1610 = vadd.f32 %v391, %v1098
        %v1611 = vadd.f32 %v391, %v1099
        %v1612 = vadd.f32 %v391, %v1100
        %v1613 = vadd.f32 %v391, %v1101
        %v1614 = vadd.f32 %v391, %v1102
        %v1615 = vadd.f32 %v391, %v1103
        %v1616 = vadd.f32 %v391, %v1104
        %v1617 = vadd.f32 %v391, %v1105
        %v1618 = vadd.f32 %v391, %v1106
        %v1619 = vadd.f32 %v391, %v1107
        %v1620 = vadd.f32 %v391, %v1108
        %v1621 = vadd.f32 %v391, %v1109
        %v1622 = vadd.f32 %v391, %v1110
        %v1623 = vadd.f32 %v391, %v1111
        %v1624 = vadd.f32 %v391, %v1112
        %v1625 = vadd.f32 %v391, %v1113
        %v1626 = vadd.f32 %v391, %v1114
        %v1627 = vadd.f32 %v391, %v1115
        %v1628 = vadd.f32 %v391, %v1116
        %v1629 = vadd.f32 %v391, %v1117
        %v1630 = vadd.f32 %v391, %v1118
        %v1631 = vadd.f32 %v391, %v1119
        %v1632 = vadd.f32 %v391, %v1120
        %v1633 = vadd.f32 %v391, %v1121
        %v1634 = vadd.f32 %v391, %v1122
        %v1635 = vadd.f32 %v391, %v1123
        %v1636 = vadd.f32 %v391, %v1124
        %v1637 = vadd.f32 %v391, %v1125
        %v1638 = vadd.f32 %v391, %v1126
        %v1639 = vadd.f32 %v396, %v1127
        %v1640 = vadd.f32 %v396, %v1128
        %v1641 = vadd.f32 %v396, %v1129
        %v1642 = vadd.f32 %v396, %v1130
        %v1643 = vadd.f32 %v396, %v1131
        %v1644 = vadd.f32 %v396, %v1132
        %v1645 = vadd.f32 %v396, %v1133
        %v1646 = vadd.f32 %v396, %v1134
        %v1647 = vadd.f32 %v396, %v1135
        %v1648 = vadd.f32 %v396, %v1136
        %v1649 = vadd.f32 %v396, %v1137
        %v1650 = vadd.f32 %v396, %v1138
        %v1651 = vadd.f32 %v396, %v1139
        %v1652 = vadd.f32 %v396, %v1140
        %v1653 = vadd.f32 %v396, %v1141
        %v1654 = vadd.f32 %v396, %v1142
        %v1655 = vadd.f32 %v396, %v1143
        %v1656 = vadd.f32 %v396, %v1144
        %v1657 = vadd.f32 %v396, %v1145
        %v1658 = vadd.f32 %v396, %v1146
        %v1659 = vadd.f32 %v396, %v1147
        %v1660 = vadd.f32 %v396, %v1148
        %v1661 = vadd.f32 %v396, %v1149
        %v1662 = vadd.f32 %v396, %v1150
        %v1663 = vadd.f32 %v396, %v1151
        %v1664 = vadd.f32 %v396, %v1152
        %v1665 = vadd.f32 %v396, %v1153
        %v1666 = vadd.f32 %v396, %v1154
        %v1667 = vadd.f32 %v396, %v1155
        %v1668 = vadd.f32 %v396, %v1156
        %v1669 = vadd.f32 %v396, %v1157
        %v1670 = vadd.f32 %v396, %v1158
        %v1671 = vadd.f32 %v401, %v1159
        %v1672 = vadd.f32 %v401, %v1160
        %v1673 = vadd.f32 %v401, %v1161
        %v1674 = vadd.f32 %v401, %v1162
        %v1675 = vadd.f32 %v401, %v1163
        %v1676 = vadd.f32 %v401, %v1164
        %v1677 = vadd.f32 %v401, %v1165
        %v1678 = vadd.f32 %v401, %v1166
        %v1679 = vadd.f32 %v401, %v1167
        %v1680 = vadd.f32 %v401, %v1168
        %v1681 = vadd.f32 %v401, %v1169
        %v1682 = vadd.f32 %v401, %v1170
        %v1683 = vadd.f32 %v401, %v1171
        %v1684 = vadd.f32 %v401, %v1172
        %v1685 = vadd.f32 %v401, %v1173
        %v1686 = vadd.f32 %v401, %v1174
        %v1687 = vadd.f32 %v401, %v1175
        %v1688 = vadd.f32 %v401, %v1176
        %v1689 = vadd.f32 %v401, %v1177
        %v1690 = vadd.f32 %v401, %v1178
        %v1691 = vadd.f32 %v401, %v1179
        %v1692 = vadd.f32 %v401, %v1180
        %v1693 = vadd.f32 %v401, %v1181
        %v1694 = vadd.f32 %v401, %v1182
        %v1695 = vadd.f32 %v401, %v1183
        %v1696 = vadd.f32 %v401, %v1184
        %v1697 = vadd.f32 %v401, %v1185
        %v1698 = vadd.f32 %v401, %v1186
        %v1699 = vadd.f32 %v401, %v1187
        %v1700 = vadd.f32 %v401, %v1188
        %v1701 = vadd.f32 %v401, %v1189
        %v1702 = vadd.f32 %v401, %v1190
        %v1703 = vadd.f32 %v406, %v1191
        %v1704 = vadd.f32 %v406, %v1192
        %v1705 = vadd.f32 %v406, %v1193
        %v1706 = vadd.f32 %v406, %v1194
        %v1707 = vadd.f32 %v406, %v1195
        %v1708 = vadd.f32 %v406, %v1196
        %v1709 = vadd.f32 %v406, %v1197
        %v1710 = vadd.f32 %v406, %v1198
        %v1711 = vadd.f32 %v406, %v1199
        %v1712 = vadd.f32 %v406, %v1200
        %v1713 = vadd.f32 %v406, %v1201
        %v1714 = vadd.f32 %v406, %v1202
        %v1715 = vadd.f32 %v406, %v1203
        %v1716 = vadd.f32 %v406, %v1204
        %v1717 = vadd.f32 %v406, %v1205
        %v1718 = vadd.f32 %v406, %v1206
        %v1719 = vadd.f32 %v406, %v1207
        %v1720 = vadd.f32 %v406, %v1208
        %v1721 = vadd.f32 %v406, %v1209
        %v1722 = vadd.f32 %v406, %v1210
        %v1723 = vadd.f32 %v406, %v1211
        %v1724 = vadd.f32 %v406, %v1212
        %v1725 = vadd.f32 %v406, %v1213
        %v1726 = vadd.f32 %v406, %v1214
        %v1727 = vadd.f32 %v406, %v1215
        %v1728 = vadd.f32 %v406, %v1216
        %v1729 = vadd.f32 %v406, %v1217
        %v1730 = vadd.f32 %v406, %v1218
        %v1731 = vadd.f32 %v406, %v1219
        %v1732 = vadd.f32 %v406, %v1220
        %v1733 = vadd.f32 %v406, %v1221
        %v1734 = vadd.f32 %v406, %v1222
        %v1735 = vadd.f32 %v411, %v1223
        %v1736 = vadd.f32 %v411, %v1224
        %v1737 = vadd.f32 %v411, %v1225
        %v1738 = vadd.f32 %v411, %v1226
        %v1739 = vadd.f32 %v411, %v1227
        %v1740 = vadd.f32 %v411, %v1228
        %v1741 = vadd.f32 %v411, %v1229
        %v1742 = vadd.f32 %v411, %v1230
        %v1743 = vadd.f32 %v411, %v1231
        %v1744 = vadd.f32 %v411, %v1232
        %v1745 = vadd.f32 %v411, %v1233
        %v1746 = vadd.f32 %v411, %v1234
        %v1747 = vadd.f32 %v411, %v1235
        %v1748 = vadd.f32 %v411, %v1236
        %v1749 = vadd.f32 %v411, %v1237
        %v1750 = vadd.f32 %v411, %v1238
        %v1751 = vadd.f32 %v411, %v1239
        %v1752 = vadd.f32 %v411, %v1240
        %v1753 = vadd.f32 %v411, %v1241
        %v1754 = vadd.f32 %v411, %v1242
        %v1755 = vadd.f32 %v411, %v1243
        %v1756 = vadd.f32 %v411, %v1244
        %v1757 = vadd.f32 %v411, %v1245
        %v1758 = vadd.f32 %v411, %v1246
        %v1759 = vadd.f32 %v411, %v1247
        %v1760 = vadd.f32 %v411, %v1248
        %v1761 = vadd.f32 %v411, %v1249
        %v1762 = vadd.f32 %v411, %v1250
        %v1763 = vadd.f32 %v411, %v1251
        %v1764 = vadd.f32 %v411, %v1252
        %v1765 = vadd.f32 %v411, %v1253
        %v1766 = vadd.f32 %v411, %v1254
        %v1767 = vadd.f32 %v416, %v1255
        %v1768 = vadd.f32 %v416, %v1256
        %v1769 = vadd.f32 %v416, %v1257
        %v1770 = vadd.f32 %v416, %v1258
        %v1771 = vadd.f32 %v416, %v1259
        %v1772 = vadd.f32 %v416, %v1260
        %v1773 = vadd.f32 %v416, %v1261
        %v1774 = vadd.f32 %v416, %v1262
        %v1775 = vadd.f32 %v416, %v1263
        %v1776 = vadd.f32 %v416, %v1264
        %v1777 = vadd.f32 %v416, %v1265
        %v1778 = vadd.f32 %v416, %v1266
        %v1779 = vadd.f32 %v416, %v1267
        %v1780 = vadd.f32 %v416, %v1268
        %v1781 = vadd.f32 %v416, %v1269
        %v1782 = vadd.f32 %v416, %v1270
        %v1783 = vadd.f32 %v416, %v1271
        %v1784 = vadd.f32 %v416, %v1272
        %v1785 = vadd.f32 %v416, %v1273
        %v1786 = vadd.f32 %v416, %v1274
        %v1787 = vadd.f32 %v416, %v1275
        %v1788 = vadd.f32 %v416, %v1276
        %v1789 = vadd.f32 %v416, %v1277
        %v1790 = vadd.f32 %v416, %v1278
        %v1791 = vadd.f32 %v416, %v1279
        %v1792 = vadd.f32 %v416, %v1280
        %v1793 = vadd.f32 %v416, %v1281
        %v1794 = vadd.f32 %v416, %v1282
        %v1795 = vadd.f32 %v416, %v1283
        %v1796 = vadd.f32 %v416, %v1284
        %v1797 = vadd.f32 %v416, %v1285
        %v1798 = vadd.f32 %v416, %v1286
        %v1799 = vadd.f32 %v421, %v1287
        %v1800 = vadd.f32 %v421, %v1288
        %v1801 = vadd.f32 %v421, %v1289
        %v1802 = vadd.f32 %v421, %v1290
        %v1803 = vadd.f32 %v421, %v1291
        %v1804 = vadd.f32 %v421, %v1292
        %v1805 = vadd.f32 %v421, %v1293
        %v1806 = vadd.f32 %v421, %v1294
        %v1807 = vadd.f32 %v421, %v1295
        %v1808 = vadd.f32 %v421, %v1296
        %v1809 = vadd.f32 %v421, %v1297
        %v1810 = vadd.f32 %v421, %v1298
        %v1811 = vadd.f32 %v421, %v1299
        %v1812 = vadd.f32 %v421, %v1300
        %v1813 = vadd.f32 %v421, %v1301
        %v1814 = vadd.f32 %v421, %v1302
        %v1815 = vadd.f32 %v421, %v1303
        %v1816 = vadd.f32 %v421, %v1304
        %v1817 = vadd.f32 %v421, %v1305
        %v1818 = vadd.f32 %v421, %v1306
        %v1819 = vadd.f32 %v421, %v1307
        %v1820 = vadd.f32 %v421, %v1308
        %v1821 = vadd.f32 %v421, %v1309
        %v1822 = vadd.f32 %v421, %v1310
        %v1823 = vadd.f32 %v421, %v1311
        %v1824 = vadd.f32 %v421, %v1312
        %v1825 = vadd.f32 %v421, %v1313
        %v1826 = vadd.f32 %v421, %v1314
        %v1827 = vadd.f32 %v421, %v1315
        %v1828 = vadd.f32 %v421, %v1316
        %v1829 = vadd.f32 %v421, %v1317
        %v1830 = vadd.f32 %v421, %v1318
        %1831 = vset.pattern.permute.xlu0 1
        %1832 = vperm.xlu0 %1831, %v311
        %v1833 = vpop.permute.xlu0 %1832
        %1835 = vset.pattern.permute.xlu0 1
        %1836 = vperm.xlu0 %1835, %v312
        %v1837 = vpop.permute.xlu0 %1836
        %1839 = vset.pattern.permute.xlu0 1
        %1840 = vperm.xlu0 %1839, %v313
        %v1841 = vpop.permute.xlu0 %1840
        %1843 = vset.pattern.permute.xlu0 1
        %1844 = vperm.xlu0 %1843, %v314
        %v1845 = vpop.permute.xlu0 %1844
        %1847 = vset.pattern.permute.xlu0 1
        %1848 = vperm.xlu0 %1847, %v315
        %v1849 = vpop.permute.xlu0 %1848
        %1851 = vset.pattern.permute.xlu0 1
        %1852 = vperm.xlu0 %1851, %v316
        %v1853 = vpop.permute.xlu0 %1852
        %1855 = vset.pattern.permute.xlu0 1
        %1856 = vperm.xlu0 %1855, %v317
        %v1857 = vpop.permute.xlu0 %1856
        %1859 = vset.pattern.permute.xlu0 1
        %1860 = vperm.xlu0 %1859, %v318
        %v1861 = vpop.permute.xlu0 %1860
        %1863 = vset.pattern.permute.xlu0 1
        %1864 = vperm.xlu0 %1863, %v319
        %v1865 = vpop.permute.xlu0 %1864
        %1867 = vset.pattern.permute.xlu0 1
        %1868 = vperm.xlu0 %1867, %v320
        %v1869 = vpop.permute.xlu0 %1868
        %1871 = vset.pattern.permute.xlu0 1
        %1872 = vperm.xlu0 %1871, %v321
        %v1873 = vpop.permute.xlu0 %1872
        %1875 = vset.pattern.permute.xlu0 1
        %1876 = vperm.xlu0 %1875, %v322
        %v1877 = vpop.permute.xlu0 %1876
        %1879 = vset.pattern.permute.xlu0 1
        %1880 = vperm.xlu0 %1879, %v323
        %v1881 = vpop.permute.xlu0 %1880
        %1883 = vset.pattern.permute.xlu0 1
        %1884 = vperm.xlu0 %1883, %v324
        %v1885 = vpop.permute.xlu0 %1884
        %1887 = vset.pattern.permute.xlu0 1
        %1888 = vperm.xlu0 %1887, %v325
        %v1889 = vpop.permute.xlu0 %1888
        %1891 = vset.pattern.permute.xlu0 1
        %1892 = vperm.xlu0 %1891, %v326
        %v1893 = vpop.permute.xlu0 %1892
        %v1895 = vlaneseq
        %v1896 = vshrl.u32 %v1895, 7
        %v1897 = vsub.s32 1, %v1896
        %v1898 = vrot.slane %v295, %v1897
        %v1899 = vlaneseq
        %v1900 = vshrl.u32 %v1899, 7
        %v1901 = vsub.s32 5, %v1900
        %v1902 = vrot.slane %v295, %v1901
        %v1903 = vlaneseq
        %v1904 = vshrl.u32 %v1903, 7
        %v1905 = vsub.s32 1, %v1904
        %v1906 = vrot.slane %v296, %v1905
        %v1907 = vlaneseq
        %v1908 = vshrl.u32 %v1907, 7
        %v1909 = vsub.s32 5, %v1908
        %v1910 = vrot.slane %v296, %v1909
        %v1911 = vlaneseq
        %v1912 = vshrl.u32 %v1911, 7
        %v1913 = vsub.s32 1, %v1912
        %v1914 = vrot.slane %v297, %v1913
        %v1915 = vlaneseq
        %v1916 = vshrl.u32 %v1915, 7
        %v1917 = vsub.s32 5, %v1916
        %v1918 = vrot.slane %v297, %v1917
        %v1919 = vlaneseq
        %v1920 = vshrl.u32 %v1919, 7
        %v1921 = vsub.s32 1, %v1920
        %v1922 = vrot.slane %v298, %v1921
        %v1923 = vlaneseq
        %v1924 = vshrl.u32 %v1923, 7
        %v1925 = vsub.s32 5, %v1924
        %v1926 = vrot.slane %v298, %v1925
        %v1927 = vlaneseq
        %v1928 = vshrl.u32 %v1927, 7
        %v1929 = vsub.s32 1, %v1928
        %v1930 = vrot.slane %v299, %v1929
        %v1931 = vlaneseq
        %v1932 = vshrl.u32 %v1931, 7
        %v1933 = vsub.s32 5, %v1932
        %v1934 = vrot.slane %v299, %v1933
        %v1935 = vlaneseq
        %v1936 = vshrl.u32 %v1935, 7
        %v1937 = vsub.s32 1, %v1936
        %v1938 = vrot.slane %v300, %v1937
        %v1939 = vlaneseq
        %v1940 = vshrl.u32 %v1939, 7
        %v1941 = vsub.s32 5, %v1940
        %v1942 = vrot.slane %v300, %v1941
        %v1943 = vlaneseq
        %v1944 = vshrl.u32 %v1943, 7
        %v1945 = vsub.s32 1, %v1944
        %v1946 = vrot.slane %v301, %v1945
        %v1947 = vlaneseq
        %v1948 = vshrl.u32 %v1947, 7
        %v1949 = vsub.s32 5, %v1948
        %v1950 = vrot.slane %v301, %v1949
        %v1951 = vlaneseq
        %v1952 = vshrl.u32 %v1951, 7
        %v1953 = vsub.s32 1, %v1952
        %v1954 = vrot.slane %v302, %v1953
        %v1955 = vlaneseq
        %v1956 = vshrl.u32 %v1955, 7
        %v1957 = vsub.s32 5, %v1956
        %v1958 = vrot.slane %v302, %v1957
        %v1959 = vlaneseq
        %v1960 = vshrl.u32 %v1959, 7
        %v1961 = vsub.s32 1, %v1960
        %v1962 = vrot.slane %v303, %v1961
        %v1963 = vlaneseq
        %v1964 = vshrl.u32 %v1963, 7
        %v1965 = vsub.s32 5, %v1964
        %v1966 = vrot.slane %v303, %v1965
        %v1967 = vlaneseq
        %v1968 = vshrl.u32 %v1967, 7
        %v1969 = vsub.s32 1, %v1968
        %v1970 = vrot.slane %v304, %v1969
        %v1971 = vlaneseq
        %v1972 = vshrl.u32 %v1971, 7
        %v1973 = vsub.s32 5, %v1972
        %v1974 = vrot.slane %v304, %v1973
        %v1975 = vlaneseq
        %v1976 = vshrl.u32 %v1975, 7
        %v1977 = vsub.s32 1, %v1976
        %v1978 = vrot.slane %v305, %v1977
        %v1979 = vlaneseq
        %v1980 = vshrl.u32 %v1979, 7
        %v1981 = vsub.s32 5, %v1980
        %v1982 = vrot.slane %v305, %v1981
        %v1983 = vlaneseq
        %v1984 = vshrl.u32 %v1983, 7
        %v1985 = vsub.s32 1, %v1984
        %v1986 = vrot.slane %v306, %v1985
        %v1987 = vlaneseq
        %v1988 = vshrl.u32 %v1987, 7
        %v1989 = vsub.s32 5, %v1988
        %v1990 = vrot.slane %v306, %v1989
        %v1991 = vlaneseq
        %v1992 = vshrl.u32 %v1991, 7
        %v1993 = vsub.s32 1, %v1992
        %v1994 = vrot.slane %v307, %v1993
        %v1995 = vlaneseq
        %v1996 = vshrl.u32 %v1995, 7
        %v1997 = vsub.s32 5, %v1996
        %v1998 = vrot.slane %v307, %v1997
        %v1999 = vlaneseq
        %v2000 = vshrl.u32 %v1999, 7
        %v2001 = vsub.s32 1, %v2000
        %v2002 = vrot.slane %v308, %v2001
        %v2003 = vlaneseq
        %v2004 = vshrl.u32 %v2003, 7
        %v2005 = vsub.s32 5, %v2004
        %v2006 = vrot.slane %v308, %v2005
        %v2007 = vlaneseq
        %v2008 = vshrl.u32 %v2007, 7
        %v2009 = vsub.s32 1, %v2008
        %v2010 = vrot.slane %v309, %v2009
        %v2011 = vlaneseq
        %v2012 = vshrl.u32 %v2011, 7
        %v2013 = vsub.s32 5, %v2012
        %v2014 = vrot.slane %v309, %v2013
        %v2015 = vlaneseq
        %v2016 = vshrl.u32 %v2015, 7
        %v2017 = vsub.s32 1, %v2016
        %v2018 = vrot.slane %v310, %v2017
        %v2019 = vlaneseq
        %v2020 = vshrl.u32 %v2019, 7
        %v2021 = vsub.s32 5, %v2020
        %v2022 = vrot.slane %v310, %v2021
        %v2055 = vlaneseq
        %v2056 = vshrl.u32 %v2055, 7
        %v2057 = vsub.s32 1, %v2056
        %v2058 = vrot.slane %v1898, %v2057
        %v2059 = vlaneseq
        %v2060 = vshrl.u32 %v2059, 7
        %v2061 = vsub.s32 1, %v2060
        %v2062 = vrot.slane %v1902, %v2061
        %v2063 = vlaneseq
        %v2064 = vshrl.u32 %v2063, 7
        %v2065 = vsub.s32 1, %v2064
        %v2066 = vrot.slane %v1906, %v2065
        %v2067 = vlaneseq
        %v2068 = vshrl.u32 %v2067, 7
        %v2069 = vsub.s32 1, %v2068
        %v2070 = vrot.slane %v1910, %v2069
        %v2071 = vlaneseq
        %v2072 = vshrl.u32 %v2071, 7
        %v2073 = vsub.s32 1, %v2072
        %v2074 = vrot.slane %v1914, %v2073
        %v2075 = vlaneseq
        %v2076 = vshrl.u32 %v2075, 7
        %v2077 = vsub.s32 1, %v2076
        %v2078 = vrot.slane %v1918, %v2077
        %v2079 = vlaneseq
        %v2080 = vshrl.u32 %v2079, 7
        %v2081 = vsub.s32 1, %v2080
        %v2082 = vrot.slane %v1922, %v2081
        %v2083 = vlaneseq
        %v2084 = vshrl.u32 %v2083, 7
        %v2085 = vsub.s32 1, %v2084
        %v2086 = vrot.slane %v1926, %v2085
        %v2087 = vlaneseq
        %v2088 = vshrl.u32 %v2087, 7
        %v2089 = vsub.s32 1, %v2088
        %v2090 = vrot.slane %v1930, %v2089
        %v2091 = vlaneseq
        %v2092 = vshrl.u32 %v2091, 7
        %v2093 = vsub.s32 1, %v2092
        %v2094 = vrot.slane %v1934, %v2093
        %v2095 = vlaneseq
        %v2096 = vshrl.u32 %v2095, 7
        %v2097 = vsub.s32 1, %v2096
        %v2098 = vrot.slane %v1938, %v2097
        %v2099 = vlaneseq
        %v2100 = vshrl.u32 %v2099, 7
        %v2101 = vsub.s32 1, %v2100
        %v2102 = vrot.slane %v1942, %v2101
        %v2103 = vlaneseq
        %v2104 = vshrl.u32 %v2103, 7
        %v2105 = vsub.s32 1, %v2104
        %v2106 = vrot.slane %v1946, %v2105
        %v2107 = vlaneseq
        %v2108 = vshrl.u32 %v2107, 7
        %v2109 = vsub.s32 1, %v2108
        %v2110 = vrot.slane %v1950, %v2109
        %v2111 = vlaneseq
        %v2112 = vshrl.u32 %v2111, 7
        %v2113 = vsub.s32 1, %v2112
        %v2114 = vrot.slane %v1954, %v2113
        %v2115 = vlaneseq
        %v2116 = vshrl.u32 %v2115, 7
        %v2117 = vsub.s32 1, %v2116
        %v2118 = vrot.slane %v1958, %v2117
        %v2119 = vlaneseq
        %v2120 = vshrl.u32 %v2119, 7
        %v2121 = vsub.s32 1, %v2120
        %v2122 = vrot.slane %v1962, %v2121
        %v2123 = vlaneseq
        %v2124 = vshrl.u32 %v2123, 7
        %v2125 = vsub.s32 1, %v2124
        %v2126 = vrot.slane %v1966, %v2125
        %v2127 = vlaneseq
        %v2128 = vshrl.u32 %v2127, 7
        %v2129 = vsub.s32 1, %v2128
        %v2130 = vrot.slane %v1970, %v2129
        %v2131 = vlaneseq
        %v2132 = vshrl.u32 %v2131, 7
        %v2133 = vsub.s32 1, %v2132
        %v2134 = vrot.slane %v1974, %v2133
        %v2135 = vlaneseq
        %v2136 = vshrl.u32 %v2135, 7
        %v2137 = vsub.s32 1, %v2136
        %v2138 = vrot.slane %v1978, %v2137
        %v2139 = vlaneseq
        %v2140 = vshrl.u32 %v2139, 7
        %v2141 = vsub.s32 1, %v2140
        %v2142 = vrot.slane %v1982, %v2141
        %v2143 = vlaneseq
        %v2144 = vshrl.u32 %v2143, 7
        %v2145 = vsub.s32 1, %v2144
        %v2146 = vrot.slane %v1986, %v2145
        %v2147 = vlaneseq
        %v2148 = vshrl.u32 %v2147, 7
        %v2149 = vsub.s32 1, %v2148
        %v2150 = vrot.slane %v1990, %v2149
        %v2151 = vlaneseq
        %v2152 = vshrl.u32 %v2151, 7
        %v2153 = vsub.s32 1, %v2152
        %v2154 = vrot.slane %v1994, %v2153
        %v2155 = vlaneseq
        %v2156 = vshrl.u32 %v2155, 7
        %v2157 = vsub.s32 1, %v2156
        %v2158 = vrot.slane %v1998, %v2157
        %v2159 = vlaneseq
        %v2160 = vshrl.u32 %v2159, 7
        %v2161 = vsub.s32 1, %v2160
        %v2162 = vrot.slane %v2002, %v2161
        %v2163 = vlaneseq
        %v2164 = vshrl.u32 %v2163, 7
        %v2165 = vsub.s32 1, %v2164
        %v2166 = vrot.slane %v2006, %v2165
        %v2167 = vlaneseq
        %v2168 = vshrl.u32 %v2167, 7
        %v2169 = vsub.s32 1, %v2168
        %v2170 = vrot.slane %v2010, %v2169
        %v2171 = vlaneseq
        %v2172 = vshrl.u32 %v2171, 7
        %v2173 = vsub.s32 1, %v2172
        %v2174 = vrot.slane %v2014, %v2173
        %v2175 = vlaneseq
        %v2176 = vshrl.u32 %v2175, 7
        %v2177 = vsub.s32 1, %v2176
        %v2178 = vrot.slane %v2018, %v2177
        %v2179 = vlaneseq
        %v2180 = vshrl.u32 %v2179, 7
        %v2181 = vsub.s32 1, %v2180
        %v2182 = vrot.slane %v2022, %v2181
        %v2183 = vmul.f32 %v1833, %v2058
        %v2184 = vmul.f32 %v1833, %v2062
        %v2185 = vmul.f32 %v1833, %v2066
        %v2186 = vmul.f32 %v1833, %v2070
        %v2187 = vmul.f32 %v1833, %v2074
        %v2188 = vmul.f32 %v1833, %v2078
        %v2189 = vmul.f32 %v1833, %v2082
        %v2190 = vmul.f32 %v1833, %v2086
        %v2191 = vmul.f32 %v1833, %v2090
        %v2192 = vmul.f32 %v1833, %v2094
        %v2193 = vmul.f32 %v1833, %v2098
        %v2194 = vmul.f32 %v1833, %v2102
        %v2195 = vmul.f32 %v1833, %v2106
        %v2196 = vmul.f32 %v1833, %v2110
        %v2197 = vmul.f32 %v1833, %v2114
        %v2198 = vmul.f32 %v1833, %v2118
        %v2199 = vmul.f32 %v1833, %v2122
        %v2200 = vmul.f32 %v1833, %v2126
        %v2201 = vmul.f32 %v1833, %v2130
        %v2202 = vmul.f32 %v1833, %v2134
        %v2203 = vmul.f32 %v1833, %v2138
        %v2204 = vmul.f32 %v1833, %v2142
        %v2205 = vmul.f32 %v1833, %v2146
        %v2206 = vmul.f32 %v1833, %v2150
        %v2207 = vmul.f32 %v1833, %v2154
        %v2208 = vmul.f32 %v1833, %v2158
        %v2209 = vmul.f32 %v1833, %v2162
        %v2210 = vmul.f32 %v1833, %v2166
        %v2211 = vmul.f32 %v1833, %v2170
        %v2212 = vmul.f32 %v1833, %v2174
        %v2213 = vmul.f32 %v1833, %v2178
        %v2214 = vmul.f32 %v1833, %v2182
        %v2215 = vmul.f32 %v1837, %v2058
        %v2216 = vmul.f32 %v1837, %v2062
        %v2217 = vmul.f32 %v1837, %v2066
        %v2218 = vmul.f32 %v1837, %v2070
        %v2219 = vmul.f32 %v1837, %v2074
        %v2220 = vmul.f32 %v1837, %v2078
        %v2221 = vmul.f32 %v1837, %v2082
        %v2222 = vmul.f32 %v1837, %v2086
        %v2223 = vmul.f32 %v1837, %v2090
        %v2224 = vmul.f32 %v1837, %v2094
        %v2225 = vmul.f32 %v1837, %v2098
        %v2226 = vmul.f32 %v1837, %v2102
        %v2227 = vmul.f32 %v1837, %v2106
        %v2228 = vmul.f32 %v1837, %v2110
        %v2229 = vmul.f32 %v1837, %v2114
        %v2230 = vmul.f32 %v1837, %v2118
        %v2231 = vmul.f32 %v1837, %v2122
        %v2232 = vmul.f32 %v1837, %v2126
        %v2233 = vmul.f32 %v1837, %v2130
        %v2234 = vmul.f32 %v1837, %v2134
        %v2235 = vmul.f32 %v1837, %v2138
        %v2236 = vmul.f32 %v1837, %v2142
        %v2237 = vmul.f32 %v1837, %v2146
        %v2238 = vmul.f32 %v1837, %v2150
        %v2239 = vmul.f32 %v1837, %v2154
        %v2240 = vmul.f32 %v1837, %v2158
        %v2241 = vmul.f32 %v1837, %v2162
        %v2242 = vmul.f32 %v1837, %v2166
        %v2243 = vmul.f32 %v1837, %v2170
        %v2244 = vmul.f32 %v1837, %v2174
        %v2245 = vmul.f32 %v1837, %v2178
        %v2246 = vmul.f32 %v1837, %v2182
        %v2247 = vmul.f32 %v1841, %v2058
        %v2248 = vmul.f32 %v1841, %v2062
        %v2249 = vmul.f32 %v1841, %v2066
        %v2250 = vmul.f32 %v1841, %v2070
        %v2251 = vmul.f32 %v1841, %v2074
        %v2252 = vmul.f32 %v1841, %v2078
        %v2253 = vmul.f32 %v1841, %v2082
        %v2254 = vmul.f32 %v1841, %v2086
        %v2255 = vmul.f32 %v1841, %v2090
        %v2256 = vmul.f32 %v1841, %v2094
        %v2257 = vmul.f32 %v1841, %v2098
        %v2258 = vmul.f32 %v1841, %v2102
        %v2259 = vmul.f32 %v1841, %v2106
        %v2260 = vmul.f32 %v1841, %v2110
        %v2261 = vmul.f32 %v1841, %v2114
        %v2262 = vmul.f32 %v1841, %v2118
        %v2263 = vmul.f32 %v1841, %v2122
        %v2264 = vmul.f32 %v1841, %v2126
        %v2265 = vmul.f32 %v1841, %v2130
        %v2266 = vmul.f32 %v1841, %v2134
        %v2267 = vmul.f32 %v1841, %v2138
        %v2268 = vmul.f32 %v1841, %v2142
        %v2269 = vmul.f32 %v1841, %v2146
        %v2270 = vmul.f32 %v1841, %v2150
        %v2271 = vmul.f32 %v1841, %v2154
        %v2272 = vmul.f32 %v1841, %v2158
        %v2273 = vmul.f32 %v1841, %v2162
        %v2274 = vmul.f32 %v1841, %v2166
        %v2275 = vmul.f32 %v1841, %v2170
        %v2276 = vmul.f32 %v1841, %v2174
        %v2277 = vmul.f32 %v1841, %v2178
        %v2278 = vmul.f32 %v1841, %v2182
        %v2279 = vmul.f32 %v1845, %v2058
        %v2280 = vmul.f32 %v1845, %v2062
        %v2281 = vmul.f32 %v1845, %v2066
        %v2282 = vmul.f32 %v1845, %v2070
        %v2283 = vmul.f32 %v1845, %v2074
        %v2284 = vmul.f32 %v1845, %v2078
        %v2285 = vmul.f32 %v1845, %v2082
        %v2286 = vmul.f32 %v1845, %v2086
        %v2287 = vmul.f32 %v1845, %v2090
        %v2288 = vmul.f32 %v1845, %v2094
        %v2289 = vmul.f32 %v1845, %v2098
        %v2290 = vmul.f32 %v1845, %v2102
        %v2291 = vmul.f32 %v1845, %v2106
        %v2292 = vmul.f32 %v1845, %v2110
        %v2293 = vmul.f32 %v1845, %v2114
        %v2294 = vmul.f32 %v1845, %v2118
        %v2295 = vmul.f32 %v1845, %v2122
        %v2296 = vmul.f32 %v1845, %v2126
        %v2297 = vmul.f32 %v1845, %v2130
        %v2298 = vmul.f32 %v1845, %v2134
        %v2299 = vmul.f32 %v1845, %v2138
        %v2300 = vmul.f32 %v1845, %v2142
        %v2301 = vmul.f32 %v1845, %v2146
        %v2302 = vmul.f32 %v1845, %v2150
        %v2303 = vmul.f32 %v1845, %v2154
        %v2304 = vmul.f32 %v1845, %v2158
        %v2305 = vmul.f32 %v1845, %v2162
        %v2306 = vmul.f32 %v1845, %v2166
        %v2307 = vmul.f32 %v1845, %v2170
        %v2308 = vmul.f32 %v1845, %v2174
        %v2309 = vmul.f32 %v1845, %v2178
        %v2310 = vmul.f32 %v1845, %v2182
        %v2311 = vmul.f32 %v1849, %v2058
        %v2312 = vmul.f32 %v1849, %v2062
        %v2313 = vmul.f32 %v1849, %v2066
        %v2314 = vmul.f32 %v1849, %v2070
        %v2315 = vmul.f32 %v1849, %v2074
        %v2316 = vmul.f32 %v1849, %v2078
        %v2317 = vmul.f32 %v1849, %v2082
        %v2318 = vmul.f32 %v1849, %v2086
        %v2319 = vmul.f32 %v1849, %v2090
        %v2320 = vmul.f32 %v1849, %v2094
        %v2321 = vmul.f32 %v1849, %v2098
        %v2322 = vmul.f32 %v1849, %v2102
        %v2323 = vmul.f32 %v1849, %v2106
        %v2324 = vmul.f32 %v1849, %v2110
        %v2325 = vmul.f32 %v1849, %v2114
        %v2326 = vmul.f32 %v1849, %v2118
        %v2327 = vmul.f32 %v1849, %v2122
        %v2328 = vmul.f32 %v1849, %v2126
        %v2329 = vmul.f32 %v1849, %v2130
        %v2330 = vmul.f32 %v1849, %v2134
        %v2331 = vmul.f32 %v1849, %v2138
        %v2332 = vmul.f32 %v1849, %v2142
        %v2333 = vmul.f32 %v1849, %v2146
        %v2334 = vmul.f32 %v1849, %v2150
        %v2335 = vmul.f32 %v1849, %v2154
        %v2336 = vmul.f32 %v1849, %v2158
        %v2337 = vmul.f32 %v1849, %v2162
        %v2338 = vmul.f32 %v1849, %v2166
        %v2339 = vmul.f32 %v1849, %v2170
        %v2340 = vmul.f32 %v1849, %v2174
        %v2341 = vmul.f32 %v1849, %v2178
        %v2342 = vmul.f32 %v1849, %v2182
        %v2343 = vmul.f32 %v1853, %v2058
        %v2344 = vmul.f32 %v1853, %v2062
        %v2345 = vmul.f32 %v1853, %v2066
        %v2346 = vmul.f32 %v1853, %v2070
        %v2347 = vmul.f32 %v1853, %v2074
        %v2348 = vmul.f32 %v1853, %v2078
        %v2349 = vmul.f32 %v1853, %v2082
        %v2350 = vmul.f32 %v1853, %v2086
        %v2351 = vmul.f32 %v1853, %v2090
        %v2352 = vmul.f32 %v1853, %v2094
        %v2353 = vmul.f32 %v1853, %v2098
        %v2354 = vmul.f32 %v1853, %v2102
        %v2355 = vmul.f32 %v1853, %v2106
        %v2356 = vmul.f32 %v1853, %v2110
        %v2357 = vmul.f32 %v1853, %v2114
        %v2358 = vmul.f32 %v1853, %v2118
        %v2359 = vmul.f32 %v1853, %v2122
        %v2360 = vmul.f32 %v1853, %v2126
        %v2361 = vmul.f32 %v1853, %v2130
        %v2362 = vmul.f32 %v1853, %v2134
        %v2363 = vmul.f32 %v1853, %v2138
        %v2364 = vmul.f32 %v1853, %v2142
        %v2365 = vmul.f32 %v1853, %v2146
        %v2366 = vmul.f32 %v1853, %v2150
        %v2367 = vmul.f32 %v1853, %v2154
        %v2368 = vmul.f32 %v1853, %v2158
        %v2369 = vmul.f32 %v1853, %v2162
        %v2370 = vmul.f32 %v1853, %v2166
        %v2371 = vmul.f32 %v1853, %v2170
        %v2372 = vmul.f32 %v1853, %v2174
        %v2373 = vmul.f32 %v1853, %v2178
        %v2374 = vmul.f32 %v1853, %v2182
        %v2375 = vmul.f32 %v1857, %v2058
        %v2376 = vmul.f32 %v1857, %v2062
        %v2377 = vmul.f32 %v1857, %v2066
        %v2378 = vmul.f32 %v1857, %v2070
        %v2379 = vmul.f32 %v1857, %v2074
        %v2380 = vmul.f32 %v1857, %v2078
        %v2381 = vmul.f32 %v1857, %v2082
        %v2382 = vmul.f32 %v1857, %v2086
        %v2383 = vmul.f32 %v1857, %v2090
        %v2384 = vmul.f32 %v1857, %v2094
        %v2385 = vmul.f32 %v1857, %v2098
        %v2386 = vmul.f32 %v1857, %v2102
        %v2387 = vmul.f32 %v1857, %v2106
        %v2388 = vmul.f32 %v1857, %v2110
        %v2389 = vmul.f32 %v1857, %v2114
        %v2390 = vmul.f32 %v1857, %v2118
        %v2391 = vmul.f32 %v1857, %v2122
        %v2392 = vmul.f32 %v1857, %v2126
        %v2393 = vmul.f32 %v1857, %v2130
        %v2394 = vmul.f32 %v1857, %v2134
        %v2395 = vmul.f32 %v1857, %v2138
        %v2396 = vmul.f32 %v1857, %v2142
        %v2397 = vmul.f32 %v1857, %v2146
        %v2398 = vmul.f32 %v1857, %v2150
        %v2399 = vmul.f32 %v1857, %v2154
        %v2400 = vmul.f32 %v1857, %v2158
        %v2401 = vmul.f32 %v1857, %v2162
        %v2402 = vmul.f32 %v1857, %v2166
        %v2403 = vmul.f32 %v1857, %v2170
        %v2404 = vmul.f32 %v1857, %v2174
        %v2405 = vmul.f32 %v1857, %v2178
        %v2406 = vmul.f32 %v1857, %v2182
        %v2407 = vmul.f32 %v1861, %v2058
        %v2408 = vmul.f32 %v1861, %v2062
        %v2409 = vmul.f32 %v1861, %v2066
        %v2410 = vmul.f32 %v1861, %v2070
        %v2411 = vmul.f32 %v1861, %v2074
        %v2412 = vmul.f32 %v1861, %v2078
        %v2413 = vmul.f32 %v1861, %v2082
        %v2414 = vmul.f32 %v1861, %v2086
        %v2415 = vmul.f32 %v1861, %v2090
        %v2416 = vmul.f32 %v1861, %v2094
        %v2417 = vmul.f32 %v1861, %v2098
        %v2418 = vmul.f32 %v1861, %v2102
        %v2419 = vmul.f32 %v1861, %v2106
        %v2420 = vmul.f32 %v1861, %v2110
        %v2421 = vmul.f32 %v1861, %v2114
        %v2422 = vmul.f32 %v1861, %v2118
        %v2423 = vmul.f32 %v1861, %v2122
        %v2424 = vmul.f32 %v1861, %v2126
        %v2425 = vmul.f32 %v1861, %v2130
        %v2426 = vmul.f32 %v1861, %v2134
        %v2427 = vmul.f32 %v1861, %v2138
        %v2428 = vmul.f32 %v1861, %v2142
        %v2429 = vmul.f32 %v1861, %v2146
        %v2430 = vmul.f32 %v1861, %v2150
        %v2431 = vmul.f32 %v1861, %v2154
        %v2432 = vmul.f32 %v1861, %v2158
        %v2433 = vmul.f32 %v1861, %v2162
        %v2434 = vmul.f32 %v1861, %v2166
        %v2435 = vmul.f32 %v1861, %v2170
        %v2436 = vmul.f32 %v1861, %v2174
        %v2437 = vmul.f32 %v1861, %v2178
        %v2438 = vmul.f32 %v1861, %v2182
        %v2439 = vmul.f32 %v1865, %v2058
        %v2440 = vmul.f32 %v1865, %v2062
        %v2441 = vmul.f32 %v1865, %v2066
        %v2442 = vmul.f32 %v1865, %v2070
        %v2443 = vmul.f32 %v1865, %v2074
        %v2444 = vmul.f32 %v1865, %v2078
        %v2445 = vmul.f32 %v1865, %v2082
        %v2446 = vmul.f32 %v1865, %v2086
        %v2447 = vmul.f32 %v1865, %v2090
        %v2448 = vmul.f32 %v1865, %v2094
        %v2449 = vmul.f32 %v1865, %v2098
        %v2450 = vmul.f32 %v1865, %v2102
        %v2451 = vmul.f32 %v1865, %v2106
        %v2452 = vmul.f32 %v1865, %v2110
        %v2453 = vmul.f32 %v1865, %v2114
        %v2454 = vmul.f32 %v1865, %v2118
        %v2455 = vmul.f32 %v1865, %v2122
        %v2456 = vmul.f32 %v1865, %v2126
        %v2457 = vmul.f32 %v1865, %v2130
        %v2458 = vmul.f32 %v1865, %v2134
        %v2459 = vmul.f32 %v1865, %v2138
        %v2460 = vmul.f32 %v1865, %v2142
        %v2461 = vmul.f32 %v1865, %v2146
        %v2462 = vmul.f32 %v1865, %v2150
        %v2463 = vmul.f32 %v1865, %v2154
        %v2464 = vmul.f32 %v1865, %v2158
        %v2465 = vmul.f32 %v1865, %v2162
        %v2466 = vmul.f32 %v1865, %v2166
        %v2467 = vmul.f32 %v1865, %v2170
        %v2468 = vmul.f32 %v1865, %v2174
        %v2469 = vmul.f32 %v1865, %v2178
        %v2470 = vmul.f32 %v1865, %v2182
        %v2471 = vmul.f32 %v1869, %v2058
        %v2472 = vmul.f32 %v1869, %v2062
        %v2473 = vmul.f32 %v1869, %v2066
        %v2474 = vmul.f32 %v1869, %v2070
        %v2475 = vmul.f32 %v1869, %v2074
        %v2476 = vmul.f32 %v1869, %v2078
        %v2477 = vmul.f32 %v1869, %v2082
        %v2478 = vmul.f32 %v1869, %v2086
        %v2479 = vmul.f32 %v1869, %v2090
        %v2480 = vmul.f32 %v1869, %v2094
        %v2481 = vmul.f32 %v1869, %v2098
        %v2482 = vmul.f32 %v1869, %v2102
        %v2483 = vmul.f32 %v1869, %v2106
        %v2484 = vmul.f32 %v1869, %v2110
        %v2485 = vmul.f32 %v1869, %v2114
        %v2486 = vmul.f32 %v1869, %v2118
        %v2487 = vmul.f32 %v1869, %v2122
        %v2488 = vmul.f32 %v1869, %v2126
        %v2489 = vmul.f32 %v1869, %v2130
        %v2490 = vmul.f32 %v1869, %v2134
        %v2491 = vmul.f32 %v1869, %v2138
        %v2492 = vmul.f32 %v1869, %v2142
        %v2493 = vmul.f32 %v1869, %v2146
        %v2494 = vmul.f32 %v1869, %v2150
        %v2495 = vmul.f32 %v1869, %v2154
        %v2496 = vmul.f32 %v1869, %v2158
        %v2497 = vmul.f32 %v1869, %v2162
        %v2498 = vmul.f32 %v1869, %v2166
        %v2499 = vmul.f32 %v1869, %v2170
        %v2500 = vmul.f32 %v1869, %v2174
        %v2501 = vmul.f32 %v1869, %v2178
        %v2502 = vmul.f32 %v1869, %v2182
        %v2503 = vmul.f32 %v1873, %v2058
        %v2504 = vmul.f32 %v1873, %v2062
        %v2505 = vmul.f32 %v1873, %v2066
        %v2506 = vmul.f32 %v1873, %v2070
        %v2507 = vmul.f32 %v1873, %v2074
        %v2508 = vmul.f32 %v1873, %v2078
        %v2509 = vmul.f32 %v1873, %v2082
        %v2510 = vmul.f32 %v1873, %v2086
        %v2511 = vmul.f32 %v1873, %v2090
        %v2512 = vmul.f32 %v1873, %v2094
        %v2513 = vmul.f32 %v1873, %v2098
        %v2514 = vmul.f32 %v1873, %v2102
        %v2515 = vmul.f32 %v1873, %v2106
        %v2516 = vmul.f32 %v1873, %v2110
        %v2517 = vmul.f32 %v1873, %v2114
        %v2518 = vmul.f32 %v1873, %v2118
        %v2519 = vmul.f32 %v1873, %v2122
        %v2520 = vmul.f32 %v1873, %v2126
        %v2521 = vmul.f32 %v1873, %v2130
        %v2522 = vmul.f32 %v1873, %v2134
        %v2523 = vmul.f32 %v1873, %v2138
        %v2524 = vmul.f32 %v1873, %v2142
        %v2525 = vmul.f32 %v1873, %v2146
        %v2526 = vmul.f32 %v1873, %v2150
        %v2527 = vmul.f32 %v1873, %v2154
        %v2528 = vmul.f32 %v1873, %v2158
        %v2529 = vmul.f32 %v1873, %v2162
        %v2530 = vmul.f32 %v1873, %v2166
        %v2531 = vmul.f32 %v1873, %v2170
        %v2532 = vmul.f32 %v1873, %v2174
        %v2533 = vmul.f32 %v1873, %v2178
        %v2534 = vmul.f32 %v1873, %v2182
        %v2535 = vmul.f32 %v1877, %v2058
        %v2536 = vmul.f32 %v1877, %v2062
        %v2537 = vmul.f32 %v1877, %v2066
        %v2538 = vmul.f32 %v1877, %v2070
        %v2539 = vmul.f32 %v1877, %v2074
        %v2540 = vmul.f32 %v1877, %v2078
        %v2541 = vmul.f32 %v1877, %v2082
        %v2542 = vmul.f32 %v1877, %v2086
        %v2543 = vmul.f32 %v1877, %v2090
        %v2544 = vmul.f32 %v1877, %v2094
        %v2545 = vmul.f32 %v1877, %v2098
        %v2546 = vmul.f32 %v1877, %v2102
        %v2547 = vmul.f32 %v1877, %v2106
        %v2548 = vmul.f32 %v1877, %v2110
        %v2549 = vmul.f32 %v1877, %v2114
        %v2550 = vmul.f32 %v1877, %v2118
        %v2551 = vmul.f32 %v1877, %v2122
        %v2552 = vmul.f32 %v1877, %v2126
        %v2553 = vmul.f32 %v1877, %v2130
        %v2554 = vmul.f32 %v1877, %v2134
        %v2555 = vmul.f32 %v1877, %v2138
        %v2556 = vmul.f32 %v1877, %v2142
        %v2557 = vmul.f32 %v1877, %v2146
        %v2558 = vmul.f32 %v1877, %v2150
        %v2559 = vmul.f32 %v1877, %v2154
        %v2560 = vmul.f32 %v1877, %v2158
        %v2561 = vmul.f32 %v1877, %v2162
        %v2562 = vmul.f32 %v1877, %v2166
        %v2563 = vmul.f32 %v1877, %v2170
        %v2564 = vmul.f32 %v1877, %v2174
        %v2565 = vmul.f32 %v1877, %v2178
        %v2566 = vmul.f32 %v1877, %v2182
        %v2567 = vmul.f32 %v1881, %v2058
        %v2568 = vmul.f32 %v1881, %v2062
        %v2569 = vmul.f32 %v1881, %v2066
        %v2570 = vmul.f32 %v1881, %v2070
        %v2571 = vmul.f32 %v1881, %v2074
        %v2572 = vmul.f32 %v1881, %v2078
        %v2573 = vmul.f32 %v1881, %v2082
        %v2574 = vmul.f32 %v1881, %v2086
        %v2575 = vmul.f32 %v1881, %v2090
        %v2576 = vmul.f32 %v1881, %v2094
        %v2577 = vmul.f32 %v1881, %v2098
        %v2578 = vmul.f32 %v1881, %v2102
        %v2579 = vmul.f32 %v1881, %v2106
        %v2580 = vmul.f32 %v1881, %v2110
        %v2581 = vmul.f32 %v1881, %v2114
        %v2582 = vmul.f32 %v1881, %v2118
        %v2583 = vmul.f32 %v1881, %v2122
        %v2584 = vmul.f32 %v1881, %v2126
        %v2585 = vmul.f32 %v1881, %v2130
        %v2586 = vmul.f32 %v1881, %v2134
        %v2587 = vmul.f32 %v1881, %v2138
        %v2588 = vmul.f32 %v1881, %v2142
        %v2589 = vmul.f32 %v1881, %v2146
        %v2590 = vmul.f32 %v1881, %v2150
        %v2591 = vmul.f32 %v1881, %v2154
        %v2592 = vmul.f32 %v1881, %v2158
        %v2593 = vmul.f32 %v1881, %v2162
        %v2594 = vmul.f32 %v1881, %v2166
        %v2595 = vmul.f32 %v1881, %v2170
        %v2596 = vmul.f32 %v1881, %v2174
        %v2597 = vmul.f32 %v1881, %v2178
        %v2598 = vmul.f32 %v1881, %v2182
        %v2599 = vmul.f32 %v1885, %v2058
        %v2600 = vmul.f32 %v1885, %v2062
        %v2601 = vmul.f32 %v1885, %v2066
        %v2602 = vmul.f32 %v1885, %v2070
        %v2603 = vmul.f32 %v1885, %v2074
        %v2604 = vmul.f32 %v1885, %v2078
        %v2605 = vmul.f32 %v1885, %v2082
        %v2606 = vmul.f32 %v1885, %v2086
        %v2607 = vmul.f32 %v1885, %v2090
        %v2608 = vmul.f32 %v1885, %v2094
        %v2609 = vmul.f32 %v1885, %v2098
        %v2610 = vmul.f32 %v1885, %v2102
        %v2611 = vmul.f32 %v1885, %v2106
        %v2612 = vmul.f32 %v1885, %v2110
        %v2613 = vmul.f32 %v1885, %v2114
        %v2614 = vmul.f32 %v1885, %v2118
        %v2615 = vmul.f32 %v1885, %v2122
        %v2616 = vmul.f32 %v1885, %v2126
        %v2617 = vmul.f32 %v1885, %v2130
        %v2618 = vmul.f32 %v1885, %v2134
        %v2619 = vmul.f32 %v1885, %v2138
        %v2620 = vmul.f32 %v1885, %v2142
        %v2621 = vmul.f32 %v1885, %v2146
        %v2622 = vmul.f32 %v1885, %v2150
        %v2623 = vmul.f32 %v1885, %v2154
        %v2624 = vmul.f32 %v1885, %v2158
        %v2625 = vmul.f32 %v1885, %v2162
        %v2626 = vmul.f32 %v1885, %v2166
        %v2627 = vmul.f32 %v1885, %v2170
        %v2628 = vmul.f32 %v1885, %v2174
        %v2629 = vmul.f32 %v1885, %v2178
        %v2630 = vmul.f32 %v1885, %v2182
        %v2631 = vmul.f32 %v1889, %v2058
        %v2632 = vmul.f32 %v1889, %v2062
        %v2633 = vmul.f32 %v1889, %v2066
        %v2634 = vmul.f32 %v1889, %v2070
        %v2635 = vmul.f32 %v1889, %v2074
        %v2636 = vmul.f32 %v1889, %v2078
        %v2637 = vmul.f32 %v1889, %v2082
        %v2638 = vmul.f32 %v1889, %v2086
        %v2639 = vmul.f32 %v1889, %v2090
        %v2640 = vmul.f32 %v1889, %v2094
        %v2641 = vmul.f32 %v1889, %v2098
        %v2642 = vmul.f32 %v1889, %v2102
        %v2643 = vmul.f32 %v1889, %v2106
        %v2644 = vmul.f32 %v1889, %v2110
        %v2645 = vmul.f32 %v1889, %v2114
        %v2646 = vmul.f32 %v1889, %v2118
        %v2647 = vmul.f32 %v1889, %v2122
        %v2648 = vmul.f32 %v1889, %v2126
        %v2649 = vmul.f32 %v1889, %v2130
        %v2650 = vmul.f32 %v1889, %v2134
        %v2651 = vmul.f32 %v1889, %v2138
        %v2652 = vmul.f32 %v1889, %v2142
        %v2653 = vmul.f32 %v1889, %v2146
        %v2654 = vmul.f32 %v1889, %v2150
        %v2655 = vmul.f32 %v1889, %v2154
        %v2656 = vmul.f32 %v1889, %v2158
        %v2657 = vmul.f32 %v1889, %v2162
        %v2658 = vmul.f32 %v1889, %v2166
        %v2659 = vmul.f32 %v1889, %v2170
        %v2660 = vmul.f32 %v1889, %v2174
        %v2661 = vmul.f32 %v1889, %v2178
        %v2662 = vmul.f32 %v1889, %v2182
        %v2663 = vmul.f32 %v1893, %v2058
        %v2664 = vmul.f32 %v1893, %v2062
        %v2665 = vmul.f32 %v1893, %v2066
        %v2666 = vmul.f32 %v1893, %v2070
        %v2667 = vmul.f32 %v1893, %v2074
        %v2668 = vmul.f32 %v1893, %v2078
        %v2669 = vmul.f32 %v1893, %v2082
        %v2670 = vmul.f32 %v1893, %v2086
        %v2671 = vmul.f32 %v1893, %v2090
        %v2672 = vmul.f32 %v1893, %v2094
        %v2673 = vmul.f32 %v1893, %v2098
        %v2674 = vmul.f32 %v1893, %v2102
        %v2675 = vmul.f32 %v1893, %v2106
        %v2676 = vmul.f32 %v1893, %v2110
        %v2677 = vmul.f32 %v1893, %v2114
        %v2678 = vmul.f32 %v1893, %v2118
        %v2679 = vmul.f32 %v1893, %v2122
        %v2680 = vmul.f32 %v1893, %v2126
        %v2681 = vmul.f32 %v1893, %v2130
        %v2682 = vmul.f32 %v1893, %v2134
        %v2683 = vmul.f32 %v1893, %v2138
        %v2684 = vmul.f32 %v1893, %v2142
        %v2685 = vmul.f32 %v1893, %v2146
        %v2686 = vmul.f32 %v1893, %v2150
        %v2687 = vmul.f32 %v1893, %v2154
        %v2688 = vmul.f32 %v1893, %v2158
        %v2689 = vmul.f32 %v1893, %v2162
        %v2690 = vmul.f32 %v1893, %v2166
        %v2691 = vmul.f32 %v1893, %v2170
        %v2692 = vmul.f32 %v1893, %v2174
        %v2693 = vmul.f32 %v1893, %v2178
        %v2694 = vmul.f32 %v1893, %v2182
        %v2695 = vadd.f32 %v1319, %v2183
        %v2696 = vadd.f32 %v1320, %v2184
        %v2697 = vadd.f32 %v1321, %v2185
        %v2698 = vadd.f32 %v1322, %v2186
        %v2699 = vadd.f32 %v1323, %v2187
        %v2700 = vadd.f32 %v1324, %v2188
        %v2701 = vadd.f32 %v1325, %v2189
        %v2702 = vadd.f32 %v1326, %v2190
        %v2703 = vadd.f32 %v1327, %v2191
        %v2704 = vadd.f32 %v1328, %v2192
        %v2705 = vadd.f32 %v1329, %v2193
        %v2706 = vadd.f32 %v1330, %v2194
        %v2707 = vadd.f32 %v1331, %v2195
        %v2708 = vadd.f32 %v1332, %v2196
        %v2709 = vadd.f32 %v1333, %v2197
        %v2710 = vadd.f32 %v1334, %v2198
        %v2711 = vadd.f32 %v1335, %v2199
        %v2712 = vadd.f32 %v1336, %v2200
        %v2713 = vadd.f32 %v1337, %v2201
        %v2714 = vadd.f32 %v1338, %v2202
        %v2715 = vadd.f32 %v1339, %v2203
        %v2716 = vadd.f32 %v1340, %v2204
        %v2717 = vadd.f32 %v1341, %v2205
        %v2718 = vadd.f32 %v1342, %v2206
        %v2719 = vadd.f32 %v1343, %v2207
        %v2720 = vadd.f32 %v1344, %v2208
        %v2721 = vadd.f32 %v1345, %v2209
        %v2722 = vadd.f32 %v1346, %v2210
        %v2723 = vadd.f32 %v1347, %v2211
        %v2724 = vadd.f32 %v1348, %v2212
        %v2725 = vadd.f32 %v1349, %v2213
        %v2726 = vadd.f32 %v1350, %v2214
        %v2727 = vadd.f32 %v1351, %v2215
        %v2728 = vadd.f32 %v1352, %v2216
        %v2729 = vadd.f32 %v1353, %v2217
        %v2730 = vadd.f32 %v1354, %v2218
        %v2731 = vadd.f32 %v1355, %v2219
        %v2732 = vadd.f32 %v1356, %v2220
        %v2733 = vadd.f32 %v1357, %v2221
        %v2734 = vadd.f32 %v1358, %v2222
        %v2735 = vadd.f32 %v1359, %v2223
        %v2736 = vadd.f32 %v1360, %v2224
        %v2737 = vadd.f32 %v1361, %v2225
        %v2738 = vadd.f32 %v1362, %v2226
        %v2739 = vadd.f32 %v1363, %v2227
        %v2740 = vadd.f32 %v1364, %v2228
        %v2741 = vadd.f32 %v1365, %v2229
        %v2742 = vadd.f32 %v1366, %v2230
        %v2743 = vadd.f32 %v1367, %v2231
        %v2744 = vadd.f32 %v1368, %v2232
        %v2745 = vadd.f32 %v1369, %v2233
        %v2746 = vadd.f32 %v1370, %v2234
        %v2747 = vadd.f32 %v1371, %v2235
        %v2748 = vadd.f32 %v1372, %v2236
        %v2749 = vadd.f32 %v1373, %v2237
        %v2750 = vadd.f32 %v1374, %v2238
        %v2751 = vadd.f32 %v1375, %v2239
        %v2752 = vadd.f32 %v1376, %v2240
        %v2753 = vadd.f32 %v1377, %v2241
        %v2754 = vadd.f32 %v1378, %v2242
        %v2755 = vadd.f32 %v1379, %v2243
        %v2756 = vadd.f32 %v1380, %v2244
        %v2757 = vadd.f32 %v1381, %v2245
        %v2758 = vadd.f32 %v1382, %v2246
        %v2759 = vadd.f32 %v1383, %v2247
        %v2760 = vadd.f32 %v1384, %v2248
        %v2761 = vadd.f32 %v1385, %v2249
        %v2762 = vadd.f32 %v1386, %v2250
        %v2763 = vadd.f32 %v1387, %v2251
        %v2764 = vadd.f32 %v1388, %v2252
        %v2765 = vadd.f32 %v1389, %v2253
        %v2766 = vadd.f32 %v1390, %v2254
        %v2767 = vadd.f32 %v1391, %v2255
        %v2768 = vadd.f32 %v1392, %v2256
        %v2769 = vadd.f32 %v1393, %v2257
        %v2770 = vadd.f32 %v1394, %v2258
        %v2771 = vadd.f32 %v1395, %v2259
        %v2772 = vadd.f32 %v1396, %v2260
        %v2773 = vadd.f32 %v1397, %v2261
        %v2774 = vadd.f32 %v1398, %v2262
        %v2775 = vadd.f32 %v1399, %v2263
        %v2776 = vadd.f32 %v1400, %v2264
        %v2777 = vadd.f32 %v1401, %v2265
        %v2778 = vadd.f32 %v1402, %v2266
        %v2779 = vadd.f32 %v1403, %v2267
        %v2780 = vadd.f32 %v1404, %v2268
        %v2781 = vadd.f32 %v1405, %v2269
        %v2782 = vadd.f32 %v1406, %v2270
        %v2783 = vadd.f32 %v1407, %v2271
        %v2784 = vadd.f32 %v1408, %v2272
        %v2785 = vadd.f32 %v1409, %v2273
        %v2786 = vadd.f32 %v1410, %v2274
        %v2787 = vadd.f32 %v1411, %v2275
        %v2788 = vadd.f32 %v1412, %v2276
        %v2789 = vadd.f32 %v1413, %v2277
        %v2790 = vadd.f32 %v1414, %v2278
        %v2791 = vadd.f32 %v1415, %v2279
        %v2792 = vadd.f32 %v1416, %v2280
        %v2793 = vadd.f32 %v1417, %v2281
        %v2794 = vadd.f32 %v1418, %v2282
        %v2795 = vadd.f32 %v1419, %v2283
        %v2796 = vadd.f32 %v1420, %v2284
        %v2797 = vadd.f32 %v1421, %v2285
        %v2798 = vadd.f32 %v1422, %v2286
        %v2799 = vadd.f32 %v1423, %v2287
        %v2800 = vadd.f32 %v1424, %v2288
        %v2801 = vadd.f32 %v1425, %v2289
        %v2802 = vadd.f32 %v1426, %v2290
        %v2803 = vadd.f32 %v1427, %v2291
        %v2804 = vadd.f32 %v1428, %v2292
        %v2805 = vadd.f32 %v1429, %v2293
        %v2806 = vadd.f32 %v1430, %v2294
        %v2807 = vadd.f32 %v1431, %v2295
        %v2808 = vadd.f32 %v1432, %v2296
        %v2809 = vadd.f32 %v1433, %v2297
        %v2810 = vadd.f32 %v1434, %v2298
        %v2811 = vadd.f32 %v1435, %v2299
        %v2812 = vadd.f32 %v1436, %v2300
        %v2813 = vadd.f32 %v1437, %v2301
        %v2814 = vadd.f32 %v1438, %v2302
        %v2815 = vadd.f32 %v1439, %v2303
        %v2816 = vadd.f32 %v1440, %v2304
        %v2817 = vadd.f32 %v1441, %v2305
        %v2818 = vadd.f32 %v1442, %v2306
        %v2819 = vadd.f32 %v1443, %v2307
        %v2820 = vadd.f32 %v1444, %v2308
        %v2821 = vadd.f32 %v1445, %v2309
        %v2822 = vadd.f32 %v1446, %v2310
        %v2823 = vadd.f32 %v1447, %v2311
        %v2824 = vadd.f32 %v1448, %v2312
        %v2825 = vadd.f32 %v1449, %v2313
        %v2826 = vadd.f32 %v1450, %v2314
        %v2827 = vadd.f32 %v1451, %v2315
        %v2828 = vadd.f32 %v1452, %v2316
        %v2829 = vadd.f32 %v1453, %v2317
        %v2830 = vadd.f32 %v1454, %v2318
        %v2831 = vadd.f32 %v1455, %v2319
        %v2832 = vadd.f32 %v1456, %v2320
        %v2833 = vadd.f32 %v1457, %v2321
        %v2834 = vadd.f32 %v1458, %v2322
        %v2835 = vadd.f32 %v1459, %v2323
        %v2836 = vadd.f32 %v1460, %v2324
        %v2837 = vadd.f32 %v1461, %v2325
        %v2838 = vadd.f32 %v1462, %v2326
        %v2839 = vadd.f32 %v1463, %v2327
        %v2840 = vadd.f32 %v1464, %v2328
        %v2841 = vadd.f32 %v1465, %v2329
        %v2842 = vadd.f32 %v1466, %v2330
        %v2843 = vadd.f32 %v1467, %v2331
        %v2844 = vadd.f32 %v1468, %v2332
        %v2845 = vadd.f32 %v1469, %v2333
        %v2846 = vadd.f32 %v1470, %v2334
        %v2847 = vadd.f32 %v1471, %v2335
        %v2848 = vadd.f32 %v1472, %v2336
        %v2849 = vadd.f32 %v1473, %v2337
        %v2850 = vadd.f32 %v1474, %v2338
        %v2851 = vadd.f32 %v1475, %v2339
        %v2852 = vadd.f32 %v1476, %v2340
        %v2853 = vadd.f32 %v1477, %v2341
        %v2854 = vadd.f32 %v1478, %v2342
        %v2855 = vadd.f32 %v1479, %v2343
        %v2856 = vadd.f32 %v1480, %v2344
        %v2857 = vadd.f32 %v1481, %v2345
        %v2858 = vadd.f32 %v1482, %v2346
        %v2859 = vadd.f32 %v1483, %v2347
        %v2860 = vadd.f32 %v1484, %v2348
        %v2861 = vadd.f32 %v1485, %v2349
        %v2862 = vadd.f32 %v1486, %v2350
        %v2863 = vadd.f32 %v1487, %v2351
        %v2864 = vadd.f32 %v1488, %v2352
        %v2865 = vadd.f32 %v1489, %v2353
        %v2866 = vadd.f32 %v1490, %v2354
        %v2867 = vadd.f32 %v1491, %v2355
        %v2868 = vadd.f32 %v1492, %v2356
        %v2869 = vadd.f32 %v1493, %v2357
        %v2870 = vadd.f32 %v1494, %v2358
        %v2871 = vadd.f32 %v1495, %v2359
        %v2872 = vadd.f32 %v1496, %v2360
        %v2873 = vadd.f32 %v1497, %v2361
        %v2874 = vadd.f32 %v1498, %v2362
        %v2875 = vadd.f32 %v1499, %v2363
        %v2876 = vadd.f32 %v1500, %v2364
        %v2877 = vadd.f32 %v1501, %v2365
        %v2878 = vadd.f32 %v1502, %v2366
        %v2879 = vadd.f32 %v1503, %v2367
        %v2880 = vadd.f32 %v1504, %v2368
        %v2881 = vadd.f32 %v1505, %v2369
        %v2882 = vadd.f32 %v1506, %v2370
        %v2883 = vadd.f32 %v1507, %v2371
        %v2884 = vadd.f32 %v1508, %v2372
        %v2885 = vadd.f32 %v1509, %v2373
        %v2886 = vadd.f32 %v1510, %v2374
        %v2887 = vadd.f32 %v1511, %v2375
        %v2888 = vadd.f32 %v1512, %v2376
        %v2889 = vadd.f32 %v1513, %v2377
        %v2890 = vadd.f32 %v1514, %v2378
        %v2891 = vadd.f32 %v1515, %v2379
        %v2892 = vadd.f32 %v1516, %v2380
        %v2893 = vadd.f32 %v1517, %v2381
        %v2894 = vadd.f32 %v1518, %v2382
        %v2895 = vadd.f32 %v1519, %v2383
        %v2896 = vadd.f32 %v1520, %v2384
        %v2897 = vadd.f32 %v1521, %v2385
        %v2898 = vadd.f32 %v1522, %v2386
        %v2899 = vadd.f32 %v1523, %v2387
        %v2900 = vadd.f32 %v1524, %v2388
        %v2901 = vadd.f32 %v1525, %v2389
        %v2902 = vadd.f32 %v1526, %v2390
        %v2903 = vadd.f32 %v1527, %v2391
        %v2904 = vadd.f32 %v1528, %v2392
        %v2905 = vadd.f32 %v1529, %v2393
        %v2906 = vadd.f32 %v1530, %v2394
        %v2907 = vadd.f32 %v1531, %v2395
        %v2908 = vadd.f32 %v1532, %v2396
        %v2909 = vadd.f32 %v1533, %v2397
        %v2910 = vadd.f32 %v1534, %v2398
        %v2911 = vadd.f32 %v1535, %v2399
        %v2912 = vadd.f32 %v1536, %v2400
        %v2913 = vadd.f32 %v1537, %v2401
        %v2914 = vadd.f32 %v1538, %v2402
        %v2915 = vadd.f32 %v1539, %v2403
        %v2916 = vadd.f32 %v1540, %v2404
        %v2917 = vadd.f32 %v1541, %v2405
        %v2918 = vadd.f32 %v1542, %v2406
        %v2919 = vadd.f32 %v1543, %v2407
        %v2920 = vadd.f32 %v1544, %v2408
        %v2921 = vadd.f32 %v1545, %v2409
        %v2922 = vadd.f32 %v1546, %v2410
        %v2923 = vadd.f32 %v1547, %v2411
        %v2924 = vadd.f32 %v1548, %v2412
        %v2925 = vadd.f32 %v1549, %v2413
        %v2926 = vadd.f32 %v1550, %v2414
        %v2927 = vadd.f32 %v1551, %v2415
        %v2928 = vadd.f32 %v1552, %v2416
        %v2929 = vadd.f32 %v1553, %v2417
        %v2930 = vadd.f32 %v1554, %v2418
        %v2931 = vadd.f32 %v1555, %v2419
        %v2932 = vadd.f32 %v1556, %v2420
        %v2933 = vadd.f32 %v1557, %v2421
        %v2934 = vadd.f32 %v1558, %v2422
        %v2935 = vadd.f32 %v1559, %v2423
        %v2936 = vadd.f32 %v1560, %v2424
        %v2937 = vadd.f32 %v1561, %v2425
        %v2938 = vadd.f32 %v1562, %v2426
        %v2939 = vadd.f32 %v1563, %v2427
        %v2940 = vadd.f32 %v1564, %v2428
        %v2941 = vadd.f32 %v1565, %v2429
        %v2942 = vadd.f32 %v1566, %v2430
        %v2943 = vadd.f32 %v1567, %v2431
        %v2944 = vadd.f32 %v1568, %v2432
        %v2945 = vadd.f32 %v1569, %v2433
        %v2946 = vadd.f32 %v1570, %v2434
        %v2947 = vadd.f32 %v1571, %v2435
        %v2948 = vadd.f32 %v1572, %v2436
        %v2949 = vadd.f32 %v1573, %v2437
        %v2950 = vadd.f32 %v1574, %v2438
        %v2951 = vadd.f32 %v1575, %v2439
        %v2952 = vadd.f32 %v1576, %v2440
        %v2953 = vadd.f32 %v1577, %v2441
        %v2954 = vadd.f32 %v1578, %v2442
        %v2955 = vadd.f32 %v1579, %v2443
        %v2956 = vadd.f32 %v1580, %v2444
        %v2957 = vadd.f32 %v1581, %v2445
        %v2958 = vadd.f32 %v1582, %v2446
        %v2959 = vadd.f32 %v1583, %v2447
        %v2960 = vadd.f32 %v1584, %v2448
        %v2961 = vadd.f32 %v1585, %v2449
        %v2962 = vadd.f32 %v1586, %v2450
        %v2963 = vadd.f32 %v1587, %v2451
        %v2964 = vadd.f32 %v1588, %v2452
        %v2965 = vadd.f32 %v1589, %v2453
        %v2966 = vadd.f32 %v1590, %v2454
        %v2967 = vadd.f32 %v1591, %v2455
        %v2968 = vadd.f32 %v1592, %v2456
        %v2969 = vadd.f32 %v1593, %v2457
        %v2970 = vadd.f32 %v1594, %v2458
        %v2971 = vadd.f32 %v1595, %v2459
        %v2972 = vadd.f32 %v1596, %v2460
        %v2973 = vadd.f32 %v1597, %v2461
        %v2974 = vadd.f32 %v1598, %v2462
        %v2975 = vadd.f32 %v1599, %v2463
        %v2976 = vadd.f32 %v1600, %v2464
        %v2977 = vadd.f32 %v1601, %v2465
        %v2978 = vadd.f32 %v1602, %v2466
        %v2979 = vadd.f32 %v1603, %v2467
        %v2980 = vadd.f32 %v1604, %v2468
        %v2981 = vadd.f32 %v1605, %v2469
        %v2982 = vadd.f32 %v1606, %v2470
        %v2983 = vadd.f32 %v1607, %v2471
        %v2984 = vadd.f32 %v1608, %v2472
        %v2985 = vadd.f32 %v1609, %v2473
        %v2986 = vadd.f32 %v1610, %v2474
        %v2987 = vadd.f32 %v1611, %v2475
        %v2988 = vadd.f32 %v1612, %v2476
        %v2989 = vadd.f32 %v1613, %v2477
        %v2990 = vadd.f32 %v1614, %v2478
        %v2991 = vadd.f32 %v1615, %v2479
        %v2992 = vadd.f32 %v1616, %v2480
        %v2993 = vadd.f32 %v1617, %v2481
        %v2994 = vadd.f32 %v1618, %v2482
        %v2995 = vadd.f32 %v1619, %v2483
        %v2996 = vadd.f32 %v1620, %v2484
        %v2997 = vadd.f32 %v1621, %v2485
        %v2998 = vadd.f32 %v1622, %v2486
        %v2999 = vadd.f32 %v1623, %v2487
        %v3000 = vadd.f32 %v1624, %v2488
        %v3001 = vadd.f32 %v1625, %v2489
        %v3002 = vadd.f32 %v1626, %v2490
        %v3003 = vadd.f32 %v1627, %v2491
        %v3004 = vadd.f32 %v1628, %v2492
        %v3005 = vadd.f32 %v1629, %v2493
        %v3006 = vadd.f32 %v1630, %v2494
        %v3007 = vadd.f32 %v1631, %v2495
        %v3008 = vadd.f32 %v1632, %v2496
        %v3009 = vadd.f32 %v1633, %v2497
        %v3010 = vadd.f32 %v1634, %v2498
        %v3011 = vadd.f32 %v1635, %v2499
        %v3012 = vadd.f32 %v1636, %v2500
        %v3013 = vadd.f32 %v1637, %v2501
        %v3014 = vadd.f32 %v1638, %v2502
        %v3015 = vadd.f32 %v1639, %v2503
        %v3016 = vadd.f32 %v1640, %v2504
        %v3017 = vadd.f32 %v1641, %v2505
        %v3018 = vadd.f32 %v1642, %v2506
        %v3019 = vadd.f32 %v1643, %v2507
        %v3020 = vadd.f32 %v1644, %v2508
        %v3021 = vadd.f32 %v1645, %v2509
        %v3022 = vadd.f32 %v1646, %v2510
        %v3023 = vadd.f32 %v1647, %v2511
        %v3024 = vadd.f32 %v1648, %v2512
        %v3025 = vadd.f32 %v1649, %v2513
        %v3026 = vadd.f32 %v1650, %v2514
        %v3027 = vadd.f32 %v1651, %v2515
        %v3028 = vadd.f32 %v1652, %v2516
        %v3029 = vadd.f32 %v1653, %v2517
        %v3030 = vadd.f32 %v1654, %v2518
        %v3031 = vadd.f32 %v1655, %v2519
        %v3032 = vadd.f32 %v1656, %v2520
        %v3033 = vadd.f32 %v1657, %v2521
        %v3034 = vadd.f32 %v1658, %v2522
        %v3035 = vadd.f32 %v1659, %v2523
        %v3036 = vadd.f32 %v1660, %v2524
        %v3037 = vadd.f32 %v1661, %v2525
        %v3038 = vadd.f32 %v1662, %v2526
        %v3039 = vadd.f32 %v1663, %v2527
        %v3040 = vadd.f32 %v1664, %v2528
        %v3041 = vadd.f32 %v1665, %v2529
        %v3042 = vadd.f32 %v1666, %v2530
        %v3043 = vadd.f32 %v1667, %v2531
        %v3044 = vadd.f32 %v1668, %v2532
        %v3045 = vadd.f32 %v1669, %v2533
        %v3046 = vadd.f32 %v1670, %v2534
        %v3047 = vadd.f32 %v1671, %v2535
        %v3048 = vadd.f32 %v1672, %v2536
        %v3049 = vadd.f32 %v1673, %v2537
        %v3050 = vadd.f32 %v1674, %v2538
        %v3051 = vadd.f32 %v1675, %v2539
        %v3052 = vadd.f32 %v1676, %v2540
        %v3053 = vadd.f32 %v1677, %v2541
        %v3054 = vadd.f32 %v1678, %v2542
        %v3055 = vadd.f32 %v1679, %v2543
        %v3056 = vadd.f32 %v1680, %v2544
        %v3057 = vadd.f32 %v1681, %v2545
        %v3058 = vadd.f32 %v1682, %v2546
        %v3059 = vadd.f32 %v1683, %v2547
        %v3060 = vadd.f32 %v1684, %v2548
        %v3061 = vadd.f32 %v1685, %v2549
        %v3062 = vadd.f32 %v1686, %v2550
        %v3063 = vadd.f32 %v1687, %v2551
        %v3064 = vadd.f32 %v1688, %v2552
        %v3065 = vadd.f32 %v1689, %v2553
        %v3066 = vadd.f32 %v1690, %v2554
        %v3067 = vadd.f32 %v1691, %v2555
        %v3068 = vadd.f32 %v1692, %v2556
        %v3069 = vadd.f32 %v1693, %v2557
        %v3070 = vadd.f32 %v1694, %v2558
        %v3071 = vadd.f32 %v1695, %v2559
        %v3072 = vadd.f32 %v1696, %v2560
        %v3073 = vadd.f32 %v1697, %v2561
        %v3074 = vadd.f32 %v1698, %v2562
        %v3075 = vadd.f32 %v1699, %v2563
        %v3076 = vadd.f32 %v1700, %v2564
        %v3077 = vadd.f32 %v1701, %v2565
        %v3078 = vadd.f32 %v1702, %v2566
        %v3079 = vadd.f32 %v1703, %v2567
        %v3080 = vadd.f32 %v1704, %v2568
        %v3081 = vadd.f32 %v1705, %v2569
        %v3082 = vadd.f32 %v1706, %v2570
        %v3083 = vadd.f32 %v1707, %v2571
        %v3084 = vadd.f32 %v1708, %v2572
        %v3085 = vadd.f32 %v1709, %v2573
        %v3086 = vadd.f32 %v1710, %v2574
        %v3087 = vadd.f32 %v1711, %v2575
        %v3088 = vadd.f32 %v1712, %v2576
        %v3089 = vadd.f32 %v1713, %v2577
        %v3090 = vadd.f32 %v1714, %v2578
        %v3091 = vadd.f32 %v1715, %v2579
        %v3092 = vadd.f32 %v1716, %v2580
        %v3093 = vadd.f32 %v1717, %v2581
        %v3094 = vadd.f32 %v1718, %v2582
        %v3095 = vadd.f32 %v1719, %v2583
        %v3096 = vadd.f32 %v1720, %v2584
        %v3097 = vadd.f32 %v1721, %v2585
        %v3098 = vadd.f32 %v1722, %v2586
        %v3099 = vadd.f32 %v1723, %v2587
        %v3100 = vadd.f32 %v1724, %v2588
        %v3101 = vadd.f32 %v1725, %v2589
        %v3102 = vadd.f32 %v1726, %v2590
        %v3103 = vadd.f32 %v1727, %v2591
        %v3104 = vadd.f32 %v1728, %v2592
        %v3105 = vadd.f32 %v1729, %v2593
        %v3106 = vadd.f32 %v1730, %v2594
        %v3107 = vadd.f32 %v1731, %v2595
        %v3108 = vadd.f32 %v1732, %v2596
        %v3109 = vadd.f32 %v1733, %v2597
        %v3110 = vadd.f32 %v1734, %v2598
        %v3111 = vadd.f32 %v1735, %v2599
        %v3112 = vadd.f32 %v1736, %v2600
        %v3113 = vadd.f32 %v1737, %v2601
        %v3114 = vadd.f32 %v1738, %v2602
        %v3115 = vadd.f32 %v1739, %v2603
        %v3116 = vadd.f32 %v1740, %v2604
        %v3117 = vadd.f32 %v1741, %v2605
        %v3118 = vadd.f32 %v1742, %v2606
        %v3119 = vadd.f32 %v1743, %v2607
        %v3120 = vadd.f32 %v1744, %v2608
        %v3121 = vadd.f32 %v1745, %v2609
        %v3122 = vadd.f32 %v1746, %v2610
        %v3123 = vadd.f32 %v1747, %v2611
        %v3124 = vadd.f32 %v1748, %v2612
        %v3125 = vadd.f32 %v1749, %v2613
        %v3126 = vadd.f32 %v1750, %v2614
        %v3127 = vadd.f32 %v1751, %v2615
        %v3128 = vadd.f32 %v1752, %v2616
        %v3129 = vadd.f32 %v1753, %v2617
        %v3130 = vadd.f32 %v1754, %v2618
        %v3131 = vadd.f32 %v1755, %v2619
        %v3132 = vadd.f32 %v1756, %v2620
        %v3133 = vadd.f32 %v1757, %v2621
        %v3134 = vadd.f32 %v1758, %v2622
        %v3135 = vadd.f32 %v1759, %v2623
        %v3136 = vadd.f32 %v1760, %v2624
        %v3137 = vadd.f32 %v1761, %v2625
        %v3138 = vadd.f32 %v1762, %v2626
        %v3139 = vadd.f32 %v1763, %v2627
        %v3140 = vadd.f32 %v1764, %v2628
        %v3141 = vadd.f32 %v1765, %v2629
        %v3142 = vadd.f32 %v1766, %v2630
        %v3143 = vadd.f32 %v1767, %v2631
        %v3144 = vadd.f32 %v1768, %v2632
        %v3145 = vadd.f32 %v1769, %v2633
        %v3146 = vadd.f32 %v1770, %v2634
        %v3147 = vadd.f32 %v1771, %v2635
        %v3148 = vadd.f32 %v1772, %v2636
        %v3149 = vadd.f32 %v1773, %v2637
        %v3150 = vadd.f32 %v1774, %v2638
        %v3151 = vadd.f32 %v1775, %v2639
        %v3152 = vadd.f32 %v1776, %v2640
        %v3153 = vadd.f32 %v1777, %v2641
        %v3154 = vadd.f32 %v1778, %v2642
        %v3155 = vadd.f32 %v1779, %v2643
        %v3156 = vadd.f32 %v1780, %v2644
        %v3157 = vadd.f32 %v1781, %v2645
        %v3158 = vadd.f32 %v1782, %v2646
        %v3159 = vadd.f32 %v1783, %v2647
        %v3160 = vadd.f32 %v1784, %v2648
        %v3161 = vadd.f32 %v1785, %v2649
        %v3162 = vadd.f32 %v1786, %v2650
        %v3163 = vadd.f32 %v1787, %v2651
        %v3164 = vadd.f32 %v1788, %v2652
        %v3165 = vadd.f32 %v1789, %v2653
        %v3166 = vadd.f32 %v1790, %v2654
        %v3167 = vadd.f32 %v1791, %v2655
        %v3168 = vadd.f32 %v1792, %v2656
        %v3169 = vadd.f32 %v1793, %v2657
        %v3170 = vadd.f32 %v1794, %v2658
        %v3171 = vadd.f32 %v1795, %v2659
        %v3172 = vadd.f32 %v1796, %v2660
        %v3173 = vadd.f32 %v1797, %v2661
        %v3174 = vadd.f32 %v1798, %v2662
        %v3175 = vadd.f32 %v1799, %v2663
        %v3176 = vadd.f32 %v1800, %v2664
        %v3177 = vadd.f32 %v1801, %v2665
        %v3178 = vadd.f32 %v1802, %v2666
        %v3179 = vadd.f32 %v1803, %v2667
        %v3180 = vadd.f32 %v1804, %v2668
        %v3181 = vadd.f32 %v1805, %v2669
        %v3182 = vadd.f32 %v1806, %v2670
        %v3183 = vadd.f32 %v1807, %v2671
        %v3184 = vadd.f32 %v1808, %v2672
        %v3185 = vadd.f32 %v1809, %v2673
        %v3186 = vadd.f32 %v1810, %v2674
        %v3187 = vadd.f32 %v1811, %v2675
        %v3188 = vadd.f32 %v1812, %v2676
        %v3189 = vadd.f32 %v1813, %v2677
        %v3190 = vadd.f32 %v1814, %v2678
        %v3191 = vadd.f32 %v1815, %v2679
        %v3192 = vadd.f32 %v1816, %v2680
        %v3193 = vadd.f32 %v1817, %v2681
        %v3194 = vadd.f32 %v1818, %v2682
        %v3195 = vadd.f32 %v1819, %v2683
        %v3196 = vadd.f32 %v1820, %v2684
        %v3197 = vadd.f32 %v1821, %v2685
        %v3198 = vadd.f32 %v1822, %v2686
        %v3199 = vadd.f32 %v1823, %v2687
        %v3200 = vadd.f32 %v1824, %v2688
        %v3201 = vadd.f32 %v1825, %v2689
        %v3202 = vadd.f32 %v1826, %v2690
        %v3203 = vadd.f32 %v1827, %v2691
        %v3204 = vadd.f32 %v1828, %v2692
        %v3205 = vadd.f32 %v1829, %v2693
        %v3206 = vadd.f32 %v1830, %v2694
        %3207 = vset.pattern.permute.xlu0 2
        %3208 = vperm.xlu0 %3207, %v311
        %v3209 = vpop.permute.xlu0 %3208
        %3211 = vset.pattern.permute.xlu0 2
        %3212 = vperm.xlu0 %3211, %v312
        %v3213 = vpop.permute.xlu0 %3212
        %3215 = vset.pattern.permute.xlu0 2
        %3216 = vperm.xlu0 %3215, %v313
        %v3217 = vpop.permute.xlu0 %3216
        %3219 = vset.pattern.permute.xlu0 2
        %3220 = vperm.xlu0 %3219, %v314
        %v3221 = vpop.permute.xlu0 %3220
        %3223 = vset.pattern.permute.xlu0 2
        %3224 = vperm.xlu0 %3223, %v315
        %v3225 = vpop.permute.xlu0 %3224
        %3227 = vset.pattern.permute.xlu0 2
        %3228 = vperm.xlu0 %3227, %v316
        %v3229 = vpop.permute.xlu0 %3228
        %3231 = vset.pattern.permute.xlu0 2
        %3232 = vperm.xlu0 %3231, %v317
        %v3233 = vpop.permute.xlu0 %3232
        %3235 = vset.pattern.permute.xlu0 2
        %3236 = vperm.xlu0 %3235, %v318
        %v3237 = vpop.permute.xlu0 %3236
        %3239 = vset.pattern.permute.xlu0 2
        %3240 = vperm.xlu0 %3239, %v319
        %v3241 = vpop.permute.xlu0 %3240
        %3243 = vset.pattern.permute.xlu0 2
        %3244 = vperm.xlu0 %3243, %v320
        %v3245 = vpop.permute.xlu0 %3244
        %3247 = vset.pattern.permute.xlu0 2
        %3248 = vperm.xlu0 %3247, %v321
        %v3249 = vpop.permute.xlu0 %3248
        %3251 = vset.pattern.permute.xlu0 2
        %3252 = vperm.xlu0 %3251, %v322
        %v3253 = vpop.permute.xlu0 %3252
        %3255 = vset.pattern.permute.xlu0 2
        %3256 = vperm.xlu0 %3255, %v323
        %v3257 = vpop.permute.xlu0 %3256
        %3259 = vset.pattern.permute.xlu0 2
        %3260 = vperm.xlu0 %3259, %v324
        %v3261 = vpop.permute.xlu0 %3260
        %3263 = vset.pattern.permute.xlu0 2
        %3264 = vperm.xlu0 %3263, %v325
        %v3265 = vpop.permute.xlu0 %3264
        %3267 = vset.pattern.permute.xlu0 2
        %3268 = vperm.xlu0 %3267, %v326
        %v3269 = vpop.permute.xlu0 %3268
        %v3271 = vlaneseq
        %v3272 = vshrl.u32 %v3271, 7
        %v3273 = vsub.s32 2, %v3272
        %v3274 = vrot.slane %v295, %v3273
        %v3275 = vlaneseq
        %v3276 = vshrl.u32 %v3275, 7
        %v3277 = vsub.s32 6, %v3276
        %v3278 = vrot.slane %v295, %v3277
        %v3279 = vlaneseq
        %v3280 = vshrl.u32 %v3279, 7
        %v3281 = vsub.s32 2, %v3280
        %v3282 = vrot.slane %v296, %v3281
        %v3283 = vlaneseq
        %v3284 = vshrl.u32 %v3283, 7
        %v3285 = vsub.s32 6, %v3284
        %v3286 = vrot.slane %v296, %v3285
        %v3287 = vlaneseq
        %v3288 = vshrl.u32 %v3287, 7
        %v3289 = vsub.s32 2, %v3288
        %v3290 = vrot.slane %v297, %v3289
        %v3291 = vlaneseq
        %v3292 = vshrl.u32 %v3291, 7
        %v3293 = vsub.s32 6, %v3292
        %v3294 = vrot.slane %v297, %v3293
        %v3295 = vlaneseq
        %v3296 = vshrl.u32 %v3295, 7
        %v3297 = vsub.s32 2, %v3296
        %v3298 = vrot.slane %v298, %v3297
        %v3299 = vlaneseq
        %v3300 = vshrl.u32 %v3299, 7
        %v3301 = vsub.s32 6, %v3300
        %v3302 = vrot.slane %v298, %v3301
        %v3303 = vlaneseq
        %v3304 = vshrl.u32 %v3303, 7
        %v3305 = vsub.s32 2, %v3304
        %v3306 = vrot.slane %v299, %v3305
        %v3307 = vlaneseq
        %v3308 = vshrl.u32 %v3307, 7
        %v3309 = vsub.s32 6, %v3308
        %v3310 = vrot.slane %v299, %v3309
        %v3311 = vlaneseq
        %v3312 = vshrl.u32 %v3311, 7
        %v3313 = vsub.s32 2, %v3312
        %v3314 = vrot.slane %v300, %v3313
        %v3315 = vlaneseq
        %v3316 = vshrl.u32 %v3315, 7
        %v3317 = vsub.s32 6, %v3316
        %v3318 = vrot.slane %v300, %v3317
        %v3319 = vlaneseq
        %v3320 = vshrl.u32 %v3319, 7
        %v3321 = vsub.s32 2, %v3320
        %v3322 = vrot.slane %v301, %v3321
        %v3323 = vlaneseq
        %v3324 = vshrl.u32 %v3323, 7
        %v3325 = vsub.s32 6, %v3324
        %v3326 = vrot.slane %v301, %v3325
        %v3327 = vlaneseq
        %v3328 = vshrl.u32 %v3327, 7
        %v3329 = vsub.s32 2, %v3328
        %v3330 = vrot.slane %v302, %v3329
        %v3331 = vlaneseq
        %v3332 = vshrl.u32 %v3331, 7
        %v3333 = vsub.s32 6, %v3332
        %v3334 = vrot.slane %v302, %v3333
        %v3335 = vlaneseq
        %v3336 = vshrl.u32 %v3335, 7
        %v3337 = vsub.s32 2, %v3336
        %v3338 = vrot.slane %v303, %v3337
        %v3339 = vlaneseq
        %v3340 = vshrl.u32 %v3339, 7
        %v3341 = vsub.s32 6, %v3340
        %v3342 = vrot.slane %v303, %v3341
        %v3343 = vlaneseq
        %v3344 = vshrl.u32 %v3343, 7
        %v3345 = vsub.s32 2, %v3344
        %v3346 = vrot.slane %v304, %v3345
        %v3347 = vlaneseq
        %v3348 = vshrl.u32 %v3347, 7
        %v3349 = vsub.s32 6, %v3348
        %v3350 = vrot.slane %v304, %v3349
        %v3351 = vlaneseq
        %v3352 = vshrl.u32 %v3351, 7
        %v3353 = vsub.s32 2, %v3352
        %v3354 = vrot.slane %v305, %v3353
        %v3355 = vlaneseq
        %v3356 = vshrl.u32 %v3355, 7
        %v3357 = vsub.s32 6, %v3356
        %v3358 = vrot.slane %v305, %v3357
        %v3359 = vlaneseq
        %v3360 = vshrl.u32 %v3359, 7
        %v3361 = vsub.s32 2, %v3360
        %v3362 = vrot.slane %v306, %v3361
        %v3363 = vlaneseq
        %v3364 = vshrl.u32 %v3363, 7
        %v3365 = vsub.s32 6, %v3364
        %v3366 = vrot.slane %v306, %v3365
        %v3367 = vlaneseq
        %v3368 = vshrl.u32 %v3367, 7
        %v3369 = vsub.s32 2, %v3368
        %v3370 = vrot.slane %v307, %v3369
        %v3371 = vlaneseq
        %v3372 = vshrl.u32 %v3371, 7
        %v3373 = vsub.s32 6, %v3372
        %v3374 = vrot.slane %v307, %v3373
        %v3375 = vlaneseq
        %v3376 = vshrl.u32 %v3375, 7
        %v3377 = vsub.s32 2, %v3376
        %v3378 = vrot.slane %v308, %v3377
        %v3379 = vlaneseq
        %v3380 = vshrl.u32 %v3379, 7
        %v3381 = vsub.s32 6, %v3380
        %v3382 = vrot.slane %v308, %v3381
        %v3383 = vlaneseq
        %v3384 = vshrl.u32 %v3383, 7
        %v3385 = vsub.s32 2, %v3384
        %v3386 = vrot.slane %v309, %v3385
        %v3387 = vlaneseq
        %v3388 = vshrl.u32 %v3387, 7
        %v3389 = vsub.s32 6, %v3388
        %v3390 = vrot.slane %v309, %v3389
        %v3391 = vlaneseq
        %v3392 = vshrl.u32 %v3391, 7
        %v3393 = vsub.s32 2, %v3392
        %v3394 = vrot.slane %v310, %v3393
        %v3395 = vlaneseq
        %v3396 = vshrl.u32 %v3395, 7
        %v3397 = vsub.s32 6, %v3396
        %v3398 = vrot.slane %v310, %v3397
        %v3431 = vlaneseq
        %v3432 = vshrl.u32 %v3431, 7
        %v3433 = vsub.s32 2, %v3432
        %v3434 = vrot.slane %v3274, %v3433
        %v3435 = vlaneseq
        %v3436 = vshrl.u32 %v3435, 7
        %v3437 = vsub.s32 2, %v3436
        %v3438 = vrot.slane %v3278, %v3437
        %v3439 = vlaneseq
        %v3440 = vshrl.u32 %v3439, 7
        %v3441 = vsub.s32 2, %v3440
        %v3442 = vrot.slane %v3282, %v3441
        %v3443 = vlaneseq
        %v3444 = vshrl.u32 %v3443, 7
        %v3445 = vsub.s32 2, %v3444
        %v3446 = vrot.slane %v3286, %v3445
        %v3447 = vlaneseq
        %v3448 = vshrl.u32 %v3447, 7
        %v3449 = vsub.s32 2, %v3448
        %v3450 = vrot.slane %v3290, %v3449
        %v3451 = vlaneseq
        %v3452 = vshrl.u32 %v3451, 7
        %v3453 = vsub.s32 2, %v3452
        %v3454 = vrot.slane %v3294, %v3453
        %v3455 = vlaneseq
        %v3456 = vshrl.u32 %v3455, 7
        %v3457 = vsub.s32 2, %v3456
        %v3458 = vrot.slane %v3298, %v3457
        %v3459 = vlaneseq
        %v3460 = vshrl.u32 %v3459, 7
        %v3461 = vsub.s32 2, %v3460
        %v3462 = vrot.slane %v3302, %v3461
        %v3463 = vlaneseq
        %v3464 = vshrl.u32 %v3463, 7
        %v3465 = vsub.s32 2, %v3464
        %v3466 = vrot.slane %v3306, %v3465
        %v3467 = vlaneseq
        %v3468 = vshrl.u32 %v3467, 7
        %v3469 = vsub.s32 2, %v3468
        %v3470 = vrot.slane %v3310, %v3469
        %v3471 = vlaneseq
        %v3472 = vshrl.u32 %v3471, 7
        %v3473 = vsub.s32 2, %v3472
        %v3474 = vrot.slane %v3314, %v3473
        %v3475 = vlaneseq
        %v3476 = vshrl.u32 %v3475, 7
        %v3477 = vsub.s32 2, %v3476
        %v3478 = vrot.slane %v3318, %v3477
        %v3479 = vlaneseq
        %v3480 = vshrl.u32 %v3479, 7
        %v3481 = vsub.s32 2, %v3480
        %v3482 = vrot.slane %v3322, %v3481
        %v3483 = vlaneseq
        %v3484 = vshrl.u32 %v3483, 7
        %v3485 = vsub.s32 2, %v3484
        %v3486 = vrot.slane %v3326, %v3485
        %v3487 = vlaneseq
        %v3488 = vshrl.u32 %v3487, 7
        %v3489 = vsub.s32 2, %v3488
        %v3490 = vrot.slane %v3330, %v3489
        %v3491 = vlaneseq
        %v3492 = vshrl.u32 %v3491, 7
        %v3493 = vsub.s32 2, %v3492
        %v3494 = vrot.slane %v3334, %v3493
        %v3495 = vlaneseq
        %v3496 = vshrl.u32 %v3495, 7
        %v3497 = vsub.s32 2, %v3496
        %v3498 = vrot.slane %v3338, %v3497
        %v3499 = vlaneseq
        %v3500 = vshrl.u32 %v3499, 7
        %v3501 = vsub.s32 2, %v3500
        %v3502 = vrot.slane %v3342, %v3501
        %v3503 = vlaneseq
        %v3504 = vshrl.u32 %v3503, 7
        %v3505 = vsub.s32 2, %v3504
        %v3506 = vrot.slane %v3346, %v3505
        %v3507 = vlaneseq
        %v3508 = vshrl.u32 %v3507, 7
        %v3509 = vsub.s32 2, %v3508
        %v3510 = vrot.slane %v3350, %v3509
        %v3511 = vlaneseq
        %v3512 = vshrl.u32 %v3511, 7
        %v3513 = vsub.s32 2, %v3512
        %v3514 = vrot.slane %v3354, %v3513
        %v3515 = vlaneseq
        %v3516 = vshrl.u32 %v3515, 7
        %v3517 = vsub.s32 2, %v3516
        %v3518 = vrot.slane %v3358, %v3517
        %v3519 = vlaneseq
        %v3520 = vshrl.u32 %v3519, 7
        %v3521 = vsub.s32 2, %v3520
        %v3522 = vrot.slane %v3362, %v3521
        %v3523 = vlaneseq
        %v3524 = vshrl.u32 %v3523, 7
        %v3525 = vsub.s32 2, %v3524
        %v3526 = vrot.slane %v3366, %v3525
        %v3527 = vlaneseq
        %v3528 = vshrl.u32 %v3527, 7
        %v3529 = vsub.s32 2, %v3528
        %v3530 = vrot.slane %v3370, %v3529
        %v3531 = vlaneseq
        %v3532 = vshrl.u32 %v3531, 7
        %v3533 = vsub.s32 2, %v3532
        %v3534 = vrot.slane %v3374, %v3533
        %v3535 = vlaneseq
        %v3536 = vshrl.u32 %v3535, 7
        %v3537 = vsub.s32 2, %v3536
        %v3538 = vrot.slane %v3378, %v3537
        %v3539 = vlaneseq
        %v3540 = vshrl.u32 %v3539, 7
        %v3541 = vsub.s32 2, %v3540
        %v3542 = vrot.slane %v3382, %v3541
        %v3543 = vlaneseq
        %v3544 = vshrl.u32 %v3543, 7
        %v3545 = vsub.s32 2, %v3544
        %v3546 = vrot.slane %v3386, %v3545
        %v3547 = vlaneseq
        %v3548 = vshrl.u32 %v3547, 7
        %v3549 = vsub.s32 2, %v3548
        %v3550 = vrot.slane %v3390, %v3549
        %v3551 = vlaneseq
        %v3552 = vshrl.u32 %v3551, 7
        %v3553 = vsub.s32 2, %v3552
        %v3554 = vrot.slane %v3394, %v3553
        %v3555 = vlaneseq
        %v3556 = vshrl.u32 %v3555, 7
        %v3557 = vsub.s32 2, %v3556
        %v3558 = vrot.slane %v3398, %v3557
        %v3559 = vmul.f32 %v3209, %v3434
        %v3560 = vmul.f32 %v3209, %v3438
        %v3561 = vmul.f32 %v3209, %v3442
        %v3562 = vmul.f32 %v3209, %v3446
        %v3563 = vmul.f32 %v3209, %v3450
        %v3564 = vmul.f32 %v3209, %v3454
        %v3565 = vmul.f32 %v3209, %v3458
        %v3566 = vmul.f32 %v3209, %v3462
        %v3567 = vmul.f32 %v3209, %v3466
        %v3568 = vmul.f32 %v3209, %v3470
        %v3569 = vmul.f32 %v3209, %v3474
        %v3570 = vmul.f32 %v3209, %v3478
        %v3571 = vmul.f32 %v3209, %v3482
        %v3572 = vmul.f32 %v3209, %v3486
        %v3573 = vmul.f32 %v3209, %v3490
        %v3574 = vmul.f32 %v3209, %v3494
        %v3575 = vmul.f32 %v3209, %v3498
        %v3576 = vmul.f32 %v3209, %v3502
        %v3577 = vmul.f32 %v3209, %v3506
        %v3578 = vmul.f32 %v3209, %v3510
        %v3579 = vmul.f32 %v3209, %v3514
        %v3580 = vmul.f32 %v3209, %v3518
        %v3581 = vmul.f32 %v3209, %v3522
        %v3582 = vmul.f32 %v3209, %v3526
        %v3583 = vmul.f32 %v3209, %v3530
        %v3584 = vmul.f32 %v3209, %v3534
        %v3585 = vmul.f32 %v3209, %v3538
        %v3586 = vmul.f32 %v3209, %v3542
        %v3587 = vmul.f32 %v3209, %v3546
        %v3588 = vmul.f32 %v3209, %v3550
        %v3589 = vmul.f32 %v3209, %v3554
        %v3590 = vmul.f32 %v3209, %v3558
        %v3591 = vmul.f32 %v3213, %v3434
        %v3592 = vmul.f32 %v3213, %v3438
        %v3593 = vmul.f32 %v3213, %v3442
        %v3594 = vmul.f32 %v3213, %v3446
        %v3595 = vmul.f32 %v3213, %v3450
        %v3596 = vmul.f32 %v3213, %v3454
        %v3597 = vmul.f32 %v3213, %v3458
        %v3598 = vmul.f32 %v3213, %v3462
        %v3599 = vmul.f32 %v3213, %v3466
        %v3600 = vmul.f32 %v3213, %v3470
        %v3601 = vmul.f32 %v3213, %v3474
        %v3602 = vmul.f32 %v3213, %v3478
        %v3603 = vmul.f32 %v3213, %v3482
        %v3604 = vmul.f32 %v3213, %v3486
        %v3605 = vmul.f32 %v3213, %v3490
        %v3606 = vmul.f32 %v3213, %v3494
        %v3607 = vmul.f32 %v3213, %v3498
        %v3608 = vmul.f32 %v3213, %v3502
        %v3609 = vmul.f32 %v3213, %v3506
        %v3610 = vmul.f32 %v3213, %v3510
        %v3611 = vmul.f32 %v3213, %v3514
        %v3612 = vmul.f32 %v3213, %v3518
        %v3613 = vmul.f32 %v3213, %v3522
        %v3614 = vmul.f32 %v3213, %v3526
        %v3615 = vmul.f32 %v3213, %v3530
        %v3616 = vmul.f32 %v3213, %v3534
        %v3617 = vmul.f32 %v3213, %v3538
        %v3618 = vmul.f32 %v3213, %v3542
        %v3619 = vmul.f32 %v3213, %v3546
        %v3620 = vmul.f32 %v3213, %v3550
        %v3621 = vmul.f32 %v3213, %v3554
        %v3622 = vmul.f32 %v3213, %v3558
        %v3623 = vmul.f32 %v3217, %v3434
        %v3624 = vmul.f32 %v3217, %v3438
        %v3625 = vmul.f32 %v3217, %v3442
        %v3626 = vmul.f32 %v3217, %v3446
        %v3627 = vmul.f32 %v3217, %v3450
        %v3628 = vmul.f32 %v3217, %v3454
        %v3629 = vmul.f32 %v3217, %v3458
        %v3630 = vmul.f32 %v3217, %v3462
        %v3631 = vmul.f32 %v3217, %v3466
        %v3632 = vmul.f32 %v3217, %v3470
        %v3633 = vmul.f32 %v3217, %v3474
        %v3634 = vmul.f32 %v3217, %v3478
        %v3635 = vmul.f32 %v3217, %v3482
        %v3636 = vmul.f32 %v3217, %v3486
        %v3637 = vmul.f32 %v3217, %v3490
        %v3638 = vmul.f32 %v3217, %v3494
        %v3639 = vmul.f32 %v3217, %v3498
        %v3640 = vmul.f32 %v3217, %v3502
        %v3641 = vmul.f32 %v3217, %v3506
        %v3642 = vmul.f32 %v3217, %v3510
        %v3643 = vmul.f32 %v3217, %v3514
        %v3644 = vmul.f32 %v3217, %v3518
        %v3645 = vmul.f32 %v3217, %v3522
        %v3646 = vmul.f32 %v3217, %v3526
        %v3647 = vmul.f32 %v3217, %v3530
        %v3648 = vmul.f32 %v3217, %v3534
        %v3649 = vmul.f32 %v3217, %v3538
        %v3650 = vmul.f32 %v3217, %v3542
        %v3651 = vmul.f32 %v3217, %v3546
        %v3652 = vmul.f32 %v3217, %v3550
        %v3653 = vmul.f32 %v3217, %v3554
        %v3654 = vmul.f32 %v3217, %v3558
        %v3655 = vmul.f32 %v3221, %v3434
        %v3656 = vmul.f32 %v3221, %v3438
        %v3657 = vmul.f32 %v3221, %v3442
        %v3658 = vmul.f32 %v3221, %v3446
        %v3659 = vmul.f32 %v3221, %v3450
        %v3660 = vmul.f32 %v3221, %v3454
        %v3661 = vmul.f32 %v3221, %v3458
        %v3662 = vmul.f32 %v3221, %v3462
        %v3663 = vmul.f32 %v3221, %v3466
        %v3664 = vmul.f32 %v3221, %v3470
        %v3665 = vmul.f32 %v3221, %v3474
        %v3666 = vmul.f32 %v3221, %v3478
        %v3667 = vmul.f32 %v3221, %v3482
        %v3668 = vmul.f32 %v3221, %v3486
        %v3669 = vmul.f32 %v3221, %v3490
        %v3670 = vmul.f32 %v3221, %v3494
        %v3671 = vmul.f32 %v3221, %v3498
        %v3672 = vmul.f32 %v3221, %v3502
        %v3673 = vmul.f32 %v3221, %v3506
        %v3674 = vmul.f32 %v3221, %v3510
        %v3675 = vmul.f32 %v3221, %v3514
        %v3676 = vmul.f32 %v3221, %v3518
        %v3677 = vmul.f32 %v3221, %v3522
        %v3678 = vmul.f32 %v3221, %v3526
        %v3679 = vmul.f32 %v3221, %v3530
        %v3680 = vmul.f32 %v3221, %v3534
        %v3681 = vmul.f32 %v3221, %v3538
        %v3682 = vmul.f32 %v3221, %v3542
        %v3683 = vmul.f32 %v3221, %v3546
        %v3684 = vmul.f32 %v3221, %v3550
        %v3685 = vmul.f32 %v3221, %v3554
        %v3686 = vmul.f32 %v3221, %v3558
        %v3687 = vmul.f32 %v3225, %v3434
        %v3688 = vmul.f32 %v3225, %v3438
        %v3689 = vmul.f32 %v3225, %v3442
        %v3690 = vmul.f32 %v3225, %v3446
        %v3691 = vmul.f32 %v3225, %v3450
        %v3692 = vmul.f32 %v3225, %v3454
        %v3693 = vmul.f32 %v3225, %v3458
        %v3694 = vmul.f32 %v3225, %v3462
        %v3695 = vmul.f32 %v3225, %v3466
        %v3696 = vmul.f32 %v3225, %v3470
        %v3697 = vmul.f32 %v3225, %v3474
        %v3698 = vmul.f32 %v3225, %v3478
        %v3699 = vmul.f32 %v3225, %v3482
        %v3700 = vmul.f32 %v3225, %v3486
        %v3701 = vmul.f32 %v3225, %v3490
        %v3702 = vmul.f32 %v3225, %v3494
        %v3703 = vmul.f32 %v3225, %v3498
        %v3704 = vmul.f32 %v3225, %v3502
        %v3705 = vmul.f32 %v3225, %v3506
        %v3706 = vmul.f32 %v3225, %v3510
        %v3707 = vmul.f32 %v3225, %v3514
        %v3708 = vmul.f32 %v3225, %v3518
        %v3709 = vmul.f32 %v3225, %v3522
        %v3710 = vmul.f32 %v3225, %v3526
        %v3711 = vmul.f32 %v3225, %v3530
        %v3712 = vmul.f32 %v3225, %v3534
        %v3713 = vmul.f32 %v3225, %v3538
        %v3714 = vmul.f32 %v3225, %v3542
        %v3715 = vmul.f32 %v3225, %v3546
        %v3716 = vmul.f32 %v3225, %v3550
        %v3717 = vmul.f32 %v3225, %v3554
        %v3718 = vmul.f32 %v3225, %v3558
        %v3719 = vmul.f32 %v3229, %v3434
        %v3720 = vmul.f32 %v3229, %v3438
        %v3721 = vmul.f32 %v3229, %v3442
        %v3722 = vmul.f32 %v3229, %v3446
        %v3723 = vmul.f32 %v3229, %v3450
        %v3724 = vmul.f32 %v3229, %v3454
        %v3725 = vmul.f32 %v3229, %v3458
        %v3726 = vmul.f32 %v3229, %v3462
        %v3727 = vmul.f32 %v3229, %v3466
        %v3728 = vmul.f32 %v3229, %v3470
        %v3729 = vmul.f32 %v3229, %v3474
        %v3730 = vmul.f32 %v3229, %v3478
        %v3731 = vmul.f32 %v3229, %v3482
        %v3732 = vmul.f32 %v3229, %v3486
        %v3733 = vmul.f32 %v3229, %v3490
        %v3734 = vmul.f32 %v3229, %v3494
        %v3735 = vmul.f32 %v3229, %v3498
        %v3736 = vmul.f32 %v3229, %v3502
        %v3737 = vmul.f32 %v3229, %v3506
        %v3738 = vmul.f32 %v3229, %v3510
        %v3739 = vmul.f32 %v3229, %v3514
        %v3740 = vmul.f32 %v3229, %v3518
        %v3741 = vmul.f32 %v3229, %v3522
        %v3742 = vmul.f32 %v3229, %v3526
        %v3743 = vmul.f32 %v3229, %v3530
        %v3744 = vmul.f32 %v3229, %v3534
        %v3745 = vmul.f32 %v3229, %v3538
        %v3746 = vmul.f32 %v3229, %v3542
        %v3747 = vmul.f32 %v3229, %v3546
        %v3748 = vmul.f32 %v3229, %v3550
        %v3749 = vmul.f32 %v3229, %v3554
        %v3750 = vmul.f32 %v3229, %v3558
        %v3751 = vmul.f32 %v3233, %v3434
        %v3752 = vmul.f32 %v3233, %v3438
        %v3753 = vmul.f32 %v3233, %v3442
        %v3754 = vmul.f32 %v3233, %v3446
        %v3755 = vmul.f32 %v3233, %v3450
        %v3756 = vmul.f32 %v3233, %v3454
        %v3757 = vmul.f32 %v3233, %v3458
        %v3758 = vmul.f32 %v3233, %v3462
        %v3759 = vmul.f32 %v3233, %v3466
        %v3760 = vmul.f32 %v3233, %v3470
        %v3761 = vmul.f32 %v3233, %v3474
        %v3762 = vmul.f32 %v3233, %v3478
        %v3763 = vmul.f32 %v3233, %v3482
        %v3764 = vmul.f32 %v3233, %v3486
        %v3765 = vmul.f32 %v3233, %v3490
        %v3766 = vmul.f32 %v3233, %v3494
        %v3767 = vmul.f32 %v3233, %v3498
        %v3768 = vmul.f32 %v3233, %v3502
        %v3769 = vmul.f32 %v3233, %v3506
        %v3770 = vmul.f32 %v3233, %v3510
        %v3771 = vmul.f32 %v3233, %v3514
        %v3772 = vmul.f32 %v3233, %v3518
        %v3773 = vmul.f32 %v3233, %v3522
        %v3774 = vmul.f32 %v3233, %v3526
        %v3775 = vmul.f32 %v3233, %v3530
        %v3776 = vmul.f32 %v3233, %v3534
        %v3777 = vmul.f32 %v3233, %v3538
        %v3778 = vmul.f32 %v3233, %v3542
        %v3779 = vmul.f32 %v3233, %v3546
        %v3780 = vmul.f32 %v3233, %v3550
        %v3781 = vmul.f32 %v3233, %v3554
        %v3782 = vmul.f32 %v3233, %v3558
        %v3783 = vmul.f32 %v3237, %v3434
        %v3784 = vmul.f32 %v3237, %v3438
        %v3785 = vmul.f32 %v3237, %v3442
        %v3786 = vmul.f32 %v3237, %v3446
        %v3787 = vmul.f32 %v3237, %v3450
        %v3788 = vmul.f32 %v3237, %v3454
        %v3789 = vmul.f32 %v3237, %v3458
        %v3790 = vmul.f32 %v3237, %v3462
        %v3791 = vmul.f32 %v3237, %v3466
        %v3792 = vmul.f32 %v3237, %v3470
        %v3793 = vmul.f32 %v3237, %v3474
        %v3794 = vmul.f32 %v3237, %v3478
        %v3795 = vmul.f32 %v3237, %v3482
        %v3796 = vmul.f32 %v3237, %v3486
        %v3797 = vmul.f32 %v3237, %v3490
        %v3798 = vmul.f32 %v3237, %v3494
        %v3799 = vmul.f32 %v3237, %v3498
        %v3800 = vmul.f32 %v3237, %v3502
        %v3801 = vmul.f32 %v3237, %v3506
        %v3802 = vmul.f32 %v3237, %v3510
        %v3803 = vmul.f32 %v3237, %v3514
        %v3804 = vmul.f32 %v3237, %v3518
        %v3805 = vmul.f32 %v3237, %v3522
        %v3806 = vmul.f32 %v3237, %v3526
        %v3807 = vmul.f32 %v3237, %v3530
        %v3808 = vmul.f32 %v3237, %v3534
        %v3809 = vmul.f32 %v3237, %v3538
        %v3810 = vmul.f32 %v3237, %v3542
        %v3811 = vmul.f32 %v3237, %v3546
        %v3812 = vmul.f32 %v3237, %v3550
        %v3813 = vmul.f32 %v3237, %v3554
        %v3814 = vmul.f32 %v3237, %v3558
        %v3815 = vmul.f32 %v3241, %v3434
        %v3816 = vmul.f32 %v3241, %v3438
        %v3817 = vmul.f32 %v3241, %v3442
        %v3818 = vmul.f32 %v3241, %v3446
        %v3819 = vmul.f32 %v3241, %v3450
        %v3820 = vmul.f32 %v3241, %v3454
        %v3821 = vmul.f32 %v3241, %v3458
        %v3822 = vmul.f32 %v3241, %v3462
        %v3823 = vmul.f32 %v3241, %v3466
        %v3824 = vmul.f32 %v3241, %v3470
        %v3825 = vmul.f32 %v3241, %v3474
        %v3826 = vmul.f32 %v3241, %v3478
        %v3827 = vmul.f32 %v3241, %v3482
        %v3828 = vmul.f32 %v3241, %v3486
        %v3829 = vmul.f32 %v3241, %v3490
        %v3830 = vmul.f32 %v3241, %v3494
        %v3831 = vmul.f32 %v3241, %v3498
        %v3832 = vmul.f32 %v3241, %v3502
        %v3833 = vmul.f32 %v3241, %v3506
        %v3834 = vmul.f32 %v3241, %v3510
        %v3835 = vmul.f32 %v3241, %v3514
        %v3836 = vmul.f32 %v3241, %v3518
        %v3837 = vmul.f32 %v3241, %v3522
        %v3838 = vmul.f32 %v3241, %v3526
        %v3839 = vmul.f32 %v3241, %v3530
        %v3840 = vmul.f32 %v3241, %v3534
        %v3841 = vmul.f32 %v3241, %v3538
        %v3842 = vmul.f32 %v3241, %v3542
        %v3843 = vmul.f32 %v3241, %v3546
        %v3844 = vmul.f32 %v3241, %v3550
        %v3845 = vmul.f32 %v3241, %v3554
        %v3846 = vmul.f32 %v3241, %v3558
        %v3847 = vmul.f32 %v3245, %v3434
        %v3848 = vmul.f32 %v3245, %v3438
        %v3849 = vmul.f32 %v3245, %v3442
        %v3850 = vmul.f32 %v3245, %v3446
        %v3851 = vmul.f32 %v3245, %v3450
        %v3852 = vmul.f32 %v3245, %v3454
        %v3853 = vmul.f32 %v3245, %v3458
        %v3854 = vmul.f32 %v3245, %v3462
        %v3855 = vmul.f32 %v3245, %v3466
        %v3856 = vmul.f32 %v3245, %v3470
        %v3857 = vmul.f32 %v3245, %v3474
        %v3858 = vmul.f32 %v3245, %v3478
        %v3859 = vmul.f32 %v3245, %v3482
        %v3860 = vmul.f32 %v3245, %v3486
        %v3861 = vmul.f32 %v3245, %v3490
        %v3862 = vmul.f32 %v3245, %v3494
        %v3863 = vmul.f32 %v3245, %v3498
        %v3864 = vmul.f32 %v3245, %v3502
        %v3865 = vmul.f32 %v3245, %v3506
        %v3866 = vmul.f32 %v3245, %v3510
        %v3867 = vmul.f32 %v3245, %v3514
        %v3868 = vmul.f32 %v3245, %v3518
        %v3869 = vmul.f32 %v3245, %v3522
        %v3870 = vmul.f32 %v3245, %v3526
        %v3871 = vmul.f32 %v3245, %v3530
        %v3872 = vmul.f32 %v3245, %v3534
        %v3873 = vmul.f32 %v3245, %v3538
        %v3874 = vmul.f32 %v3245, %v3542
        %v3875 = vmul.f32 %v3245, %v3546
        %v3876 = vmul.f32 %v3245, %v3550
        %v3877 = vmul.f32 %v3245, %v3554
        %v3878 = vmul.f32 %v3245, %v3558
        %v3879 = vmul.f32 %v3249, %v3434
        %v3880 = vmul.f32 %v3249, %v3438
        %v3881 = vmul.f32 %v3249, %v3442
        %v3882 = vmul.f32 %v3249, %v3446
        %v3883 = vmul.f32 %v3249, %v3450
        %v3884 = vmul.f32 %v3249, %v3454
        %v3885 = vmul.f32 %v3249, %v3458
        %v3886 = vmul.f32 %v3249, %v3462
        %v3887 = vmul.f32 %v3249, %v3466
        %v3888 = vmul.f32 %v3249, %v3470
        %v3889 = vmul.f32 %v3249, %v3474
        %v3890 = vmul.f32 %v3249, %v3478
        %v3891 = vmul.f32 %v3249, %v3482
        %v3892 = vmul.f32 %v3249, %v3486
        %v3893 = vmul.f32 %v3249, %v3490
        %v3894 = vmul.f32 %v3249, %v3494
        %v3895 = vmul.f32 %v3249, %v3498
        %v3896 = vmul.f32 %v3249, %v3502
        %v3897 = vmul.f32 %v3249, %v3506
        %v3898 = vmul.f32 %v3249, %v3510
        %v3899 = vmul.f32 %v3249, %v3514
        %v3900 = vmul.f32 %v3249, %v3518
        %v3901 = vmul.f32 %v3249, %v3522
        %v3902 = vmul.f32 %v3249, %v3526
        %v3903 = vmul.f32 %v3249, %v3530
        %v3904 = vmul.f32 %v3249, %v3534
        %v3905 = vmul.f32 %v3249, %v3538
        %v3906 = vmul.f32 %v3249, %v3542
        %v3907 = vmul.f32 %v3249, %v3546
        %v3908 = vmul.f32 %v3249, %v3550
        %v3909 = vmul.f32 %v3249, %v3554
        %v3910 = vmul.f32 %v3249, %v3558
        %v3911 = vmul.f32 %v3253, %v3434
        %v3912 = vmul.f32 %v3253, %v3438
        %v3913 = vmul.f32 %v3253, %v3442
        %v3914 = vmul.f32 %v3253, %v3446
        %v3915 = vmul.f32 %v3253, %v3450
        %v3916 = vmul.f32 %v3253, %v3454
        %v3917 = vmul.f32 %v3253, %v3458
        %v3918 = vmul.f32 %v3253, %v3462
        %v3919 = vmul.f32 %v3253, %v3466
        %v3920 = vmul.f32 %v3253, %v3470
        %v3921 = vmul.f32 %v3253, %v3474
        %v3922 = vmul.f32 %v3253, %v3478
        %v3923 = vmul.f32 %v3253, %v3482
        %v3924 = vmul.f32 %v3253, %v3486
        %v3925 = vmul.f32 %v3253, %v3490
        %v3926 = vmul.f32 %v3253, %v3494
        %v3927 = vmul.f32 %v3253, %v3498
        %v3928 = vmul.f32 %v3253, %v3502
        %v3929 = vmul.f32 %v3253, %v3506
        %v3930 = vmul.f32 %v3253, %v3510
        %v3931 = vmul.f32 %v3253, %v3514
        %v3932 = vmul.f32 %v3253, %v3518
        %v3933 = vmul.f32 %v3253, %v3522
        %v3934 = vmul.f32 %v3253, %v3526
        %v3935 = vmul.f32 %v3253, %v3530
        %v3936 = vmul.f32 %v3253, %v3534
        %v3937 = vmul.f32 %v3253, %v3538
        %v3938 = vmul.f32 %v3253, %v3542
        %v3939 = vmul.f32 %v3253, %v3546
        %v3940 = vmul.f32 %v3253, %v3550
        %v3941 = vmul.f32 %v3253, %v3554
        %v3942 = vmul.f32 %v3253, %v3558
        %v3943 = vmul.f32 %v3257, %v3434
        %v3944 = vmul.f32 %v3257, %v3438
        %v3945 = vmul.f32 %v3257, %v3442
        %v3946 = vmul.f32 %v3257, %v3446
        %v3947 = vmul.f32 %v3257, %v3450
        %v3948 = vmul.f32 %v3257, %v3454
        %v3949 = vmul.f32 %v3257, %v3458
        %v3950 = vmul.f32 %v3257, %v3462
        %v3951 = vmul.f32 %v3257, %v3466
        %v3952 = vmul.f32 %v3257, %v3470
        %v3953 = vmul.f32 %v3257, %v3474
        %v3954 = vmul.f32 %v3257, %v3478
        %v3955 = vmul.f32 %v3257, %v3482
        %v3956 = vmul.f32 %v3257, %v3486
        %v3957 = vmul.f32 %v3257, %v3490
        %v3958 = vmul.f32 %v3257, %v3494
        %v3959 = vmul.f32 %v3257, %v3498
        %v3960 = vmul.f32 %v3257, %v3502
        %v3961 = vmul.f32 %v3257, %v3506
        %v3962 = vmul.f32 %v3257, %v3510
        %v3963 = vmul.f32 %v3257, %v3514
        %v3964 = vmul.f32 %v3257, %v3518
        %v3965 = vmul.f32 %v3257, %v3522
        %v3966 = vmul.f32 %v3257, %v3526
        %v3967 = vmul.f32 %v3257, %v3530
        %v3968 = vmul.f32 %v3257, %v3534
        %v3969 = vmul.f32 %v3257, %v3538
        %v3970 = vmul.f32 %v3257, %v3542
        %v3971 = vmul.f32 %v3257, %v3546
        %v3972 = vmul.f32 %v3257, %v3550
        %v3973 = vmul.f32 %v3257, %v3554
        %v3974 = vmul.f32 %v3257, %v3558
        %v3975 = vmul.f32 %v3261, %v3434
        %v3976 = vmul.f32 %v3261, %v3438
        %v3977 = vmul.f32 %v3261, %v3442
        %v3978 = vmul.f32 %v3261, %v3446
        %v3979 = vmul.f32 %v3261, %v3450
        %v3980 = vmul.f32 %v3261, %v3454
        %v3981 = vmul.f32 %v3261, %v3458
        %v3982 = vmul.f32 %v3261, %v3462
        %v3983 = vmul.f32 %v3261, %v3466
        %v3984 = vmul.f32 %v3261, %v3470
        %v3985 = vmul.f32 %v3261, %v3474
        %v3986 = vmul.f32 %v3261, %v3478
        %v3987 = vmul.f32 %v3261, %v3482
        %v3988 = vmul.f32 %v3261, %v3486
        %v3989 = vmul.f32 %v3261, %v3490
        %v3990 = vmul.f32 %v3261, %v3494
        %v3991 = vmul.f32 %v3261, %v3498
        %v3992 = vmul.f32 %v3261, %v3502
        %v3993 = vmul.f32 %v3261, %v3506
        %v3994 = vmul.f32 %v3261, %v3510
        %v3995 = vmul.f32 %v3261, %v3514
        %v3996 = vmul.f32 %v3261, %v3518
        %v3997 = vmul.f32 %v3261, %v3522
        %v3998 = vmul.f32 %v3261, %v3526
        %v3999 = vmul.f32 %v3261, %v3530
        %v4000 = vmul.f32 %v3261, %v3534
        %v4001 = vmul.f32 %v3261, %v3538
        %v4002 = vmul.f32 %v3261, %v3542
        %v4003 = vmul.f32 %v3261, %v3546
        %v4004 = vmul.f32 %v3261, %v3550
        %v4005 = vmul.f32 %v3261, %v3554
        %v4006 = vmul.f32 %v3261, %v3558
        %v4007 = vmul.f32 %v3265, %v3434
        %v4008 = vmul.f32 %v3265, %v3438
        %v4009 = vmul.f32 %v3265, %v3442
        %v4010 = vmul.f32 %v3265, %v3446
        %v4011 = vmul.f32 %v3265, %v3450
        %v4012 = vmul.f32 %v3265, %v3454
        %v4013 = vmul.f32 %v3265, %v3458
        %v4014 = vmul.f32 %v3265, %v3462
        %v4015 = vmul.f32 %v3265, %v3466
        %v4016 = vmul.f32 %v3265, %v3470
        %v4017 = vmul.f32 %v3265, %v3474
        %v4018 = vmul.f32 %v3265, %v3478
        %v4019 = vmul.f32 %v3265, %v3482
        %v4020 = vmul.f32 %v3265, %v3486
        %v4021 = vmul.f32 %v3265, %v3490
        %v4022 = vmul.f32 %v3265, %v3494
        %v4023 = vmul.f32 %v3265, %v3498
        %v4024 = vmul.f32 %v3265, %v3502
        %v4025 = vmul.f32 %v3265, %v3506
        %v4026 = vmul.f32 %v3265, %v3510
        %v4027 = vmul.f32 %v3265, %v3514
        %v4028 = vmul.f32 %v3265, %v3518
        %v4029 = vmul.f32 %v3265, %v3522
        %v4030 = vmul.f32 %v3265, %v3526
        %v4031 = vmul.f32 %v3265, %v3530
        %v4032 = vmul.f32 %v3265, %v3534
        %v4033 = vmul.f32 %v3265, %v3538
        %v4034 = vmul.f32 %v3265, %v3542
        %v4035 = vmul.f32 %v3265, %v3546
        %v4036 = vmul.f32 %v3265, %v3550
        %v4037 = vmul.f32 %v3265, %v3554
        %v4038 = vmul.f32 %v3265, %v3558
        %v4039 = vmul.f32 %v3269, %v3434
        %v4040 = vmul.f32 %v3269, %v3438
        %v4041 = vmul.f32 %v3269, %v3442
        %v4042 = vmul.f32 %v3269, %v3446
        %v4043 = vmul.f32 %v3269, %v3450
        %v4044 = vmul.f32 %v3269, %v3454
        %v4045 = vmul.f32 %v3269, %v3458
        %v4046 = vmul.f32 %v3269, %v3462
        %v4047 = vmul.f32 %v3269, %v3466
        %v4048 = vmul.f32 %v3269, %v3470
        %v4049 = vmul.f32 %v3269, %v3474
        %v4050 = vmul.f32 %v3269, %v3478
        %v4051 = vmul.f32 %v3269, %v3482
        %v4052 = vmul.f32 %v3269, %v3486
        %v4053 = vmul.f32 %v3269, %v3490
        %v4054 = vmul.f32 %v3269, %v3494
        %v4055 = vmul.f32 %v3269, %v3498
        %v4056 = vmul.f32 %v3269, %v3502
        %v4057 = vmul.f32 %v3269, %v3506
        %v4058 = vmul.f32 %v3269, %v3510
        %v4059 = vmul.f32 %v3269, %v3514
        %v4060 = vmul.f32 %v3269, %v3518
        %v4061 = vmul.f32 %v3269, %v3522
        %v4062 = vmul.f32 %v3269, %v3526
        %v4063 = vmul.f32 %v3269, %v3530
        %v4064 = vmul.f32 %v3269, %v3534
        %v4065 = vmul.f32 %v3269, %v3538
        %v4066 = vmul.f32 %v3269, %v3542
        %v4067 = vmul.f32 %v3269, %v3546
        %v4068 = vmul.f32 %v3269, %v3550
        %v4069 = vmul.f32 %v3269, %v3554
        %v4070 = vmul.f32 %v3269, %v3558
        %v4071 = vadd.f32 %v2695, %v3559
        %v4072 = vadd.f32 %v2696, %v3560
        %v4073 = vadd.f32 %v2697, %v3561
        %v4074 = vadd.f32 %v2698, %v3562
        %v4075 = vadd.f32 %v2699, %v3563
        %v4076 = vadd.f32 %v2700, %v3564
        %v4077 = vadd.f32 %v2701, %v3565
        %v4078 = vadd.f32 %v2702, %v3566
        %v4079 = vadd.f32 %v2703, %v3567
        %v4080 = vadd.f32 %v2704, %v3568
        %v4081 = vadd.f32 %v2705, %v3569
        %v4082 = vadd.f32 %v2706, %v3570
        %v4083 = vadd.f32 %v2707, %v3571
        %v4084 = vadd.f32 %v2708, %v3572
        %v4085 = vadd.f32 %v2709, %v3573
        %v4086 = vadd.f32 %v2710, %v3574
        %v4087 = vadd.f32 %v2711, %v3575
        %v4088 = vadd.f32 %v2712, %v3576
        %v4089 = vadd.f32 %v2713, %v3577
        %v4090 = vadd.f32 %v2714, %v3578
        %v4091 = vadd.f32 %v2715, %v3579
        %v4092 = vadd.f32 %v2716, %v3580
        %v4093 = vadd.f32 %v2717, %v3581
        %v4094 = vadd.f32 %v2718, %v3582
        %v4095 = vadd.f32 %v2719, %v3583
        %v4096 = vadd.f32 %v2720, %v3584
        %v4097 = vadd.f32 %v2721, %v3585
        %v4098 = vadd.f32 %v2722, %v3586
        %v4099 = vadd.f32 %v2723, %v3587
        %v4100 = vadd.f32 %v2724, %v3588
        %v4101 = vadd.f32 %v2725, %v3589
        %v4102 = vadd.f32 %v2726, %v3590
        %v4103 = vadd.f32 %v2727, %v3591
        %v4104 = vadd.f32 %v2728, %v3592
        %v4105 = vadd.f32 %v2729, %v3593
        %v4106 = vadd.f32 %v2730, %v3594
        %v4107 = vadd.f32 %v2731, %v3595
        %v4108 = vadd.f32 %v2732, %v3596
        %v4109 = vadd.f32 %v2733, %v3597
        %v4110 = vadd.f32 %v2734, %v3598
        %v4111 = vadd.f32 %v2735, %v3599
        %v4112 = vadd.f32 %v2736, %v3600
        %v4113 = vadd.f32 %v2737, %v3601
        %v4114 = vadd.f32 %v2738, %v3602
        %v4115 = vadd.f32 %v2739, %v3603
        %v4116 = vadd.f32 %v2740, %v3604
        %v4117 = vadd.f32 %v2741, %v3605
        %v4118 = vadd.f32 %v2742, %v3606
        %v4119 = vadd.f32 %v2743, %v3607
        %v4120 = vadd.f32 %v2744, %v3608
        %v4121 = vadd.f32 %v2745, %v3609
        %v4122 = vadd.f32 %v2746, %v3610
        %v4123 = vadd.f32 %v2747, %v3611
        %v4124 = vadd.f32 %v2748, %v3612
        %v4125 = vadd.f32 %v2749, %v3613
        %v4126 = vadd.f32 %v2750, %v3614
        %v4127 = vadd.f32 %v2751, %v3615
        %v4128 = vadd.f32 %v2752, %v3616
        %v4129 = vadd.f32 %v2753, %v3617
        %v4130 = vadd.f32 %v2754, %v3618
        %v4131 = vadd.f32 %v2755, %v3619
        %v4132 = vadd.f32 %v2756, %v3620
        %v4133 = vadd.f32 %v2757, %v3621
        %v4134 = vadd.f32 %v2758, %v3622
        %v4135 = vadd.f32 %v2759, %v3623
        %v4136 = vadd.f32 %v2760, %v3624
        %v4137 = vadd.f32 %v2761, %v3625
        %v4138 = vadd.f32 %v2762, %v3626
        %v4139 = vadd.f32 %v2763, %v3627
        %v4140 = vadd.f32 %v2764, %v3628
        %v4141 = vadd.f32 %v2765, %v3629
        %v4142 = vadd.f32 %v2766, %v3630
        %v4143 = vadd.f32 %v2767, %v3631
        %v4144 = vadd.f32 %v2768, %v3632
        %v4145 = vadd.f32 %v2769, %v3633
        %v4146 = vadd.f32 %v2770, %v3634
        %v4147 = vadd.f32 %v2771, %v3635
        %v4148 = vadd.f32 %v2772, %v3636
        %v4149 = vadd.f32 %v2773, %v3637
        %v4150 = vadd.f32 %v2774, %v3638
        %v4151 = vadd.f32 %v2775, %v3639
        %v4152 = vadd.f32 %v2776, %v3640
        %v4153 = vadd.f32 %v2777, %v3641
        %v4154 = vadd.f32 %v2778, %v3642
        %v4155 = vadd.f32 %v2779, %v3643
        %v4156 = vadd.f32 %v2780, %v3644
        %v4157 = vadd.f32 %v2781, %v3645
        %v4158 = vadd.f32 %v2782, %v3646
        %v4159 = vadd.f32 %v2783, %v3647
        %v4160 = vadd.f32 %v2784, %v3648
        %v4161 = vadd.f32 %v2785, %v3649
        %v4162 = vadd.f32 %v2786, %v3650
        %v4163 = vadd.f32 %v2787, %v3651
        %v4164 = vadd.f32 %v2788, %v3652
        %v4165 = vadd.f32 %v2789, %v3653
        %v4166 = vadd.f32 %v2790, %v3654
        %v4167 = vadd.f32 %v2791, %v3655
        %v4168 = vadd.f32 %v2792, %v3656
        %v4169 = vadd.f32 %v2793, %v3657
        %v4170 = vadd.f32 %v2794, %v3658
        %v4171 = vadd.f32 %v2795, %v3659
        %v4172 = vadd.f32 %v2796, %v3660
        %v4173 = vadd.f32 %v2797, %v3661
        %v4174 = vadd.f32 %v2798, %v3662
        %v4175 = vadd.f32 %v2799, %v3663
        %v4176 = vadd.f32 %v2800, %v3664
        %v4177 = vadd.f32 %v2801, %v3665
        %v4178 = vadd.f32 %v2802, %v3666
        %v4179 = vadd.f32 %v2803, %v3667
        %v4180 = vadd.f32 %v2804, %v3668
        %v4181 = vadd.f32 %v2805, %v3669
        %v4182 = vadd.f32 %v2806, %v3670
        %v4183 = vadd.f32 %v2807, %v3671
        %v4184 = vadd.f32 %v2808, %v3672
        %v4185 = vadd.f32 %v2809, %v3673
        %v4186 = vadd.f32 %v2810, %v3674
        %v4187 = vadd.f32 %v2811, %v3675
        %v4188 = vadd.f32 %v2812, %v3676
        %v4189 = vadd.f32 %v2813, %v3677
        %v4190 = vadd.f32 %v2814, %v3678
        %v4191 = vadd.f32 %v2815, %v3679
        %v4192 = vadd.f32 %v2816, %v3680
        %v4193 = vadd.f32 %v2817, %v3681
        %v4194 = vadd.f32 %v2818, %v3682
        %v4195 = vadd.f32 %v2819, %v3683
        %v4196 = vadd.f32 %v2820, %v3684
        %v4197 = vadd.f32 %v2821, %v3685
        %v4198 = vadd.f32 %v2822, %v3686
        %v4199 = vadd.f32 %v2823, %v3687
        %v4200 = vadd.f32 %v2824, %v3688
        %v4201 = vadd.f32 %v2825, %v3689
        %v4202 = vadd.f32 %v2826, %v3690
        %v4203 = vadd.f32 %v2827, %v3691
        %v4204 = vadd.f32 %v2828, %v3692
        %v4205 = vadd.f32 %v2829, %v3693
        %v4206 = vadd.f32 %v2830, %v3694
        %v4207 = vadd.f32 %v2831, %v3695
        %v4208 = vadd.f32 %v2832, %v3696
        %v4209 = vadd.f32 %v2833, %v3697
        %v4210 = vadd.f32 %v2834, %v3698
        %v4211 = vadd.f32 %v2835, %v3699
        %v4212 = vadd.f32 %v2836, %v3700
        %v4213 = vadd.f32 %v2837, %v3701
        %v4214 = vadd.f32 %v2838, %v3702
        %v4215 = vadd.f32 %v2839, %v3703
        %v4216 = vadd.f32 %v2840, %v3704
        %v4217 = vadd.f32 %v2841, %v3705
        %v4218 = vadd.f32 %v2842, %v3706
        %v4219 = vadd.f32 %v2843, %v3707
        %v4220 = vadd.f32 %v2844, %v3708
        %v4221 = vadd.f32 %v2845, %v3709
        %v4222 = vadd.f32 %v2846, %v3710
        %v4223 = vadd.f32 %v2847, %v3711
        %v4224 = vadd.f32 %v2848, %v3712
        %v4225 = vadd.f32 %v2849, %v3713
        %v4226 = vadd.f32 %v2850, %v3714
        %v4227 = vadd.f32 %v2851, %v3715
        %v4228 = vadd.f32 %v2852, %v3716
        %v4229 = vadd.f32 %v2853, %v3717
        %v4230 = vadd.f32 %v2854, %v3718
        %v4231 = vadd.f32 %v2855, %v3719
        %v4232 = vadd.f32 %v2856, %v3720
        %v4233 = vadd.f32 %v2857, %v3721
        %v4234 = vadd.f32 %v2858, %v3722
        %v4235 = vadd.f32 %v2859, %v3723
        %v4236 = vadd.f32 %v2860, %v3724
        %v4237 = vadd.f32 %v2861, %v3725
        %v4238 = vadd.f32 %v2862, %v3726
        %v4239 = vadd.f32 %v2863, %v3727
        %v4240 = vadd.f32 %v2864, %v3728
        %v4241 = vadd.f32 %v2865, %v3729
        %v4242 = vadd.f32 %v2866, %v3730
        %v4243 = vadd.f32 %v2867, %v3731
        %v4244 = vadd.f32 %v2868, %v3732
        %v4245 = vadd.f32 %v2869, %v3733
        %v4246 = vadd.f32 %v2870, %v3734
        %v4247 = vadd.f32 %v2871, %v3735
        %v4248 = vadd.f32 %v2872, %v3736
        %v4249 = vadd.f32 %v2873, %v3737
        %v4250 = vadd.f32 %v2874, %v3738
        %v4251 = vadd.f32 %v2875, %v3739
        %v4252 = vadd.f32 %v2876, %v3740
        %v4253 = vadd.f32 %v2877, %v3741
        %v4254 = vadd.f32 %v2878, %v3742
        %v4255 = vadd.f32 %v2879, %v3743
        %v4256 = vadd.f32 %v2880, %v3744
        %v4257 = vadd.f32 %v2881, %v3745
        %v4258 = vadd.f32 %v2882, %v3746
        %v4259 = vadd.f32 %v2883, %v3747
        %v4260 = vadd.f32 %v2884, %v3748
        %v4261 = vadd.f32 %v2885, %v3749
        %v4262 = vadd.f32 %v2886, %v3750
        %v4263 = vadd.f32 %v2887, %v3751
        %v4264 = vadd.f32 %v2888, %v3752
        %v4265 = vadd.f32 %v2889, %v3753
        %v4266 = vadd.f32 %v2890, %v3754
        %v4267 = vadd.f32 %v2891, %v3755
        %v4268 = vadd.f32 %v2892, %v3756
        %v4269 = vadd.f32 %v2893, %v3757
        %v4270 = vadd.f32 %v2894, %v3758
        %v4271 = vadd.f32 %v2895, %v3759
        %v4272 = vadd.f32 %v2896, %v3760
        %v4273 = vadd.f32 %v2897, %v3761
        %v4274 = vadd.f32 %v2898, %v3762
        %v4275 = vadd.f32 %v2899, %v3763
        %v4276 = vadd.f32 %v2900, %v3764
        %v4277 = vadd.f32 %v2901, %v3765
        %v4278 = vadd.f32 %v2902, %v3766
        %v4279 = vadd.f32 %v2903, %v3767
        %v4280 = vadd.f32 %v2904, %v3768
        %v4281 = vadd.f32 %v2905, %v3769
        %v4282 = vadd.f32 %v2906, %v3770
        %v4283 = vadd.f32 %v2907, %v3771
        %v4284 = vadd.f32 %v2908, %v3772
        %v4285 = vadd.f32 %v2909, %v3773
        %v4286 = vadd.f32 %v2910, %v3774
        %v4287 = vadd.f32 %v2911, %v3775
        %v4288 = vadd.f32 %v2912, %v3776
        %v4289 = vadd.f32 %v2913, %v3777
        %v4290 = vadd.f32 %v2914, %v3778
        %v4291 = vadd.f32 %v2915, %v3779
        %v4292 = vadd.f32 %v2916, %v3780
        %v4293 = vadd.f32 %v2917, %v3781
        %v4294 = vadd.f32 %v2918, %v3782
        %v4295 = vadd.f32 %v2919, %v3783
        %v4296 = vadd.f32 %v2920, %v3784
        %v4297 = vadd.f32 %v2921, %v3785
        %v4298 = vadd.f32 %v2922, %v3786
        %v4299 = vadd.f32 %v2923, %v3787
        %v4300 = vadd.f32 %v2924, %v3788
        %v4301 = vadd.f32 %v2925, %v3789
        %v4302 = vadd.f32 %v2926, %v3790
        %v4303 = vadd.f32 %v2927, %v3791
        %v4304 = vadd.f32 %v2928, %v3792
        %v4305 = vadd.f32 %v2929, %v3793
        %v4306 = vadd.f32 %v2930, %v3794
        %v4307 = vadd.f32 %v2931, %v3795
        %v4308 = vadd.f32 %v2932, %v3796
        %v4309 = vadd.f32 %v2933, %v3797
        %v4310 = vadd.f32 %v2934, %v3798
        %v4311 = vadd.f32 %v2935, %v3799
        %v4312 = vadd.f32 %v2936, %v3800
        %v4313 = vadd.f32 %v2937, %v3801
        %v4314 = vadd.f32 %v2938, %v3802
        %v4315 = vadd.f32 %v2939, %v3803
        %v4316 = vadd.f32 %v2940, %v3804
        %v4317 = vadd.f32 %v2941, %v3805
        %v4318 = vadd.f32 %v2942, %v3806
        %v4319 = vadd.f32 %v2943, %v3807
        %v4320 = vadd.f32 %v2944, %v3808
        %v4321 = vadd.f32 %v2945, %v3809
        %v4322 = vadd.f32 %v2946, %v3810
        %v4323 = vadd.f32 %v2947, %v3811
        %v4324 = vadd.f32 %v2948, %v3812
        %v4325 = vadd.f32 %v2949, %v3813
        %v4326 = vadd.f32 %v2950, %v3814
        %v4327 = vadd.f32 %v2951, %v3815
        %v4328 = vadd.f32 %v2952, %v3816
        %v4329 = vadd.f32 %v2953, %v3817
        %v4330 = vadd.f32 %v2954, %v3818
        %v4331 = vadd.f32 %v2955, %v3819
        %v4332 = vadd.f32 %v2956, %v3820
        %v4333 = vadd.f32 %v2957, %v3821
        %v4334 = vadd.f32 %v2958, %v3822
        %v4335 = vadd.f32 %v2959, %v3823
        %v4336 = vadd.f32 %v2960, %v3824
        %v4337 = vadd.f32 %v2961, %v3825
        %v4338 = vadd.f32 %v2962, %v3826
        %v4339 = vadd.f32 %v2963, %v3827
        %v4340 = vadd.f32 %v2964, %v3828
        %v4341 = vadd.f32 %v2965, %v3829
        %v4342 = vadd.f32 %v2966, %v3830
        %v4343 = vadd.f32 %v2967, %v3831
        %v4344 = vadd.f32 %v2968, %v3832
        %v4345 = vadd.f32 %v2969, %v3833
        %v4346 = vadd.f32 %v2970, %v3834
        %v4347 = vadd.f32 %v2971, %v3835
        %v4348 = vadd.f32 %v2972, %v3836
        %v4349 = vadd.f32 %v2973, %v3837
        %v4350 = vadd.f32 %v2974, %v3838
        %v4351 = vadd.f32 %v2975, %v3839
        %v4352 = vadd.f32 %v2976, %v3840
        %v4353 = vadd.f32 %v2977, %v3841
        %v4354 = vadd.f32 %v2978, %v3842
        %v4355 = vadd.f32 %v2979, %v3843
        %v4356 = vadd.f32 %v2980, %v3844
        %v4357 = vadd.f32 %v2981, %v3845
        %v4358 = vadd.f32 %v2982, %v3846
        %v4359 = vadd.f32 %v2983, %v3847
        %v4360 = vadd.f32 %v2984, %v3848
        %v4361 = vadd.f32 %v2985, %v3849
        %v4362 = vadd.f32 %v2986, %v3850
        %v4363 = vadd.f32 %v2987, %v3851
        %v4364 = vadd.f32 %v2988, %v3852
        %v4365 = vadd.f32 %v2989, %v3853
        %v4366 = vadd.f32 %v2990, %v3854
        %v4367 = vadd.f32 %v2991, %v3855
        %v4368 = vadd.f32 %v2992, %v3856
        %v4369 = vadd.f32 %v2993, %v3857
        %v4370 = vadd.f32 %v2994, %v3858
        %v4371 = vadd.f32 %v2995, %v3859
        %v4372 = vadd.f32 %v2996, %v3860
        %v4373 = vadd.f32 %v2997, %v3861
        %v4374 = vadd.f32 %v2998, %v3862
        %v4375 = vadd.f32 %v2999, %v3863
        %v4376 = vadd.f32 %v3000, %v3864
        %v4377 = vadd.f32 %v3001, %v3865
        %v4378 = vadd.f32 %v3002, %v3866
        %v4379 = vadd.f32 %v3003, %v3867
        %v4380 = vadd.f32 %v3004, %v3868
        %v4381 = vadd.f32 %v3005, %v3869
        %v4382 = vadd.f32 %v3006, %v3870
        %v4383 = vadd.f32 %v3007, %v3871
        %v4384 = vadd.f32 %v3008, %v3872
        %v4385 = vadd.f32 %v3009, %v3873
        %v4386 = vadd.f32 %v3010, %v3874
        %v4387 = vadd.f32 %v3011, %v3875
        %v4388 = vadd.f32 %v3012, %v3876
        %v4389 = vadd.f32 %v3013, %v3877
        %v4390 = vadd.f32 %v3014, %v3878
        %v4391 = vadd.f32 %v3015, %v3879
        %v4392 = vadd.f32 %v3016, %v3880
        %v4393 = vadd.f32 %v3017, %v3881
        %v4394 = vadd.f32 %v3018, %v3882
        %v4395 = vadd.f32 %v3019, %v3883
        %v4396 = vadd.f32 %v3020, %v3884
        %v4397 = vadd.f32 %v3021, %v3885
        %v4398 = vadd.f32 %v3022, %v3886
        %v4399 = vadd.f32 %v3023, %v3887
        %v4400 = vadd.f32 %v3024, %v3888
        %v4401 = vadd.f32 %v3025, %v3889
        %v4402 = vadd.f32 %v3026, %v3890
        %v4403 = vadd.f32 %v3027, %v3891
        %v4404 = vadd.f32 %v3028, %v3892
        %v4405 = vadd.f32 %v3029, %v3893
        %v4406 = vadd.f32 %v3030, %v3894
        %v4407 = vadd.f32 %v3031, %v3895
        %v4408 = vadd.f32 %v3032, %v3896
        %v4409 = vadd.f32 %v3033, %v3897
        %v4410 = vadd.f32 %v3034, %v3898
        %v4411 = vadd.f32 %v3035, %v3899
        %v4412 = vadd.f32 %v3036, %v3900
        %v4413 = vadd.f32 %v3037, %v3901
        %v4414 = vadd.f32 %v3038, %v3902
        %v4415 = vadd.f32 %v3039, %v3903
        %v4416 = vadd.f32 %v3040, %v3904
        %v4417 = vadd.f32 %v3041, %v3905
        %v4418 = vadd.f32 %v3042, %v3906
        %v4419 = vadd.f32 %v3043, %v3907
        %v4420 = vadd.f32 %v3044, %v3908
        %v4421 = vadd.f32 %v3045, %v3909
        %v4422 = vadd.f32 %v3046, %v3910
        %v4423 = vadd.f32 %v3047, %v3911
        %v4424 = vadd.f32 %v3048, %v3912
        %v4425 = vadd.f32 %v3049, %v3913
        %v4426 = vadd.f32 %v3050, %v3914
        %v4427 = vadd.f32 %v3051, %v3915
        %v4428 = vadd.f32 %v3052, %v3916
        %v4429 = vadd.f32 %v3053, %v3917
        %v4430 = vadd.f32 %v3054, %v3918
        %v4431 = vadd.f32 %v3055, %v3919
        %v4432 = vadd.f32 %v3056, %v3920
        %v4433 = vadd.f32 %v3057, %v3921
        %v4434 = vadd.f32 %v3058, %v3922
        %v4435 = vadd.f32 %v3059, %v3923
        %v4436 = vadd.f32 %v3060, %v3924
        %v4437 = vadd.f32 %v3061, %v3925
        %v4438 = vadd.f32 %v3062, %v3926
        %v4439 = vadd.f32 %v3063, %v3927
        %v4440 = vadd.f32 %v3064, %v3928
        %v4441 = vadd.f32 %v3065, %v3929
        %v4442 = vadd.f32 %v3066, %v3930
        %v4443 = vadd.f32 %v3067, %v3931
        %v4444 = vadd.f32 %v3068, %v3932
        %v4445 = vadd.f32 %v3069, %v3933
        %v4446 = vadd.f32 %v3070, %v3934
        %v4447 = vadd.f32 %v3071, %v3935
        %v4448 = vadd.f32 %v3072, %v3936
        %v4449 = vadd.f32 %v3073, %v3937
        %v4450 = vadd.f32 %v3074, %v3938
        %v4451 = vadd.f32 %v3075, %v3939
        %v4452 = vadd.f32 %v3076, %v3940
        %v4453 = vadd.f32 %v3077, %v3941
        %v4454 = vadd.f32 %v3078, %v3942
        %v4455 = vadd.f32 %v3079, %v3943
        %v4456 = vadd.f32 %v3080, %v3944
        %v4457 = vadd.f32 %v3081, %v3945
        %v4458 = vadd.f32 %v3082, %v3946
        %v4459 = vadd.f32 %v3083, %v3947
        %v4460 = vadd.f32 %v3084, %v3948
        %v4461 = vadd.f32 %v3085, %v3949
        %v4462 = vadd.f32 %v3086, %v3950
        %v4463 = vadd.f32 %v3087, %v3951
        %v4464 = vadd.f32 %v3088, %v3952
        %v4465 = vadd.f32 %v3089, %v3953
        %v4466 = vadd.f32 %v3090, %v3954
        %v4467 = vadd.f32 %v3091, %v3955
        %v4468 = vadd.f32 %v3092, %v3956
        %v4469 = vadd.f32 %v3093, %v3957
        %v4470 = vadd.f32 %v3094, %v3958
        %v4471 = vadd.f32 %v3095, %v3959
        %v4472 = vadd.f32 %v3096, %v3960
        %v4473 = vadd.f32 %v3097, %v3961
        %v4474 = vadd.f32 %v3098, %v3962
        %v4475 = vadd.f32 %v3099, %v3963
        %v4476 = vadd.f32 %v3100, %v3964
        %v4477 = vadd.f32 %v3101, %v3965
        %v4478 = vadd.f32 %v3102, %v3966
        %v4479 = vadd.f32 %v3103, %v3967
        %v4480 = vadd.f32 %v3104, %v3968
        %v4481 = vadd.f32 %v3105, %v3969
        %v4482 = vadd.f32 %v3106, %v3970
        %v4483 = vadd.f32 %v3107, %v3971
        %v4484 = vadd.f32 %v3108, %v3972
        %v4485 = vadd.f32 %v3109, %v3973
        %v4486 = vadd.f32 %v3110, %v3974
        %v4487 = vadd.f32 %v3111, %v3975
        %v4488 = vadd.f32 %v3112, %v3976
        %v4489 = vadd.f32 %v3113, %v3977
        %v4490 = vadd.f32 %v3114, %v3978
        %v4491 = vadd.f32 %v3115, %v3979
        %v4492 = vadd.f32 %v3116, %v3980
        %v4493 = vadd.f32 %v3117, %v3981
        %v4494 = vadd.f32 %v3118, %v3982
        %v4495 = vadd.f32 %v3119, %v3983
        %v4496 = vadd.f32 %v3120, %v3984
        %v4497 = vadd.f32 %v3121, %v3985
        %v4498 = vadd.f32 %v3122, %v3986
        %v4499 = vadd.f32 %v3123, %v3987
        %v4500 = vadd.f32 %v3124, %v3988
        %v4501 = vadd.f32 %v3125, %v3989
        %v4502 = vadd.f32 %v3126, %v3990
        %v4503 = vadd.f32 %v3127, %v3991
        %v4504 = vadd.f32 %v3128, %v3992
        %v4505 = vadd.f32 %v3129, %v3993
        %v4506 = vadd.f32 %v3130, %v3994
        %v4507 = vadd.f32 %v3131, %v3995
        %v4508 = vadd.f32 %v3132, %v3996
        %v4509 = vadd.f32 %v3133, %v3997
        %v4510 = vadd.f32 %v3134, %v3998
        %v4511 = vadd.f32 %v3135, %v3999
        %v4512 = vadd.f32 %v3136, %v4000
        %v4513 = vadd.f32 %v3137, %v4001
        %v4514 = vadd.f32 %v3138, %v4002
        %v4515 = vadd.f32 %v3139, %v4003
        %v4516 = vadd.f32 %v3140, %v4004
        %v4517 = vadd.f32 %v3141, %v4005
        %v4518 = vadd.f32 %v3142, %v4006
        %v4519 = vadd.f32 %v3143, %v4007
        %v4520 = vadd.f32 %v3144, %v4008
        %v4521 = vadd.f32 %v3145, %v4009
        %v4522 = vadd.f32 %v3146, %v4010
        %v4523 = vadd.f32 %v3147, %v4011
        %v4524 = vadd.f32 %v3148, %v4012
        %v4525 = vadd.f32 %v3149, %v4013
        %v4526 = vadd.f32 %v3150, %v4014
        %v4527 = vadd.f32 %v3151, %v4015
        %v4528 = vadd.f32 %v3152, %v4016
        %v4529 = vadd.f32 %v3153, %v4017
        %v4530 = vadd.f32 %v3154, %v4018
        %v4531 = vadd.f32 %v3155, %v4019
        %v4532 = vadd.f32 %v3156, %v4020
        %v4533 = vadd.f32 %v3157, %v4021
        %v4534 = vadd.f32 %v3158, %v4022
        %v4535 = vadd.f32 %v3159, %v4023
        %v4536 = vadd.f32 %v3160, %v4024
        %v4537 = vadd.f32 %v3161, %v4025
        %v4538 = vadd.f32 %v3162, %v4026
        %v4539 = vadd.f32 %v3163, %v4027
        %v4540 = vadd.f32 %v3164, %v4028
        %v4541 = vadd.f32 %v3165, %v4029
        %v4542 = vadd.f32 %v3166, %v4030
        %v4543 = vadd.f32 %v3167, %v4031
        %v4544 = vadd.f32 %v3168, %v4032
        %v4545 = vadd.f32 %v3169, %v4033
        %v4546 = vadd.f32 %v3170, %v4034
        %v4547 = vadd.f32 %v3171, %v4035
        %v4548 = vadd.f32 %v3172, %v4036
        %v4549 = vadd.f32 %v3173, %v4037
        %v4550 = vadd.f32 %v3174, %v4038
        %v4551 = vadd.f32 %v3175, %v4039
        %v4552 = vadd.f32 %v3176, %v4040
        %v4553 = vadd.f32 %v3177, %v4041
        %v4554 = vadd.f32 %v3178, %v4042
        %v4555 = vadd.f32 %v3179, %v4043
        %v4556 = vadd.f32 %v3180, %v4044
        %v4557 = vadd.f32 %v3181, %v4045
        %v4558 = vadd.f32 %v3182, %v4046
        %v4559 = vadd.f32 %v3183, %v4047
        %v4560 = vadd.f32 %v3184, %v4048
        %v4561 = vadd.f32 %v3185, %v4049
        %v4562 = vadd.f32 %v3186, %v4050
        %v4563 = vadd.f32 %v3187, %v4051
        %v4564 = vadd.f32 %v3188, %v4052
        %v4565 = vadd.f32 %v3189, %v4053
        %v4566 = vadd.f32 %v3190, %v4054
        %v4567 = vadd.f32 %v3191, %v4055
        %v4568 = vadd.f32 %v3192, %v4056
        %v4569 = vadd.f32 %v3193, %v4057
        %v4570 = vadd.f32 %v3194, %v4058
        %v4571 = vadd.f32 %v3195, %v4059
        %v4572 = vadd.f32 %v3196, %v4060
        %v4573 = vadd.f32 %v3197, %v4061
        %v4574 = vadd.f32 %v3198, %v4062
        %v4575 = vadd.f32 %v3199, %v4063
        %v4576 = vadd.f32 %v3200, %v4064
        %v4577 = vadd.f32 %v3201, %v4065
        %v4578 = vadd.f32 %v3202, %v4066
        %v4579 = vadd.f32 %v3203, %v4067
        %v4580 = vadd.f32 %v3204, %v4068
        %v4581 = vadd.f32 %v3205, %v4069
        %v4582 = vadd.f32 %v3206, %v4070
        %4583 = vset.pattern.permute.xlu0 3
        %4584 = vperm.xlu0 %4583, %v311
        %v4585 = vpop.permute.xlu0 %4584
        %4587 = vset.pattern.permute.xlu0 3
        %4588 = vperm.xlu0 %4587, %v312
        %v4589 = vpop.permute.xlu0 %4588
        %4591 = vset.pattern.permute.xlu0 3
        %4592 = vperm.xlu0 %4591, %v313
        %v4593 = vpop.permute.xlu0 %4592
        %4595 = vset.pattern.permute.xlu0 3
        %4596 = vperm.xlu0 %4595, %v314
        %v4597 = vpop.permute.xlu0 %4596
        %4599 = vset.pattern.permute.xlu0 3
        %4600 = vperm.xlu0 %4599, %v315
        %v4601 = vpop.permute.xlu0 %4600
        %4603 = vset.pattern.permute.xlu0 3
        %4604 = vperm.xlu0 %4603, %v316
        %v4605 = vpop.permute.xlu0 %4604
        %4607 = vset.pattern.permute.xlu0 3
        %4608 = vperm.xlu0 %4607, %v317
        %v4609 = vpop.permute.xlu0 %4608
        %4611 = vset.pattern.permute.xlu0 3
        %4612 = vperm.xlu0 %4611, %v318
        %v4613 = vpop.permute.xlu0 %4612
        %4615 = vset.pattern.permute.xlu0 3
        %4616 = vperm.xlu0 %4615, %v319
        %v4617 = vpop.permute.xlu0 %4616
        %4619 = vset.pattern.permute.xlu0 3
        %4620 = vperm.xlu0 %4619, %v320
        %v4621 = vpop.permute.xlu0 %4620
        %4623 = vset.pattern.permute.xlu0 3
        %4624 = vperm.xlu0 %4623, %v321
        %v4625 = vpop.permute.xlu0 %4624
        %4627 = vset.pattern.permute.xlu0 3
        %4628 = vperm.xlu0 %4627, %v322
        %v4629 = vpop.permute.xlu0 %4628
        %4631 = vset.pattern.permute.xlu0 3
        %4632 = vperm.xlu0 %4631, %v323
        %v4633 = vpop.permute.xlu0 %4632
        %4635 = vset.pattern.permute.xlu0 3
        %4636 = vperm.xlu0 %4635, %v324
        %v4637 = vpop.permute.xlu0 %4636
        %4639 = vset.pattern.permute.xlu0 3
        %4640 = vperm.xlu0 %4639, %v325
        %v4641 = vpop.permute.xlu0 %4640
        %4643 = vset.pattern.permute.xlu0 3
        %4644 = vperm.xlu0 %4643, %v326
        %v4645 = vpop.permute.xlu0 %4644
        %v4647 = vlaneseq
        %v4648 = vshrl.u32 %v4647, 7
        %v4649 = vsub.s32 3, %v4648
        %v4650 = vrot.slane %v295, %v4649
        %v4651 = vlaneseq
        %v4652 = vshrl.u32 %v4651, 7
        %v4653 = vsub.s32 7, %v4652
        %v4654 = vrot.slane %v295, %v4653
        %v4655 = vlaneseq
        %v4656 = vshrl.u32 %v4655, 7
        %v4657 = vsub.s32 3, %v4656
        %v4658 = vrot.slane %v296, %v4657
        %v4659 = vlaneseq
        %v4660 = vshrl.u32 %v4659, 7
        %v4661 = vsub.s32 7, %v4660
        %v4662 = vrot.slane %v296, %v4661
        %v4663 = vlaneseq
        %v4664 = vshrl.u32 %v4663, 7
        %v4665 = vsub.s32 3, %v4664
        %v4666 = vrot.slane %v297, %v4665
        %v4667 = vlaneseq
        %v4668 = vshrl.u32 %v4667, 7
        %v4669 = vsub.s32 7, %v4668
        %v4670 = vrot.slane %v297, %v4669
        %v4671 = vlaneseq
        %v4672 = vshrl.u32 %v4671, 7
        %v4673 = vsub.s32 3, %v4672
        %v4674 = vrot.slane %v298, %v4673
        %v4675 = vlaneseq
        %v4676 = vshrl.u32 %v4675, 7
        %v4677 = vsub.s32 7, %v4676
        %v4678 = vrot.slane %v298, %v4677
        %v4679 = vlaneseq
        %v4680 = vshrl.u32 %v4679, 7
        %v4681 = vsub.s32 3, %v4680
        %v4682 = vrot.slane %v299, %v4681
        %v4683 = vlaneseq
        %v4684 = vshrl.u32 %v4683, 7
        %v4685 = vsub.s32 7, %v4684
        %v4686 = vrot.slane %v299, %v4685
        %v4687 = vlaneseq
        %v4688 = vshrl.u32 %v4687, 7
        %v4689 = vsub.s32 3, %v4688
        %v4690 = vrot.slane %v300, %v4689
        %v4691 = vlaneseq
        %v4692 = vshrl.u32 %v4691, 7
        %v4693 = vsub.s32 7, %v4692
        %v4694 = vrot.slane %v300, %v4693
        %v4695 = vlaneseq
        %v4696 = vshrl.u32 %v4695, 7
        %v4697 = vsub.s32 3, %v4696
        %v4698 = vrot.slane %v301, %v4697
        %v4699 = vlaneseq
        %v4700 = vshrl.u32 %v4699, 7
        %v4701 = vsub.s32 7, %v4700
        %v4702 = vrot.slane %v301, %v4701
        %v4703 = vlaneseq
        %v4704 = vshrl.u32 %v4703, 7
        %v4705 = vsub.s32 3, %v4704
        %v4706 = vrot.slane %v302, %v4705
        %v4707 = vlaneseq
        %v4708 = vshrl.u32 %v4707, 7
        %v4709 = vsub.s32 7, %v4708
        %v4710 = vrot.slane %v302, %v4709
        %v4711 = vlaneseq
        %v4712 = vshrl.u32 %v4711, 7
        %v4713 = vsub.s32 3, %v4712
        %v4714 = vrot.slane %v303, %v4713
        %v4715 = vlaneseq
        %v4716 = vshrl.u32 %v4715, 7
        %v4717 = vsub.s32 7, %v4716
        %v4718 = vrot.slane %v303, %v4717
        %v4719 = vlaneseq
        %v4720 = vshrl.u32 %v4719, 7
        %v4721 = vsub.s32 3, %v4720
        %v4722 = vrot.slane %v304, %v4721
        %v4723 = vlaneseq
        %v4724 = vshrl.u32 %v4723, 7
        %v4725 = vsub.s32 7, %v4724
        %v4726 = vrot.slane %v304, %v4725
        %v4727 = vlaneseq
        %v4728 = vshrl.u32 %v4727, 7
        %v4729 = vsub.s32 3, %v4728
        %v4730 = vrot.slane %v305, %v4729
        %v4731 = vlaneseq
        %v4732 = vshrl.u32 %v4731, 7
        %v4733 = vsub.s32 7, %v4732
        %v4734 = vrot.slane %v305, %v4733
        %v4735 = vlaneseq
        %v4736 = vshrl.u32 %v4735, 7
        %v4737 = vsub.s32 3, %v4736
        %v4738 = vrot.slane %v306, %v4737
        %v4739 = vlaneseq
        %v4740 = vshrl.u32 %v4739, 7
        %v4741 = vsub.s32 7, %v4740
        %v4742 = vrot.slane %v306, %v4741
        %v4743 = vlaneseq
        %v4744 = vshrl.u32 %v4743, 7
        %v4745 = vsub.s32 3, %v4744
        %v4746 = vrot.slane %v307, %v4745
        %v4747 = vlaneseq
        %v4748 = vshrl.u32 %v4747, 7
        %v4749 = vsub.s32 7, %v4748
        %v4750 = vrot.slane %v307, %v4749
        %v4751 = vlaneseq
        %v4752 = vshrl.u32 %v4751, 7
        %v4753 = vsub.s32 3, %v4752
        %v4754 = vrot.slane %v308, %v4753
        %v4755 = vlaneseq
        %v4756 = vshrl.u32 %v4755, 7
        %v4757 = vsub.s32 7, %v4756
        %v4758 = vrot.slane %v308, %v4757
        %v4759 = vlaneseq
        %v4760 = vshrl.u32 %v4759, 7
        %v4761 = vsub.s32 3, %v4760
        %v4762 = vrot.slane %v309, %v4761
        %v4763 = vlaneseq
        %v4764 = vshrl.u32 %v4763, 7
        %v4765 = vsub.s32 7, %v4764
        %v4766 = vrot.slane %v309, %v4765
        %v4767 = vlaneseq
        %v4768 = vshrl.u32 %v4767, 7
        %v4769 = vsub.s32 3, %v4768
        %v4770 = vrot.slane %v310, %v4769
        %v4771 = vlaneseq
        %v4772 = vshrl.u32 %v4771, 7
        %v4773 = vsub.s32 7, %v4772
        %v4774 = vrot.slane %v310, %v4773
        %v4807 = vlaneseq
        %v4808 = vshrl.u32 %v4807, 7
        %v4809 = vsub.s32 3, %v4808
        %v4810 = vrot.slane %v4650, %v4809
        %v4811 = vlaneseq
        %v4812 = vshrl.u32 %v4811, 7
        %v4813 = vsub.s32 3, %v4812
        %v4814 = vrot.slane %v4654, %v4813
        %v4815 = vlaneseq
        %v4816 = vshrl.u32 %v4815, 7
        %v4817 = vsub.s32 3, %v4816
        %v4818 = vrot.slane %v4658, %v4817
        %v4819 = vlaneseq
        %v4820 = vshrl.u32 %v4819, 7
        %v4821 = vsub.s32 3, %v4820
        %v4822 = vrot.slane %v4662, %v4821
        %v4823 = vlaneseq
        %v4824 = vshrl.u32 %v4823, 7
        %v4825 = vsub.s32 3, %v4824
        %v4826 = vrot.slane %v4666, %v4825
        %v4827 = vlaneseq
        %v4828 = vshrl.u32 %v4827, 7
        %v4829 = vsub.s32 3, %v4828
        %v4830 = vrot.slane %v4670, %v4829
        %v4831 = vlaneseq
        %v4832 = vshrl.u32 %v4831, 7
        %v4833 = vsub.s32 3, %v4832
        %v4834 = vrot.slane %v4674, %v4833
        %v4835 = vlaneseq
        %v4836 = vshrl.u32 %v4835, 7
        %v4837 = vsub.s32 3, %v4836
        %v4838 = vrot.slane %v4678, %v4837
        %v4839 = vlaneseq
        %v4840 = vshrl.u32 %v4839, 7
        %v4841 = vsub.s32 3, %v4840
        %v4842 = vrot.slane %v4682, %v4841
        %v4843 = vlaneseq
        %v4844 = vshrl.u32 %v4843, 7
        %v4845 = vsub.s32 3, %v4844
        %v4846 = vrot.slane %v4686, %v4845
        %v4847 = vlaneseq
        %v4848 = vshrl.u32 %v4847, 7
        %v4849 = vsub.s32 3, %v4848
        %v4850 = vrot.slane %v4690, %v4849
        %v4851 = vlaneseq
        %v4852 = vshrl.u32 %v4851, 7
        %v4853 = vsub.s32 3, %v4852
        %v4854 = vrot.slane %v4694, %v4853
        %v4855 = vlaneseq
        %v4856 = vshrl.u32 %v4855, 7
        %v4857 = vsub.s32 3, %v4856
        %v4858 = vrot.slane %v4698, %v4857
        %v4859 = vlaneseq
        %v4860 = vshrl.u32 %v4859, 7
        %v4861 = vsub.s32 3, %v4860
        %v4862 = vrot.slane %v4702, %v4861
        %v4863 = vlaneseq
        %v4864 = vshrl.u32 %v4863, 7
        %v4865 = vsub.s32 3, %v4864
        %v4866 = vrot.slane %v4706, %v4865
        %v4867 = vlaneseq
        %v4868 = vshrl.u32 %v4867, 7
        %v4869 = vsub.s32 3, %v4868
        %v4870 = vrot.slane %v4710, %v4869
        %v4871 = vlaneseq
        %v4872 = vshrl.u32 %v4871, 7
        %v4873 = vsub.s32 3, %v4872
        %v4874 = vrot.slane %v4714, %v4873
        %v4875 = vlaneseq
        %v4876 = vshrl.u32 %v4875, 7
        %v4877 = vsub.s32 3, %v4876
        %v4878 = vrot.slane %v4718, %v4877
        %v4879 = vlaneseq
        %v4880 = vshrl.u32 %v4879, 7
        %v4881 = vsub.s32 3, %v4880
        %v4882 = vrot.slane %v4722, %v4881
        %v4883 = vlaneseq
        %v4884 = vshrl.u32 %v4883, 7
        %v4885 = vsub.s32 3, %v4884
        %v4886 = vrot.slane %v4726, %v4885
        %v4887 = vlaneseq
        %v4888 = vshrl.u32 %v4887, 7
        %v4889 = vsub.s32 3, %v4888
        %v4890 = vrot.slane %v4730, %v4889
        %v4891 = vlaneseq
        %v4892 = vshrl.u32 %v4891, 7
        %v4893 = vsub.s32 3, %v4892
        %v4894 = vrot.slane %v4734, %v4893
        %v4895 = vlaneseq
        %v4896 = vshrl.u32 %v4895, 7
        %v4897 = vsub.s32 3, %v4896
        %v4898 = vrot.slane %v4738, %v4897
        %v4899 = vlaneseq
        %v4900 = vshrl.u32 %v4899, 7
        %v4901 = vsub.s32 3, %v4900
        %v4902 = vrot.slane %v4742, %v4901
        %v4903 = vlaneseq
        %v4904 = vshrl.u32 %v4903, 7
        %v4905 = vsub.s32 3, %v4904
        %v4906 = vrot.slane %v4746, %v4905
        %v4907 = vlaneseq
        %v4908 = vshrl.u32 %v4907, 7
        %v4909 = vsub.s32 3, %v4908
        %v4910 = vrot.slane %v4750, %v4909
        %v4911 = vlaneseq
        %v4912 = vshrl.u32 %v4911, 7
        %v4913 = vsub.s32 3, %v4912
        %v4914 = vrot.slane %v4754, %v4913
        %v4915 = vlaneseq
        %v4916 = vshrl.u32 %v4915, 7
        %v4917 = vsub.s32 3, %v4916
        %v4918 = vrot.slane %v4758, %v4917
        %v4919 = vlaneseq
        %v4920 = vshrl.u32 %v4919, 7
        %v4921 = vsub.s32 3, %v4920
        %v4922 = vrot.slane %v4762, %v4921
        %v4923 = vlaneseq
        %v4924 = vshrl.u32 %v4923, 7
        %v4925 = vsub.s32 3, %v4924
        %v4926 = vrot.slane %v4766, %v4925
        %v4927 = vlaneseq
        %v4928 = vshrl.u32 %v4927, 7
        %v4929 = vsub.s32 3, %v4928
        %v4930 = vrot.slane %v4770, %v4929
        %v4931 = vlaneseq
        %v4932 = vshrl.u32 %v4931, 7
        %v4933 = vsub.s32 3, %v4932
        %v4934 = vrot.slane %v4774, %v4933
        %v4935 = vmul.f32 %v4585, %v4810
        %v4936 = vmul.f32 %v4585, %v4814
        %v4937 = vmul.f32 %v4585, %v4818
        %v4938 = vmul.f32 %v4585, %v4822
        %v4939 = vmul.f32 %v4585, %v4826
        %v4940 = vmul.f32 %v4585, %v4830
        %v4941 = vmul.f32 %v4585, %v4834
        %v4942 = vmul.f32 %v4585, %v4838
        %v4943 = vmul.f32 %v4585, %v4842
        %v4944 = vmul.f32 %v4585, %v4846
        %v4945 = vmul.f32 %v4585, %v4850
        %v4946 = vmul.f32 %v4585, %v4854
        %v4947 = vmul.f32 %v4585, %v4858
        %v4948 = vmul.f32 %v4585, %v4862
        %v4949 = vmul.f32 %v4585, %v4866
        %v4950 = vmul.f32 %v4585, %v4870
        %v4951 = vmul.f32 %v4585, %v4874
        %v4952 = vmul.f32 %v4585, %v4878
        %v4953 = vmul.f32 %v4585, %v4882
        %v4954 = vmul.f32 %v4585, %v4886
        %v4955 = vmul.f32 %v4585, %v4890
        %v4956 = vmul.f32 %v4585, %v4894
        %v4957 = vmul.f32 %v4585, %v4898
        %v4958 = vmul.f32 %v4585, %v4902
        %v4959 = vmul.f32 %v4585, %v4906
        %v4960 = vmul.f32 %v4585, %v4910
        %v4961 = vmul.f32 %v4585, %v4914
        %v4962 = vmul.f32 %v4585, %v4918
        %v4963 = vmul.f32 %v4585, %v4922
        %v4964 = vmul.f32 %v4585, %v4926
        %v4965 = vmul.f32 %v4585, %v4930
        %v4966 = vmul.f32 %v4585, %v4934
        %v4967 = vmul.f32 %v4589, %v4810
        %v4968 = vmul.f32 %v4589, %v4814
        %v4969 = vmul.f32 %v4589, %v4818
        %v4970 = vmul.f32 %v4589, %v4822
        %v4971 = vmul.f32 %v4589, %v4826
        %v4972 = vmul.f32 %v4589, %v4830
        %v4973 = vmul.f32 %v4589, %v4834
        %v4974 = vmul.f32 %v4589, %v4838
        %v4975 = vmul.f32 %v4589, %v4842
        %v4976 = vmul.f32 %v4589, %v4846
        %v4977 = vmul.f32 %v4589, %v4850
        %v4978 = vmul.f32 %v4589, %v4854
        %v4979 = vmul.f32 %v4589, %v4858
        %v4980 = vmul.f32 %v4589, %v4862
        %v4981 = vmul.f32 %v4589, %v4866
        %v4982 = vmul.f32 %v4589, %v4870
        %v4983 = vmul.f32 %v4589, %v4874
        %v4984 = vmul.f32 %v4589, %v4878
        %v4985 = vmul.f32 %v4589, %v4882
        %v4986 = vmul.f32 %v4589, %v4886
        %v4987 = vmul.f32 %v4589, %v4890
        %v4988 = vmul.f32 %v4589, %v4894
        %v4989 = vmul.f32 %v4589, %v4898
        %v4990 = vmul.f32 %v4589, %v4902
        %v4991 = vmul.f32 %v4589, %v4906
        %v4992 = vmul.f32 %v4589, %v4910
        %v4993 = vmul.f32 %v4589, %v4914
        %v4994 = vmul.f32 %v4589, %v4918
        %v4995 = vmul.f32 %v4589, %v4922
        %v4996 = vmul.f32 %v4589, %v4926
        %v4997 = vmul.f32 %v4589, %v4930
        %v4998 = vmul.f32 %v4589, %v4934
        %v4999 = vmul.f32 %v4593, %v4810
        %v5000 = vmul.f32 %v4593, %v4814
        %v5001 = vmul.f32 %v4593, %v4818
        %v5002 = vmul.f32 %v4593, %v4822
        %v5003 = vmul.f32 %v4593, %v4826
        %v5004 = vmul.f32 %v4593, %v4830
        %v5005 = vmul.f32 %v4593, %v4834
        %v5006 = vmul.f32 %v4593, %v4838
        %v5007 = vmul.f32 %v4593, %v4842
        %v5008 = vmul.f32 %v4593, %v4846
        %v5009 = vmul.f32 %v4593, %v4850
        %v5010 = vmul.f32 %v4593, %v4854
        %v5011 = vmul.f32 %v4593, %v4858
        %v5012 = vmul.f32 %v4593, %v4862
        %v5013 = vmul.f32 %v4593, %v4866
        %v5014 = vmul.f32 %v4593, %v4870
        %v5015 = vmul.f32 %v4593, %v4874
        %v5016 = vmul.f32 %v4593, %v4878
        %v5017 = vmul.f32 %v4593, %v4882
        %v5018 = vmul.f32 %v4593, %v4886
        %v5019 = vmul.f32 %v4593, %v4890
        %v5020 = vmul.f32 %v4593, %v4894
        %v5021 = vmul.f32 %v4593, %v4898
        %v5022 = vmul.f32 %v4593, %v4902
        %v5023 = vmul.f32 %v4593, %v4906
        %v5024 = vmul.f32 %v4593, %v4910
        %v5025 = vmul.f32 %v4593, %v4914
        %v5026 = vmul.f32 %v4593, %v4918
        %v5027 = vmul.f32 %v4593, %v4922
        %v5028 = vmul.f32 %v4593, %v4926
        %v5029 = vmul.f32 %v4593, %v4930
        %v5030 = vmul.f32 %v4593, %v4934
        %v5031 = vmul.f32 %v4597, %v4810
        %v5032 = vmul.f32 %v4597, %v4814
        %v5033 = vmul.f32 %v4597, %v4818
        %v5034 = vmul.f32 %v4597, %v4822
        %v5035 = vmul.f32 %v4597, %v4826
        %v5036 = vmul.f32 %v4597, %v4830
        %v5037 = vmul.f32 %v4597, %v4834
        %v5038 = vmul.f32 %v4597, %v4838
        %v5039 = vmul.f32 %v4597, %v4842
        %v5040 = vmul.f32 %v4597, %v4846
        %v5041 = vmul.f32 %v4597, %v4850
        %v5042 = vmul.f32 %v4597, %v4854
        %v5043 = vmul.f32 %v4597, %v4858
        %v5044 = vmul.f32 %v4597, %v4862
        %v5045 = vmul.f32 %v4597, %v4866
        %v5046 = vmul.f32 %v4597, %v4870
        %v5047 = vmul.f32 %v4597, %v4874
        %v5048 = vmul.f32 %v4597, %v4878
        %v5049 = vmul.f32 %v4597, %v4882
        %v5050 = vmul.f32 %v4597, %v4886
        %v5051 = vmul.f32 %v4597, %v4890
        %v5052 = vmul.f32 %v4597, %v4894
        %v5053 = vmul.f32 %v4597, %v4898
        %v5054 = vmul.f32 %v4597, %v4902
        %v5055 = vmul.f32 %v4597, %v4906
        %v5056 = vmul.f32 %v4597, %v4910
        %v5057 = vmul.f32 %v4597, %v4914
        %v5058 = vmul.f32 %v4597, %v4918
        %v5059 = vmul.f32 %v4597, %v4922
        %v5060 = vmul.f32 %v4597, %v4926
        %v5061 = vmul.f32 %v4597, %v4930
        %v5062 = vmul.f32 %v4597, %v4934
        %v5063 = vmul.f32 %v4601, %v4810
        %v5064 = vmul.f32 %v4601, %v4814
        %v5065 = vmul.f32 %v4601, %v4818
        %v5066 = vmul.f32 %v4601, %v4822
        %v5067 = vmul.f32 %v4601, %v4826
        %v5068 = vmul.f32 %v4601, %v4830
        %v5069 = vmul.f32 %v4601, %v4834
        %v5070 = vmul.f32 %v4601, %v4838
        %v5071 = vmul.f32 %v4601, %v4842
        %v5072 = vmul.f32 %v4601, %v4846
        %v5073 = vmul.f32 %v4601, %v4850
        %v5074 = vmul.f32 %v4601, %v4854
        %v5075 = vmul.f32 %v4601, %v4858
        %v5076 = vmul.f32 %v4601, %v4862
        %v5077 = vmul.f32 %v4601, %v4866
        %v5078 = vmul.f32 %v4601, %v4870
        %v5079 = vmul.f32 %v4601, %v4874
        %v5080 = vmul.f32 %v4601, %v4878
        %v5081 = vmul.f32 %v4601, %v4882
        %v5082 = vmul.f32 %v4601, %v4886
        %v5083 = vmul.f32 %v4601, %v4890
        %v5084 = vmul.f32 %v4601, %v4894
        %v5085 = vmul.f32 %v4601, %v4898
        %v5086 = vmul.f32 %v4601, %v4902
        %v5087 = vmul.f32 %v4601, %v4906
        %v5088 = vmul.f32 %v4601, %v4910
        %v5089 = vmul.f32 %v4601, %v4914
        %v5090 = vmul.f32 %v4601, %v4918
        %v5091 = vmul.f32 %v4601, %v4922
        %v5092 = vmul.f32 %v4601, %v4926
        %v5093 = vmul.f32 %v4601, %v4930
        %v5094 = vmul.f32 %v4601, %v4934
        %v5095 = vmul.f32 %v4605, %v4810
        %v5096 = vmul.f32 %v4605, %v4814
        %v5097 = vmul.f32 %v4605, %v4818
        %v5098 = vmul.f32 %v4605, %v4822
        %v5099 = vmul.f32 %v4605, %v4826
        %v5100 = vmul.f32 %v4605, %v4830
        %v5101 = vmul.f32 %v4605, %v4834
        %v5102 = vmul.f32 %v4605, %v4838
        %v5103 = vmul.f32 %v4605, %v4842
        %v5104 = vmul.f32 %v4605, %v4846
        %v5105 = vmul.f32 %v4605, %v4850
        %v5106 = vmul.f32 %v4605, %v4854
        %v5107 = vmul.f32 %v4605, %v4858
        %v5108 = vmul.f32 %v4605, %v4862
        %v5109 = vmul.f32 %v4605, %v4866
        %v5110 = vmul.f32 %v4605, %v4870
        %v5111 = vmul.f32 %v4605, %v4874
        %v5112 = vmul.f32 %v4605, %v4878
        %v5113 = vmul.f32 %v4605, %v4882
        %v5114 = vmul.f32 %v4605, %v4886
        %v5115 = vmul.f32 %v4605, %v4890
        %v5116 = vmul.f32 %v4605, %v4894
        %v5117 = vmul.f32 %v4605, %v4898
        %v5118 = vmul.f32 %v4605, %v4902
        %v5119 = vmul.f32 %v4605, %v4906
        %v5120 = vmul.f32 %v4605, %v4910
        %v5121 = vmul.f32 %v4605, %v4914
        %v5122 = vmul.f32 %v4605, %v4918
        %v5123 = vmul.f32 %v4605, %v4922
        %v5124 = vmul.f32 %v4605, %v4926
        %v5125 = vmul.f32 %v4605, %v4930
        %v5126 = vmul.f32 %v4605, %v4934
        %v5127 = vmul.f32 %v4609, %v4810
        %v5128 = vmul.f32 %v4609, %v4814
        %v5129 = vmul.f32 %v4609, %v4818
        %v5130 = vmul.f32 %v4609, %v4822
        %v5131 = vmul.f32 %v4609, %v4826
        %v5132 = vmul.f32 %v4609, %v4830
        %v5133 = vmul.f32 %v4609, %v4834
        %v5134 = vmul.f32 %v4609, %v4838
        %v5135 = vmul.f32 %v4609, %v4842
        %v5136 = vmul.f32 %v4609, %v4846
        %v5137 = vmul.f32 %v4609, %v4850
        %v5138 = vmul.f32 %v4609, %v4854
        %v5139 = vmul.f32 %v4609, %v4858
        %v5140 = vmul.f32 %v4609, %v4862
        %v5141 = vmul.f32 %v4609, %v4866
        %v5142 = vmul.f32 %v4609, %v4870
        %v5143 = vmul.f32 %v4609, %v4874
        %v5144 = vmul.f32 %v4609, %v4878
        %v5145 = vmul.f32 %v4609, %v4882
        %v5146 = vmul.f32 %v4609, %v4886
        %v5147 = vmul.f32 %v4609, %v4890
        %v5148 = vmul.f32 %v4609, %v4894
        %v5149 = vmul.f32 %v4609, %v4898
        %v5150 = vmul.f32 %v4609, %v4902
        %v5151 = vmul.f32 %v4609, %v4906
        %v5152 = vmul.f32 %v4609, %v4910
        %v5153 = vmul.f32 %v4609, %v4914
        %v5154 = vmul.f32 %v4609, %v4918
        %v5155 = vmul.f32 %v4609, %v4922
        %v5156 = vmul.f32 %v4609, %v4926
        %v5157 = vmul.f32 %v4609, %v4930
        %v5158 = vmul.f32 %v4609, %v4934
        %v5159 = vmul.f32 %v4613, %v4810
        %v5160 = vmul.f32 %v4613, %v4814
        %v5161 = vmul.f32 %v4613, %v4818
        %v5162 = vmul.f32 %v4613, %v4822
        %v5163 = vmul.f32 %v4613, %v4826
        %v5164 = vmul.f32 %v4613, %v4830
        %v5165 = vmul.f32 %v4613, %v4834
        %v5166 = vmul.f32 %v4613, %v4838
        %v5167 = vmul.f32 %v4613, %v4842
        %v5168 = vmul.f32 %v4613, %v4846
        %v5169 = vmul.f32 %v4613, %v4850
        %v5170 = vmul.f32 %v4613, %v4854
        %v5171 = vmul.f32 %v4613, %v4858
        %v5172 = vmul.f32 %v4613, %v4862
        %v5173 = vmul.f32 %v4613, %v4866
        %v5174 = vmul.f32 %v4613, %v4870
        %v5175 = vmul.f32 %v4613, %v4874
        %v5176 = vmul.f32 %v4613, %v4878
        %v5177 = vmul.f32 %v4613, %v4882
        %v5178 = vmul.f32 %v4613, %v4886
        %v5179 = vmul.f32 %v4613, %v4890
        %v5180 = vmul.f32 %v4613, %v4894
        %v5181 = vmul.f32 %v4613, %v4898
        %v5182 = vmul.f32 %v4613, %v4902
        %v5183 = vmul.f32 %v4613, %v4906
        %v5184 = vmul.f32 %v4613, %v4910
        %v5185 = vmul.f32 %v4613, %v4914
        %v5186 = vmul.f32 %v4613, %v4918
        %v5187 = vmul.f32 %v4613, %v4922
        %v5188 = vmul.f32 %v4613, %v4926
        %v5189 = vmul.f32 %v4613, %v4930
        %v5190 = vmul.f32 %v4613, %v4934
        %v5191 = vmul.f32 %v4617, %v4810
        %v5192 = vmul.f32 %v4617, %v4814
        %v5193 = vmul.f32 %v4617, %v4818
        %v5194 = vmul.f32 %v4617, %v4822
        %v5195 = vmul.f32 %v4617, %v4826
        %v5196 = vmul.f32 %v4617, %v4830
        %v5197 = vmul.f32 %v4617, %v4834
        %v5198 = vmul.f32 %v4617, %v4838
        %v5199 = vmul.f32 %v4617, %v4842
        %v5200 = vmul.f32 %v4617, %v4846
        %v5201 = vmul.f32 %v4617, %v4850
        %v5202 = vmul.f32 %v4617, %v4854
        %v5203 = vmul.f32 %v4617, %v4858
        %v5204 = vmul.f32 %v4617, %v4862
        %v5205 = vmul.f32 %v4617, %v4866
        %v5206 = vmul.f32 %v4617, %v4870
        %v5207 = vmul.f32 %v4617, %v4874
        %v5208 = vmul.f32 %v4617, %v4878
        %v5209 = vmul.f32 %v4617, %v4882
        %v5210 = vmul.f32 %v4617, %v4886
        %v5211 = vmul.f32 %v4617, %v4890
        %v5212 = vmul.f32 %v4617, %v4894
        %v5213 = vmul.f32 %v4617, %v4898
        %v5214 = vmul.f32 %v4617, %v4902
        %v5215 = vmul.f32 %v4617, %v4906
        %v5216 = vmul.f32 %v4617, %v4910
        %v5217 = vmul.f32 %v4617, %v4914
        %v5218 = vmul.f32 %v4617, %v4918
        %v5219 = vmul.f32 %v4617, %v4922
        %v5220 = vmul.f32 %v4617, %v4926
        %v5221 = vmul.f32 %v4617, %v4930
        %v5222 = vmul.f32 %v4617, %v4934
        %v5223 = vmul.f32 %v4621, %v4810
        %v5224 = vmul.f32 %v4621, %v4814
        %v5225 = vmul.f32 %v4621, %v4818
        %v5226 = vmul.f32 %v4621, %v4822
        %v5227 = vmul.f32 %v4621, %v4826
        %v5228 = vmul.f32 %v4621, %v4830
        %v5229 = vmul.f32 %v4621, %v4834
        %v5230 = vmul.f32 %v4621, %v4838
        %v5231 = vmul.f32 %v4621, %v4842
        %v5232 = vmul.f32 %v4621, %v4846
        %v5233 = vmul.f32 %v4621, %v4850
        %v5234 = vmul.f32 %v4621, %v4854
        %v5235 = vmul.f32 %v4621, %v4858
        %v5236 = vmul.f32 %v4621, %v4862
        %v5237 = vmul.f32 %v4621, %v4866
        %v5238 = vmul.f32 %v4621, %v4870
        %v5239 = vmul.f32 %v4621, %v4874
        %v5240 = vmul.f32 %v4621, %v4878
        %v5241 = vmul.f32 %v4621, %v4882
        %v5242 = vmul.f32 %v4621, %v4886
        %v5243 = vmul.f32 %v4621, %v4890
        %v5244 = vmul.f32 %v4621, %v4894
        %v5245 = vmul.f32 %v4621, %v4898
        %v5246 = vmul.f32 %v4621, %v4902
        %v5247 = vmul.f32 %v4621, %v4906
        %v5248 = vmul.f32 %v4621, %v4910
        %v5249 = vmul.f32 %v4621, %v4914
        %v5250 = vmul.f32 %v4621, %v4918
        %v5251 = vmul.f32 %v4621, %v4922
        %v5252 = vmul.f32 %v4621, %v4926
        %v5253 = vmul.f32 %v4621, %v4930
        %v5254 = vmul.f32 %v4621, %v4934
        %v5255 = vmul.f32 %v4625, %v4810
        %v5256 = vmul.f32 %v4625, %v4814
        %v5257 = vmul.f32 %v4625, %v4818
        %v5258 = vmul.f32 %v4625, %v4822
        %v5259 = vmul.f32 %v4625, %v4826
        %v5260 = vmul.f32 %v4625, %v4830
        %v5261 = vmul.f32 %v4625, %v4834
        %v5262 = vmul.f32 %v4625, %v4838
        %v5263 = vmul.f32 %v4625, %v4842
        %v5264 = vmul.f32 %v4625, %v4846
        %v5265 = vmul.f32 %v4625, %v4850
        %v5266 = vmul.f32 %v4625, %v4854
        %v5267 = vmul.f32 %v4625, %v4858
        %v5268 = vmul.f32 %v4625, %v4862
        %v5269 = vmul.f32 %v4625, %v4866
        %v5270 = vmul.f32 %v4625, %v4870
        %v5271 = vmul.f32 %v4625, %v4874
        %v5272 = vmul.f32 %v4625, %v4878
        %v5273 = vmul.f32 %v4625, %v4882
        %v5274 = vmul.f32 %v4625, %v4886
        %v5275 = vmul.f32 %v4625, %v4890
        %v5276 = vmul.f32 %v4625, %v4894
        %v5277 = vmul.f32 %v4625, %v4898
        %v5278 = vmul.f32 %v4625, %v4902
        %v5279 = vmul.f32 %v4625, %v4906
        %v5280 = vmul.f32 %v4625, %v4910
        %v5281 = vmul.f32 %v4625, %v4914
        %v5282 = vmul.f32 %v4625, %v4918
        %v5283 = vmul.f32 %v4625, %v4922
        %v5284 = vmul.f32 %v4625, %v4926
        %v5285 = vmul.f32 %v4625, %v4930
        %v5286 = vmul.f32 %v4625, %v4934
        %v5287 = vmul.f32 %v4629, %v4810
        %v5288 = vmul.f32 %v4629, %v4814
        %v5289 = vmul.f32 %v4629, %v4818
        %v5290 = vmul.f32 %v4629, %v4822
        %v5291 = vmul.f32 %v4629, %v4826
        %v5292 = vmul.f32 %v4629, %v4830
        %v5293 = vmul.f32 %v4629, %v4834
        %v5294 = vmul.f32 %v4629, %v4838
        %v5295 = vmul.f32 %v4629, %v4842
        %v5296 = vmul.f32 %v4629, %v4846
        %v5297 = vmul.f32 %v4629, %v4850
        %v5298 = vmul.f32 %v4629, %v4854
        %v5299 = vmul.f32 %v4629, %v4858
        %v5300 = vmul.f32 %v4629, %v4862
        %v5301 = vmul.f32 %v4629, %v4866
        %v5302 = vmul.f32 %v4629, %v4870
        %v5303 = vmul.f32 %v4629, %v4874
        %v5304 = vmul.f32 %v4629, %v4878
        %v5305 = vmul.f32 %v4629, %v4882
        %v5306 = vmul.f32 %v4629, %v4886
        %v5307 = vmul.f32 %v4629, %v4890
        %v5308 = vmul.f32 %v4629, %v4894
        %v5309 = vmul.f32 %v4629, %v4898
        %v5310 = vmul.f32 %v4629, %v4902
        %v5311 = vmul.f32 %v4629, %v4906
        %v5312 = vmul.f32 %v4629, %v4910
        %v5313 = vmul.f32 %v4629, %v4914
        %v5314 = vmul.f32 %v4629, %v4918
        %v5315 = vmul.f32 %v4629, %v4922
        %v5316 = vmul.f32 %v4629, %v4926
        %v5317 = vmul.f32 %v4629, %v4930
        %v5318 = vmul.f32 %v4629, %v4934
        %v5319 = vmul.f32 %v4633, %v4810
        %v5320 = vmul.f32 %v4633, %v4814
        %v5321 = vmul.f32 %v4633, %v4818
        %v5322 = vmul.f32 %v4633, %v4822
        %v5323 = vmul.f32 %v4633, %v4826
        %v5324 = vmul.f32 %v4633, %v4830
        %v5325 = vmul.f32 %v4633, %v4834
        %v5326 = vmul.f32 %v4633, %v4838
        %v5327 = vmul.f32 %v4633, %v4842
        %v5328 = vmul.f32 %v4633, %v4846
        %v5329 = vmul.f32 %v4633, %v4850
        %v5330 = vmul.f32 %v4633, %v4854
        %v5331 = vmul.f32 %v4633, %v4858
        %v5332 = vmul.f32 %v4633, %v4862
        %v5333 = vmul.f32 %v4633, %v4866
        %v5334 = vmul.f32 %v4633, %v4870
        %v5335 = vmul.f32 %v4633, %v4874
        %v5336 = vmul.f32 %v4633, %v4878
        %v5337 = vmul.f32 %v4633, %v4882
        %v5338 = vmul.f32 %v4633, %v4886
        %v5339 = vmul.f32 %v4633, %v4890
        %v5340 = vmul.f32 %v4633, %v4894
        %v5341 = vmul.f32 %v4633, %v4898
        %v5342 = vmul.f32 %v4633, %v4902
        %v5343 = vmul.f32 %v4633, %v4906
        %v5344 = vmul.f32 %v4633, %v4910
        %v5345 = vmul.f32 %v4633, %v4914
        %v5346 = vmul.f32 %v4633, %v4918
        %v5347 = vmul.f32 %v4633, %v4922
        %v5348 = vmul.f32 %v4633, %v4926
        %v5349 = vmul.f32 %v4633, %v4930
        %v5350 = vmul.f32 %v4633, %v4934
        %v5351 = vmul.f32 %v4637, %v4810
        %v5352 = vmul.f32 %v4637, %v4814
        %v5353 = vmul.f32 %v4637, %v4818
        %v5354 = vmul.f32 %v4637, %v4822
        %v5355 = vmul.f32 %v4637, %v4826
        %v5356 = vmul.f32 %v4637, %v4830
        %v5357 = vmul.f32 %v4637, %v4834
        %v5358 = vmul.f32 %v4637, %v4838
        %v5359 = vmul.f32 %v4637, %v4842
        %v5360 = vmul.f32 %v4637, %v4846
        %v5361 = vmul.f32 %v4637, %v4850
        %v5362 = vmul.f32 %v4637, %v4854
        %v5363 = vmul.f32 %v4637, %v4858
        %v5364 = vmul.f32 %v4637, %v4862
        %v5365 = vmul.f32 %v4637, %v4866
        %v5366 = vmul.f32 %v4637, %v4870
        %v5367 = vmul.f32 %v4637, %v4874
        %v5368 = vmul.f32 %v4637, %v4878
        %v5369 = vmul.f32 %v4637, %v4882
        %v5370 = vmul.f32 %v4637, %v4886
        %v5371 = vmul.f32 %v4637, %v4890
        %v5372 = vmul.f32 %v4637, %v4894
        %v5373 = vmul.f32 %v4637, %v4898
        %v5374 = vmul.f32 %v4637, %v4902
        %v5375 = vmul.f32 %v4637, %v4906
        %v5376 = vmul.f32 %v4637, %v4910
        %v5377 = vmul.f32 %v4637, %v4914
        %v5378 = vmul.f32 %v4637, %v4918
        %v5379 = vmul.f32 %v4637, %v4922
        %v5380 = vmul.f32 %v4637, %v4926
        %v5381 = vmul.f32 %v4637, %v4930
        %v5382 = vmul.f32 %v4637, %v4934
        %v5383 = vmul.f32 %v4641, %v4810
        %v5384 = vmul.f32 %v4641, %v4814
        %v5385 = vmul.f32 %v4641, %v4818
        %v5386 = vmul.f32 %v4641, %v4822
        %v5387 = vmul.f32 %v4641, %v4826
        %v5388 = vmul.f32 %v4641, %v4830
        %v5389 = vmul.f32 %v4641, %v4834
        %v5390 = vmul.f32 %v4641, %v4838
        %v5391 = vmul.f32 %v4641, %v4842
        %v5392 = vmul.f32 %v4641, %v4846
        %v5393 = vmul.f32 %v4641, %v4850
        %v5394 = vmul.f32 %v4641, %v4854
        %v5395 = vmul.f32 %v4641, %v4858
        %v5396 = vmul.f32 %v4641, %v4862
        %v5397 = vmul.f32 %v4641, %v4866
        %v5398 = vmul.f32 %v4641, %v4870
        %v5399 = vmul.f32 %v4641, %v4874
        %v5400 = vmul.f32 %v4641, %v4878
        %v5401 = vmul.f32 %v4641, %v4882
        %v5402 = vmul.f32 %v4641, %v4886
        %v5403 = vmul.f32 %v4641, %v4890
        %v5404 = vmul.f32 %v4641, %v4894
        %v5405 = vmul.f32 %v4641, %v4898
        %v5406 = vmul.f32 %v4641, %v4902
        %v5407 = vmul.f32 %v4641, %v4906
        %v5408 = vmul.f32 %v4641, %v4910
        %v5409 = vmul.f32 %v4641, %v4914
        %v5410 = vmul.f32 %v4641, %v4918
        %v5411 = vmul.f32 %v4641, %v4922
        %v5412 = vmul.f32 %v4641, %v4926
        %v5413 = vmul.f32 %v4641, %v4930
        %v5414 = vmul.f32 %v4641, %v4934
        %v5415 = vmul.f32 %v4645, %v4810
        %v5416 = vmul.f32 %v4645, %v4814
        %v5417 = vmul.f32 %v4645, %v4818
        %v5418 = vmul.f32 %v4645, %v4822
        %v5419 = vmul.f32 %v4645, %v4826
        %v5420 = vmul.f32 %v4645, %v4830
        %v5421 = vmul.f32 %v4645, %v4834
        %v5422 = vmul.f32 %v4645, %v4838
        %v5423 = vmul.f32 %v4645, %v4842
        %v5424 = vmul.f32 %v4645, %v4846
        %v5425 = vmul.f32 %v4645, %v4850
        %v5426 = vmul.f32 %v4645, %v4854
        %v5427 = vmul.f32 %v4645, %v4858
        %v5428 = vmul.f32 %v4645, %v4862
        %v5429 = vmul.f32 %v4645, %v4866
        %v5430 = vmul.f32 %v4645, %v4870
        %v5431 = vmul.f32 %v4645, %v4874
        %v5432 = vmul.f32 %v4645, %v4878
        %v5433 = vmul.f32 %v4645, %v4882
        %v5434 = vmul.f32 %v4645, %v4886
        %v5435 = vmul.f32 %v4645, %v4890
        %v5436 = vmul.f32 %v4645, %v4894
        %v5437 = vmul.f32 %v4645, %v4898
        %v5438 = vmul.f32 %v4645, %v4902
        %v5439 = vmul.f32 %v4645, %v4906
        %v5440 = vmul.f32 %v4645, %v4910
        %v5441 = vmul.f32 %v4645, %v4914
        %v5442 = vmul.f32 %v4645, %v4918
        %v5443 = vmul.f32 %v4645, %v4922
        %v5444 = vmul.f32 %v4645, %v4926
        %v5445 = vmul.f32 %v4645, %v4930
        %v5446 = vmul.f32 %v4645, %v4934
        %v5447 = vadd.f32 %v4071, %v4935
        %v5448 = vadd.f32 %v4072, %v4936
        %v5449 = vadd.f32 %v4073, %v4937
        %v5450 = vadd.f32 %v4074, %v4938
        %v5451 = vadd.f32 %v4075, %v4939
        %v5452 = vadd.f32 %v4076, %v4940
        %v5453 = vadd.f32 %v4077, %v4941
        %v5454 = vadd.f32 %v4078, %v4942
        %v5455 = vadd.f32 %v4079, %v4943
        %v5456 = vadd.f32 %v4080, %v4944
        %v5457 = vadd.f32 %v4081, %v4945
        %v5458 = vadd.f32 %v4082, %v4946
        %v5459 = vadd.f32 %v4083, %v4947
        %v5460 = vadd.f32 %v4084, %v4948
        %v5461 = vadd.f32 %v4085, %v4949
        %v5462 = vadd.f32 %v4086, %v4950
        %v5463 = vadd.f32 %v4087, %v4951
        %v5464 = vadd.f32 %v4088, %v4952
        %v5465 = vadd.f32 %v4089, %v4953
        %v5466 = vadd.f32 %v4090, %v4954
        %v5467 = vadd.f32 %v4091, %v4955
        %v5468 = vadd.f32 %v4092, %v4956
        %v5469 = vadd.f32 %v4093, %v4957
        %v5470 = vadd.f32 %v4094, %v4958
        %v5471 = vadd.f32 %v4095, %v4959
        %v5472 = vadd.f32 %v4096, %v4960
        %v5473 = vadd.f32 %v4097, %v4961
        %v5474 = vadd.f32 %v4098, %v4962
        %v5475 = vadd.f32 %v4099, %v4963
        %v5476 = vadd.f32 %v4100, %v4964
        %v5477 = vadd.f32 %v4101, %v4965
        %v5478 = vadd.f32 %v4102, %v4966
        %v5479 = vadd.f32 %v4103, %v4967
        %v5480 = vadd.f32 %v4104, %v4968
        %v5481 = vadd.f32 %v4105, %v4969
        %v5482 = vadd.f32 %v4106, %v4970
        %v5483 = vadd.f32 %v4107, %v4971
        %v5484 = vadd.f32 %v4108, %v4972
        %v5485 = vadd.f32 %v4109, %v4973
        %v5486 = vadd.f32 %v4110, %v4974
        %v5487 = vadd.f32 %v4111, %v4975
        %v5488 = vadd.f32 %v4112, %v4976
        %v5489 = vadd.f32 %v4113, %v4977
        %v5490 = vadd.f32 %v4114, %v4978
        %v5491 = vadd.f32 %v4115, %v4979
        %v5492 = vadd.f32 %v4116, %v4980
        %v5493 = vadd.f32 %v4117, %v4981
        %v5494 = vadd.f32 %v4118, %v4982
        %v5495 = vadd.f32 %v4119, %v4983
        %v5496 = vadd.f32 %v4120, %v4984
        %v5497 = vadd.f32 %v4121, %v4985
        %v5498 = vadd.f32 %v4122, %v4986
        %v5499 = vadd.f32 %v4123, %v4987
        %v5500 = vadd.f32 %v4124, %v4988
        %v5501 = vadd.f32 %v4125, %v4989
        %v5502 = vadd.f32 %v4126, %v4990
        %v5503 = vadd.f32 %v4127, %v4991
        %v5504 = vadd.f32 %v4128, %v4992
        %v5505 = vadd.f32 %v4129, %v4993
        %v5506 = vadd.f32 %v4130, %v4994
        %v5507 = vadd.f32 %v4131, %v4995
        %v5508 = vadd.f32 %v4132, %v4996
        %v5509 = vadd.f32 %v4133, %v4997
        %v5510 = vadd.f32 %v4134, %v4998
        %v5511 = vadd.f32 %v4135, %v4999
        %v5512 = vadd.f32 %v4136, %v5000
        %v5513 = vadd.f32 %v4137, %v5001
        %v5514 = vadd.f32 %v4138, %v5002
        %v5515 = vadd.f32 %v4139, %v5003
        %v5516 = vadd.f32 %v4140, %v5004
        %v5517 = vadd.f32 %v4141, %v5005
        %v5518 = vadd.f32 %v4142, %v5006
        %v5519 = vadd.f32 %v4143, %v5007
        %v5520 = vadd.f32 %v4144, %v5008
        %v5521 = vadd.f32 %v4145, %v5009
        %v5522 = vadd.f32 %v4146, %v5010
        %v5523 = vadd.f32 %v4147, %v5011
        %v5524 = vadd.f32 %v4148, %v5012
        %v5525 = vadd.f32 %v4149, %v5013
        %v5526 = vadd.f32 %v4150, %v5014
        %v5527 = vadd.f32 %v4151, %v5015
        %v5528 = vadd.f32 %v4152, %v5016
        %v5529 = vadd.f32 %v4153, %v5017
        %v5530 = vadd.f32 %v4154, %v5018
        %v5531 = vadd.f32 %v4155, %v5019
        %v5532 = vadd.f32 %v4156, %v5020
        %v5533 = vadd.f32 %v4157, %v5021
        %v5534 = vadd.f32 %v4158, %v5022
        %v5535 = vadd.f32 %v4159, %v5023
        %v5536 = vadd.f32 %v4160, %v5024
        %v5537 = vadd.f32 %v4161, %v5025
        %v5538 = vadd.f32 %v4162, %v5026
        %v5539 = vadd.f32 %v4163, %v5027
        %v5540 = vadd.f32 %v4164, %v5028
        %v5541 = vadd.f32 %v4165, %v5029
        %v5542 = vadd.f32 %v4166, %v5030
        %v5543 = vadd.f32 %v4167, %v5031
        %v5544 = vadd.f32 %v4168, %v5032
        %v5545 = vadd.f32 %v4169, %v5033
        %v5546 = vadd.f32 %v4170, %v5034
        %v5547 = vadd.f32 %v4171, %v5035
        %v5548 = vadd.f32 %v4172, %v5036
        %v5549 = vadd.f32 %v4173, %v5037
        %v5550 = vadd.f32 %v4174, %v5038
        %v5551 = vadd.f32 %v4175, %v5039
        %v5552 = vadd.f32 %v4176, %v5040
        %v5553 = vadd.f32 %v4177, %v5041
        %v5554 = vadd.f32 %v4178, %v5042
        %v5555 = vadd.f32 %v4179, %v5043
        %v5556 = vadd.f32 %v4180, %v5044
        %v5557 = vadd.f32 %v4181, %v5045
        %v5558 = vadd.f32 %v4182, %v5046
        %v5559 = vadd.f32 %v4183, %v5047
        %v5560 = vadd.f32 %v4184, %v5048
        %v5561 = vadd.f32 %v4185, %v5049
        %v5562 = vadd.f32 %v4186, %v5050
        %v5563 = vadd.f32 %v4187, %v5051
        %v5564 = vadd.f32 %v4188, %v5052
        %v5565 = vadd.f32 %v4189, %v5053
        %v5566 = vadd.f32 %v4190, %v5054
        %v5567 = vadd.f32 %v4191, %v5055
        %v5568 = vadd.f32 %v4192, %v5056
        %v5569 = vadd.f32 %v4193, %v5057
        %v5570 = vadd.f32 %v4194, %v5058
        %v5571 = vadd.f32 %v4195, %v5059
        %v5572 = vadd.f32 %v4196, %v5060
        %v5573 = vadd.f32 %v4197, %v5061
        %v5574 = vadd.f32 %v4198, %v5062
        %v5575 = vadd.f32 %v4199, %v5063
        %v5576 = vadd.f32 %v4200, %v5064
        %v5577 = vadd.f32 %v4201, %v5065
        %v5578 = vadd.f32 %v4202, %v5066
        %v5579 = vadd.f32 %v4203, %v5067
        %v5580 = vadd.f32 %v4204, %v5068
        %v5581 = vadd.f32 %v4205, %v5069
        %v5582 = vadd.f32 %v4206, %v5070
        %v5583 = vadd.f32 %v4207, %v5071
        %v5584 = vadd.f32 %v4208, %v5072
        %v5585 = vadd.f32 %v4209, %v5073
        %v5586 = vadd.f32 %v4210, %v5074
        %v5587 = vadd.f32 %v4211, %v5075
        %v5588 = vadd.f32 %v4212, %v5076
        %v5589 = vadd.f32 %v4213, %v5077
        %v5590 = vadd.f32 %v4214, %v5078
        %v5591 = vadd.f32 %v4215, %v5079
        %v5592 = vadd.f32 %v4216, %v5080
        %v5593 = vadd.f32 %v4217, %v5081
        %v5594 = vadd.f32 %v4218, %v5082
        %v5595 = vadd.f32 %v4219, %v5083
        %v5596 = vadd.f32 %v4220, %v5084
        %v5597 = vadd.f32 %v4221, %v5085
        %v5598 = vadd.f32 %v4222, %v5086
        %v5599 = vadd.f32 %v4223, %v5087
        %v5600 = vadd.f32 %v4224, %v5088
        %v5601 = vadd.f32 %v4225, %v5089
        %v5602 = vadd.f32 %v4226, %v5090
        %v5603 = vadd.f32 %v4227, %v5091
        %v5604 = vadd.f32 %v4228, %v5092
        %v5605 = vadd.f32 %v4229, %v5093
        %v5606 = vadd.f32 %v4230, %v5094
        %v5607 = vadd.f32 %v4231, %v5095
        %v5608 = vadd.f32 %v4232, %v5096
        %v5609 = vadd.f32 %v4233, %v5097
        %v5610 = vadd.f32 %v4234, %v5098
        %v5611 = vadd.f32 %v4235, %v5099
        %v5612 = vadd.f32 %v4236, %v5100
        %v5613 = vadd.f32 %v4237, %v5101
        %v5614 = vadd.f32 %v4238, %v5102
        %v5615 = vadd.f32 %v4239, %v5103
        %v5616 = vadd.f32 %v4240, %v5104
        %v5617 = vadd.f32 %v4241, %v5105
        %v5618 = vadd.f32 %v4242, %v5106
        %v5619 = vadd.f32 %v4243, %v5107
        %v5620 = vadd.f32 %v4244, %v5108
        %v5621 = vadd.f32 %v4245, %v5109
        %v5622 = vadd.f32 %v4246, %v5110
        %v5623 = vadd.f32 %v4247, %v5111
        %v5624 = vadd.f32 %v4248, %v5112
        %v5625 = vadd.f32 %v4249, %v5113
        %v5626 = vadd.f32 %v4250, %v5114
        %v5627 = vadd.f32 %v4251, %v5115
        %v5628 = vadd.f32 %v4252, %v5116
        %v5629 = vadd.f32 %v4253, %v5117
        %v5630 = vadd.f32 %v4254, %v5118
        %v5631 = vadd.f32 %v4255, %v5119
        %v5632 = vadd.f32 %v4256, %v5120
        %v5633 = vadd.f32 %v4257, %v5121
        %v5634 = vadd.f32 %v4258, %v5122
        %v5635 = vadd.f32 %v4259, %v5123
        %v5636 = vadd.f32 %v4260, %v5124
        %v5637 = vadd.f32 %v4261, %v5125
        %v5638 = vadd.f32 %v4262, %v5126
        %v5639 = vadd.f32 %v4263, %v5127
        %v5640 = vadd.f32 %v4264, %v5128
        %v5641 = vadd.f32 %v4265, %v5129
        %v5642 = vadd.f32 %v4266, %v5130
        %v5643 = vadd.f32 %v4267, %v5131
        %v5644 = vadd.f32 %v4268, %v5132
        %v5645 = vadd.f32 %v4269, %v5133
        %v5646 = vadd.f32 %v4270, %v5134
        %v5647 = vadd.f32 %v4271, %v5135
        %v5648 = vadd.f32 %v4272, %v5136
        %v5649 = vadd.f32 %v4273, %v5137
        %v5650 = vadd.f32 %v4274, %v5138
        %v5651 = vadd.f32 %v4275, %v5139
        %v5652 = vadd.f32 %v4276, %v5140
        %v5653 = vadd.f32 %v4277, %v5141
        %v5654 = vadd.f32 %v4278, %v5142
        %v5655 = vadd.f32 %v4279, %v5143
        %v5656 = vadd.f32 %v4280, %v5144
        %v5657 = vadd.f32 %v4281, %v5145
        %v5658 = vadd.f32 %v4282, %v5146
        %v5659 = vadd.f32 %v4283, %v5147
        %v5660 = vadd.f32 %v4284, %v5148
        %v5661 = vadd.f32 %v4285, %v5149
        %v5662 = vadd.f32 %v4286, %v5150
        %v5663 = vadd.f32 %v4287, %v5151
        %v5664 = vadd.f32 %v4288, %v5152
        %v5665 = vadd.f32 %v4289, %v5153
        %v5666 = vadd.f32 %v4290, %v5154
        %v5667 = vadd.f32 %v4291, %v5155
        %v5668 = vadd.f32 %v4292, %v5156
        %v5669 = vadd.f32 %v4293, %v5157
        %v5670 = vadd.f32 %v4294, %v5158
        %v5671 = vadd.f32 %v4295, %v5159
        %v5672 = vadd.f32 %v4296, %v5160
        %v5673 = vadd.f32 %v4297, %v5161
        %v5674 = vadd.f32 %v4298, %v5162
        %v5675 = vadd.f32 %v4299, %v5163
        %v5676 = vadd.f32 %v4300, %v5164
        %v5677 = vadd.f32 %v4301, %v5165
        %v5678 = vadd.f32 %v4302, %v5166
        %v5679 = vadd.f32 %v4303, %v5167
        %v5680 = vadd.f32 %v4304, %v5168
        %v5681 = vadd.f32 %v4305, %v5169
        %v5682 = vadd.f32 %v4306, %v5170
        %v5683 = vadd.f32 %v4307, %v5171
        %v5684 = vadd.f32 %v4308, %v5172
        %v5685 = vadd.f32 %v4309, %v5173
        %v5686 = vadd.f32 %v4310, %v5174
        %v5687 = vadd.f32 %v4311, %v5175
        %v5688 = vadd.f32 %v4312, %v5176
        %v5689 = vadd.f32 %v4313, %v5177
        %v5690 = vadd.f32 %v4314, %v5178
        %v5691 = vadd.f32 %v4315, %v5179
        %v5692 = vadd.f32 %v4316, %v5180
        %v5693 = vadd.f32 %v4317, %v5181
        %v5694 = vadd.f32 %v4318, %v5182
        %v5695 = vadd.f32 %v4319, %v5183
        %v5696 = vadd.f32 %v4320, %v5184
        %v5697 = vadd.f32 %v4321, %v5185
        %v5698 = vadd.f32 %v4322, %v5186
        %v5699 = vadd.f32 %v4323, %v5187
        %v5700 = vadd.f32 %v4324, %v5188
        %v5701 = vadd.f32 %v4325, %v5189
        %v5702 = vadd.f32 %v4326, %v5190
        %v5703 = vadd.f32 %v4327, %v5191
        %v5704 = vadd.f32 %v4328, %v5192
        %v5705 = vadd.f32 %v4329, %v5193
        %v5706 = vadd.f32 %v4330, %v5194
        %v5707 = vadd.f32 %v4331, %v5195
        %v5708 = vadd.f32 %v4332, %v5196
        %v5709 = vadd.f32 %v4333, %v5197
        %v5710 = vadd.f32 %v4334, %v5198
        %v5711 = vadd.f32 %v4335, %v5199
        %v5712 = vadd.f32 %v4336, %v5200
        %v5713 = vadd.f32 %v4337, %v5201
        %v5714 = vadd.f32 %v4338, %v5202
        %v5715 = vadd.f32 %v4339, %v5203
        %v5716 = vadd.f32 %v4340, %v5204
        %v5717 = vadd.f32 %v4341, %v5205
        %v5718 = vadd.f32 %v4342, %v5206
        %v5719 = vadd.f32 %v4343, %v5207
        %v5720 = vadd.f32 %v4344, %v5208
        %v5721 = vadd.f32 %v4345, %v5209
        %v5722 = vadd.f32 %v4346, %v5210
        %v5723 = vadd.f32 %v4347, %v5211
        %v5724 = vadd.f32 %v4348, %v5212
        %v5725 = vadd.f32 %v4349, %v5213
        %v5726 = vadd.f32 %v4350, %v5214
        %v5727 = vadd.f32 %v4351, %v5215
        %v5728 = vadd.f32 %v4352, %v5216
        %v5729 = vadd.f32 %v4353, %v5217
        %v5730 = vadd.f32 %v4354, %v5218
        %v5731 = vadd.f32 %v4355, %v5219
        %v5732 = vadd.f32 %v4356, %v5220
        %v5733 = vadd.f32 %v4357, %v5221
        %v5734 = vadd.f32 %v4358, %v5222
        %v5735 = vadd.f32 %v4359, %v5223
        %v5736 = vadd.f32 %v4360, %v5224
        %v5737 = vadd.f32 %v4361, %v5225
        %v5738 = vadd.f32 %v4362, %v5226
        %v5739 = vadd.f32 %v4363, %v5227
        %v5740 = vadd.f32 %v4364, %v5228
        %v5741 = vadd.f32 %v4365, %v5229
        %v5742 = vadd.f32 %v4366, %v5230
        %v5743 = vadd.f32 %v4367, %v5231
        %v5744 = vadd.f32 %v4368, %v5232
        %v5745 = vadd.f32 %v4369, %v5233
        %v5746 = vadd.f32 %v4370, %v5234
        %v5747 = vadd.f32 %v4371, %v5235
        %v5748 = vadd.f32 %v4372, %v5236
        %v5749 = vadd.f32 %v4373, %v5237
        %v5750 = vadd.f32 %v4374, %v5238
        %v5751 = vadd.f32 %v4375, %v5239
        %v5752 = vadd.f32 %v4376, %v5240
        %v5753 = vadd.f32 %v4377, %v5241
        %v5754 = vadd.f32 %v4378, %v5242
        %v5755 = vadd.f32 %v4379, %v5243
        %v5756 = vadd.f32 %v4380, %v5244
        %v5757 = vadd.f32 %v4381, %v5245
        %v5758 = vadd.f32 %v4382, %v5246
        %v5759 = vadd.f32 %v4383, %v5247
        %v5760 = vadd.f32 %v4384, %v5248
        %v5761 = vadd.f32 %v4385, %v5249
        %v5762 = vadd.f32 %v4386, %v5250
        %v5763 = vadd.f32 %v4387, %v5251
        %v5764 = vadd.f32 %v4388, %v5252
        %v5765 = vadd.f32 %v4389, %v5253
        %v5766 = vadd.f32 %v4390, %v5254
        %v5767 = vadd.f32 %v4391, %v5255
        %v5768 = vadd.f32 %v4392, %v5256
        %v5769 = vadd.f32 %v4393, %v5257
        %v5770 = vadd.f32 %v4394, %v5258
        %v5771 = vadd.f32 %v4395, %v5259
        %v5772 = vadd.f32 %v4396, %v5260
        %v5773 = vadd.f32 %v4397, %v5261
        %v5774 = vadd.f32 %v4398, %v5262
        %v5775 = vadd.f32 %v4399, %v5263
        %v5776 = vadd.f32 %v4400, %v5264
        %v5777 = vadd.f32 %v4401, %v5265
        %v5778 = vadd.f32 %v4402, %v5266
        %v5779 = vadd.f32 %v4403, %v5267
        %v5780 = vadd.f32 %v4404, %v5268
        %v5781 = vadd.f32 %v4405, %v5269
        %v5782 = vadd.f32 %v4406, %v5270
        %v5783 = vadd.f32 %v4407, %v5271
        %v5784 = vadd.f32 %v4408, %v5272
        %v5785 = vadd.f32 %v4409, %v5273
        %v5786 = vadd.f32 %v4410, %v5274
        %v5787 = vadd.f32 %v4411, %v5275
        %v5788 = vadd.f32 %v4412, %v5276
        %v5789 = vadd.f32 %v4413, %v5277
        %v5790 = vadd.f32 %v4414, %v5278
        %v5791 = vadd.f32 %v4415, %v5279
        %v5792 = vadd.f32 %v4416, %v5280
        %v5793 = vadd.f32 %v4417, %v5281
        %v5794 = vadd.f32 %v4418, %v5282
        %v5795 = vadd.f32 %v4419, %v5283
        %v5796 = vadd.f32 %v4420, %v5284
        %v5797 = vadd.f32 %v4421, %v5285
        %v5798 = vadd.f32 %v4422, %v5286
        %v5799 = vadd.f32 %v4423, %v5287
        %v5800 = vadd.f32 %v4424, %v5288
        %v5801 = vadd.f32 %v4425, %v5289
        %v5802 = vadd.f32 %v4426, %v5290
        %v5803 = vadd.f32 %v4427, %v5291
        %v5804 = vadd.f32 %v4428, %v5292
        %v5805 = vadd.f32 %v4429, %v5293
        %v5806 = vadd.f32 %v4430, %v5294
        %v5807 = vadd.f32 %v4431, %v5295
        %v5808 = vadd.f32 %v4432, %v5296
        %v5809 = vadd.f32 %v4433, %v5297
        %v5810 = vadd.f32 %v4434, %v5298
        %v5811 = vadd.f32 %v4435, %v5299
        %v5812 = vadd.f32 %v4436, %v5300
        %v5813 = vadd.f32 %v4437, %v5301
        %v5814 = vadd.f32 %v4438, %v5302
        %v5815 = vadd.f32 %v4439, %v5303
        %v5816 = vadd.f32 %v4440, %v5304
        %v5817 = vadd.f32 %v4441, %v5305
        %v5818 = vadd.f32 %v4442, %v5306
        %v5819 = vadd.f32 %v4443, %v5307
        %v5820 = vadd.f32 %v4444, %v5308
        %v5821 = vadd.f32 %v4445, %v5309
        %v5822 = vadd.f32 %v4446, %v5310
        %v5823 = vadd.f32 %v4447, %v5311
        %v5824 = vadd.f32 %v4448, %v5312
        %v5825 = vadd.f32 %v4449, %v5313
        %v5826 = vadd.f32 %v4450, %v5314
        %v5827 = vadd.f32 %v4451, %v5315
        %v5828 = vadd.f32 %v4452, %v5316
        %v5829 = vadd.f32 %v4453, %v5317
        %v5830 = vadd.f32 %v4454, %v5318
        %v5831 = vadd.f32 %v4455, %v5319
        %v5832 = vadd.f32 %v4456, %v5320
        %v5833 = vadd.f32 %v4457, %v5321
        %v5834 = vadd.f32 %v4458, %v5322
        %v5835 = vadd.f32 %v4459, %v5323
        %v5836 = vadd.f32 %v4460, %v5324
        %v5837 = vadd.f32 %v4461, %v5325
        %v5838 = vadd.f32 %v4462, %v5326
        %v5839 = vadd.f32 %v4463, %v5327
        %v5840 = vadd.f32 %v4464, %v5328
        %v5841 = vadd.f32 %v4465, %v5329
        %v5842 = vadd.f32 %v4466, %v5330
        %v5843 = vadd.f32 %v4467, %v5331
        %v5844 = vadd.f32 %v4468, %v5332
        %v5845 = vadd.f32 %v4469, %v5333
        %v5846 = vadd.f32 %v4470, %v5334
        %v5847 = vadd.f32 %v4471, %v5335
        %v5848 = vadd.f32 %v4472, %v5336
        %v5849 = vadd.f32 %v4473, %v5337
        %v5850 = vadd.f32 %v4474, %v5338
        %v5851 = vadd.f32 %v4475, %v5339
        %v5852 = vadd.f32 %v4476, %v5340
        %v5853 = vadd.f32 %v4477, %v5341
        %v5854 = vadd.f32 %v4478, %v5342
        %v5855 = vadd.f32 %v4479, %v5343
        %v5856 = vadd.f32 %v4480, %v5344
        %v5857 = vadd.f32 %v4481, %v5345
        %v5858 = vadd.f32 %v4482, %v5346
        %v5859 = vadd.f32 %v4483, %v5347
        %v5860 = vadd.f32 %v4484, %v5348
        %v5861 = vadd.f32 %v4485, %v5349
        %v5862 = vadd.f32 %v4486, %v5350
        %v5863 = vadd.f32 %v4487, %v5351
        %v5864 = vadd.f32 %v4488, %v5352
        %v5865 = vadd.f32 %v4489, %v5353
        %v5866 = vadd.f32 %v4490, %v5354
        %v5867 = vadd.f32 %v4491, %v5355
        %v5868 = vadd.f32 %v4492, %v5356
        %v5869 = vadd.f32 %v4493, %v5357
        %v5870 = vadd.f32 %v4494, %v5358
        %v5871 = vadd.f32 %v4495, %v5359
        %v5872 = vadd.f32 %v4496, %v5360
        %v5873 = vadd.f32 %v4497, %v5361
        %v5874 = vadd.f32 %v4498, %v5362
        %v5875 = vadd.f32 %v4499, %v5363
        %v5876 = vadd.f32 %v4500, %v5364
        %v5877 = vadd.f32 %v4501, %v5365
        %v5878 = vadd.f32 %v4502, %v5366
        %v5879 = vadd.f32 %v4503, %v5367
        %v5880 = vadd.f32 %v4504, %v5368
        %v5881 = vadd.f32 %v4505, %v5369
        %v5882 = vadd.f32 %v4506, %v5370
        %v5883 = vadd.f32 %v4507, %v5371
        %v5884 = vadd.f32 %v4508, %v5372
        %v5885 = vadd.f32 %v4509, %v5373
        %v5886 = vadd.f32 %v4510, %v5374
        %v5887 = vadd.f32 %v4511, %v5375
        %v5888 = vadd.f32 %v4512, %v5376
        %v5889 = vadd.f32 %v4513, %v5377
        %v5890 = vadd.f32 %v4514, %v5378
        %v5891 = vadd.f32 %v4515, %v5379
        %v5892 = vadd.f32 %v4516, %v5380
        %v5893 = vadd.f32 %v4517, %v5381
        %v5894 = vadd.f32 %v4518, %v5382
        %v5895 = vadd.f32 %v4519, %v5383
        %v5896 = vadd.f32 %v4520, %v5384
        %v5897 = vadd.f32 %v4521, %v5385
        %v5898 = vadd.f32 %v4522, %v5386
        %v5899 = vadd.f32 %v4523, %v5387
        %v5900 = vadd.f32 %v4524, %v5388
        %v5901 = vadd.f32 %v4525, %v5389
        %v5902 = vadd.f32 %v4526, %v5390
        %v5903 = vadd.f32 %v4527, %v5391
        %v5904 = vadd.f32 %v4528, %v5392
        %v5905 = vadd.f32 %v4529, %v5393
        %v5906 = vadd.f32 %v4530, %v5394
        %v5907 = vadd.f32 %v4531, %v5395
        %v5908 = vadd.f32 %v4532, %v5396
        %v5909 = vadd.f32 %v4533, %v5397
        %v5910 = vadd.f32 %v4534, %v5398
        %v5911 = vadd.f32 %v4535, %v5399
        %v5912 = vadd.f32 %v4536, %v5400
        %v5913 = vadd.f32 %v4537, %v5401
        %v5914 = vadd.f32 %v4538, %v5402
        %v5915 = vadd.f32 %v4539, %v5403
        %v5916 = vadd.f32 %v4540, %v5404
        %v5917 = vadd.f32 %v4541, %v5405
        %v5918 = vadd.f32 %v4542, %v5406
        %v5919 = vadd.f32 %v4543, %v5407
        %v5920 = vadd.f32 %v4544, %v5408
        %v5921 = vadd.f32 %v4545, %v5409
        %v5922 = vadd.f32 %v4546, %v5410
        %v5923 = vadd.f32 %v4547, %v5411
        %v5924 = vadd.f32 %v4548, %v5412
        %v5925 = vadd.f32 %v4549, %v5413
        %v5926 = vadd.f32 %v4550, %v5414
        %v5927 = vadd.f32 %v4551, %v5415
        %v5928 = vadd.f32 %v4552, %v5416
        %v5929 = vadd.f32 %v4553, %v5417
        %v5930 = vadd.f32 %v4554, %v5418
        %v5931 = vadd.f32 %v4555, %v5419
        %v5932 = vadd.f32 %v4556, %v5420
        %v5933 = vadd.f32 %v4557, %v5421
        %v5934 = vadd.f32 %v4558, %v5422
        %v5935 = vadd.f32 %v4559, %v5423
        %v5936 = vadd.f32 %v4560, %v5424
        %v5937 = vadd.f32 %v4561, %v5425
        %v5938 = vadd.f32 %v4562, %v5426
        %v5939 = vadd.f32 %v4563, %v5427
        %v5940 = vadd.f32 %v4564, %v5428
        %v5941 = vadd.f32 %v4565, %v5429
        %v5942 = vadd.f32 %v4566, %v5430
        %v5943 = vadd.f32 %v4567, %v5431
        %v5944 = vadd.f32 %v4568, %v5432
        %v5945 = vadd.f32 %v4569, %v5433
        %v5946 = vadd.f32 %v4570, %v5434
        %v5947 = vadd.f32 %v4571, %v5435
        %v5948 = vadd.f32 %v4572, %v5436
        %v5949 = vadd.f32 %v4573, %v5437
        %v5950 = vadd.f32 %v4574, %v5438
        %v5951 = vadd.f32 %v4575, %v5439
        %v5952 = vadd.f32 %v4576, %v5440
        %v5953 = vadd.f32 %v4577, %v5441
        %v5954 = vadd.f32 %v4578, %v5442
        %v5955 = vadd.f32 %v4579, %v5443
        %v5956 = vadd.f32 %v4580, %v5444
        %v5957 = vadd.f32 %v4581, %v5445
        %v5958 = vadd.f32 %v4582, %v5446
        %v5959 = vmax.f32 %v5447, 0.0
        %v5960 = vmax.f32 %v5448, 0.0
        %v5961 = vmax.f32 %v5449, 0.0
        %v5962 = vmax.f32 %v5450, 0.0
        %v5963 = vmax.f32 %v5451, 0.0
        %v5964 = vmax.f32 %v5452, 0.0
        %v5965 = vmax.f32 %v5453, 0.0
        %v5966 = vmax.f32 %v5454, 0.0
        %v5967 = vmax.f32 %v5455, 0.0
        %v5968 = vmax.f32 %v5456, 0.0
        %v5969 = vmax.f32 %v5457, 0.0
        %v5970 = vmax.f32 %v5458, 0.0
        %v5971 = vmax.f32 %v5459, 0.0
        %v5972 = vmax.f32 %v5460, 0.0
        %v5973 = vmax.f32 %v5461, 0.0
        %v5974 = vmax.f32 %v5462, 0.0
        %v5975 = vmax.f32 %v5463, 0.0
        %v5976 = vmax.f32 %v5464, 0.0
        %v5977 = vmax.f32 %v5465, 0.0
        %v5978 = vmax.f32 %v5466, 0.0
        %v5979 = vmax.f32 %v5467, 0.0
        %v5980 = vmax.f32 %v5468, 0.0
        %v5981 = vmax.f32 %v5469, 0.0
        %v5982 = vmax.f32 %v5470, 0.0
        %v5983 = vmax.f32 %v5471, 0.0
        %v5984 = vmax.f32 %v5472, 0.0
        %v5985 = vmax.f32 %v5473, 0.0
        %v5986 = vmax.f32 %v5474, 0.0
        %v5987 = vmax.f32 %v5475, 0.0
        %v5988 = vmax.f32 %v5476, 0.0
        %v5989 = vmax.f32 %v5477, 0.0
        %v5990 = vmax.f32 %v5478, 0.0
        %v5991 = vmax.f32 %v5479, 0.0
        %v5992 = vmax.f32 %v5480, 0.0
        %v5993 = vmax.f32 %v5481, 0.0
        %v5994 = vmax.f32 %v5482, 0.0
        %v5995 = vmax.f32 %v5483, 0.0
        %v5996 = vmax.f32 %v5484, 0.0
        %v5997 = vmax.f32 %v5485, 0.0
        %v5998 = vmax.f32 %v5486, 0.0
        %v5999 = vmax.f32 %v5487, 0.0
        %v6000 = vmax.f32 %v5488, 0.0
        %v6001 = vmax.f32 %v5489, 0.0
        %v6002 = vmax.f32 %v5490, 0.0
        %v6003 = vmax.f32 %v5491, 0.0
        %v6004 = vmax.f32 %v5492, 0.0
        %v6005 = vmax.f32 %v5493, 0.0
        %v6006 = vmax.f32 %v5494, 0.0
        %v6007 = vmax.f32 %v5495, 0.0
        %v6008 = vmax.f32 %v5496, 0.0
        %v6009 = vmax.f32 %v5497, 0.0
        %v6010 = vmax.f32 %v5498, 0.0
        %v6011 = vmax.f32 %v5499, 0.0
        %v6012 = vmax.f32 %v5500, 0.0
        %v6013 = vmax.f32 %v5501, 0.0
        %v6014 = vmax.f32 %v5502, 0.0
        %v6015 = vmax.f32 %v5503, 0.0
        %v6016 = vmax.f32 %v5504, 0.0
        %v6017 = vmax.f32 %v5505, 0.0
        %v6018 = vmax.f32 %v5506, 0.0
        %v6019 = vmax.f32 %v5507, 0.0
        %v6020 = vmax.f32 %v5508, 0.0
        %v6021 = vmax.f32 %v5509, 0.0
        %v6022 = vmax.f32 %v5510, 0.0
        %v6023 = vmax.f32 %v5511, 0.0
        %v6024 = vmax.f32 %v5512, 0.0
        %v6025 = vmax.f32 %v5513, 0.0
        %v6026 = vmax.f32 %v5514, 0.0
        %v6027 = vmax.f32 %v5515, 0.0
        %v6028 = vmax.f32 %v5516, 0.0
        %v6029 = vmax.f32 %v5517, 0.0
        %v6030 = vmax.f32 %v5518, 0.0
        %v6031 = vmax.f32 %v5519, 0.0
        %v6032 = vmax.f32 %v5520, 0.0
        %v6033 = vmax.f32 %v5521, 0.0
        %v6034 = vmax.f32 %v5522, 0.0
        %v6035 = vmax.f32 %v5523, 0.0
        %v6036 = vmax.f32 %v5524, 0.0
        %v6037 = vmax.f32 %v5525, 0.0
        %v6038 = vmax.f32 %v5526, 0.0
        %v6039 = vmax.f32 %v5527, 0.0
        %v6040 = vmax.f32 %v5528, 0.0
        %v6041 = vmax.f32 %v5529, 0.0
        %v6042 = vmax.f32 %v5530, 0.0
        %v6043 = vmax.f32 %v5531, 0.0
        %v6044 = vmax.f32 %v5532, 0.0
        %v6045 = vmax.f32 %v5533, 0.0
        %v6046 = vmax.f32 %v5534, 0.0
        %v6047 = vmax.f32 %v5535, 0.0
        %v6048 = vmax.f32 %v5536, 0.0
        %v6049 = vmax.f32 %v5537, 0.0
        %v6050 = vmax.f32 %v5538, 0.0
        %v6051 = vmax.f32 %v5539, 0.0
        %v6052 = vmax.f32 %v5540, 0.0
        %v6053 = vmax.f32 %v5541, 0.0
        %v6054 = vmax.f32 %v5542, 0.0
        %v6055 = vmax.f32 %v5543, 0.0
        %v6056 = vmax.f32 %v5544, 0.0
        %v6057 = vmax.f32 %v5545, 0.0
        %v6058 = vmax.f32 %v5546, 0.0
        %v6059 = vmax.f32 %v5547, 0.0
        %v6060 = vmax.f32 %v5548, 0.0
        %v6061 = vmax.f32 %v5549, 0.0
        %v6062 = vmax.f32 %v5550, 0.0
        %v6063 = vmax.f32 %v5551, 0.0
        %v6064 = vmax.f32 %v5552, 0.0
        %v6065 = vmax.f32 %v5553, 0.0
        %v6066 = vmax.f32 %v5554, 0.0
        %v6067 = vmax.f32 %v5555, 0.0
        %v6068 = vmax.f32 %v5556, 0.0
        %v6069 = vmax.f32 %v5557, 0.0
        %v6070 = vmax.f32 %v5558, 0.0
        %v6071 = vmax.f32 %v5559, 0.0
        %v6072 = vmax.f32 %v5560, 0.0
        %v6073 = vmax.f32 %v5561, 0.0
        %v6074 = vmax.f32 %v5562, 0.0
        %v6075 = vmax.f32 %v5563, 0.0
        %v6076 = vmax.f32 %v5564, 0.0
        %v6077 = vmax.f32 %v5565, 0.0
        %v6078 = vmax.f32 %v5566, 0.0
        %v6079 = vmax.f32 %v5567, 0.0
        %v6080 = vmax.f32 %v5568, 0.0
        %v6081 = vmax.f32 %v5569, 0.0
        %v6082 = vmax.f32 %v5570, 0.0
        %v6083 = vmax.f32 %v5571, 0.0
        %v6084 = vmax.f32 %v5572, 0.0
        %v6085 = vmax.f32 %v5573, 0.0
        %v6086 = vmax.f32 %v5574, 0.0
        %v6087 = vmax.f32 %v5575, 0.0
        %v6088 = vmax.f32 %v5576, 0.0
        %v6089 = vmax.f32 %v5577, 0.0
        %v6090 = vmax.f32 %v5578, 0.0
        %v6091 = vmax.f32 %v5579, 0.0
        %v6092 = vmax.f32 %v5580, 0.0
        %v6093 = vmax.f32 %v5581, 0.0
        %v6094 = vmax.f32 %v5582, 0.0
        %v6095 = vmax.f32 %v5583, 0.0
        %v6096 = vmax.f32 %v5584, 0.0
        %v6097 = vmax.f32 %v5585, 0.0
        %v6098 = vmax.f32 %v5586, 0.0
        %v6099 = vmax.f32 %v5587, 0.0
        %v6100 = vmax.f32 %v5588, 0.0
        %v6101 = vmax.f32 %v5589, 0.0
        %v6102 = vmax.f32 %v5590, 0.0
        %v6103 = vmax.f32 %v5591, 0.0
        %v6104 = vmax.f32 %v5592, 0.0
        %v6105 = vmax.f32 %v5593, 0.0
        %v6106 = vmax.f32 %v5594, 0.0
        %v6107 = vmax.f32 %v5595, 0.0
        %v6108 = vmax.f32 %v5596, 0.0
        %v6109 = vmax.f32 %v5597, 0.0
        %v6110 = vmax.f32 %v5598, 0.0
        %v6111 = vmax.f32 %v5599, 0.0
        %v6112 = vmax.f32 %v5600, 0.0
        %v6113 = vmax.f32 %v5601, 0.0
        %v6114 = vmax.f32 %v5602, 0.0
        %v6115 = vmax.f32 %v5603, 0.0
        %v6116 = vmax.f32 %v5604, 0.0
        %v6117 = vmax.f32 %v5605, 0.0
        %v6118 = vmax.f32 %v5606, 0.0
        %v6119 = vmax.f32 %v5607, 0.0
        %v6120 = vmax.f32 %v5608, 0.0
        %v6121 = vmax.f32 %v5609, 0.0
        %v6122 = vmax.f32 %v5610, 0.0
        %v6123 = vmax.f32 %v5611, 0.0
        %v6124 = vmax.f32 %v5612, 0.0
        %v6125 = vmax.f32 %v5613, 0.0
        %v6126 = vmax.f32 %v5614, 0.0
        %v6127 = vmax.f32 %v5615, 0.0
        %v6128 = vmax.f32 %v5616, 0.0
        %v6129 = vmax.f32 %v5617, 0.0
        %v6130 = vmax.f32 %v5618, 0.0
        %v6131 = vmax.f32 %v5619, 0.0
        %v6132 = vmax.f32 %v5620, 0.0
        %v6133 = vmax.f32 %v5621, 0.0
        %v6134 = vmax.f32 %v5622, 0.0
        %v6135 = vmax.f32 %v5623, 0.0
        %v6136 = vmax.f32 %v5624, 0.0
        %v6137 = vmax.f32 %v5625, 0.0
        %v6138 = vmax.f32 %v5626, 0.0
        %v6139 = vmax.f32 %v5627, 0.0
        %v6140 = vmax.f32 %v5628, 0.0
        %v6141 = vmax.f32 %v5629, 0.0
        %v6142 = vmax.f32 %v5630, 0.0
        %v6143 = vmax.f32 %v5631, 0.0
        %v6144 = vmax.f32 %v5632, 0.0
        %v6145 = vmax.f32 %v5633, 0.0
        %v6146 = vmax.f32 %v5634, 0.0
        %v6147 = vmax.f32 %v5635, 0.0
        %v6148 = vmax.f32 %v5636, 0.0
        %v6149 = vmax.f32 %v5637, 0.0
        %v6150 = vmax.f32 %v5638, 0.0
        %v6151 = vmax.f32 %v5639, 0.0
        %v6152 = vmax.f32 %v5640, 0.0
        %v6153 = vmax.f32 %v5641, 0.0
        %v6154 = vmax.f32 %v5642, 0.0
        %v6155 = vmax.f32 %v5643, 0.0
        %v6156 = vmax.f32 %v5644, 0.0
        %v6157 = vmax.f32 %v5645, 0.0
        %v6158 = vmax.f32 %v5646, 0.0
        %v6159 = vmax.f32 %v5647, 0.0
        %v6160 = vmax.f32 %v5648, 0.0
        %v6161 = vmax.f32 %v5649, 0.0
        %v6162 = vmax.f32 %v5650, 0.0
        %v6163 = vmax.f32 %v5651, 0.0
        %v6164 = vmax.f32 %v5652, 0.0
        %v6165 = vmax.f32 %v5653, 0.0
        %v6166 = vmax.f32 %v5654, 0.0
        %v6167 = vmax.f32 %v5655, 0.0
        %v6168 = vmax.f32 %v5656, 0.0
        %v6169 = vmax.f32 %v5657, 0.0
        %v6170 = vmax.f32 %v5658, 0.0
        %v6171 = vmax.f32 %v5659, 0.0
        %v6172 = vmax.f32 %v5660, 0.0
        %v6173 = vmax.f32 %v5661, 0.0
        %v6174 = vmax.f32 %v5662, 0.0
        %v6175 = vmax.f32 %v5663, 0.0
        %v6176 = vmax.f32 %v5664, 0.0
        %v6177 = vmax.f32 %v5665, 0.0
        %v6178 = vmax.f32 %v5666, 0.0
        %v6179 = vmax.f32 %v5667, 0.0
        %v6180 = vmax.f32 %v5668, 0.0
        %v6181 = vmax.f32 %v5669, 0.0
        %v6182 = vmax.f32 %v5670, 0.0
        %v6183 = vmax.f32 %v5671, 0.0
        %v6184 = vmax.f32 %v5672, 0.0
        %v6185 = vmax.f32 %v5673, 0.0
        %v6186 = vmax.f32 %v5674, 0.0
        %v6187 = vmax.f32 %v5675, 0.0
        %v6188 = vmax.f32 %v5676, 0.0
        %v6189 = vmax.f32 %v5677, 0.0
        %v6190 = vmax.f32 %v5678, 0.0
        %v6191 = vmax.f32 %v5679, 0.0
        %v6192 = vmax.f32 %v5680, 0.0
        %v6193 = vmax.f32 %v5681, 0.0
        %v6194 = vmax.f32 %v5682, 0.0
        %v6195 = vmax.f32 %v5683, 0.0
        %v6196 = vmax.f32 %v5684, 0.0
        %v6197 = vmax.f32 %v5685, 0.0
        %v6198 = vmax.f32 %v5686, 0.0
        %v6199 = vmax.f32 %v5687, 0.0
        %v6200 = vmax.f32 %v5688, 0.0
        %v6201 = vmax.f32 %v5689, 0.0
        %v6202 = vmax.f32 %v5690, 0.0
        %v6203 = vmax.f32 %v5691, 0.0
        %v6204 = vmax.f32 %v5692, 0.0
        %v6205 = vmax.f32 %v5693, 0.0
        %v6206 = vmax.f32 %v5694, 0.0
        %v6207 = vmax.f32 %v5695, 0.0
        %v6208 = vmax.f32 %v5696, 0.0
        %v6209 = vmax.f32 %v5697, 0.0
        %v6210 = vmax.f32 %v5698, 0.0
        %v6211 = vmax.f32 %v5699, 0.0
        %v6212 = vmax.f32 %v5700, 0.0
        %v6213 = vmax.f32 %v5701, 0.0
        %v6214 = vmax.f32 %v5702, 0.0
        %v6215 = vmax.f32 %v5703, 0.0
        %v6216 = vmax.f32 %v5704, 0.0
        %v6217 = vmax.f32 %v5705, 0.0
        %v6218 = vmax.f32 %v5706, 0.0
        %v6219 = vmax.f32 %v5707, 0.0
        %v6220 = vmax.f32 %v5708, 0.0
        %v6221 = vmax.f32 %v5709, 0.0
        %v6222 = vmax.f32 %v5710, 0.0
        %v6223 = vmax.f32 %v5711, 0.0
        %v6224 = vmax.f32 %v5712, 0.0
        %v6225 = vmax.f32 %v5713, 0.0
        %v6226 = vmax.f32 %v5714, 0.0
        %v6227 = vmax.f32 %v5715, 0.0
        %v6228 = vmax.f32 %v5716, 0.0
        %v6229 = vmax.f32 %v5717, 0.0
        %v6230 = vmax.f32 %v5718, 0.0
        %v6231 = vmax.f32 %v5719, 0.0
        %v6232 = vmax.f32 %v5720, 0.0
        %v6233 = vmax.f32 %v5721, 0.0
        %v6234 = vmax.f32 %v5722, 0.0
        %v6235 = vmax.f32 %v5723, 0.0
        %v6236 = vmax.f32 %v5724, 0.0
        %v6237 = vmax.f32 %v5725, 0.0
        %v6238 = vmax.f32 %v5726, 0.0
        %v6239 = vmax.f32 %v5727, 0.0
        %v6240 = vmax.f32 %v5728, 0.0
        %v6241 = vmax.f32 %v5729, 0.0
        %v6242 = vmax.f32 %v5730, 0.0
        %v6243 = vmax.f32 %v5731, 0.0
        %v6244 = vmax.f32 %v5732, 0.0
        %v6245 = vmax.f32 %v5733, 0.0
        %v6246 = vmax.f32 %v5734, 0.0
        %v6247 = vmax.f32 %v5735, 0.0
        %v6248 = vmax.f32 %v5736, 0.0
        %v6249 = vmax.f32 %v5737, 0.0
        %v6250 = vmax.f32 %v5738, 0.0
        %v6251 = vmax.f32 %v5739, 0.0
        %v6252 = vmax.f32 %v5740, 0.0
        %v6253 = vmax.f32 %v5741, 0.0
        %v6254 = vmax.f32 %v5742, 0.0
        %v6255 = vmax.f32 %v5743, 0.0
        %v6256 = vmax.f32 %v5744, 0.0
        %v6257 = vmax.f32 %v5745, 0.0
        %v6258 = vmax.f32 %v5746, 0.0
        %v6259 = vmax.f32 %v5747, 0.0
        %v6260 = vmax.f32 %v5748, 0.0
        %v6261 = vmax.f32 %v5749, 0.0
        %v6262 = vmax.f32 %v5750, 0.0
        %v6263 = vmax.f32 %v5751, 0.0
        %v6264 = vmax.f32 %v5752, 0.0
        %v6265 = vmax.f32 %v5753, 0.0
        %v6266 = vmax.f32 %v5754, 0.0
        %v6267 = vmax.f32 %v5755, 0.0
        %v6268 = vmax.f32 %v5756, 0.0
        %v6269 = vmax.f32 %v5757, 0.0
        %v6270 = vmax.f32 %v5758, 0.0
        %v6271 = vmax.f32 %v5759, 0.0
        %v6272 = vmax.f32 %v5760, 0.0
        %v6273 = vmax.f32 %v5761, 0.0
        %v6274 = vmax.f32 %v5762, 0.0
        %v6275 = vmax.f32 %v5763, 0.0
        %v6276 = vmax.f32 %v5764, 0.0
        %v6277 = vmax.f32 %v5765, 0.0
        %v6278 = vmax.f32 %v5766, 0.0
        %v6279 = vmax.f32 %v5767, 0.0
        %v6280 = vmax.f32 %v5768, 0.0
        %v6281 = vmax.f32 %v5769, 0.0
        %v6282 = vmax.f32 %v5770, 0.0
        %v6283 = vmax.f32 %v5771, 0.0
        %v6284 = vmax.f32 %v5772, 0.0
        %v6285 = vmax.f32 %v5773, 0.0
        %v6286 = vmax.f32 %v5774, 0.0
        %v6287 = vmax.f32 %v5775, 0.0
        %v6288 = vmax.f32 %v5776, 0.0
        %v6289 = vmax.f32 %v5777, 0.0
        %v6290 = vmax.f32 %v5778, 0.0
        %v6291 = vmax.f32 %v5779, 0.0
        %v6292 = vmax.f32 %v5780, 0.0
        %v6293 = vmax.f32 %v5781, 0.0
        %v6294 = vmax.f32 %v5782, 0.0
        %v6295 = vmax.f32 %v5783, 0.0
        %v6296 = vmax.f32 %v5784, 0.0
        %v6297 = vmax.f32 %v5785, 0.0
        %v6298 = vmax.f32 %v5786, 0.0
        %v6299 = vmax.f32 %v5787, 0.0
        %v6300 = vmax.f32 %v5788, 0.0
        %v6301 = vmax.f32 %v5789, 0.0
        %v6302 = vmax.f32 %v5790, 0.0
        %v6303 = vmax.f32 %v5791, 0.0
        %v6304 = vmax.f32 %v5792, 0.0
        %v6305 = vmax.f32 %v5793, 0.0
        %v6306 = vmax.f32 %v5794, 0.0
        %v6307 = vmax.f32 %v5795, 0.0
        %v6308 = vmax.f32 %v5796, 0.0
        %v6309 = vmax.f32 %v5797, 0.0
        %v6310 = vmax.f32 %v5798, 0.0
        %v6311 = vmax.f32 %v5799, 0.0
        %v6312 = vmax.f32 %v5800, 0.0
        %v6313 = vmax.f32 %v5801, 0.0
        %v6314 = vmax.f32 %v5802, 0.0
        %v6315 = vmax.f32 %v5803, 0.0
        %v6316 = vmax.f32 %v5804, 0.0
        %v6317 = vmax.f32 %v5805, 0.0
        %v6318 = vmax.f32 %v5806, 0.0
        %v6319 = vmax.f32 %v5807, 0.0
        %v6320 = vmax.f32 %v5808, 0.0
        %v6321 = vmax.f32 %v5809, 0.0
        %v6322 = vmax.f32 %v5810, 0.0
        %v6323 = vmax.f32 %v5811, 0.0
        %v6324 = vmax.f32 %v5812, 0.0
        %v6325 = vmax.f32 %v5813, 0.0
        %v6326 = vmax.f32 %v5814, 0.0
        %v6327 = vmax.f32 %v5815, 0.0
        %v6328 = vmax.f32 %v5816, 0.0
        %v6329 = vmax.f32 %v5817, 0.0
        %v6330 = vmax.f32 %v5818, 0.0
        %v6331 = vmax.f32 %v5819, 0.0
        %v6332 = vmax.f32 %v5820, 0.0
        %v6333 = vmax.f32 %v5821, 0.0
        %v6334 = vmax.f32 %v5822, 0.0
        %v6335 = vmax.f32 %v5823, 0.0
        %v6336 = vmax.f32 %v5824, 0.0
        %v6337 = vmax.f32 %v5825, 0.0
        %v6338 = vmax.f32 %v5826, 0.0
        %v6339 = vmax.f32 %v5827, 0.0
        %v6340 = vmax.f32 %v5828, 0.0
        %v6341 = vmax.f32 %v5829, 0.0
        %v6342 = vmax.f32 %v5830, 0.0
        %v6343 = vmax.f32 %v5831, 0.0
        %v6344 = vmax.f32 %v5832, 0.0
        %v6345 = vmax.f32 %v5833, 0.0
        %v6346 = vmax.f32 %v5834, 0.0
        %v6347 = vmax.f32 %v5835, 0.0
        %v6348 = vmax.f32 %v5836, 0.0
        %v6349 = vmax.f32 %v5837, 0.0
        %v6350 = vmax.f32 %v5838, 0.0
        %v6351 = vmax.f32 %v5839, 0.0
        %v6352 = vmax.f32 %v5840, 0.0
        %v6353 = vmax.f32 %v5841, 0.0
        %v6354 = vmax.f32 %v5842, 0.0
        %v6355 = vmax.f32 %v5843, 0.0
        %v6356 = vmax.f32 %v5844, 0.0
        %v6357 = vmax.f32 %v5845, 0.0
        %v6358 = vmax.f32 %v5846, 0.0
        %v6359 = vmax.f32 %v5847, 0.0
        %v6360 = vmax.f32 %v5848, 0.0
        %v6361 = vmax.f32 %v5849, 0.0
        %v6362 = vmax.f32 %v5850, 0.0
        %v6363 = vmax.f32 %v5851, 0.0
        %v6364 = vmax.f32 %v5852, 0.0
        %v6365 = vmax.f32 %v5853, 0.0
        %v6366 = vmax.f32 %v5854, 0.0
        %v6367 = vmax.f32 %v5855, 0.0
        %v6368 = vmax.f32 %v5856, 0.0
        %v6369 = vmax.f32 %v5857, 0.0
        %v6370 = vmax.f32 %v5858, 0.0
        %v6371 = vmax.f32 %v5859, 0.0
        %v6372 = vmax.f32 %v5860, 0.0
        %v6373 = vmax.f32 %v5861, 0.0
        %v6374 = vmax.f32 %v5862, 0.0
        %v6375 = vmax.f32 %v5863, 0.0
        %v6376 = vmax.f32 %v5864, 0.0
        %v6377 = vmax.f32 %v5865, 0.0
        %v6378 = vmax.f32 %v5866, 0.0
        %v6379 = vmax.f32 %v5867, 0.0
        %v6380 = vmax.f32 %v5868, 0.0
        %v6381 = vmax.f32 %v5869, 0.0
        %v6382 = vmax.f32 %v5870, 0.0
        %v6383 = vmax.f32 %v5871, 0.0
        %v6384 = vmax.f32 %v5872, 0.0
        %v6385 = vmax.f32 %v5873, 0.0
        %v6386 = vmax.f32 %v5874, 0.0
        %v6387 = vmax.f32 %v5875, 0.0
        %v6388 = vmax.f32 %v5876, 0.0
        %v6389 = vmax.f32 %v5877, 0.0
        %v6390 = vmax.f32 %v5878, 0.0
        %v6391 = vmax.f32 %v5879, 0.0
        %v6392 = vmax.f32 %v5880, 0.0
        %v6393 = vmax.f32 %v5881, 0.0
        %v6394 = vmax.f32 %v5882, 0.0
        %v6395 = vmax.f32 %v5883, 0.0
        %v6396 = vmax.f32 %v5884, 0.0
        %v6397 = vmax.f32 %v5885, 0.0
        %v6398 = vmax.f32 %v5886, 0.0
        %v6399 = vmax.f32 %v5887, 0.0
        %v6400 = vmax.f32 %v5888, 0.0
        %v6401 = vmax.f32 %v5889, 0.0
        %v6402 = vmax.f32 %v5890, 0.0
        %v6403 = vmax.f32 %v5891, 0.0
        %v6404 = vmax.f32 %v5892, 0.0
        %v6405 = vmax.f32 %v5893, 0.0
        %v6406 = vmax.f32 %v5894, 0.0
        %v6407 = vmax.f32 %v5895, 0.0
        %v6408 = vmax.f32 %v5896, 0.0
        %v6409 = vmax.f32 %v5897, 0.0
        %v6410 = vmax.f32 %v5898, 0.0
        %v6411 = vmax.f32 %v5899, 0.0
        %v6412 = vmax.f32 %v5900, 0.0
        %v6413 = vmax.f32 %v5901, 0.0
        %v6414 = vmax.f32 %v5902, 0.0
        %v6415 = vmax.f32 %v5903, 0.0
        %v6416 = vmax.f32 %v5904, 0.0
        %v6417 = vmax.f32 %v5905, 0.0
        %v6418 = vmax.f32 %v5906, 0.0
        %v6419 = vmax.f32 %v5907, 0.0
        %v6420 = vmax.f32 %v5908, 0.0
        %v6421 = vmax.f32 %v5909, 0.0
        %v6422 = vmax.f32 %v5910, 0.0
        %v6423 = vmax.f32 %v5911, 0.0
        %v6424 = vmax.f32 %v5912, 0.0
        %v6425 = vmax.f32 %v5913, 0.0
        %v6426 = vmax.f32 %v5914, 0.0
        %v6427 = vmax.f32 %v5915, 0.0
        %v6428 = vmax.f32 %v5916, 0.0
        %v6429 = vmax.f32 %v5917, 0.0
        %v6430 = vmax.f32 %v5918, 0.0
        %v6431 = vmax.f32 %v5919, 0.0
        %v6432 = vmax.f32 %v5920, 0.0
        %v6433 = vmax.f32 %v5921, 0.0
        %v6434 = vmax.f32 %v5922, 0.0
        %v6435 = vmax.f32 %v5923, 0.0
        %v6436 = vmax.f32 %v5924, 0.0
        %v6437 = vmax.f32 %v5925, 0.0
        %v6438 = vmax.f32 %v5926, 0.0
        %v6439 = vmax.f32 %v5927, 0.0
        %v6440 = vmax.f32 %v5928, 0.0
        %v6441 = vmax.f32 %v5929, 0.0
        %v6442 = vmax.f32 %v5930, 0.0
        %v6443 = vmax.f32 %v5931, 0.0
        %v6444 = vmax.f32 %v5932, 0.0
        %v6445 = vmax.f32 %v5933, 0.0
        %v6446 = vmax.f32 %v5934, 0.0
        %v6447 = vmax.f32 %v5935, 0.0
        %v6448 = vmax.f32 %v5936, 0.0
        %v6449 = vmax.f32 %v5937, 0.0
        %v6450 = vmax.f32 %v5938, 0.0
        %v6451 = vmax.f32 %v5939, 0.0
        %v6452 = vmax.f32 %v5940, 0.0
        %v6453 = vmax.f32 %v5941, 0.0
        %v6454 = vmax.f32 %v5942, 0.0
        %v6455 = vmax.f32 %v5943, 0.0
        %v6456 = vmax.f32 %v5944, 0.0
        %v6457 = vmax.f32 %v5945, 0.0
        %v6458 = vmax.f32 %v5946, 0.0
        %v6459 = vmax.f32 %v5947, 0.0
        %v6460 = vmax.f32 %v5948, 0.0
        %v6461 = vmax.f32 %v5949, 0.0
        %v6462 = vmax.f32 %v5950, 0.0
        %v6463 = vmax.f32 %v5951, 0.0
        %v6464 = vmax.f32 %v5952, 0.0
        %v6465 = vmax.f32 %v5953, 0.0
        %v6466 = vmax.f32 %v5954, 0.0
        %v6467 = vmax.f32 %v5955, 0.0
        %v6468 = vmax.f32 %v5956, 0.0
        %v6469 = vmax.f32 %v5957, 0.0
        %v6470 = vmax.f32 %v5958, 0.0
        %v6471 = vld [vmem:[%s3] sm:$0xf]
        %v6472 = vld [vmem:[%s3 + $0x4] sm:$0xf]
        %v6473 = vld [vmem:[%s3 + $0x8] sm:$0xf]
        %v6474 = vld [vmem:[%s3 + $0xc] sm:$0xf]
        %v6475 = vld [vmem:[%s3 + $0x10] sm:$0xf]
        %v6476 = vld [vmem:[%s3 + $0x14] sm:$0xf]
        %v6477 = vld [vmem:[%s3 + $0x18] sm:$0xf]
        %v6478 = vld [vmem:[%s3 + $0x1c] sm:$0xf]
        %v6479 = vld [vmem:[%s3 + $0x20] sm:$0xf]
        %v6480 = vld [vmem:[%s3 + $0x24] sm:$0xf]
        %v6481 = vld [vmem:[%s3 + $0x28] sm:$0xf]
        %v6482 = vld [vmem:[%s3 + $0x2c] sm:$0xf]
        %v6483 = vld [vmem:[%s3 + $0x30] sm:$0xf]
        %v6484 = vld [vmem:[%s3 + $0x34] sm:$0xf]
        %v6485 = vld [vmem:[%s3 + $0x38] sm:$0xf]
        %v6486 = vld [vmem:[%s3 + $0x3c] sm:$0xf]
        %v6487 = vpack.c.bf16 %v5991, %v5959
        %v6488 = vpack.c.bf16 %v5992, %v5960
        %v6489 = vpack.c.bf16 %v5993, %v5961
        %v6490 = vpack.c.bf16 %v5994, %v5962
        %v6491 = vpack.c.bf16 %v5995, %v5963
        %v6492 = vpack.c.bf16 %v5996, %v5964
        %v6493 = vpack.c.bf16 %v5997, %v5965
        %v6494 = vpack.c.bf16 %v5998, %v5966
        %v6495 = vpack.c.bf16 %v5999, %v5967
        %v6496 = vpack.c.bf16 %v6000, %v5968
        %v6497 = vpack.c.bf16 %v6001, %v5969
        %v6498 = vpack.c.bf16 %v6002, %v5970
        %v6499 = vpack.c.bf16 %v6003, %v5971
        %v6500 = vpack.c.bf16 %v6004, %v5972
        %v6501 = vpack.c.bf16 %v6005, %v5973
        %v6502 = vpack.c.bf16 %v6006, %v5974
        %v6503 = vpack.c.bf16 %v6007, %v5975
        %v6504 = vpack.c.bf16 %v6008, %v5976
        %v6505 = vpack.c.bf16 %v6009, %v5977
        %v6506 = vpack.c.bf16 %v6010, %v5978
        %v6507 = vpack.c.bf16 %v6011, %v5979
        %v6508 = vpack.c.bf16 %v6012, %v5980
        %v6509 = vpack.c.bf16 %v6013, %v5981
        %v6510 = vpack.c.bf16 %v6014, %v5982
        %v6511 = vpack.c.bf16 %v6015, %v5983
        %v6512 = vpack.c.bf16 %v6016, %v5984
        %v6513 = vpack.c.bf16 %v6017, %v5985
        %v6514 = vpack.c.bf16 %v6018, %v5986
        %v6515 = vpack.c.bf16 %v6019, %v5987
        %v6516 = vpack.c.bf16 %v6020, %v5988
        %v6517 = vpack.c.bf16 %v6021, %v5989
        %v6518 = vpack.c.bf16 %v6022, %v5990
        %v6519 = vpack.c.bf16 %v6055, %v6023
        %v6520 = vpack.c.bf16 %v6056, %v6024
        %v6521 = vpack.c.bf16 %v6057, %v6025
        %v6522 = vpack.c.bf16 %v6058, %v6026
        %v6523 = vpack.c.bf16 %v6059, %v6027
        %v6524 = vpack.c.bf16 %v6060, %v6028
        %v6525 = vpack.c.bf16 %v6061, %v6029
        %v6526 = vpack.c.bf16 %v6062, %v6030
        %v6527 = vpack.c.bf16 %v6063, %v6031
        %v6528 = vpack.c.bf16 %v6064, %v6032
        %v6529 = vpack.c.bf16 %v6065, %v6033
        %v6530 = vpack.c.bf16 %v6066, %v6034
        %v6531 = vpack.c.bf16 %v6067, %v6035
        %v6532 = vpack.c.bf16 %v6068, %v6036
        %v6533 = vpack.c.bf16 %v6069, %v6037
        %v6534 = vpack.c.bf16 %v6070, %v6038
        %v6535 = vpack.c.bf16 %v6071, %v6039
        %v6536 = vpack.c.bf16 %v6072, %v6040
        %v6537 = vpack.c.bf16 %v6073, %v6041
        %v6538 = vpack.c.bf16 %v6074, %v6042
        %v6539 = vpack.c.bf16 %v6075, %v6043
        %v6540 = vpack.c.bf16 %v6076, %v6044
        %v6541 = vpack.c.bf16 %v6077, %v6045
        %v6542 = vpack.c.bf16 %v6078, %v6046
        %v6543 = vpack.c.bf16 %v6079, %v6047
        %v6544 = vpack.c.bf16 %v6080, %v6048
        %v6545 = vpack.c.bf16 %v6081, %v6049
        %v6546 = vpack.c.bf16 %v6082, %v6050
        %v6547 = vpack.c.bf16 %v6083, %v6051
        %v6548 = vpack.c.bf16 %v6084, %v6052
        %v6549 = vpack.c.bf16 %v6085, %v6053
        %v6550 = vpack.c.bf16 %v6086, %v6054
        %v6551 = vpack.c.bf16 %v6119, %v6087
        %v6552 = vpack.c.bf16 %v6120, %v6088
        %v6553 = vpack.c.bf16 %v6121, %v6089
        %v6554 = vpack.c.bf16 %v6122, %v6090
        %v6555 = vpack.c.bf16 %v6123, %v6091
        %v6556 = vpack.c.bf16 %v6124, %v6092
        %v6557 = vpack.c.bf16 %v6125, %v6093
        %v6558 = vpack.c.bf16 %v6126, %v6094
        %v6559 = vpack.c.bf16 %v6127, %v6095
        %v6560 = vpack.c.bf16 %v6128, %v6096
        %v6561 = vpack.c.bf16 %v6129, %v6097
        %v6562 = vpack.c.bf16 %v6130, %v6098
        %v6563 = vpack.c.bf16 %v6131, %v6099
        %v6564 = vpack.c.bf16 %v6132, %v6100
        %v6565 = vpack.c.bf16 %v6133, %v6101
        %v6566 = vpack.c.bf16 %v6134, %v6102
        %v6567 = vpack.c.bf16 %v6135, %v6103
        %v6568 = vpack.c.bf16 %v6136, %v6104
        %v6569 = vpack.c.bf16 %v6137, %v6105
        %v6570 = vpack.c.bf16 %v6138, %v6106
        %v6571 = vpack.c.bf16 %v6139, %v6107
        %v6572 = vpack.c.bf16 %v6140, %v6108
        %v6573 = vpack.c.bf16 %v6141, %v6109
        %v6574 = vpack.c.bf16 %v6142, %v6110
        %v6575 = vpack.c.bf16 %v6143, %v6111
        %v6576 = vpack.c.bf16 %v6144, %v6112
        %v6577 = vpack.c.bf16 %v6145, %v6113
        %v6578 = vpack.c.bf16 %v6146, %v6114
        %v6579 = vpack.c.bf16 %v6147, %v6115
        %v6580 = vpack.c.bf16 %v6148, %v6116
        %v6581 = vpack.c.bf16 %v6149, %v6117
        %v6582 = vpack.c.bf16 %v6150, %v6118
        %v6583 = vpack.c.bf16 %v6183, %v6151
        %v6584 = vpack.c.bf16 %v6184, %v6152
        %v6585 = vpack.c.bf16 %v6185, %v6153
        %v6586 = vpack.c.bf16 %v6186, %v6154
        %v6587 = vpack.c.bf16 %v6187, %v6155
        %v6588 = vpack.c.bf16 %v6188, %v6156
        %v6589 = vpack.c.bf16 %v6189, %v6157
        %v6590 = vpack.c.bf16 %v6190, %v6158
        %v6591 = vpack.c.bf16 %v6191, %v6159
        %v6592 = vpack.c.bf16 %v6192, %v6160
        %v6593 = vpack.c.bf16 %v6193, %v6161
        %v6594 = vpack.c.bf16 %v6194, %v6162
        %v6595 = vpack.c.bf16 %v6195, %v6163
        %v6596 = vpack.c.bf16 %v6196, %v6164
        %v6597 = vpack.c.bf16 %v6197, %v6165
        %v6598 = vpack.c.bf16 %v6198, %v6166
        %v6599 = vpack.c.bf16 %v6199, %v6167
        %v6600 = vpack.c.bf16 %v6200, %v6168
        %v6601 = vpack.c.bf16 %v6201, %v6169
        %v6602 = vpack.c.bf16 %v6202, %v6170
        %v6603 = vpack.c.bf16 %v6203, %v6171
        %v6604 = vpack.c.bf16 %v6204, %v6172
        %v6605 = vpack.c.bf16 %v6205, %v6173
        %v6606 = vpack.c.bf16 %v6206, %v6174
        %v6607 = vpack.c.bf16 %v6207, %v6175
        %v6608 = vpack.c.bf16 %v6208, %v6176
        %v6609 = vpack.c.bf16 %v6209, %v6177
        %v6610 = vpack.c.bf16 %v6210, %v6178
        %v6611 = vpack.c.bf16 %v6211, %v6179
        %v6612 = vpack.c.bf16 %v6212, %v6180
        %v6613 = vpack.c.bf16 %v6213, %v6181
        %v6614 = vpack.c.bf16 %v6214, %v6182
        %v6615 = vpack.c.bf16 %v6247, %v6215
        %v6616 = vpack.c.bf16 %v6248, %v6216
        %v6617 = vpack.c.bf16 %v6249, %v6217
        %v6618 = vpack.c.bf16 %v6250, %v6218
        %v6619 = vpack.c.bf16 %v6251, %v6219
        %v6620 = vpack.c.bf16 %v6252, %v6220
        %v6621 = vpack.c.bf16 %v6253, %v6221
        %v6622 = vpack.c.bf16 %v6254, %v6222
        %v6623 = vpack.c.bf16 %v6255, %v6223
        %v6624 = vpack.c.bf16 %v6256, %v6224
        %v6625 = vpack.c.bf16 %v6257, %v6225
        %v6626 = vpack.c.bf16 %v6258, %v6226
        %v6627 = vpack.c.bf16 %v6259, %v6227
        %v6628 = vpack.c.bf16 %v6260, %v6228
        %v6629 = vpack.c.bf16 %v6261, %v6229
        %v6630 = vpack.c.bf16 %v6262, %v6230
        %v6631 = vpack.c.bf16 %v6263, %v6231
        %v6632 = vpack.c.bf16 %v6264, %v6232
        %v6633 = vpack.c.bf16 %v6265, %v6233
        %v6634 = vpack.c.bf16 %v6266, %v6234
        %v6635 = vpack.c.bf16 %v6267, %v6235
        %v6636 = vpack.c.bf16 %v6268, %v6236
        %v6637 = vpack.c.bf16 %v6269, %v6237
        %v6638 = vpack.c.bf16 %v6270, %v6238
        %v6639 = vpack.c.bf16 %v6271, %v6239
        %v6640 = vpack.c.bf16 %v6272, %v6240
        %v6641 = vpack.c.bf16 %v6273, %v6241
        %v6642 = vpack.c.bf16 %v6274, %v6242
        %v6643 = vpack.c.bf16 %v6275, %v6243
        %v6644 = vpack.c.bf16 %v6276, %v6244
        %v6645 = vpack.c.bf16 %v6277, %v6245
        %v6646 = vpack.c.bf16 %v6278, %v6246
        %v6647 = vpack.c.bf16 %v6311, %v6279
        %v6648 = vpack.c.bf16 %v6312, %v6280
        %v6649 = vpack.c.bf16 %v6313, %v6281
        %v6650 = vpack.c.bf16 %v6314, %v6282
        %v6651 = vpack.c.bf16 %v6315, %v6283
        %v6652 = vpack.c.bf16 %v6316, %v6284
        %v6653 = vpack.c.bf16 %v6317, %v6285
        %v6654 = vpack.c.bf16 %v6318, %v6286
        %v6655 = vpack.c.bf16 %v6319, %v6287
        %v6656 = vpack.c.bf16 %v6320, %v6288
        %v6657 = vpack.c.bf16 %v6321, %v6289
        %v6658 = vpack.c.bf16 %v6322, %v6290
        %v6659 = vpack.c.bf16 %v6323, %v6291
        %v6660 = vpack.c.bf16 %v6324, %v6292
        %v6661 = vpack.c.bf16 %v6325, %v6293
        %v6662 = vpack.c.bf16 %v6326, %v6294
        %v6663 = vpack.c.bf16 %v6327, %v6295
        %v6664 = vpack.c.bf16 %v6328, %v6296
        %v6665 = vpack.c.bf16 %v6329, %v6297
        %v6666 = vpack.c.bf16 %v6330, %v6298
        %v6667 = vpack.c.bf16 %v6331, %v6299
        %v6668 = vpack.c.bf16 %v6332, %v6300
        %v6669 = vpack.c.bf16 %v6333, %v6301
        %v6670 = vpack.c.bf16 %v6334, %v6302
        %v6671 = vpack.c.bf16 %v6335, %v6303
        %v6672 = vpack.c.bf16 %v6336, %v6304
        %v6673 = vpack.c.bf16 %v6337, %v6305
        %v6674 = vpack.c.bf16 %v6338, %v6306
        %v6675 = vpack.c.bf16 %v6339, %v6307
        %v6676 = vpack.c.bf16 %v6340, %v6308
        %v6677 = vpack.c.bf16 %v6341, %v6309
        %v6678 = vpack.c.bf16 %v6342, %v6310
        %v6679 = vpack.c.bf16 %v6375, %v6343
        %v6680 = vpack.c.bf16 %v6376, %v6344
        %v6681 = vpack.c.bf16 %v6377, %v6345
        %v6682 = vpack.c.bf16 %v6378, %v6346
        %v6683 = vpack.c.bf16 %v6379, %v6347
        %v6684 = vpack.c.bf16 %v6380, %v6348
        %v6685 = vpack.c.bf16 %v6381, %v6349
        %v6686 = vpack.c.bf16 %v6382, %v6350
        %v6687 = vpack.c.bf16 %v6383, %v6351
        %v6688 = vpack.c.bf16 %v6384, %v6352
        %v6689 = vpack.c.bf16 %v6385, %v6353
        %v6690 = vpack.c.bf16 %v6386, %v6354
        %v6691 = vpack.c.bf16 %v6387, %v6355
        %v6692 = vpack.c.bf16 %v6388, %v6356
        %v6693 = vpack.c.bf16 %v6389, %v6357
        %v6694 = vpack.c.bf16 %v6390, %v6358
        %v6695 = vpack.c.bf16 %v6391, %v6359
        %v6696 = vpack.c.bf16 %v6392, %v6360
        %v6697 = vpack.c.bf16 %v6393, %v6361
        %v6698 = vpack.c.bf16 %v6394, %v6362
        %v6699 = vpack.c.bf16 %v6395, %v6363
        %v6700 = vpack.c.bf16 %v6396, %v6364
        %v6701 = vpack.c.bf16 %v6397, %v6365
        %v6702 = vpack.c.bf16 %v6398, %v6366
        %v6703 = vpack.c.bf16 %v6399, %v6367
        %v6704 = vpack.c.bf16 %v6400, %v6368
        %v6705 = vpack.c.bf16 %v6401, %v6369
        %v6706 = vpack.c.bf16 %v6402, %v6370
        %v6707 = vpack.c.bf16 %v6403, %v6371
        %v6708 = vpack.c.bf16 %v6404, %v6372
        %v6709 = vpack.c.bf16 %v6405, %v6373
        %v6710 = vpack.c.bf16 %v6406, %v6374
        %v6711 = vpack.c.bf16 %v6439, %v6407
        %v6712 = vpack.c.bf16 %v6440, %v6408
        %v6713 = vpack.c.bf16 %v6441, %v6409
        %v6714 = vpack.c.bf16 %v6442, %v6410
        %v6715 = vpack.c.bf16 %v6443, %v6411
        %v6716 = vpack.c.bf16 %v6444, %v6412
        %v6717 = vpack.c.bf16 %v6445, %v6413
        %v6718 = vpack.c.bf16 %v6446, %v6414
        %v6719 = vpack.c.bf16 %v6447, %v6415
        %v6720 = vpack.c.bf16 %v6448, %v6416
        %v6721 = vpack.c.bf16 %v6449, %v6417
        %v6722 = vpack.c.bf16 %v6450, %v6418
        %v6723 = vpack.c.bf16 %v6451, %v6419
        %v6724 = vpack.c.bf16 %v6452, %v6420
        %v6725 = vpack.c.bf16 %v6453, %v6421
        %v6726 = vpack.c.bf16 %v6454, %v6422
        %v6727 = vpack.c.bf16 %v6455, %v6423
        %v6728 = vpack.c.bf16 %v6456, %v6424
        %v6729 = vpack.c.bf16 %v6457, %v6425
        %v6730 = vpack.c.bf16 %v6458, %v6426
        %v6731 = vpack.c.bf16 %v6459, %v6427
        %v6732 = vpack.c.bf16 %v6460, %v6428
        %v6733 = vpack.c.bf16 %v6461, %v6429
        %v6734 = vpack.c.bf16 %v6462, %v6430
        %v6735 = vpack.c.bf16 %v6463, %v6431
        %v6736 = vpack.c.bf16 %v6464, %v6432
        %v6737 = vpack.c.bf16 %v6465, %v6433
        %v6738 = vpack.c.bf16 %v6466, %v6434
        %v6739 = vpack.c.bf16 %v6467, %v6435
        %v6740 = vpack.c.bf16 %v6468, %v6436
        %v6741 = vpack.c.bf16 %v6469, %v6437
        %v6742 = vpack.c.bf16 %v6470, %v6438
        %v6759 = vunpack.c.l.b16 %v6471
        %v6760 = vunpack.c.l.b16 %v6472
        %v6761 = vunpack.c.l.b16 %v6473
        %v6762 = vunpack.c.l.b16 %v6474
        %v6763 = vunpack.c.l.b16 %v6475
        %v6764 = vunpack.c.l.b16 %v6476
        %v6765 = vunpack.c.l.b16 %v6477
        %v6766 = vunpack.c.l.b16 %v6478
        %v6767 = vunpack.c.l.b16 %v6479
        %v6768 = vunpack.c.l.b16 %v6480
        %v6769 = vunpack.c.l.b16 %v6481
        %v6770 = vunpack.c.l.b16 %v6482
        %v6771 = vunpack.c.l.b16 %v6483
        %v6772 = vunpack.c.l.b16 %v6484
        %v6773 = vunpack.c.l.b16 %v6485
        %v6774 = vunpack.c.l.b16 %v6486
        %v6775 = vpack.c.b16 %v6760, %v6759
        %v6776 = vpack.c.b16 %v6762, %v6761
        %v6777 = vpack.c.b16 %v6764, %v6763
        %v6778 = vpack.c.b16 %v6766, %v6765
        %v6779 = vpack.c.b16 %v6768, %v6767
        %v6780 = vpack.c.b16 %v6770, %v6769
        %v6781 = vpack.c.b16 %v6772, %v6771
        %v6782 = vpack.c.b16 %v6774, %v6773
        %6791 = vmatprep.subr.bf16.mxu0 %v6488
        %6792 = vmatpush1.bf16.msra.mxu0 %v6487
        %6793 = vmatprep.subr.bf16.mxu0 %v6520
        %6794 = vmatpush1.bf16.msra.mxu0 %v6519
        %6795 = vmatprep.subr.bf16.mxu0 %v6552
        %6796 = vmatpush1.bf16.msra.mxu0 %v6551
        %6797 = vmatprep.subr.bf16.mxu0 %v6584
        %6798 = vmatpush1.bf16.msra.mxu0 %v6583
        %6799 = vmatprep.subr.bf16.mxu0 %v6616
        %6800 = vmatpush1.bf16.msra.mxu0 %v6615
        %6801 = vmatprep.subr.bf16.mxu0 %v6648
        %6802 = vmatpush1.bf16.msra.mxu0 %v6647
        %6803 = vmatprep.subr.bf16.mxu0 %v6680
        %6804 = vmatpush1.bf16.msra.mxu0 %v6679
        %6805 = vmatprep.subr.bf16.mxu0 %v6712
        %6806 = vmatpush1.bf16.msra.mxu0 %v6711
        %6807 = vmatprep.subr.bf16.mxu0 0
        %6808 = vmatpush1.bf16.msra.mxu0 0
        %6809 = vmatprep.subr.bf16.mxu0 0
        %6810 = vmatpush1.bf16.msra.mxu0 0
        %6811 = vmatprep.subr.bf16.mxu0 0
        %6812 = vmatpush1.bf16.msra.mxu0 0
        %6813 = vmatprep.subr.bf16.mxu0 0
        %6814 = vmatpush1.bf16.msra.mxu0 0
        %6815 = vmatprep.subr.bf16.mxu0 0
        %6816 = vmatpush1.bf16.msra.mxu0 0
        %6817 = vmatprep.subr.bf16.mxu0 0
        %6818 = vmatpush1.bf16.msra.mxu0 0
        %6819 = vmatprep.subr.bf16.mxu0 0
        %6820 = vmatpush1.bf16.msra.mxu0 0
        %6821 = vmatprep.subr.bf16.mxu0 0
        %6822 = vmatpush1.bf16.msra.mxu0 0
        %6823 = vmatprep.mubr.bf16.mxu0 0
        %6824 = vmatmul.mubr.bf16.gmra.mrb[0].mxu0 %v6775
        %v6825 = vpop.f32.mrb[0].mxu0
        %v6826 = vadd.f32 0.0, %v6825
        %v6827 = vpop.f32.mrb[0].mxu0
        %v6828 = vadd.f32 0.0, %v6827
        %v6829 = vpop.f32.mrb[0].mxu0
        %v6830 = vadd.f32 0.0, %v6829
        %v6831 = vpop.f32.mrb[0].mxu0
        %v6832 = vadd.f32 0.0, %v6831
        %6833 = vmatprep.mubr.bf16.mxu0 0
        %6834 = vmatmul.mubr.bf16.gmra.mrb[0].mxu0 %v6776
        %v6835 = vpop.f32.mrb[0].mxu0
        %v6836 = vadd.f32 0.0, %v6835
        %v6837 = vpop.f32.mrb[0].mxu0
        %v6838 = vadd.f32 0.0, %v6837
        %v6839 = vpop.f32.mrb[0].mxu0
        %v6840 = vadd.f32 0.0, %v6839
        %v6841 = vpop.f32.mrb[0].mxu0
        %v6842 = vadd.f32 0.0, %v6841
        %6843 = vmatprep.mubr.bf16.mxu0 0
        %6844 = vmatmul.mubr.bf16.gmra.mrb[0].mxu0 %v6777
        %v6845 = vpop.f32.mrb[0].mxu0
        %v6846 = vadd.f32 0.0, %v6845
        %v6847 = vpop.f32.mrb[0].mxu0
        %v6848 = vadd.f32 0.0, %v6847
        %v6849 = vpop.f32.mrb[0].mxu0
        %v6850 = vadd.f32 0.0, %v6849
        %v6851 = vpop.f32.mrb[0].mxu0
        %v6852 = vadd.f32 0.0, %v6851
        %6853 = vmatprep.mubr.bf16.mxu0 0
        %6854 = vmatmul.mubr.bf16.gmra.mrb[0].mxu0 %v6778
        %v6855 = vpop.f32.mrb[0].mxu0
        %v6856 = vadd.f32 0.0, %v6855
        %v6857 = vpop.f32.mrb[0].mxu0
        %v6858 = vadd.f32 0.0, %v6857
        %v6859 = vpop.f32.mrb[0].mxu0
        %v6860 = vadd.f32 0.0, %v6859
        %v6861 = vpop.f32.mrb[0].mxu0
        %v6862 = vadd.f32 0.0, %v6861
        %6863 = vmatprep.mubr.bf16.mxu0 0
        %6864 = vmatmul.mubr.bf16.gmra.mrb[0].mxu0 %v6779
        %v6865 = vpop.f32.mrb[0].mxu0
        %v6866 = vadd.f32 0.0, %v6865
        %v6867 = vpop.f32.mrb[0].mxu0
        %v6868 = vadd.f32 0.0, %v6867
        %v6869 = vpop.f32.mrb[0].mxu0
        %v6870 = vadd.f32 0.0, %v6869
        %v6871 = vpop.f32.mrb[0].mxu0
        %v6872 = vadd.f32 0.0, %v6871
        %6873 = vmatprep.mubr.bf16.mxu0 0
        %6874 = vmatmul.mubr.bf16.gmra.mrb[0].mxu0 %v6780
        %v6875 = vpop.f32.mrb[0].mxu0
        %v6876 = vadd.f32 0.0, %v6875
        %v6877 = vpop.f32.mrb[0].mxu0
        %v6878 = vadd.f32 0.0, %v6877
        %v6879 = vpop.f32.mrb[0].mxu0
        %v6880 = vadd.f32 0.0, %v6879
        %v6881 = vpop.f32.mrb[0].mxu0
        %v6882 = vadd.f32 0.0, %v6881
        %6883 = vmatprep.mubr.bf16.mxu0 0
        %6884 = vmatmul.mubr.bf16.gmra.mrb[0].mxu0 %v6781
        %v6885 = vpop.f32.mrb[0].mxu0
        %v6886 = vadd.f32 0.0, %v6885
        %v6887 = vpop.f32.mrb[0].mxu0
        %v6888 = vadd.f32 0.0, %v6887
        %v6889 = vpop.f32.mrb[0].mxu0
        %v6890 = vadd.f32 0.0, %v6889
        %v6891 = vpop.f32.mrb[0].mxu0
        %v6892 = vadd.f32 0.0, %v6891
        %6893 = vmatprep.mubr.bf16.mxu0 0
        %6894 = vmatmul.mubr.bf16.gmra.mrb[0].mxu0 %v6782
        %v6895 = vpop.f32.mrb[0].mxu0
        %v6896 = vadd.f32 0.0, %v6895
        %v6897 = vpop.f32.mrb[0].mxu0
        %v6898 = vadd.f32 0.0, %v6897
        %v6899 = vpop.f32.mrb[0].mxu0
        %v6900 = vadd.f32 0.0, %v6899
        %v6901 = vpop.f32.mrb[0].mxu0
        %v6902 = vadd.f32 0.0, %v6901
        %6903 = vdwg.mxu0
        %6904 = vmatprep.subr.bf16.mxu0 %v6490
        %6905 = vmatpush1.bf16.msra.mxu0 %v6489
        %6906 = vmatprep.subr.bf16.mxu0 %v6522
        %6907 = vmatpush1.bf16.msra.mxu0 %v6521
        %6908 = vmatprep.subr.bf16.mxu0 %v6554
        %6909 = vmatpush1.bf16.msra.mxu0 %v6553
        %6910 = vmatprep.subr.bf16.mxu0 %v6586
        %6911 = vmatpush1.bf16.msra.mxu0 %v6585
        %6912 = vmatprep.subr.bf16.mxu0 %v6618
        %6913 = vmatpush1.bf16.msra.mxu0 %v6617
        %6914 = vmatprep.subr.bf16.mxu0 %v6650
        %6915 = vmatpush1.bf16.msra.mxu0 %v6649
        %6916 = vmatprep.subr.bf16.mxu0 %v6682
        %6917 = vmatpush1.bf16.msra.mxu0 %v6681
        %6918 = vmatprep.subr.bf16.mxu0 %v6714
        %6919 = vmatpush1.bf16.msra.mxu0 %v6713
        %6920 = vmatprep.subr.bf16.mxu0 0
        %6921 = vmatpush1.bf16.msra.mxu0 0
        %6922 = vmatprep.subr.bf16.mxu0 0
        %6923 = vmatpush1.bf16.msra.mxu0 0
        %6924 = vmatprep.subr.bf16.mxu0 0
        %6925 = vmatpush1.bf16.msra.mxu0 0
        %6926 = vmatprep.subr.bf16.mxu0 0
        %6927 = vmatpush1.bf16.msra.mxu0 0
        %6928 = vmatprep.subr.bf16.mxu0 0
        %6929 = vmatpush1.bf16.msra.mxu0 0
        %6930 = vmatprep.subr.bf16.mxu0 0
        %6931 = vmatpush1.bf16.msra.mxu0 0
        %6932 = vmatprep.subr.bf16.mxu0 0
        %6933 = vmatpush1.bf16.msra.mxu0 0
        %6934 = vmatprep.subr.bf16.mxu0 0
        %6935 = vmatpush1.bf16.msra.mxu0 0
        %6936 = vmatprep.mubr.bf16.mxu0 0
        %6937 = vmatmul.mubr.bf16.gmra.mrb[0].mxu0 %v6775
        %v6938 = vpop.f32.mrb[0].mxu0
        %v6939 = vadd.f32 0.0, %v6938
        %v6940 = vpop.f32.mrb[0].mxu0
        %v6941 = vadd.f32 0.0, %v6940
        %v6942 = vpop.f32.mrb[0].mxu0
        %v6943 = vadd.f32 0.0, %v6942
        %v6944 = vpop.f32.mrb[0].mxu0
        %v6945 = vadd.f32 0.0, %v6944
        %6946 = vmatprep.mubr.bf16.mxu0 0
        %6947 = vmatmul.mubr.bf16.gmra.mrb[0].mxu0 %v6776
        %v6948 = vpop.f32.mrb[0].mxu0
        %v6949 = vadd.f32 0.0, %v6948
        %v6950 = vpop.f32.mrb[0].mxu0
        %v6951 = vadd.f32 0.0, %v6950
        %v6952 = vpop.f32.mrb[0].mxu0
        %v6953 = vadd.f32 0.0, %v6952
        %v6954 = vpop.f32.mrb[0].mxu0
        %v6955 = vadd.f32 0.0, %v6954
        %6956 = vmatprep.mubr.bf16.mxu0 0
        %6957 = vmatmul.mubr.bf16.gmra.mrb[0].mxu0 %v6777
        %v6958 = vpop.f32.mrb[0].mxu0
        %v6959 = vadd.f32 0.0, %v6958
        %v6960 = vpop.f32.mrb[0].mxu0
        %v6961 = vadd.f32 0.0, %v6960
        %v6962 = vpop.f32.mrb[0].mxu0
        %v6963 = vadd.f32 0.0, %v6962
        %v6964 = vpop.f32.mrb[0].mxu0
        %v6965 = vadd.f32 0.0, %v6964
        %6966 = vmatprep.mubr.bf16.mxu0 0
        %6967 = vmatmul.mubr.bf16.gmra.mrb[0].mxu0 %v6778
        %v6968 = vpop.f32.mrb[0].mxu0
        %v6969 = vadd.f32 0.0, %v6968
        %v6970 = vpop.f32.mrb[0].mxu0
        %v6971 = vadd.f32 0.0, %v6970
        %v6972 = vpop.f32.mrb[0].mxu0
        %v6973 = vadd.f32 0.0, %v6972
        %v6974 = vpop.f32.mrb[0].mxu0
        %v6975 = vadd.f32 0.0, %v6974
        %6976 = vmatprep.mubr.bf16.mxu0 0
        %6977 = vmatmul.mubr.bf16.gmra.mrb[0].mxu0 %v6779
        %v6978 = vpop.f32.mrb[0].mxu0
        %v6979 = vadd.f32 0.0, %v6978
        %v6980 = vpop.f32.mrb[0].mxu0
        %v6981 = vadd.f32 0.0, %v6980
        %v6982 = vpop.f32.mrb[0].mxu0
        %v6983 = vadd.f32 0.0, %v6982
        %v6984 = vpop.f32.mrb[0].mxu0
        %v6985 = vadd.f32 0.0, %v6984
        %6986 = vmatprep.mubr.bf16.mxu0 0
        %6987 = vmatmul.mubr.bf16.gmra.mrb[0].mxu0 %v6780
        %v6988 = vpop.f32.mrb[0].mxu0
        %v6989 = vadd.f32 0.0, %v6988
        %v6990 = vpop.f32.mrb[0].mxu0
        %v6991 = vadd.f32 0.0, %v6990
        %v6992 = vpop.f32.mrb[0].mxu0
        %v6993 = vadd.f32 0.0, %v6992
        %v6994 = vpop.f32.mrb[0].mxu0
        %v6995 = vadd.f32 0.0, %v6994
        %6996 = vmatprep.mubr.bf16.mxu0 0
        %6997 = vmatmul.mubr.bf16.gmra.mrb[0].mxu0 %v6781
        %v6998 = vpop.f32.mrb[0].mxu0
        %v6999 = vadd.f32 0.0, %v6998
        %v7000 = vpop.f32.mrb[0].mxu0
        %v7001 = vadd.f32 0.0, %v7000
        %v7002 = vpop.f32.mrb[0].mxu0
        %v7003 = vadd.f32 0.0, %v7002
        %v7004 = vpop.f32.mrb[0].mxu0
        %v7005 = vadd.f32 0.0, %v7004
        %7006 = vmatprep.mubr.bf16.mxu0 0
        %7007 = vmatmul.mubr.bf16.gmra.mrb[0].mxu0 %v6782
        %v7008 = vpop.f32.mrb[0].mxu0
        %v7009 = vadd.f32 0.0, %v7008
        %v7010 = vpop.f32.mrb[0].mxu0
        %v7011 = vadd.f32 0.0, %v7010
        %v7012 = vpop.f32.mrb[0].mxu0
        %v7013 = vadd.f32 0.0, %v7012
        %v7014 = vpop.f32.mrb[0].mxu0
        %v7015 = vadd.f32 0.0, %v7014
        %7016 = vdwg.mxu0
        %7017 = vmatprep.subr.bf16.mxu0 %v6492
        %7018 = vmatpush1.bf16.msra.mxu0 %v6491
        %7019 = vmatprep.subr.bf16.mxu0 %v6524
        %7020 = vmatpush1.bf16.msra.mxu0 %v6523
        %7021 = vmatprep.subr.bf16.mxu0 %v6556
        %7022 = vmatpush1.bf16.msra.mxu0 %v6555
        %7023 = vmatprep.subr.bf16.mxu0 %v6588
        %7024 = vmatpush1.bf16.msra.mxu0 %v6587
        %7025 = vmatprep.subr.bf16.mxu0 %v6620
        %7026 = vmatpush1.bf16.msra.mxu0 %v6619
        %7027 = vmatprep.subr.bf16.mxu0 %v6652
        %7028 = vmatpush1.bf16.msra.mxu0 %v6651
        %7029 = vmatprep.subr.bf16.mxu0 %v6684
        %7030 = vmatpush1.bf16.msra.mxu0 %v6683
        %7031 = vmatprep.subr.bf16.mxu0 %v6716
        %7032 = vmatpush1.bf16.msra.mxu0 %v6715
        %7033 = vmatprep.subr.bf16.mxu0 0
        %7034 = vmatpush1.bf16.msra.mxu0 0
        %7035 = vmatprep.subr.bf16.mxu0 0
        %7036 = vmatpush1.bf16.msra.mxu0 0
        %7037 = vmatprep.subr.bf16.mxu0 0
        %7038 = vmatpush1.bf16.msra.mxu0 0
        %7039 = vmatprep.subr.bf16.mxu0 0
        %7040 = vmatpush1.bf16.msra.mxu0 0
        %7041 = vmatprep.subr.bf16.mxu0 0
        %7042 = vmatpush1.bf16.msra.mxu0 0
        %7043 = vmatprep.subr.bf16.mxu0 0
        %7044 = vmatpush1.bf16.msra.mxu0 0
        %7045 = vmatprep.subr.bf16.mxu0 0
        %7046 = vmatpush1.bf16.msra.mxu0 0
        %7047 = vmatprep.subr.bf16.mxu0 0
        %7048 = vmatpush1.bf16.msra.mxu0 0
        %7049 = vmatprep.mubr.bf16.mxu0 0
        %7050 = vmatmul.mubr.bf16.gmra.mrb[0].mxu0 %v6775
        %v7051 = vpop.f32.mrb[0].mxu0
        %v7052 = vadd.f32 0.0, %v7051
        %v7053 = vpop.f32.mrb[0].mxu0
        %v7054 = vadd.f32 0.0, %v7053
        %v7055 = vpop.f32.mrb[0].mxu0
        %v7056 = vadd.f32 0.0, %v7055
        %v7057 = vpop.f32.mrb[0].mxu0
        %v7058 = vadd.f32 0.0, %v7057
        %7059 = vmatprep.mubr.bf16.mxu0 0
        %7060 = vmatmul.mubr.bf16.gmra.mrb[0].mxu0 %v6776
        %v7061 = vpop.f32.mrb[0].mxu0
        %v7062 = vadd.f32 0.0, %v7061
        %v7063 = vpop.f32.mrb[0].mxu0
        %v7064 = vadd.f32 0.0, %v7063
        %v7065 = vpop.f32.mrb[0].mxu0
        %v7066 = vadd.f32 0.0, %v7065
        %v7067 = vpop.f32.mrb[0].mxu0
        %v7068 = vadd.f32 0.0, %v7067
        %7069 = vmatprep.mubr.bf16.mxu0 0
        %7070 = vmatmul.mubr.bf16.gmra.mrb[0].mxu0 %v6777
        %v7071 = vpop.f32.mrb[0].mxu0
        %v7072 = vadd.f32 0.0, %v7071
        %v7073 = vpop.f32.mrb[0].mxu0
        %v7074 = vadd.f32 0.0, %v7073
        %v7075 = vpop.f32.mrb[0].mxu0
        %v7076 = vadd.f32 0.0, %v7075
        %v7077 = vpop.f32.mrb[0].mxu0
        %v7078 = vadd.f32 0.0, %v7077
        %7079 = vmatprep.mubr.bf16.mxu0 0
        %7080 = vmatmul.mubr.bf16.gmra.mrb[0].mxu0 %v6778
        %v7081 = vpop.f32.mrb[0].mxu0
        %v7082 = vadd.f32 0.0, %v7081
        %v7083 = vpop.f32.mrb[0].mxu0
        %v7084 = vadd.f32 0.0, %v7083
        %v7085 = vpop.f32.mrb[0].mxu0
        %v7086 = vadd.f32 0.0, %v7085
        %v7087 = vpop.f32.mrb[0].mxu0
        %v7088 = vadd.f32 0.0, %v7087
        %7089 = vmatprep.mubr.bf16.mxu0 0
        %7090 = vmatmul.mubr.bf16.gmra.mrb[0].mxu0 %v6779
        %v7091 = vpop.f32.mrb[0].mxu0
        %v7092 = vadd.f32 0.0, %v7091
        %v7093 = vpop.f32.mrb[0].mxu0
        %v7094 = vadd.f32 0.0, %v7093
        %v7095 = vpop.f32.mrb[0].mxu0
        %v7096 = vadd.f32 0.0, %v7095
        %v7097 = vpop.f32.mrb[0].mxu0
        %v7098 = vadd.f32 0.0, %v7097
        %7099 = vmatprep.mubr.bf16.mxu0 0
        %7100 = vmatmul.mubr.bf16.gmra.mrb[0].mxu0 %v6780
        %v7101 = vpop.f32.mrb[0].mxu0
        %v7102 = vadd.f32 0.0, %v7101
        %v7103 = vpop.f32.mrb[0].mxu0
        %v7104 = vadd.f32 0.0, %v7103
        %v7105 = vpop.f32.mrb[0].mxu0
        %v7106 = vadd.f32 0.0, %v7105
        %v7107 = vpop.f32.mrb[0].mxu0
        %v7108 = vadd.f32 0.0, %v7107
        %7109 = vmatprep.mubr.bf16.mxu0 0
        %7110 = vmatmul.mubr.bf16.gmra.mrb[0].mxu0 %v6781
        %v7111 = vpop.f32.mrb[0].mxu0
        %v7112 = vadd.f32 0.0, %v7111
        %v7113 = vpop.f32.mrb[0].mxu0
        %v7114 = vadd.f32 0.0, %v7113
        %v7115 = vpop.f32.mrb[0].mxu0
        %v7116 = vadd.f32 0.0, %v7115
        %v7117 = vpop.f32.mrb[0].mxu0
        %v7118 = vadd.f32 0.0, %v7117
        %7119 = vmatprep.mubr.bf16.mxu0 0
        %7120 = vmatmul.mubr.bf16.gmra.mrb[0].mxu0 %v6782
        %v7121 = vpop.f32.mrb[0].mxu0
        %v7122 = vadd.f32 0.0, %v7121
        %v7123 = vpop.f32.mrb[0].mxu0
        %v7124 = vadd.f32 0.0, %v7123
        %v7125 = vpop.f32.mrb[0].mxu0
        %v7126 = vadd.f32 0.0, %v7125
        %v7127 = vpop.f32.mrb[0].mxu0
        %v7128 = vadd.f32 0.0, %v7127
        %7129 = vdwg.mxu0
        %7130 = vmatprep.subr.bf16.mxu0 %v6494
        %7131 = vmatpush1.bf16.msra.mxu0 %v6493
        %7132 = vmatprep.subr.bf16.mxu0 %v6526
        %7133 = vmatpush1.bf16.msra.mxu0 %v6525
        %7134 = vmatprep.subr.bf16.mxu0 %v6558
        %7135 = vmatpush1.bf16.msra.mxu0 %v6557
        %7136 = vmatprep.subr.bf16.mxu0 %v6590
        %7137 = vmatpush1.bf16.msra.mxu0 %v6589
        %7138 = vmatprep.subr.bf16.mxu0 %v6622
        %7139 = vmatpush1.bf16.msra.mxu0 %v6621
        %7140 = vmatprep.subr.bf16.mxu0 %v6654
        %7141 = vmatpush1.bf16.msra.mxu0 %v6653
        %7142 = vmatprep.subr.bf16.mxu0 %v6686
        %7143 = vmatpush1.bf16.msra.mxu0 %v6685
        %7144 = vmatprep.subr.bf16.mxu0 %v6718
        %7145 = vmatpush1.bf16.msra.mxu0 %v6717
        %7146 = vmatprep.subr.bf16.mxu0 0
        %7147 = vmatpush1.bf16.msra.mxu0 0
        %7148 = vmatprep.subr.bf16.mxu0 0
        %7149 = vmatpush1.bf16.msra.mxu0 0
        %7150 = vmatprep.subr.bf16.mxu0 0
        %7151 = vmatpush1.bf16.msra.mxu0 0
        %7152 = vmatprep.subr.bf16.mxu0 0
        %7153 = vmatpush1.bf16.msra.mxu0 0
        %7154 = vmatprep.subr.bf16.mxu0 0
        %7155 = vmatpush1.bf16.msra.mxu0 0
        %7156 = vmatprep.subr.bf16.mxu0 0
        %7157 = vmatpush1.bf16.msra.mxu0 0
        %7158 = vmatprep.subr.bf16.mxu0 0
        %7159 = vmatpush1.bf16.msra.mxu0 0
        %7160 = vmatprep.subr.bf16.mxu0 0
        %7161 = vmatpush1.bf16.msra.mxu0 0
        %7162 = vmatprep.mubr.bf16.mxu0 0
        %7163 = vmatmul.mubr.bf16.gmra.mrb[0].mxu0 %v6775
        %v7164 = vpop.f32.mrb[0].mxu0
        %v7165 = vadd.f32 0.0, %v7164
        %v7166 = vpop.f32.mrb[0].mxu0
        %v7167 = vadd.f32 0.0, %v7166
        %v7168 = vpop.f32.mrb[0].mxu0
        %v7169 = vadd.f32 0.0, %v7168
        %v7170 = vpop.f32.mrb[0].mxu0
        %v7171 = vadd.f32 0.0, %v7170
        %7172 = vmatprep.mubr.bf16.mxu0 0
        %7173 = vmatmul.mubr.bf16.gmra.mrb[0].mxu0 %v6776
        %v7174 = vpop.f32.mrb[0].mxu0
        %v7175 = vadd.f32 0.0, %v7174
        %v7176 = vpop.f32.mrb[0].mxu0
        %v7177 = vadd.f32 0.0, %v7176
        %v7178 = vpop.f32.mrb[0].mxu0
        %v7179 = vadd.f32 0.0, %v7178
        %v7180 = vpop.f32.mrb[0].mxu0
        %v7181 = vadd.f32 0.0, %v7180
        %7182 = vmatprep.mubr.bf16.mxu0 0
        %7183 = vmatmul.mubr.bf16.gmra.mrb[0].mxu0 %v6777
        %v7184 = vpop.f32.mrb[0].mxu0
        %v7185 = vadd.f32 0.0, %v7184
        %v7186 = vpop.f32.mrb[0].mxu0
        %v7187 = vadd.f32 0.0, %v7186
        %v7188 = vpop.f32.mrb[0].mxu0
        %v7189 = vadd.f32 0.0, %v7188
        %v7190 = vpop.f32.mrb[0].mxu0
        %v7191 = vadd.f32 0.0, %v7190
        %7192 = vmatprep.mubr.bf16.mxu0 0
        %7193 = vmatmul.mubr.bf16.gmra.mrb[0].mxu0 %v6778
        %v7194 = vpop.f32.mrb[0].mxu0
        %v7195 = vadd.f32 0.0, %v7194
        %v7196 = vpop.f32.mrb[0].mxu0
        %v7197 = vadd.f32 0.0, %v7196
        %v7198 = vpop.f32.mrb[0].mxu0
        %v7199 = vadd.f32 0.0, %v7198
        %v7200 = vpop.f32.mrb[0].mxu0
        %v7201 = vadd.f32 0.0, %v7200
        %7202 = vmatprep.mubr.bf16.mxu0 0
        %7203 = vmatmul.mubr.bf16.gmra.mrb[0].mxu0 %v6779
        %v7204 = vpop.f32.mrb[0].mxu0
        %v7205 = vadd.f32 0.0, %v7204
        %v7206 = vpop.f32.mrb[0].mxu0
        %v7207 = vadd.f32 0.0, %v7206
        %v7208 = vpop.f32.mrb[0].mxu0
        %v7209 = vadd.f32 0.0, %v7208
        %v7210 = vpop.f32.mrb[0].mxu0
        %v7211 = vadd.f32 0.0, %v7210
        %7212 = vmatprep.mubr.bf16.mxu0 0
        %7213 = vmatmul.mubr.bf16.gmra.mrb[0].mxu0 %v6780
        %v7214 = vpop.f32.mrb[0].mxu0
        %v7215 = vadd.f32 0.0, %v7214
        %v7216 = vpop.f32.mrb[0].mxu0
        %v7217 = vadd.f32 0.0, %v7216
        %v7218 = vpop.f32.mrb[0].mxu0
        %v7219 = vadd.f32 0.0, %v7218
        %v7220 = vpop.f32.mrb[0].mxu0
        %v7221 = vadd.f32 0.0, %v7220
        %7222 = vmatprep.mubr.bf16.mxu0 0
        %7223 = vmatmul.mubr.bf16.gmra.mrb[0].mxu0 %v6781
        %v7224 = vpop.f32.mrb[0].mxu0
        %v7225 = vadd.f32 0.0, %v7224
        %v7226 = vpop.f32.mrb[0].mxu0
        %v7227 = vadd.f32 0.0, %v7226
        %v7228 = vpop.f32.mrb[0].mxu0
        %v7229 = vadd.f32 0.0, %v7228
        %v7230 = vpop.f32.mrb[0].mxu0
        %v7231 = vadd.f32 0.0, %v7230
        %7232 = vmatprep.mubr.bf16.mxu0 0
        %7233 = vmatmul.mubr.bf16.gmra.mrb[0].mxu0 %v6782
        %v7234 = vpop.f32.mrb[0].mxu0
        %v7235 = vadd.f32 0.0, %v7234
        %v7236 = vpop.f32.mrb[0].mxu0
        %v7237 = vadd.f32 0.0, %v7236
        %v7238 = vpop.f32.mrb[0].mxu0
        %v7239 = vadd.f32 0.0, %v7238
        %v7240 = vpop.f32.mrb[0].mxu0
        %v7241 = vadd.f32 0.0, %v7240
        %7242 = vdwg.mxu0
        %7243 = vmatprep.subr.bf16.mxu0 %v6496
        %7244 = vmatpush1.bf16.msra.mxu0 %v6495
        %7245 = vmatprep.subr.bf16.mxu0 %v6528
        %7246 = vmatpush1.bf16.msra.mxu0 %v6527
        %7247 = vmatprep.subr.bf16.mxu0 %v6560
        %7248 = vmatpush1.bf16.msra.mxu0 %v6559
        %7249 = vmatprep.subr.bf16.mxu0 %v6592
        %7250 = vmatpush1.bf16.msra.mxu0 %v6591
        %7251 = vmatprep.subr.bf16.mxu0 %v6624
        %7252 = vmatpush1.bf16.msra.mxu0 %v6623
        %7253 = vmatprep.subr.bf16.mxu0 %v6656
        %7254 = vmatpush1.bf16.msra.mxu0 %v6655
        %7255 = vmatprep.subr.bf16.mxu0 %v6688
        %7256 = vmatpush1.bf16.msra.mxu0 %v6687
        %7257 = vmatprep.subr.bf16.mxu0 %v6720
        %7258 = vmatpush1.bf16.msra.mxu0 %v6719
        %7259 = vmatprep.subr.bf16.mxu0 0
        %7260 = vmatpush1.bf16.msra.mxu0 0
        %7261 = vmatprep.subr.bf16.mxu0 0
        %7262 = vmatpush1.bf16.msra.mxu0 0
        %7263 = vmatprep.subr.bf16.mxu0 0
        %7264 = vmatpush1.bf16.msra.mxu0 0
        %7265 = vmatprep.subr.bf16.mxu0 0
        %7266 = vmatpush1.bf16.msra.mxu0 0
        %7267 = vmatprep.subr.bf16.mxu0 0
        %7268 = vmatpush1.bf16.msra.mxu0 0
        %7269 = vmatprep.subr.bf16.mxu0 0
        %7270 = vmatpush1.bf16.msra.mxu0 0
        %7271 = vmatprep.subr.bf16.mxu0 0
        %7272 = vmatpush1.bf16.msra.mxu0 0
        %7273 = vmatprep.subr.bf16.mxu0 0
        %7274 = vmatpush1.bf16.msra.mxu0 0
        %7275 = vmatprep.mubr.bf16.mxu0 0
        %7276 = vmatmul.mubr.bf16.gmra.mrb[0].mxu0 %v6775
        %v7277 = vpop.f32.mrb[0].mxu0
        %v7278 = vadd.f32 0.0, %v7277
        %v7279 = vpop.f32.mrb[0].mxu0
        %v7280 = vadd.f32 0.0, %v7279
        %v7281 = vpop.f32.mrb[0].mxu0
        %v7282 = vadd.f32 0.0, %v7281
        %v7283 = vpop.f32.mrb[0].mxu0
        %v7284 = vadd.f32 0.0, %v7283
        %7285 = vmatprep.mubr.bf16.mxu0 0
        %7286 = vmatmul.mubr.bf16.gmra.mrb[0].mxu0 %v6776
        %v7287 = vpop.f32.mrb[0].mxu0
        %v7288 = vadd.f32 0.0, %v7287
        %v7289 = vpop.f32.mrb[0].mxu0
        %v7290 = vadd.f32 0.0, %v7289
        %v7291 = vpop.f32.mrb[0].mxu0
        %v7292 = vadd.f32 0.0, %v7291
        %v7293 = vpop.f32.mrb[0].mxu0
        %v7294 = vadd.f32 0.0, %v7293
        %7295 = vmatprep.mubr.bf16.mxu0 0
        %7296 = vmatmul.mubr.bf16.gmra.mrb[0].mxu0 %v6777
        %v7297 = vpop.f32.mrb[0].mxu0
        %v7298 = vadd.f32 0.0, %v7297
        %v7299 = vpop.f32.mrb[0].mxu0
        %v7300 = vadd.f32 0.0, %v7299
        %v7301 = vpop.f32.mrb[0].mxu0
        %v7302 = vadd.f32 0.0, %v7301
        %v7303 = vpop.f32.mrb[0].mxu0
        %v7304 = vadd.f32 0.0, %v7303
        %7305 = vmatprep.mubr.bf16.mxu0 0
        %7306 = vmatmul.mubr.bf16.gmra.mrb[0].mxu0 %v6778
        %v7307 = vpop.f32.mrb[0].mxu0
        %v7308 = vadd.f32 0.0, %v7307
        %v7309 = vpop.f32.mrb[0].mxu0
        %v7310 = vadd.f32 0.0, %v7309
        %v7311 = vpop.f32.mrb[0].mxu0
        %v7312 = vadd.f32 0.0, %v7311
        %v7313 = vpop.f32.mrb[0].mxu0
        %v7314 = vadd.f32 0.0, %v7313
        %7315 = vmatprep.mubr.bf16.mxu0 0
        %7316 = vmatmul.mubr.bf16.gmra.mrb[0].mxu0 %v6779
        %v7317 = vpop.f32.mrb[0].mxu0
        %v7318 = vadd.f32 0.0, %v7317
        %v7319 = vpop.f32.mrb[0].mxu0
        %v7320 = vadd.f32 0.0, %v7319
        %v7321 = vpop.f32.mrb[0].mxu0
        %v7322 = vadd.f32 0.0, %v7321
        %v7323 = vpop.f32.mrb[0].mxu0
        %v7324 = vadd.f32 0.0, %v7323
        %7325 = vmatprep.mubr.bf16.mxu0 0
        %7326 = vmatmul.mubr.bf16.gmra.mrb[0].mxu0 %v6780
        %v7327 = vpop.f32.mrb[0].mxu0
        %v7328 = vadd.f32 0.0, %v7327
        %v7329 = vpop.f32.mrb[0].mxu0
        %v7330 = vadd.f32 0.0, %v7329
        %v7331 = vpop.f32.mrb[0].mxu0
        %v7332 = vadd.f32 0.0, %v7331
        %v7333 = vpop.f32.mrb[0].mxu0
        %v7334 = vadd.f32 0.0, %v7333
        %7335 = vmatprep.mubr.bf16.mxu0 0
        %7336 = vmatmul.mubr.bf16.gmra.mrb[0].mxu0 %v6781
        %v7337 = vpop.f32.mrb[0].mxu0
        %v7338 = vadd.f32 0.0, %v7337
        %v7339 = vpop.f32.mrb[0].mxu0
        %v7340 = vadd.f32 0.0, %v7339
        %v7341 = vpop.f32.mrb[0].mxu0
        %v7342 = vadd.f32 0.0, %v7341
        %v7343 = vpop.f32.mrb[0].mxu0
        %v7344 = vadd.f32 0.0, %v7343
        %7345 = vmatprep.mubr.bf16.mxu0 0
        %7346 = vmatmul.mubr.bf16.gmra.mrb[0].mxu0 %v6782
        %v7347 = vpop.f32.mrb[0].mxu0
        %v7348 = vadd.f32 0.0, %v7347
        %v7349 = vpop.f32.mrb[0].mxu0
        %v7350 = vadd.f32 0.0, %v7349
        %v7351 = vpop.f32.mrb[0].mxu0
        %v7352 = vadd.f32 0.0, %v7351
        %v7353 = vpop.f32.mrb[0].mxu0
        %v7354 = vadd.f32 0.0, %v7353
        %7355 = vdwg.mxu0
        %7356 = vmatprep.subr.bf16.mxu0 %v6498
        %7357 = vmatpush1.bf16.msra.mxu0 %v6497
        %7358 = vmatprep.subr.bf16.mxu0 %v6530
        %7359 = vmatpush1.bf16.msra.mxu0 %v6529
        %7360 = vmatprep.subr.bf16.mxu0 %v6562
        %7361 = vmatpush1.bf16.msra.mxu0 %v6561
        %7362 = vmatprep.subr.bf16.mxu0 %v6594
        %7363 = vmatpush1.bf16.msra.mxu0 %v6593
        %7364 = vmatprep.subr.bf16.mxu0 %v6626
        %7365 = vmatpush1.bf16.msra.mxu0 %v6625
        %7366 = vmatprep.subr.bf16.mxu0 %v6658
        %7367 = vmatpush1.bf16.msra.mxu0 %v6657
        %7368 = vmatprep.subr.bf16.mxu0 %v6690
        %7369 = vmatpush1.bf16.msra.mxu0 %v6689
        %7370 = vmatprep.subr.bf16.mxu0 %v6722
        %7371 = vmatpush1.bf16.msra.mxu0 %v6721
        %7372 = vmatprep.subr.bf16.mxu0 0
        %7373 = vmatpush1.bf16.msra.mxu0 0
        %7374 = vmatprep.subr.bf16.mxu0 0
        %7375 = vmatpush1.bf16.msra.mxu0 0
        %7376 = vmatprep.subr.bf16.mxu0 0
        %7377 = vmatpush1.bf16.msra.mxu0 0
        %7378 = vmatprep.subr.bf16.mxu0 0
        %7379 = vmatpush1.bf16.msra.mxu0 0
        %7380 = vmatprep.subr.bf16.mxu0 0
        %7381 = vmatpush1.bf16.msra.mxu0 0
        %7382 = vmatprep.subr.bf16.mxu0 0
        %7383 = vmatpush1.bf16.msra.mxu0 0
        %7384 = vmatprep.subr.bf16.mxu0 0
        %7385 = vmatpush1.bf16.msra.mxu0 0
        %7386 = vmatprep.subr.bf16.mxu0 0
        %7387 = vmatpush1.bf16.msra.mxu0 0
        %7388 = vmatprep.mubr.bf16.mxu0 0
        %7389 = vmatmul.mubr.bf16.gmra.mrb[0].mxu0 %v6775
        %v7390 = vpop.f32.mrb[0].mxu0
        %v7391 = vadd.f32 0.0, %v7390
        %v7392 = vpop.f32.mrb[0].mxu0
        %v7393 = vadd.f32 0.0, %v7392
        %v7394 = vpop.f32.mrb[0].mxu0
        %v7395 = vadd.f32 0.0, %v7394
        %v7396 = vpop.f32.mrb[0].mxu0
        %v7397 = vadd.f32 0.0, %v7396
        %7398 = vmatprep.mubr.bf16.mxu0 0
        %7399 = vmatmul.mubr.bf16.gmra.mrb[0].mxu0 %v6776
        %v7400 = vpop.f32.mrb[0].mxu0
        %v7401 = vadd.f32 0.0, %v7400
        %v7402 = vpop.f32.mrb[0].mxu0
        %v7403 = vadd.f32 0.0, %v7402
        %v7404 = vpop.f32.mrb[0].mxu0
        %v7405 = vadd.f32 0.0, %v7404
        %v7406 = vpop.f32.mrb[0].mxu0
        %v7407 = vadd.f32 0.0, %v7406
        %7408 = vmatprep.mubr.bf16.mxu0 0
        %7409 = vmatmul.mubr.bf16.gmra.mrb[0].mxu0 %v6777
        %v7410 = vpop.f32.mrb[0].mxu0
        %v7411 = vadd.f32 0.0, %v7410
        %v7412 = vpop.f32.mrb[0].mxu0
        %v7413 = vadd.f32 0.0, %v7412
        %v7414 = vpop.f32.mrb[0].mxu0
        %v7415 = vadd.f32 0.0, %v7414
        %v7416 = vpop.f32.mrb[0].mxu0
        %v7417 = vadd.f32 0.0, %v7416
        %7418 = vmatprep.mubr.bf16.mxu0 0
        %7419 = vmatmul.mubr.bf16.gmra.mrb[0].mxu0 %v6778
        %v7420 = vpop.f32.mrb[0].mxu0
        %v7421 = vadd.f32 0.0, %v7420
        %v7422 = vpop.f32.mrb[0].mxu0
        %v7423 = vadd.f32 0.0, %v7422
        %v7424 = vpop.f32.mrb[0].mxu0
        %v7425 = vadd.f32 0.0, %v7424
        %v7426 = vpop.f32.mrb[0].mxu0
        %v7427 = vadd.f32 0.0, %v7426
        %7428 = vmatprep.mubr.bf16.mxu0 0
        %7429 = vmatmul.mubr.bf16.gmra.mrb[0].mxu0 %v6779
        %v7430 = vpop.f32.mrb[0].mxu0
        %v7431 = vadd.f32 0.0, %v7430
        %v7432 = vpop.f32.mrb[0].mxu0
        %v7433 = vadd.f32 0.0, %v7432
        %v7434 = vpop.f32.mrb[0].mxu0
        %v7435 = vadd.f32 0.0, %v7434
        %v7436 = vpop.f32.mrb[0].mxu0
        %v7437 = vadd.f32 0.0, %v7436
        %7438 = vmatprep.mubr.bf16.mxu0 0
        %7439 = vmatmul.mubr.bf16.gmra.mrb[0].mxu0 %v6780
        %v7440 = vpop.f32.mrb[0].mxu0
        %v7441 = vadd.f32 0.0, %v7440
        %v7442 = vpop.f32.mrb[0].mxu0
        %v7443 = vadd.f32 0.0, %v7442
        %v7444 = vpop.f32.mrb[0].mxu0
        %v7445 = vadd.f32 0.0, %v7444
        %v7446 = vpop.f32.mrb[0].mxu0
        %v7447 = vadd.f32 0.0, %v7446
        %7448 = vmatprep.mubr.bf16.mxu0 0
        %7449 = vmatmul.mubr.bf16.gmra.mrb[0].mxu0 %v6781
        %v7450 = vpop.f32.mrb[0].mxu0
        %v7451 = vadd.f32 0.0, %v7450
        %v7452 = vpop.f32.mrb[0].mxu0
        %v7453 = vadd.f32 0.0, %v7452
        %v7454 = vpop.f32.mrb[0].mxu0
        %v7455 = vadd.f32 0.0, %v7454
        %v7456 = vpop.f32.mrb[0].mxu0
        %v7457 = vadd.f32 0.0, %v7456
        %7458 = vmatprep.mubr.bf16.mxu0 0
        %7459 = vmatmul.mubr.bf16.gmra.mrb[0].mxu0 %v6782
        %v7460 = vpop.f32.mrb[0].mxu0
        %v7461 = vadd.f32 0.0, %v7460
        %v7462 = vpop.f32.mrb[0].mxu0
        %v7463 = vadd.f32 0.0, %v7462
        %v7464 = vpop.f32.mrb[0].mxu0
        %v7465 = vadd.f32 0.0, %v7464
        %v7466 = vpop.f32.mrb[0].mxu0
        %v7467 = vadd.f32 0.0, %v7466
        %7468 = vdwg.mxu0
        %7469 = vmatprep.subr.bf16.mxu0 %v6500
        %7470 = vmatpush1.bf16.msra.mxu0 %v6499
        %7471 = vmatprep.subr.bf16.mxu0 %v6532
        %7472 = vmatpush1.bf16.msra.mxu0 %v6531
        %7473 = vmatprep.subr.bf16.mxu0 %v6564
        %7474 = vmatpush1.bf16.msra.mxu0 %v6563
        %7475 = vmatprep.subr.bf16.mxu0 %v6596
        %7476 = vmatpush1.bf16.msra.mxu0 %v6595
        %7477 = vmatprep.subr.bf16.mxu0 %v6628
        %7478 = vmatpush1.bf16.msra.mxu0 %v6627
        %7479 = vmatprep.subr.bf16.mxu0 %v6660
        %7480 = vmatpush1.bf16.msra.mxu0 %v6659
        %7481 = vmatprep.subr.bf16.mxu0 %v6692
        %7482 = vmatpush1.bf16.msra.mxu0 %v6691
        %7483 = vmatprep.subr.bf16.mxu0 %v6724
        %7484 = vmatpush1.bf16.msra.mxu0 %v6723
        %7485 = vmatprep.subr.bf16.mxu0 0
        %7486 = vmatpush1.bf16.msra.mxu0 0
        %7487 = vmatprep.subr.bf16.mxu0 0
        %7488 = vmatpush1.bf16.msra.mxu0 0
        %7489 = vmatprep.subr.bf16.mxu0 0
        %7490 = vmatpush1.bf16.msra.mxu0 0
        %7491 = vmatprep.subr.bf16.mxu0 0
        %7492 = vmatpush1.bf16.msra.mxu0 0
        %7493 = vmatprep.subr.bf16.mxu0 0
        %7494 = vmatpush1.bf16.msra.mxu0 0
        %7495 = vmatprep.subr.bf16.mxu0 0
        %7496 = vmatpush1.bf16.msra.mxu0 0
        %7497 = vmatprep.subr.bf16.mxu0 0
        %7498 = vmatpush1.bf16.msra.mxu0 0
        %7499 = vmatprep.subr.bf16.mxu0 0
        %7500 = vmatpush1.bf16.msra.mxu0 0
        %7501 = vmatprep.mubr.bf16.mxu0 0
        %7502 = vmatmul.mubr.bf16.gmra.mrb[0].mxu0 %v6775
        %v7503 = vpop.f32.mrb[0].mxu0
        %v7504 = vadd.f32 0.0, %v7503
        %v7505 = vpop.f32.mrb[0].mxu0
        %v7506 = vadd.f32 0.0, %v7505
        %v7507 = vpop.f32.mrb[0].mxu0
        %v7508 = vadd.f32 0.0, %v7507
        %v7509 = vpop.f32.mrb[0].mxu0
        %v7510 = vadd.f32 0.0, %v7509
        %7511 = vmatprep.mubr.bf16.mxu0 0
        %7512 = vmatmul.mubr.bf16.gmra.mrb[0].mxu0 %v6776
        %v7513 = vpop.f32.mrb[0].mxu0
        %v7514 = vadd.f32 0.0, %v7513
        %v7515 = vpop.f32.mrb[0].mxu0
        %v7516 = vadd.f32 0.0, %v7515
        %v7517 = vpop.f32.mrb[0].mxu0
        %v7518 = vadd.f32 0.0, %v7517
        %v7519 = vpop.f32.mrb[0].mxu0
        %v7520 = vadd.f32 0.0, %v7519
        %7521 = vmatprep.mubr.bf16.mxu0 0
        %7522 = vmatmul.mubr.bf16.gmra.mrb[0].mxu0 %v6777
        %v7523 = vpop.f32.mrb[0].mxu0
        %v7524 = vadd.f32 0.0, %v7523
        %v7525 = vpop.f32.mrb[0].mxu0
        %v7526 = vadd.f32 0.0, %v7525
        %v7527 = vpop.f32.mrb[0].mxu0
        %v7528 = vadd.f32 0.0, %v7527
        %v7529 = vpop.f32.mrb[0].mxu0
        %v7530 = vadd.f32 0.0, %v7529
        %7531 = vmatprep.mubr.bf16.mxu0 0
        %7532 = vmatmul.mubr.bf16.gmra.mrb[0].mxu0 %v6778
        %v7533 = vpop.f32.mrb[0].mxu0
        %v7534 = vadd.f32 0.0, %v7533
        %v7535 = vpop.f32.mrb[0].mxu0
        %v7536 = vadd.f32 0.0, %v7535
        %v7537 = vpop.f32.mrb[0].mxu0
        %v7538 = vadd.f32 0.0, %v7537
        %v7539 = vpop.f32.mrb[0].mxu0
        %v7540 = vadd.f32 0.0, %v7539
        %7541 = vmatprep.mubr.bf16.mxu0 0
        %7542 = vmatmul.mubr.bf16.gmra.mrb[0].mxu0 %v6779
        %v7543 = vpop.f32.mrb[0].mxu0
        %v7544 = vadd.f32 0.0, %v7543
        %v7545 = vpop.f32.mrb[0].mxu0
        %v7546 = vadd.f32 0.0, %v7545
        %v7547 = vpop.f32.mrb[0].mxu0
        %v7548 = vadd.f32 0.0, %v7547
        %v7549 = vpop.f32.mrb[0].mxu0
        %v7550 = vadd.f32 0.0, %v7549
        %7551 = vmatprep.mubr.bf16.mxu0 0
        %7552 = vmatmul.mubr.bf16.gmra.mrb[0].mxu0 %v6780
        %v7553 = vpop.f32.mrb[0].mxu0
        %v7554 = vadd.f32 0.0, %v7553
        %v7555 = vpop.f32.mrb[0].mxu0
        %v7556 = vadd.f32 0.0, %v7555
        %v7557 = vpop.f32.mrb[0].mxu0
        %v7558 = vadd.f32 0.0, %v7557
        %v7559 = vpop.f32.mrb[0].mxu0
        %v7560 = vadd.f32 0.0, %v7559
        %7561 = vmatprep.mubr.bf16.mxu0 0
        %7562 = vmatmul.mubr.bf16.gmra.mrb[0].mxu0 %v6781
        %v7563 = vpop.f32.mrb[0].mxu0
        %v7564 = vadd.f32 0.0, %v7563
        %v7565 = vpop.f32.mrb[0].mxu0
        %v7566 = vadd.f32 0.0, %v7565
        %v7567 = vpop.f32.mrb[0].mxu0
        %v7568 = vadd.f32 0.0, %v7567
        %v7569 = vpop.f32.mrb[0].mxu0
        %v7570 = vadd.f32 0.0, %v7569
        %7571 = vmatprep.mubr.bf16.mxu0 0
        %7572 = vmatmul.mubr.bf16.gmra.mrb[0].mxu0 %v6782
        %v7573 = vpop.f32.mrb[0].mxu0
        %v7574 = vadd.f32 0.0, %v7573
        %v7575 = vpop.f32.mrb[0].mxu0
        %v7576 = vadd.f32 0.0, %v7575
        %v7577 = vpop.f32.mrb[0].mxu0
        %v7578 = vadd.f32 0.0, %v7577
        %v7579 = vpop.f32.mrb[0].mxu0
        %v7580 = vadd.f32 0.0, %v7579
        %7581 = vdwg.mxu0
        %7582 = vmatprep.subr.bf16.mxu0 %v6502
        %7583 = vmatpush1.bf16.msra.mxu0 %v6501
        %7584 = vmatprep.subr.bf16.mxu0 %v6534
        %7585 = vmatpush1.bf16.msra.mxu0 %v6533
        %7586 = vmatprep.subr.bf16.mxu0 %v6566
        %7587 = vmatpush1.bf16.msra.mxu0 %v6565
        %7588 = vmatprep.subr.bf16.mxu0 %v6598
        %7589 = vmatpush1.bf16.msra.mxu0 %v6597
        %7590 = vmatprep.subr.bf16.mxu0 %v6630
        %7591 = vmatpush1.bf16.msra.mxu0 %v6629
        %7592 = vmatprep.subr.bf16.mxu0 %v6662
        %7593 = vmatpush1.bf16.msra.mxu0 %v6661
        %7594 = vmatprep.subr.bf16.mxu0 %v6694
        %7595 = vmatpush1.bf16.msra.mxu0 %v6693
        %7596 = vmatprep.subr.bf16.mxu0 %v6726
        %7597 = vmatpush1.bf16.msra.mxu0 %v6725
        %7598 = vmatprep.subr.bf16.mxu0 0
        %7599 = vmatpush1.bf16.msra.mxu0 0
        %7600 = vmatprep.subr.bf16.mxu0 0
        %7601 = vmatpush1.bf16.msra.mxu0 0
        %7602 = vmatprep.subr.bf16.mxu0 0
        %7603 = vmatpush1.bf16.msra.mxu0 0
        %7604 = vmatprep.subr.bf16.mxu0 0
        %7605 = vmatpush1.bf16.msra.mxu0 0
        %7606 = vmatprep.subr.bf16.mxu0 0
        %7607 = vmatpush1.bf16.msra.mxu0 0
        %7608 = vmatprep.subr.bf16.mxu0 0
        %7609 = vmatpush1.bf16.msra.mxu0 0
        %7610 = vmatprep.subr.bf16.mxu0 0
        %7611 = vmatpush1.bf16.msra.mxu0 0
        %7612 = vmatprep.subr.bf16.mxu0 0
        %7613 = vmatpush1.bf16.msra.mxu0 0
        %7614 = vmatprep.mubr.bf16.mxu0 0
        %7615 = vmatmul.mubr.bf16.gmra.mrb[0].mxu0 %v6775
        %v7616 = vpop.f32.mrb[0].mxu0
        %v7617 = vadd.f32 0.0, %v7616
        %v7618 = vpop.f32.mrb[0].mxu0
        %v7619 = vadd.f32 0.0, %v7618
        %v7620 = vpop.f32.mrb[0].mxu0
        %v7621 = vadd.f32 0.0, %v7620
        %v7622 = vpop.f32.mrb[0].mxu0
        %v7623 = vadd.f32 0.0, %v7622
        %7624 = vmatprep.mubr.bf16.mxu0 0
        %7625 = vmatmul.mubr.bf16.gmra.mrb[0].mxu0 %v6776
        %v7626 = vpop.f32.mrb[0].mxu0
        %v7627 = vadd.f32 0.0, %v7626
        %v7628 = vpop.f32.mrb[0].mxu0
        %v7629 = vadd.f32 0.0, %v7628
        %v7630 = vpop.f32.mrb[0].mxu0
        %v7631 = vadd.f32 0.0, %v7630
        %v7632 = vpop.f32.mrb[0].mxu0
        %v7633 = vadd.f32 0.0, %v7632
        %7634 = vmatprep.mubr.bf16.mxu0 0
        %7635 = vmatmul.mubr.bf16.gmra.mrb[0].mxu0 %v6777
        %v7636 = vpop.f32.mrb[0].mxu0
        %v7637 = vadd.f32 0.0, %v7636
        %v7638 = vpop.f32.mrb[0].mxu0
        %v7639 = vadd.f32 0.0, %v7638
        %v7640 = vpop.f32.mrb[0].mxu0
        %v7641 = vadd.f32 0.0, %v7640
        %v7642 = vpop.f32.mrb[0].mxu0
        %v7643 = vadd.f32 0.0, %v7642
        %7644 = vmatprep.mubr.bf16.mxu0 0
        %7645 = vmatmul.mubr.bf16.gmra.mrb[0].mxu0 %v6778
        %v7646 = vpop.f32.mrb[0].mxu0
        %v7647 = vadd.f32 0.0, %v7646
        %v7648 = vpop.f32.mrb[0].mxu0
        %v7649 = vadd.f32 0.0, %v7648
        %v7650 = vpop.f32.mrb[0].mxu0
        %v7651 = vadd.f32 0.0, %v7650
        %v7652 = vpop.f32.mrb[0].mxu0
        %v7653 = vadd.f32 0.0, %v7652
        %7654 = vmatprep.mubr.bf16.mxu0 0
        %7655 = vmatmul.mubr.bf16.gmra.mrb[0].mxu0 %v6779
        %v7656 = vpop.f32.mrb[0].mxu0
        %v7657 = vadd.f32 0.0, %v7656
        %v7658 = vpop.f32.mrb[0].mxu0
        %v7659 = vadd.f32 0.0, %v7658
        %v7660 = vpop.f32.mrb[0].mxu0
        %v7661 = vadd.f32 0.0, %v7660
        %v7662 = vpop.f32.mrb[0].mxu0
        %v7663 = vadd.f32 0.0, %v7662
        %7664 = vmatprep.mubr.bf16.mxu0 0
        %7665 = vmatmul.mubr.bf16.gmra.mrb[0].mxu0 %v6780
        %v7666 = vpop.f32.mrb[0].mxu0
        %v7667 = vadd.f32 0.0, %v7666
        %v7668 = vpop.f32.mrb[0].mxu0
        %v7669 = vadd.f32 0.0, %v7668
        %v7670 = vpop.f32.mrb[0].mxu0
        %v7671 = vadd.f32 0.0, %v7670
        %v7672 = vpop.f32.mrb[0].mxu0
        %v7673 = vadd.f32 0.0, %v7672
        %7674 = vmatprep.mubr.bf16.mxu0 0
        %7675 = vmatmul.mubr.bf16.gmra.mrb[0].mxu0 %v6781
        %v7676 = vpop.f32.mrb[0].mxu0
        %v7677 = vadd.f32 0.0, %v7676
        %v7678 = vpop.f32.mrb[0].mxu0
        %v7679 = vadd.f32 0.0, %v7678
        %v7680 = vpop.f32.mrb[0].mxu0
        %v7681 = vadd.f32 0.0, %v7680
        %v7682 = vpop.f32.mrb[0].mxu0
        %v7683 = vadd.f32 0.0, %v7682
        %7684 = vmatprep.mubr.bf16.mxu0 0
        %7685 = vmatmul.mubr.bf16.gmra.mrb[0].mxu0 %v6782
        %v7686 = vpop.f32.mrb[0].mxu0
        %v7687 = vadd.f32 0.0, %v7686
        %v7688 = vpop.f32.mrb[0].mxu0
        %v7689 = vadd.f32 0.0, %v7688
        %v7690 = vpop.f32.mrb[0].mxu0
        %v7691 = vadd.f32 0.0, %v7690
        %v7692 = vpop.f32.mrb[0].mxu0
        %v7693 = vadd.f32 0.0, %v7692
        %7694 = vdwg.mxu0
        %7695 = vmatprep.subr.bf16.mxu0 %v6504
        %7696 = vmatpush1.bf16.msra.mxu0 %v6503
        %7697 = vmatprep.subr.bf16.mxu0 %v6536
        %7698 = vmatpush1.bf16.msra.mxu0 %v6535
        %7699 = vmatprep.subr.bf16.mxu0 %v6568
        %7700 = vmatpush1.bf16.msra.mxu0 %v6567
        %7701 = vmatprep.subr.bf16.mxu0 %v6600
        %7702 = vmatpush1.bf16.msra.mxu0 %v6599
        %7703 = vmatprep.subr.bf16.mxu0 %v6632
        %7704 = vmatpush1.bf16.msra.mxu0 %v6631
        %7705 = vmatprep.subr.bf16.mxu0 %v6664
        %7706 = vmatpush1.bf16.msra.mxu0 %v6663
        %7707 = vmatprep.subr.bf16.mxu0 %v6696
        %7708 = vmatpush1.bf16.msra.mxu0 %v6695
        %7709 = vmatprep.subr.bf16.mxu0 %v6728
        %7710 = vmatpush1.bf16.msra.mxu0 %v6727
        %7711 = vmatprep.subr.bf16.mxu0 0
        %7712 = vmatpush1.bf16.msra.mxu0 0
        %7713 = vmatprep.subr.bf16.mxu0 0
        %7714 = vmatpush1.bf16.msra.mxu0 0
        %7715 = vmatprep.subr.bf16.mxu0 0
        %7716 = vmatpush1.bf16.msra.mxu0 0
        %7717 = vmatprep.subr.bf16.mxu0 0
        %7718 = vmatpush1.bf16.msra.mxu0 0
        %7719 = vmatprep.subr.bf16.mxu0 0
        %7720 = vmatpush1.bf16.msra.mxu0 0
        %7721 = vmatprep.subr.bf16.mxu0 0
        %7722 = vmatpush1.bf16.msra.mxu0 0
        %7723 = vmatprep.subr.bf16.mxu0 0
        %7724 = vmatpush1.bf16.msra.mxu0 0
        %7725 = vmatprep.subr.bf16.mxu0 0
        %7726 = vmatpush1.bf16.msra.mxu0 0
        %7727 = vmatprep.mubr.bf16.mxu0 0
        %7728 = vmatmul.mubr.bf16.gmra.mrb[0].mxu0 %v6775
        %v7729 = vpop.f32.mrb[0].mxu0
        %v7730 = vadd.f32 0.0, %v7729
        %v7731 = vpop.f32.mrb[0].mxu0
        %v7732 = vadd.f32 0.0, %v7731
        %v7733 = vpop.f32.mrb[0].mxu0
        %v7734 = vadd.f32 0.0, %v7733
        %v7735 = vpop.f32.mrb[0].mxu0
        %v7736 = vadd.f32 0.0, %v7735
        %7737 = vmatprep.mubr.bf16.mxu0 0
        %7738 = vmatmul.mubr.bf16.gmra.mrb[0].mxu0 %v6776
        %v7739 = vpop.f32.mrb[0].mxu0
        %v7740 = vadd.f32 0.0, %v7739
        %v7741 = vpop.f32.mrb[0].mxu0
        %v7742 = vadd.f32 0.0, %v7741
        %v7743 = vpop.f32.mrb[0].mxu0
        %v7744 = vadd.f32 0.0, %v7743
        %v7745 = vpop.f32.mrb[0].mxu0
        %v7746 = vadd.f32 0.0, %v7745
        %7747 = vmatprep.mubr.bf16.mxu0 0
        %7748 = vmatmul.mubr.bf16.gmra.mrb[0].mxu0 %v6777
        %v7749 = vpop.f32.mrb[0].mxu0
        %v7750 = vadd.f32 0.0, %v7749
        %v7751 = vpop.f32.mrb[0].mxu0
        %v7752 = vadd.f32 0.0, %v7751
        %v7753 = vpop.f32.mrb[0].mxu0
        %v7754 = vadd.f32 0.0, %v7753
        %v7755 = vpop.f32.mrb[0].mxu0
        %v7756 = vadd.f32 0.0, %v7755
        %7757 = vmatprep.mubr.bf16.mxu0 0
        %7758 = vmatmul.mubr.bf16.gmra.mrb[0].mxu0 %v6778
        %v7759 = vpop.f32.mrb[0].mxu0
        %v7760 = vadd.f32 0.0, %v7759
        %v7761 = vpop.f32.mrb[0].mxu0
        %v7762 = vadd.f32 0.0, %v7761
        %v7763 = vpop.f32.mrb[0].mxu0
        %v7764 = vadd.f32 0.0, %v7763
        %v7765 = vpop.f32.mrb[0].mxu0
        %v7766 = vadd.f32 0.0, %v7765
        %7767 = vmatprep.mubr.bf16.mxu0 0
        %7768 = vmatmul.mubr.bf16.gmra.mrb[0].mxu0 %v6779
        %v7769 = vpop.f32.mrb[0].mxu0
        %v7770 = vadd.f32 0.0, %v7769
        %v7771 = vpop.f32.mrb[0].mxu0
        %v7772 = vadd.f32 0.0, %v7771
        %v7773 = vpop.f32.mrb[0].mxu0
        %v7774 = vadd.f32 0.0, %v7773
        %v7775 = vpop.f32.mrb[0].mxu0
        %v7776 = vadd.f32 0.0, %v7775
        %7777 = vmatprep.mubr.bf16.mxu0 0
        %7778 = vmatmul.mubr.bf16.gmra.mrb[0].mxu0 %v6780
        %v7779 = vpop.f32.mrb[0].mxu0
        %v7780 = vadd.f32 0.0, %v7779
        %v7781 = vpop.f32.mrb[0].mxu0
        %v7782 = vadd.f32 0.0, %v7781
        %v7783 = vpop.f32.mrb[0].mxu0
        %v7784 = vadd.f32 0.0, %v7783
        %v7785 = vpop.f32.mrb[0].mxu0
        %v7786 = vadd.f32 0.0, %v7785
        %7787 = vmatprep.mubr.bf16.mxu0 0
        %7788 = vmatmul.mubr.bf16.gmra.mrb[0].mxu0 %v6781
        %v7789 = vpop.f32.mrb[0].mxu0
        %v7790 = vadd.f32 0.0, %v7789
        %v7791 = vpop.f32.mrb[0].mxu0
        %v7792 = vadd.f32 0.0, %v7791
        %v7793 = vpop.f32.mrb[0].mxu0
        %v7794 = vadd.f32 0.0, %v7793
        %v7795 = vpop.f32.mrb[0].mxu0
        %v7796 = vadd.f32 0.0, %v7795
        %7797 = vmatprep.mubr.bf16.mxu0 0
        %7798 = vmatmul.mubr.bf16.gmra.mrb[0].mxu0 %v6782
        %v7799 = vpop.f32.mrb[0].mxu0
        %v7800 = vadd.f32 0.0, %v7799
        %v7801 = vpop.f32.mrb[0].mxu0
        %v7802 = vadd.f32 0.0, %v7801
        %v7803 = vpop.f32.mrb[0].mxu0
        %v7804 = vadd.f32 0.0, %v7803
        %v7805 = vpop.f32.mrb[0].mxu0
        %v7806 = vadd.f32 0.0, %v7805
        %7807 = vdwg.mxu0
        %7808 = vmatprep.subr.bf16.mxu0 %v6506
        %7809 = vmatpush1.bf16.msra.mxu0 %v6505
        %7810 = vmatprep.subr.bf16.mxu0 %v6538
        %7811 = vmatpush1.bf16.msra.mxu0 %v6537
        %7812 = vmatprep.subr.bf16.mxu0 %v6570
        %7813 = vmatpush1.bf16.msra.mxu0 %v6569
        %7814 = vmatprep.subr.bf16.mxu0 %v6602
        %7815 = vmatpush1.bf16.msra.mxu0 %v6601
        %7816 = vmatprep.subr.bf16.mxu0 %v6634
        %7817 = vmatpush1.bf16.msra.mxu0 %v6633
        %7818 = vmatprep.subr.bf16.mxu0 %v6666
        %7819 = vmatpush1.bf16.msra.mxu0 %v6665
        %7820 = vmatprep.subr.bf16.mxu0 %v6698
        %7821 = vmatpush1.bf16.msra.mxu0 %v6697
        %7822 = vmatprep.subr.bf16.mxu0 %v6730
        %7823 = vmatpush1.bf16.msra.mxu0 %v6729
        %7824 = vmatprep.subr.bf16.mxu0 0
        %7825 = vmatpush1.bf16.msra.mxu0 0
        %7826 = vmatprep.subr.bf16.mxu0 0
        %7827 = vmatpush1.bf16.msra.mxu0 0
        %7828 = vmatprep.subr.bf16.mxu0 0
        %7829 = vmatpush1.bf16.msra.mxu0 0
        %7830 = vmatprep.subr.bf16.mxu0 0
        %7831 = vmatpush1.bf16.msra.mxu0 0
        %7832 = vmatprep.subr.bf16.mxu0 0
        %7833 = vmatpush1.bf16.msra.mxu0 0
        %7834 = vmatprep.subr.bf16.mxu0 0
        %7835 = vmatpush1.bf16.msra.mxu0 0
        %7836 = vmatprep.subr.bf16.mxu0 0
        %7837 = vmatpush1.bf16.msra.mxu0 0
        %7838 = vmatprep.subr.bf16.mxu0 0
        %7839 = vmatpush1.bf16.msra.mxu0 0
        %7840 = vmatprep.mubr.bf16.mxu0 0
        %7841 = vmatmul.mubr.bf16.gmra.mrb[0].mxu0 %v6775
        %v7842 = vpop.f32.mrb[0].mxu0
        %v7843 = vadd.f32 0.0, %v7842
        %v7844 = vpop.f32.mrb[0].mxu0
        %v7845 = vadd.f32 0.0, %v7844
        %v7846 = vpop.f32.mrb[0].mxu0
        %v7847 = vadd.f32 0.0, %v7846
        %v7848 = vpop.f32.mrb[0].mxu0
        %v7849 = vadd.f32 0.0, %v7848
        %7850 = vmatprep.mubr.bf16.mxu0 0
        %7851 = vmatmul.mubr.bf16.gmra.mrb[0].mxu0 %v6776
        %v7852 = vpop.f32.mrb[0].mxu0
        %v7853 = vadd.f32 0.0, %v7852
        %v7854 = vpop.f32.mrb[0].mxu0
        %v7855 = vadd.f32 0.0, %v7854
        %v7856 = vpop.f32.mrb[0].mxu0
        %v7857 = vadd.f32 0.0, %v7856
        %v7858 = vpop.f32.mrb[0].mxu0
        %v7859 = vadd.f32 0.0, %v7858
        %7860 = vmatprep.mubr.bf16.mxu0 0
        %7861 = vmatmul.mubr.bf16.gmra.mrb[0].mxu0 %v6777
        %v7862 = vpop.f32.mrb[0].mxu0
        %v7863 = vadd.f32 0.0, %v7862
        %v7864 = vpop.f32.mrb[0].mxu0
        %v7865 = vadd.f32 0.0, %v7864
        %v7866 = vpop.f32.mrb[0].mxu0
        %v7867 = vadd.f32 0.0, %v7866
        %v7868 = vpop.f32.mrb[0].mxu0
        %v7869 = vadd.f32 0.0, %v7868
        %7870 = vmatprep.mubr.bf16.mxu0 0
        %7871 = vmatmul.mubr.bf16.gmra.mrb[0].mxu0 %v6778
        %v7872 = vpop.f32.mrb[0].mxu0
        %v7873 = vadd.f32 0.0, %v7872
        %v7874 = vpop.f32.mrb[0].mxu0
        %v7875 = vadd.f32 0.0, %v7874
        %v7876 = vpop.f32.mrb[0].mxu0
        %v7877 = vadd.f32 0.0, %v7876
        %v7878 = vpop.f32.mrb[0].mxu0
        %v7879 = vadd.f32 0.0, %v7878
        %7880 = vmatprep.mubr.bf16.mxu0 0
        %7881 = vmatmul.mubr.bf16.gmra.mrb[0].mxu0 %v6779
        %v7882 = vpop.f32.mrb[0].mxu0
        %v7883 = vadd.f32 0.0, %v7882
        %v7884 = vpop.f32.mrb[0].mxu0
        %v7885 = vadd.f32 0.0, %v7884
        %v7886 = vpop.f32.mrb[0].mxu0
        %v7887 = vadd.f32 0.0, %v7886
        %v7888 = vpop.f32.mrb[0].mxu0
        %v7889 = vadd.f32 0.0, %v7888
        %7890 = vmatprep.mubr.bf16.mxu0 0
        %7891 = vmatmul.mubr.bf16.gmra.mrb[0].mxu0 %v6780
        %v7892 = vpop.f32.mrb[0].mxu0
        %v7893 = vadd.f32 0.0, %v7892
        %v7894 = vpop.f32.mrb[0].mxu0
        %v7895 = vadd.f32 0.0, %v7894
        %v7896 = vpop.f32.mrb[0].mxu0
        %v7897 = vadd.f32 0.0, %v7896
        %v7898 = vpop.f32.mrb[0].mxu0
        %v7899 = vadd.f32 0.0, %v7898
        %7900 = vmatprep.mubr.bf16.mxu0 0
        %7901 = vmatmul.mubr.bf16.gmra.mrb[0].mxu0 %v6781
        %v7902 = vpop.f32.mrb[0].mxu0
        %v7903 = vadd.f32 0.0, %v7902
        %v7904 = vpop.f32.mrb[0].mxu0
        %v7905 = vadd.f32 0.0, %v7904
        %v7906 = vpop.f32.mrb[0].mxu0
        %v7907 = vadd.f32 0.0, %v7906
        %v7908 = vpop.f32.mrb[0].mxu0
        %v7909 = vadd.f32 0.0, %v7908
        %7910 = vmatprep.mubr.bf16.mxu0 0
        %7911 = vmatmul.mubr.bf16.gmra.mrb[0].mxu0 %v6782
        %v7912 = vpop.f32.mrb[0].mxu0
        %v7913 = vadd.f32 0.0, %v7912
        %v7914 = vpop.f32.mrb[0].mxu0
        %v7915 = vadd.f32 0.0, %v7914
        %v7916 = vpop.f32.mrb[0].mxu0
        %v7917 = vadd.f32 0.0, %v7916
        %v7918 = vpop.f32.mrb[0].mxu0
        %v7919 = vadd.f32 0.0, %v7918
        %7920 = vdwg.mxu0
        %7921 = vmatprep.subr.bf16.mxu0 %v6508
        %7922 = vmatpush1.bf16.msra.mxu0 %v6507
        %7923 = vmatprep.subr.bf16.mxu0 %v6540
        %7924 = vmatpush1.bf16.msra.mxu0 %v6539
        %7925 = vmatprep.subr.bf16.mxu0 %v6572
        %7926 = vmatpush1.bf16.msra.mxu0 %v6571
        %7927 = vmatprep.subr.bf16.mxu0 %v6604
        %7928 = vmatpush1.bf16.msra.mxu0 %v6603
        %7929 = vmatprep.subr.bf16.mxu0 %v6636
        %7930 = vmatpush1.bf16.msra.mxu0 %v6635
        %7931 = vmatprep.subr.bf16.mxu0 %v6668
        %7932 = vmatpush1.bf16.msra.mxu0 %v6667
        %7933 = vmatprep.subr.bf16.mxu0 %v6700
        %7934 = vmatpush1.bf16.msra.mxu0 %v6699
        %7935 = vmatprep.subr.bf16.mxu0 %v6732
        %7936 = vmatpush1.bf16.msra.mxu0 %v6731
        %7937 = vmatprep.subr.bf16.mxu0 0
        %7938 = vmatpush1.bf16.msra.mxu0 0
        %7939 = vmatprep.subr.bf16.mxu0 0
        %7940 = vmatpush1.bf16.msra.mxu0 0
        %7941 = vmatprep.subr.bf16.mxu0 0
        %7942 = vmatpush1.bf16.msra.mxu0 0
        %7943 = vmatprep.subr.bf16.mxu0 0
        %7944 = vmatpush1.bf16.msra.mxu0 0
        %7945 = vmatprep.subr.bf16.mxu0 0
        %7946 = vmatpush1.bf16.msra.mxu0 0
        %7947 = vmatprep.subr.bf16.mxu0 0
        %7948 = vmatpush1.bf16.msra.mxu0 0
        %7949 = vmatprep.subr.bf16.mxu0 0
        %7950 = vmatpush1.bf16.msra.mxu0 0
        %7951 = vmatprep.subr.bf16.mxu0 0
        %7952 = vmatpush1.bf16.msra.mxu0 0
        %7953 = vmatprep.mubr.bf16.mxu0 0
        %7954 = vmatmul.mubr.bf16.gmra.mrb[0].mxu0 %v6775
        %v7955 = vpop.f32.mrb[0].mxu0
        %v7956 = vadd.f32 0.0, %v7955
        %v7957 = vpop.f32.mrb[0].mxu0
        %v7958 = vadd.f32 0.0, %v7957
        %v7959 = vpop.f32.mrb[0].mxu0
        %v7960 = vadd.f32 0.0, %v7959
        %v7961 = vpop.f32.mrb[0].mxu0
        %v7962 = vadd.f32 0.0, %v7961
        %7963 = vmatprep.mubr.bf16.mxu0 0
        %7964 = vmatmul.mubr.bf16.gmra.mrb[0].mxu0 %v6776
        %v7965 = vpop.f32.mrb[0].mxu0
        %v7966 = vadd.f32 0.0, %v7965
        %v7967 = vpop.f32.mrb[0].mxu0
        %v7968 = vadd.f32 0.0, %v7967
        %v7969 = vpop.f32.mrb[0].mxu0
        %v7970 = vadd.f32 0.0, %v7969
        %v7971 = vpop.f32.mrb[0].mxu0
        %v7972 = vadd.f32 0.0, %v7971
        %7973 = vmatprep.mubr.bf16.mxu0 0
        %7974 = vmatmul.mubr.bf16.gmra.mrb[0].mxu0 %v6777
        %v7975 = vpop.f32.mrb[0].mxu0
        %v7976 = vadd.f32 0.0, %v7975
        %v7977 = vpop.f32.mrb[0].mxu0
        %v7978 = vadd.f32 0.0, %v7977
        %v7979 = vpop.f32.mrb[0].mxu0
        %v7980 = vadd.f32 0.0, %v7979
        %v7981 = vpop.f32.mrb[0].mxu0
        %v7982 = vadd.f32 0.0, %v7981
        %7983 = vmatprep.mubr.bf16.mxu0 0
        %7984 = vmatmul.mubr.bf16.gmra.mrb[0].mxu0 %v6778
        %v7985 = vpop.f32.mrb[0].mxu0
        %v7986 = vadd.f32 0.0, %v7985
        %v7987 = vpop.f32.mrb[0].mxu0
        %v7988 = vadd.f32 0.0, %v7987
        %v7989 = vpop.f32.mrb[0].mxu0
        %v7990 = vadd.f32 0.0, %v7989
        %v7991 = vpop.f32.mrb[0].mxu0
        %v7992 = vadd.f32 0.0, %v7991
        %7993 = vmatprep.mubr.bf16.mxu0 0
        %7994 = vmatmul.mubr.bf16.gmra.mrb[0].mxu0 %v6779
        %v7995 = vpop.f32.mrb[0].mxu0
        %v7996 = vadd.f32 0.0, %v7995
        %v7997 = vpop.f32.mrb[0].mxu0
        %v7998 = vadd.f32 0.0, %v7997
        %v7999 = vpop.f32.mrb[0].mxu0
        %v8000 = vadd.f32 0.0, %v7999
        %v8001 = vpop.f32.mrb[0].mxu0
        %v8002 = vadd.f32 0.0, %v8001
        %8003 = vmatprep.mubr.bf16.mxu0 0
        %8004 = vmatmul.mubr.bf16.gmra.mrb[0].mxu0 %v6780
        %v8005 = vpop.f32.mrb[0].mxu0
        %v8006 = vadd.f32 0.0, %v8005
        %v8007 = vpop.f32.mrb[0].mxu0
        %v8008 = vadd.f32 0.0, %v8007
        %v8009 = vpop.f32.mrb[0].mxu0
        %v8010 = vadd.f32 0.0, %v8009
        %v8011 = vpop.f32.mrb[0].mxu0
        %v8012 = vadd.f32 0.0, %v8011
        %8013 = vmatprep.mubr.bf16.mxu0 0
        %8014 = vmatmul.mubr.bf16.gmra.mrb[0].mxu0 %v6781
        %v8015 = vpop.f32.mrb[0].mxu0
        %v8016 = vadd.f32 0.0, %v8015
        %v8017 = vpop.f32.mrb[0].mxu0
        %v8018 = vadd.f32 0.0, %v8017
        %v8019 = vpop.f32.mrb[0].mxu0
        %v8020 = vadd.f32 0.0, %v8019
        %v8021 = vpop.f32.mrb[0].mxu0
        %v8022 = vadd.f32 0.0, %v8021
        %8023 = vmatprep.mubr.bf16.mxu0 0
        %8024 = vmatmul.mubr.bf16.gmra.mrb[0].mxu0 %v6782
        %v8025 = vpop.f32.mrb[0].mxu0
        %v8026 = vadd.f32 0.0, %v8025
        %v8027 = vpop.f32.mrb[0].mxu0
        %v8028 = vadd.f32 0.0, %v8027
        %v8029 = vpop.f32.mrb[0].mxu0
        %v8030 = vadd.f32 0.0, %v8029
        %v8031 = vpop.f32.mrb[0].mxu0
        %v8032 = vadd.f32 0.0, %v8031
        %8033 = vdwg.mxu0
        %8034 = vmatprep.subr.bf16.mxu0 %v6510
        %8035 = vmatpush1.bf16.msra.mxu0 %v6509
        %8036 = vmatprep.subr.bf16.mxu0 %v6542
        %8037 = vmatpush1.bf16.msra.mxu0 %v6541
        %8038 = vmatprep.subr.bf16.mxu0 %v6574
        %8039 = vmatpush1.bf16.msra.mxu0 %v6573
        %8040 = vmatprep.subr.bf16.mxu0 %v6606
        %8041 = vmatpush1.bf16.msra.mxu0 %v6605
        %8042 = vmatprep.subr.bf16.mxu0 %v6638
        %8043 = vmatpush1.bf16.msra.mxu0 %v6637
        %8044 = vmatprep.subr.bf16.mxu0 %v6670
        %8045 = vmatpush1.bf16.msra.mxu0 %v6669
        %8046 = vmatprep.subr.bf16.mxu0 %v6702
        %8047 = vmatpush1.bf16.msra.mxu0 %v6701
        %8048 = vmatprep.subr.bf16.mxu0 %v6734
        %8049 = vmatpush1.bf16.msra.mxu0 %v6733
        %8050 = vmatprep.subr.bf16.mxu0 0
        %8051 = vmatpush1.bf16.msra.mxu0 0
        %8052 = vmatprep.subr.bf16.mxu0 0
        %8053 = vmatpush1.bf16.msra.mxu0 0
        %8054 = vmatprep.subr.bf16.mxu0 0
        %8055 = vmatpush1.bf16.msra.mxu0 0
        %8056 = vmatprep.subr.bf16.mxu0 0
        %8057 = vmatpush1.bf16.msra.mxu0 0
        %8058 = vmatprep.subr.bf16.mxu0 0
        %8059 = vmatpush1.bf16.msra.mxu0 0
        %8060 = vmatprep.subr.bf16.mxu0 0
        %8061 = vmatpush1.bf16.msra.mxu0 0
        %8062 = vmatprep.subr.bf16.mxu0 0
        %8063 = vmatpush1.bf16.msra.mxu0 0
        %8064 = vmatprep.subr.bf16.mxu0 0
        %8065 = vmatpush1.bf16.msra.mxu0 0
        %8066 = vmatprep.mubr.bf16.mxu0 0
        %8067 = vmatmul.mubr.bf16.gmra.mrb[0].mxu0 %v6775
        %v8068 = vpop.f32.mrb[0].mxu0
        %v8069 = vadd.f32 0.0, %v8068
        %v8070 = vpop.f32.mrb[0].mxu0
        %v8071 = vadd.f32 0.0, %v8070
        %v8072 = vpop.f32.mrb[0].mxu0
        %v8073 = vadd.f32 0.0, %v8072
        %v8074 = vpop.f32.mrb[0].mxu0
        %v8075 = vadd.f32 0.0, %v8074
        %8076 = vmatprep.mubr.bf16.mxu0 0
        %8077 = vmatmul.mubr.bf16.gmra.mrb[0].mxu0 %v6776
        %v8078 = vpop.f32.mrb[0].mxu0
        %v8079 = vadd.f32 0.0, %v8078
        %v8080 = vpop.f32.mrb[0].mxu0
        %v8081 = vadd.f32 0.0, %v8080
        %v8082 = vpop.f32.mrb[0].mxu0
        %v8083 = vadd.f32 0.0, %v8082
        %v8084 = vpop.f32.mrb[0].mxu0
        %v8085 = vadd.f32 0.0, %v8084
        %8086 = vmatprep.mubr.bf16.mxu0 0
        %8087 = vmatmul.mubr.bf16.gmra.mrb[0].mxu0 %v6777
        %v8088 = vpop.f32.mrb[0].mxu0
        %v8089 = vadd.f32 0.0, %v8088
        %v8090 = vpop.f32.mrb[0].mxu0
        %v8091 = vadd.f32 0.0, %v8090
        %v8092 = vpop.f32.mrb[0].mxu0
        %v8093 = vadd.f32 0.0, %v8092
        %v8094 = vpop.f32.mrb[0].mxu0
        %v8095 = vadd.f32 0.0, %v8094
        %8096 = vmatprep.mubr.bf16.mxu0 0
        %8097 = vmatmul.mubr.bf16.gmra.mrb[0].mxu0 %v6778
        %v8098 = vpop.f32.mrb[0].mxu0
        %v8099 = vadd.f32 0.0, %v8098
        %v8100 = vpop.f32.mrb[0].mxu0
        %v8101 = vadd.f32 0.0, %v8100
        %v8102 = vpop.f32.mrb[0].mxu0
        %v8103 = vadd.f32 0.0, %v8102
        %v8104 = vpop.f32.mrb[0].mxu0
        %v8105 = vadd.f32 0.0, %v8104
        %8106 = vmatprep.mubr.bf16.mxu0 0
        %8107 = vmatmul.mubr.bf16.gmra.mrb[0].mxu0 %v6779
        %v8108 = vpop.f32.mrb[0].mxu0
        %v8109 = vadd.f32 0.0, %v8108
        %v8110 = vpop.f32.mrb[0].mxu0
        %v8111 = vadd.f32 0.0, %v8110
        %v8112 = vpop.f32.mrb[0].mxu0
        %v8113 = vadd.f32 0.0, %v8112
        %v8114 = vpop.f32.mrb[0].mxu0
        %v8115 = vadd.f32 0.0, %v8114
        %8116 = vmatprep.mubr.bf16.mxu0 0
        %8117 = vmatmul.mubr.bf16.gmra.mrb[0].mxu0 %v6780
        %v8118 = vpop.f32.mrb[0].mxu0
        %v8119 = vadd.f32 0.0, %v8118
        %v8120 = vpop.f32.mrb[0].mxu0
        %v8121 = vadd.f32 0.0, %v8120
        %v8122 = vpop.f32.mrb[0].mxu0
        %v8123 = vadd.f32 0.0, %v8122
        %v8124 = vpop.f32.mrb[0].mxu0
        %v8125 = vadd.f32 0.0, %v8124
        %8126 = vmatprep.mubr.bf16.mxu0 0
        %8127 = vmatmul.mubr.bf16.gmra.mrb[0].mxu0 %v6781
        %v8128 = vpop.f32.mrb[0].mxu0
        %v8129 = vadd.f32 0.0, %v8128
        %v8130 = vpop.f32.mrb[0].mxu0
        %v8131 = vadd.f32 0.0, %v8130
        %v8132 = vpop.f32.mrb[0].mxu0
        %v8133 = vadd.f32 0.0, %v8132
        %v8134 = vpop.f32.mrb[0].mxu0
        %v8135 = vadd.f32 0.0, %v8134
        %8136 = vmatprep.mubr.bf16.mxu0 0
        %8137 = vmatmul.mubr.bf16.gmra.mrb[0].mxu0 %v6782
        %v8138 = vpop.f32.mrb[0].mxu0
        %v8139 = vadd.f32 0.0, %v8138
        %v8140 = vpop.f32.mrb[0].mxu0
        %v8141 = vadd.f32 0.0, %v8140
        %v8142 = vpop.f32.mrb[0].mxu0
        %v8143 = vadd.f32 0.0, %v8142
        %v8144 = vpop.f32.mrb[0].mxu0
        %v8145 = vadd.f32 0.0, %v8144
        %8146 = vdwg.mxu0
        %8147 = vmatprep.subr.bf16.mxu0 %v6512
        %8148 = vmatpush1.bf16.msra.mxu0 %v6511
        %8149 = vmatprep.subr.bf16.mxu0 %v6544
        %8150 = vmatpush1.bf16.msra.mxu0 %v6543
        %8151 = vmatprep.subr.bf16.mxu0 %v6576
        %8152 = vmatpush1.bf16.msra.mxu0 %v6575
        %8153 = vmatprep.subr.bf16.mxu0 %v6608
        %8154 = vmatpush1.bf16.msra.mxu0 %v6607
        %8155 = vmatprep.subr.bf16.mxu0 %v6640
        %8156 = vmatpush1.bf16.msra.mxu0 %v6639
        %8157 = vmatprep.subr.bf16.mxu0 %v6672
        %8158 = vmatpush1.bf16.msra.mxu0 %v6671
        %8159 = vmatprep.subr.bf16.mxu0 %v6704
        %8160 = vmatpush1.bf16.msra.mxu0 %v6703
        %8161 = vmatprep.subr.bf16.mxu0 %v6736
        %8162 = vmatpush1.bf16.msra.mxu0 %v6735
        %8163 = vmatprep.subr.bf16.mxu0 0
        %8164 = vmatpush1.bf16.msra.mxu0 0
        %8165 = vmatprep.subr.bf16.mxu0 0
        %8166 = vmatpush1.bf16.msra.mxu0 0
        %8167 = vmatprep.subr.bf16.mxu0 0
        %8168 = vmatpush1.bf16.msra.mxu0 0
        %8169 = vmatprep.subr.bf16.mxu0 0
        %8170 = vmatpush1.bf16.msra.mxu0 0
        %8171 = vmatprep.subr.bf16.mxu0 0
        %8172 = vmatpush1.bf16.msra.mxu0 0
        %8173 = vmatprep.subr.bf16.mxu0 0
        %8174 = vmatpush1.bf16.msra.mxu0 0
        %8175 = vmatprep.subr.bf16.mxu0 0
        %8176 = vmatpush1.bf16.msra.mxu0 0
        %8177 = vmatprep.subr.bf16.mxu0 0
        %8178 = vmatpush1.bf16.msra.mxu0 0
        %8179 = vmatprep.mubr.bf16.mxu0 0
        %8180 = vmatmul.mubr.bf16.gmra.mrb[0].mxu0 %v6775
        %v8181 = vpop.f32.mrb[0].mxu0
        %v8182 = vadd.f32 0.0, %v8181
        %v8183 = vpop.f32.mrb[0].mxu0
        %v8184 = vadd.f32 0.0, %v8183
        %v8185 = vpop.f32.mrb[0].mxu0
        %v8186 = vadd.f32 0.0, %v8185
        %v8187 = vpop.f32.mrb[0].mxu0
        %v8188 = vadd.f32 0.0, %v8187
        %8189 = vmatprep.mubr.bf16.mxu0 0
        %8190 = vmatmul.mubr.bf16.gmra.mrb[0].mxu0 %v6776
        %v8191 = vpop.f32.mrb[0].mxu0
        %v8192 = vadd.f32 0.0, %v8191
        %v8193 = vpop.f32.mrb[0].mxu0
        %v8194 = vadd.f32 0.0, %v8193
        %v8195 = vpop.f32.mrb[0].mxu0
        %v8196 = vadd.f32 0.0, %v8195
        %v8197 = vpop.f32.mrb[0].mxu0
        %v8198 = vadd.f32 0.0, %v8197
        %8199 = vmatprep.mubr.bf16.mxu0 0
        %8200 = vmatmul.mubr.bf16.gmra.mrb[0].mxu0 %v6777
        %v8201 = vpop.f32.mrb[0].mxu0
        %v8202 = vadd.f32 0.0, %v8201
        %v8203 = vpop.f32.mrb[0].mxu0
        %v8204 = vadd.f32 0.0, %v8203
        %v8205 = vpop.f32.mrb[0].mxu0
        %v8206 = vadd.f32 0.0, %v8205
        %v8207 = vpop.f32.mrb[0].mxu0
        %v8208 = vadd.f32 0.0, %v8207
        %8209 = vmatprep.mubr.bf16.mxu0 0
        %8210 = vmatmul.mubr.bf16.gmra.mrb[0].mxu0 %v6778
        %v8211 = vpop.f32.mrb[0].mxu0
        %v8212 = vadd.f32 0.0, %v8211
        %v8213 = vpop.f32.mrb[0].mxu0
        %v8214 = vadd.f32 0.0, %v8213
        %v8215 = vpop.f32.mrb[0].mxu0
        %v8216 = vadd.f32 0.0, %v8215
        %v8217 = vpop.f32.mrb[0].mxu0
        %v8218 = vadd.f32 0.0, %v8217
        %8219 = vmatprep.mubr.bf16.mxu0 0
        %8220 = vmatmul.mubr.bf16.gmra.mrb[0].mxu0 %v6779
        %v8221 = vpop.f32.mrb[0].mxu0
        %v8222 = vadd.f32 0.0, %v8221
        %v8223 = vpop.f32.mrb[0].mxu0
        %v8224 = vadd.f32 0.0, %v8223
        %v8225 = vpop.f32.mrb[0].mxu0
        %v8226 = vadd.f32 0.0, %v8225
        %v8227 = vpop.f32.mrb[0].mxu0
        %v8228 = vadd.f32 0.0, %v8227
        %8229 = vmatprep.mubr.bf16.mxu0 0
        %8230 = vmatmul.mubr.bf16.gmra.mrb[0].mxu0 %v6780
        %v8231 = vpop.f32.mrb[0].mxu0
        %v8232 = vadd.f32 0.0, %v8231
        %v8233 = vpop.f32.mrb[0].mxu0
        %v8234 = vadd.f32 0.0, %v8233
        %v8235 = vpop.f32.mrb[0].mxu0
        %v8236 = vadd.f32 0.0, %v8235
        %v8237 = vpop.f32.mrb[0].mxu0
        %v8238 = vadd.f32 0.0, %v8237
        %8239 = vmatprep.mubr.bf16.mxu0 0
        %8240 = vmatmul.mubr.bf16.gmra.mrb[0].mxu0 %v6781
        %v8241 = vpop.f32.mrb[0].mxu0
        %v8242 = vadd.f32 0.0, %v8241
        %v8243 = vpop.f32.mrb[0].mxu0
        %v8244 = vadd.f32 0.0, %v8243
        %v8245 = vpop.f32.mrb[0].mxu0
        %v8246 = vadd.f32 0.0, %v8245
        %v8247 = vpop.f32.mrb[0].mxu0
        %v8248 = vadd.f32 0.0, %v8247
        %8249 = vmatprep.mubr.bf16.mxu0 0
        %8250 = vmatmul.mubr.bf16.gmra.mrb[0].mxu0 %v6782
        %v8251 = vpop.f32.mrb[0].mxu0
        %v8252 = vadd.f32 0.0, %v8251
        %v8253 = vpop.f32.mrb[0].mxu0
        %v8254 = vadd.f32 0.0, %v8253
        %v8255 = vpop.f32.mrb[0].mxu0
        %v8256 = vadd.f32 0.0, %v8255
        %v8257 = vpop.f32.mrb[0].mxu0
        %v8258 = vadd.f32 0.0, %v8257
        %8259 = vdwg.mxu0
        %8260 = vmatprep.subr.bf16.mxu0 %v6514
        %8261 = vmatpush1.bf16.msra.mxu0 %v6513
        %8262 = vmatprep.subr.bf16.mxu0 %v6546
        %8263 = vmatpush1.bf16.msra.mxu0 %v6545
        %8264 = vmatprep.subr.bf16.mxu0 %v6578
        %8265 = vmatpush1.bf16.msra.mxu0 %v6577
        %8266 = vmatprep.subr.bf16.mxu0 %v6610
        %8267 = vmatpush1.bf16.msra.mxu0 %v6609
        %8268 = vmatprep.subr.bf16.mxu0 %v6642
        %8269 = vmatpush1.bf16.msra.mxu0 %v6641
        %8270 = vmatprep.subr.bf16.mxu0 %v6674
        %8271 = vmatpush1.bf16.msra.mxu0 %v6673
        %8272 = vmatprep.subr.bf16.mxu0 %v6706
        %8273 = vmatpush1.bf16.msra.mxu0 %v6705
        %8274 = vmatprep.subr.bf16.mxu0 %v6738
        %8275 = vmatpush1.bf16.msra.mxu0 %v6737
        %8276 = vmatprep.subr.bf16.mxu0 0
        %8277 = vmatpush1.bf16.msra.mxu0 0
        %8278 = vmatprep.subr.bf16.mxu0 0
        %8279 = vmatpush1.bf16.msra.mxu0 0
        %8280 = vmatprep.subr.bf16.mxu0 0
        %8281 = vmatpush1.bf16.msra.mxu0 0
        %8282 = vmatprep.subr.bf16.mxu0 0
        %8283 = vmatpush1.bf16.msra.mxu0 0
        %8284 = vmatprep.subr.bf16.mxu0 0
        %8285 = vmatpush1.bf16.msra.mxu0 0
        %8286 = vmatprep.subr.bf16.mxu0 0
        %8287 = vmatpush1.bf16.msra.mxu0 0
        %8288 = vmatprep.subr.bf16.mxu0 0
        %8289 = vmatpush1.bf16.msra.mxu0 0
        %8290 = vmatprep.subr.bf16.mxu0 0
        %8291 = vmatpush1.bf16.msra.mxu0 0
        %8292 = vmatprep.mubr.bf16.mxu0 0
        %8293 = vmatmul.mubr.bf16.gmra.mrb[0].mxu0 %v6775
        %v8294 = vpop.f32.mrb[0].mxu0
        %v8295 = vadd.f32 0.0, %v8294
        %v8296 = vpop.f32.mrb[0].mxu0
        %v8297 = vadd.f32 0.0, %v8296
        %v8298 = vpop.f32.mrb[0].mxu0
        %v8299 = vadd.f32 0.0, %v8298
        %v8300 = vpop.f32.mrb[0].mxu0
        %v8301 = vadd.f32 0.0, %v8300
        %8302 = vmatprep.mubr.bf16.mxu0 0
        %8303 = vmatmul.mubr.bf16.gmra.mrb[0].mxu0 %v6776
        %v8304 = vpop.f32.mrb[0].mxu0
        %v8305 = vadd.f32 0.0, %v8304
        %v8306 = vpop.f32.mrb[0].mxu0
        %v8307 = vadd.f32 0.0, %v8306
        %v8308 = vpop.f32.mrb[0].mxu0
        %v8309 = vadd.f32 0.0, %v8308
        %v8310 = vpop.f32.mrb[0].mxu0
        %v8311 = vadd.f32 0.0, %v8310
        %8312 = vmatprep.mubr.bf16.mxu0 0
        %8313 = vmatmul.mubr.bf16.gmra.mrb[0].mxu0 %v6777
        %v8314 = vpop.f32.mrb[0].mxu0
        %v8315 = vadd.f32 0.0, %v8314
        %v8316 = vpop.f32.mrb[0].mxu0
        %v8317 = vadd.f32 0.0, %v8316
        %v8318 = vpop.f32.mrb[0].mxu0
        %v8319 = vadd.f32 0.0, %v8318
        %v8320 = vpop.f32.mrb[0].mxu0
        %v8321 = vadd.f32 0.0, %v8320
        %8322 = vmatprep.mubr.bf16.mxu0 0
        %8323 = vmatmul.mubr.bf16.gmra.mrb[0].mxu0 %v6778
        %v8324 = vpop.f32.mrb[0].mxu0
        %v8325 = vadd.f32 0.0, %v8324
        %v8326 = vpop.f32.mrb[0].mxu0
        %v8327 = vadd.f32 0.0, %v8326
        %v8328 = vpop.f32.mrb[0].mxu0
        %v8329 = vadd.f32 0.0, %v8328
        %v8330 = vpop.f32.mrb[0].mxu0
        %v8331 = vadd.f32 0.0, %v8330
        %8332 = vmatprep.mubr.bf16.mxu0 0
        %8333 = vmatmul.mubr.bf16.gmra.mrb[0].mxu0 %v6779
        %v8334 = vpop.f32.mrb[0].mxu0
        %v8335 = vadd.f32 0.0, %v8334
        %v8336 = vpop.f32.mrb[0].mxu0
        %v8337 = vadd.f32 0.0, %v8336
        %v8338 = vpop.f32.mrb[0].mxu0
        %v8339 = vadd.f32 0.0, %v8338
        %v8340 = vpop.f32.mrb[0].mxu0
        %v8341 = vadd.f32 0.0, %v8340
        %8342 = vmatprep.mubr.bf16.mxu0 0
        %8343 = vmatmul.mubr.bf16.gmra.mrb[0].mxu0 %v6780
        %v8344 = vpop.f32.mrb[0].mxu0
        %v8345 = vadd.f32 0.0, %v8344
        %v8346 = vpop.f32.mrb[0].mxu0
        %v8347 = vadd.f32 0.0, %v8346
        %v8348 = vpop.f32.mrb[0].mxu0
        %v8349 = vadd.f32 0.0, %v8348
        %v8350 = vpop.f32.mrb[0].mxu0
        %v8351 = vadd.f32 0.0, %v8350
        %8352 = vmatprep.mubr.bf16.mxu0 0
        %8353 = vmatmul.mubr.bf16.gmra.mrb[0].mxu0 %v6781
        %v8354 = vpop.f32.mrb[0].mxu0
        %v8355 = vadd.f32 0.0, %v8354
        %v8356 = vpop.f32.mrb[0].mxu0
        %v8357 = vadd.f32 0.0, %v8356
        %v8358 = vpop.f32.mrb[0].mxu0
        %v8359 = vadd.f32 0.0, %v8358
        %v8360 = vpop.f32.mrb[0].mxu0
        %v8361 = vadd.f32 0.0, %v8360
        %8362 = vmatprep.mubr.bf16.mxu0 0
        %8363 = vmatmul.mubr.bf16.gmra.mrb[0].mxu0 %v6782
        %v8364 = vpop.f32.mrb[0].mxu0
        %v8365 = vadd.f32 0.0, %v8364
        %v8366 = vpop.f32.mrb[0].mxu0
        %v8367 = vadd.f32 0.0, %v8366
        %v8368 = vpop.f32.mrb[0].mxu0
        %v8369 = vadd.f32 0.0, %v8368
        %v8370 = vpop.f32.mrb[0].mxu0
        %v8371 = vadd.f32 0.0, %v8370
        %8372 = vdwg.mxu0
        %8373 = vmatprep.subr.bf16.mxu0 %v6516
        %8374 = vmatpush1.bf16.msra.mxu0 %v6515
        %8375 = vmatprep.subr.bf16.mxu0 %v6548
        %8376 = vmatpush1.bf16.msra.mxu0 %v6547
        %8377 = vmatprep.subr.bf16.mxu0 %v6580
        %8378 = vmatpush1.bf16.msra.mxu0 %v6579
        %8379 = vmatprep.subr.bf16.mxu0 %v6612
        %8380 = vmatpush1.bf16.msra.mxu0 %v6611
        %8381 = vmatprep.subr.bf16.mxu0 %v6644
        %8382 = vmatpush1.bf16.msra.mxu0 %v6643
        %8383 = vmatprep.subr.bf16.mxu0 %v6676
        %8384 = vmatpush1.bf16.msra.mxu0 %v6675
        %8385 = vmatprep.subr.bf16.mxu0 %v6708
        %8386 = vmatpush1.bf16.msra.mxu0 %v6707
        %8387 = vmatprep.subr.bf16.mxu0 %v6740
        %8388 = vmatpush1.bf16.msra.mxu0 %v6739
        %8389 = vmatprep.subr.bf16.mxu0 0
        %8390 = vmatpush1.bf16.msra.mxu0 0
        %8391 = vmatprep.subr.bf16.mxu0 0
        %8392 = vmatpush1.bf16.msra.mxu0 0
        %8393 = vmatprep.subr.bf16.mxu0 0
        %8394 = vmatpush1.bf16.msra.mxu0 0
        %8395 = vmatprep.subr.bf16.mxu0 0
        %8396 = vmatpush1.bf16.msra.mxu0 0
        %8397 = vmatprep.subr.bf16.mxu0 0
        %8398 = vmatpush1.bf16.msra.mxu0 0
        %8399 = vmatprep.subr.bf16.mxu0 0
        %8400 = vmatpush1.bf16.msra.mxu0 0
        %8401 = vmatprep.subr.bf16.mxu0 0
        %8402 = vmatpush1.bf16.msra.mxu0 0
        %8403 = vmatprep.subr.bf16.mxu0 0
        %8404 = vmatpush1.bf16.msra.mxu0 0
        %8405 = vmatprep.mubr.bf16.mxu0 0
        %8406 = vmatmul.mubr.bf16.gmra.mrb[0].mxu0 %v6775
        %v8407 = vpop.f32.mrb[0].mxu0
        %v8408 = vadd.f32 0.0, %v8407
        %v8409 = vpop.f32.mrb[0].mxu0
        %v8410 = vadd.f32 0.0, %v8409
        %v8411 = vpop.f32.mrb[0].mxu0
        %v8412 = vadd.f32 0.0, %v8411
        %v8413 = vpop.f32.mrb[0].mxu0
        %v8414 = vadd.f32 0.0, %v8413
        %8415 = vmatprep.mubr.bf16.mxu0 0
        %8416 = vmatmul.mubr.bf16.gmra.mrb[0].mxu0 %v6776
        %v8417 = vpop.f32.mrb[0].mxu0
        %v8418 = vadd.f32 0.0, %v8417
        %v8419 = vpop.f32.mrb[0].mxu0
        %v8420 = vadd.f32 0.0, %v8419
        %v8421 = vpop.f32.mrb[0].mxu0
        %v8422 = vadd.f32 0.0, %v8421
        %v8423 = vpop.f32.mrb[0].mxu0
        %v8424 = vadd.f32 0.0, %v8423
        %8425 = vmatprep.mubr.bf16.mxu0 0
        %8426 = vmatmul.mubr.bf16.gmra.mrb[0].mxu0 %v6777
        %v8427 = vpop.f32.mrb[0].mxu0
        %v8428 = vadd.f32 0.0, %v8427
        %v8429 = vpop.f32.mrb[0].mxu0
        %v8430 = vadd.f32 0.0, %v8429
        %v8431 = vpop.f32.mrb[0].mxu0
        %v8432 = vadd.f32 0.0, %v8431
        %v8433 = vpop.f32.mrb[0].mxu0
        %v8434 = vadd.f32 0.0, %v8433
        %8435 = vmatprep.mubr.bf16.mxu0 0
        %8436 = vmatmul.mubr.bf16.gmra.mrb[0].mxu0 %v6778
        %v8437 = vpop.f32.mrb[0].mxu0
        %v8438 = vadd.f32 0.0, %v8437
        %v8439 = vpop.f32.mrb[0].mxu0
        %v8440 = vadd.f32 0.0, %v8439
        %v8441 = vpop.f32.mrb[0].mxu0
        %v8442 = vadd.f32 0.0, %v8441
        %v8443 = vpop.f32.mrb[0].mxu0
        %v8444 = vadd.f32 0.0, %v8443
        %8445 = vmatprep.mubr.bf16.mxu0 0
        %8446 = vmatmul.mubr.bf16.gmra.mrb[0].mxu0 %v6779
        %v8447 = vpop.f32.mrb[0].mxu0
        %v8448 = vadd.f32 0.0, %v8447
        %v8449 = vpop.f32.mrb[0].mxu0
        %v8450 = vadd.f32 0.0, %v8449
        %v8451 = vpop.f32.mrb[0].mxu0
        %v8452 = vadd.f32 0.0, %v8451
        %v8453 = vpop.f32.mrb[0].mxu0
        %v8454 = vadd.f32 0.0, %v8453
        %8455 = vmatprep.mubr.bf16.mxu0 0
        %8456 = vmatmul.mubr.bf16.gmra.mrb[0].mxu0 %v6780
        %v8457 = vpop.f32.mrb[0].mxu0
        %v8458 = vadd.f32 0.0, %v8457
        %v8459 = vpop.f32.mrb[0].mxu0
        %v8460 = vadd.f32 0.0, %v8459
        %v8461 = vpop.f32.mrb[0].mxu0
        %v8462 = vadd.f32 0.0, %v8461
        %v8463 = vpop.f32.mrb[0].mxu0
        %v8464 = vadd.f32 0.0, %v8463
        %8465 = vmatprep.mubr.bf16.mxu0 0
        %8466 = vmatmul.mubr.bf16.gmra.mrb[0].mxu0 %v6781
        %v8467 = vpop.f32.mrb[0].mxu0
        %v8468 = vadd.f32 0.0, %v8467
        %v8469 = vpop.f32.mrb[0].mxu0
        %v8470 = vadd.f32 0.0, %v8469
        %v8471 = vpop.f32.mrb[0].mxu0
        %v8472 = vadd.f32 0.0, %v8471
        %v8473 = vpop.f32.mrb[0].mxu0
        %v8474 = vadd.f32 0.0, %v8473
        %8475 = vmatprep.mubr.bf16.mxu0 0
        %8476 = vmatmul.mubr.bf16.gmra.mrb[0].mxu0 %v6782
        %v8477 = vpop.f32.mrb[0].mxu0
        %v8478 = vadd.f32 0.0, %v8477
        %v8479 = vpop.f32.mrb[0].mxu0
        %v8480 = vadd.f32 0.0, %v8479
        %v8481 = vpop.f32.mrb[0].mxu0
        %v8482 = vadd.f32 0.0, %v8481
        %v8483 = vpop.f32.mrb[0].mxu0
        %v8484 = vadd.f32 0.0, %v8483
        %8485 = vdwg.mxu0
        %8486 = vmatprep.subr.bf16.mxu0 %v6518
        %8487 = vmatpush1.bf16.msra.mxu0 %v6517
        %8488 = vmatprep.subr.bf16.mxu0 %v6550
        %8489 = vmatpush1.bf16.msra.mxu0 %v6549
        %8490 = vmatprep.subr.bf16.mxu0 %v6582
        %8491 = vmatpush1.bf16.msra.mxu0 %v6581
        %8492 = vmatprep.subr.bf16.mxu0 %v6614
        %8493 = vmatpush1.bf16.msra.mxu0 %v6613
        %8494 = vmatprep.subr.bf16.mxu0 %v6646
        %8495 = vmatpush1.bf16.msra.mxu0 %v6645
        %8496 = vmatprep.subr.bf16.mxu0 %v6678
        %8497 = vmatpush1.bf16.msra.mxu0 %v6677
        %8498 = vmatprep.subr.bf16.mxu0 %v6710
        %8499 = vmatpush1.bf16.msra.mxu0 %v6709
        %8500 = vmatprep.subr.bf16.mxu0 %v6742
        %8501 = vmatpush1.bf16.msra.mxu0 %v6741
        %8502 = vmatprep.subr.bf16.mxu0 0
        %8503 = vmatpush1.bf16.msra.mxu0 0
        %8504 = vmatprep.subr.bf16.mxu0 0
        %8505 = vmatpush1.bf16.msra.mxu0 0
        %8506 = vmatprep.subr.bf16.mxu0 0
        %8507 = vmatpush1.bf16.msra.mxu0 0
        %8508 = vmatprep.subr.bf16.mxu0 0
        %8509 = vmatpush1.bf16.msra.mxu0 0
        %8510 = vmatprep.subr.bf16.mxu0 0
        %8511 = vmatpush1.bf16.msra.mxu0 0
        %8512 = vmatprep.subr.bf16.mxu0 0
        %8513 = vmatpush1.bf16.msra.mxu0 0
        %8514 = vmatprep.subr.bf16.mxu0 0
        %8515 = vmatpush1.bf16.msra.mxu0 0
        %8516 = vmatprep.subr.bf16.mxu0 0
        %8517 = vmatpush1.bf16.msra.mxu0 0
        %8518 = vmatprep.mubr.bf16.mxu0 0
        %8519 = vmatmul.mubr.bf16.gmra.mrb[0].mxu0 %v6775
        %v8520 = vpop.f32.mrb[0].mxu0
        %v8521 = vadd.f32 0.0, %v8520
        %v8522 = vpop.f32.mrb[0].mxu0
        %v8523 = vadd.f32 0.0, %v8522
        %v8524 = vpop.f32.mrb[0].mxu0
        %v8525 = vadd.f32 0.0, %v8524
        %v8526 = vpop.f32.mrb[0].mxu0
        %v8527 = vadd.f32 0.0, %v8526
        %8528 = vmatprep.mubr.bf16.mxu0 0
        %8529 = vmatmul.mubr.bf16.gmra.mrb[0].mxu0 %v6776
        %v8530 = vpop.f32.mrb[0].mxu0
        %v8531 = vadd.f32 0.0, %v8530
        %v8532 = vpop.f32.mrb[0].mxu0
        %v8533 = vadd.f32 0.0, %v8532
        %v8534 = vpop.f32.mrb[0].mxu0
        %v8535 = vadd.f32 0.0, %v8534
        %v8536 = vpop.f32.mrb[0].mxu0
        %v8537 = vadd.f32 0.0, %v8536
        %8538 = vmatprep.mubr.bf16.mxu0 0
        %8539 = vmatmul.mubr.bf16.gmra.mrb[0].mxu0 %v6777
        %v8540 = vpop.f32.mrb[0].mxu0
        %v8541 = vadd.f32 0.0, %v8540
        %v8542 = vpop.f32.mrb[0].mxu0
        %v8543 = vadd.f32 0.0, %v8542
        %v8544 = vpop.f32.mrb[0].mxu0
        %v8545 = vadd.f32 0.0, %v8544
        %v8546 = vpop.f32.mrb[0].mxu0
        %v8547 = vadd.f32 0.0, %v8546
        %8548 = vmatprep.mubr.bf16.mxu0 0
        %8549 = vmatmul.mubr.bf16.gmra.mrb[0].mxu0 %v6778
        %v8550 = vpop.f32.mrb[0].mxu0
        %v8551 = vadd.f32 0.0, %v8550
        %v8552 = vpop.f32.mrb[0].mxu0
        %v8553 = vadd.f32 0.0, %v8552
        %v8554 = vpop.f32.mrb[0].mxu0
        %v8555 = vadd.f32 0.0, %v8554
        %v8556 = vpop.f32.mrb[0].mxu0
        %v8557 = vadd.f32 0.0, %v8556
        %8558 = vmatprep.mubr.bf16.mxu0 0
        %8559 = vmatmul.mubr.bf16.gmra.mrb[0].mxu0 %v6779
        %v8560 = vpop.f32.mrb[0].mxu0
        %v8561 = vadd.f32 0.0, %v8560
        %v8562 = vpop.f32.mrb[0].mxu0
        %v8563 = vadd.f32 0.0, %v8562
        %v8564 = vpop.f32.mrb[0].mxu0
        %v8565 = vadd.f32 0.0, %v8564
        %v8566 = vpop.f32.mrb[0].mxu0
        %v8567 = vadd.f32 0.0, %v8566
        %8568 = vmatprep.mubr.bf16.mxu0 0
        %8569 = vmatmul.mubr.bf16.gmra.mrb[0].mxu0 %v6780
        %v8570 = vpop.f32.mrb[0].mxu0
        %v8571 = vadd.f32 0.0, %v8570
        %v8572 = vpop.f32.mrb[0].mxu0
        %v8573 = vadd.f32 0.0, %v8572
        %v8574 = vpop.f32.mrb[0].mxu0
        %v8575 = vadd.f32 0.0, %v8574
        %v8576 = vpop.f32.mrb[0].mxu0
        %v8577 = vadd.f32 0.0, %v8576
        %8578 = vmatprep.mubr.bf16.mxu0 0
        %8579 = vmatmul.mubr.bf16.gmra.mrb[0].mxu0 %v6781
        %v8580 = vpop.f32.mrb[0].mxu0
        %v8581 = vadd.f32 0.0, %v8580
        %v8582 = vpop.f32.mrb[0].mxu0
        %v8583 = vadd.f32 0.0, %v8582
        %v8584 = vpop.f32.mrb[0].mxu0
        %v8585 = vadd.f32 0.0, %v8584
        %v8586 = vpop.f32.mrb[0].mxu0
        %v8587 = vadd.f32 0.0, %v8586
        %8588 = vmatprep.mubr.bf16.mxu0 0
        %8589 = vmatmul.mubr.bf16.gmra.mrb[0].mxu0 %v6782
        %v8590 = vpop.f32.mrb[0].mxu0
        %v8591 = vadd.f32 0.0, %v8590
        %v8592 = vpop.f32.mrb[0].mxu0
        %v8593 = vadd.f32 0.0, %v8592
        %v8594 = vpop.f32.mrb[0].mxu0
        %v8595 = vadd.f32 0.0, %v8594
        %v8596 = vpop.f32.mrb[0].mxu0
        %v8597 = vadd.f32 0.0, %v8596
        %8598 = vdwg.mxu0
        %v8599 = vld [vmem:[#allocation2] sm:$0xff]
        %v8600 = vld [vmem:[#allocation2 + $0x8] sm:$0xff]
        %v8601 = vld [vmem:[#allocation2 + $0x10] sm:$0xff]
        %v8602 = vld [vmem:[#allocation2 + $0x18] sm:$0xff]
        %v8603 = vld [vmem:[#allocation2 + $0x20] sm:$0xff]
        %v8604 = vld [vmem:[#allocation2 + $0x28] sm:$0xff]
        %v8605 = vld [vmem:[#allocation2 + $0x30] sm:$0xff]
        %v8606 = vld [vmem:[#allocation2 + $0x38] sm:$0xff]
        %v8607 = vld [vmem:[#allocation2 + $0x40] sm:$0xff]
        %v8608 = vld [vmem:[#allocation2 + $0x48] sm:$0xff]
        %v8609 = vld [vmem:[#allocation2 + $0x50] sm:$0xff]
        %v8610 = vld [vmem:[#allocation2 + $0x58] sm:$0xff]
        %v8611 = vld [vmem:[#allocation2 + $0x60] sm:$0xff]
        %v8612 = vld [vmem:[#allocation2 + $0x68] sm:$0xff]
        %v8613 = vld [vmem:[#allocation2 + $0x70] sm:$0xff]
        %v8614 = vld [vmem:[#allocation2 + $0x78] sm:$0xff]
        %v8615 = vmax.f32 %v8599, %v6826
        %v8616 = vmax.f32 %v8600, %v6830
        %v8617 = vmax.f32 %v8601, %v6836
        %v8618 = vmax.f32 %v8602, %v6840
        %v8619 = vmax.f32 %v8603, %v6846
        %v8620 = vmax.f32 %v8604, %v6850
        %v8621 = vmax.f32 %v8605, %v6856
        %v8622 = vmax.f32 %v8606, %v6860
        %v8623 = vmax.f32 %v8607, %v6866
        %v8624 = vmax.f32 %v8608, %v6870
        %v8625 = vmax.f32 %v8609, %v6876
        %v8626 = vmax.f32 %v8610, %v6880
        %v8627 = vmax.f32 %v8611, %v6886
        %v8628 = vmax.f32 %v8612, %v6890
        %v8629 = vmax.f32 %v8613, %v6896
        %v8630 = vmax.f32 %v8614, %v6900
        %v8631 = vmax.f32 %v8615, %v6828
        %v8632 = vmax.f32 %v8616, %v6832
        %v8633 = vmax.f32 %v8617, %v6838
        %v8634 = vmax.f32 %v8618, %v6842
        %v8635 = vmax.f32 %v8619, %v6848
        %v8636 = vmax.f32 %v8620, %v6852
        %v8637 = vmax.f32 %v8621, %v6858
        %v8638 = vmax.f32 %v8622, %v6862
        %v8639 = vmax.f32 %v8623, %v6868
        %v8640 = vmax.f32 %v8624, %v6872
        %v8641 = vmax.f32 %v8625, %v6878
        %v8642 = vmax.f32 %v8626, %v6882
        %v8643 = vmax.f32 %v8627, %v6888
        %v8644 = vmax.f32 %v8628, %v6892
        %v8645 = vmax.f32 %v8629, %v6898
        %v8646 = vmax.f32 %v8630, %v6902
        %v8647 = vmax.f32 %v8631, %v6939
        %v8648 = vmax.f32 %v8632, %v6943
        %v8649 = vmax.f32 %v8633, %v6949
        %v8650 = vmax.f32 %v8634, %v6953
        %v8651 = vmax.f32 %v8635, %v6959
        %v8652 = vmax.f32 %v8636, %v6963
        %v8653 = vmax.f32 %v8637, %v6969
        %v8654 = vmax.f32 %v8638, %v6973
        %v8655 = vmax.f32 %v8639, %v6979
        %v8656 = vmax.f32 %v8640, %v6983
        %v8657 = vmax.f32 %v8641, %v6989
        %v8658 = vmax.f32 %v8642, %v6993
        %v8659 = vmax.f32 %v8643, %v6999
        %v8660 = vmax.f32 %v8644, %v7003
        %v8661 = vmax.f32 %v8645, %v7009
        %v8662 = vmax.f32 %v8646, %v7013
        %v8663 = vmax.f32 %v8647, %v6941
        %v8664 = vmax.f32 %v8648, %v6945
        %v8665 = vmax.f32 %v8649, %v6951
        %v8666 = vmax.f32 %v8650, %v6955
        %v8667 = vmax.f32 %v8651, %v6961
        %v8668 = vmax.f32 %v8652, %v6965
        %v8669 = vmax.f32 %v8653, %v6971
        %v8670 = vmax.f32 %v8654, %v6975
        %v8671 = vmax.f32 %v8655, %v6981
        %v8672 = vmax.f32 %v8656, %v6985
        %v8673 = vmax.f32 %v8657, %v6991
        %v8674 = vmax.f32 %v8658, %v6995
        %v8675 = vmax.f32 %v8659, %v7001
        %v8676 = vmax.f32 %v8660, %v7005
        %v8677 = vmax.f32 %v8661, %v7011
        %v8678 = vmax.f32 %v8662, %v7015
        %v8679 = vmax.f32 %v8663, %v7052
        %v8680 = vmax.f32 %v8664, %v7056
        %v8681 = vmax.f32 %v8665, %v7062
        %v8682 = vmax.f32 %v8666, %v7066
        %v8683 = vmax.f32 %v8667, %v7072
        %v8684 = vmax.f32 %v8668, %v7076
        %v8685 = vmax.f32 %v8669, %v7082
        %v8686 = vmax.f32 %v8670, %v7086
        %v8687 = vmax.f32 %v8671, %v7092
        %v8688 = vmax.f32 %v8672, %v7096
        %v8689 = vmax.f32 %v8673, %v7102
        %v8690 = vmax.f32 %v8674, %v7106
        %v8691 = vmax.f32 %v8675, %v7112
        %v8692 = vmax.f32 %v8676, %v7116
        %v8693 = vmax.f32 %v8677, %v7122
        %v8694 = vmax.f32 %v8678, %v7126
        %v8695 = vmax.f32 %v8679, %v7054
        %v8696 = vmax.f32 %v8680, %v7058
        %v8697 = vmax.f32 %v8681, %v7064
        %v8698 = vmax.f32 %v8682, %v7068
        %v8699 = vmax.f32 %v8683, %v7074
        %v8700 = vmax.f32 %v8684, %v7078
        %v8701 = vmax.f32 %v8685, %v7084
        %v8702 = vmax.f32 %v8686, %v7088
        %v8703 = vmax.f32 %v8687, %v7094
        %v8704 = vmax.f32 %v8688, %v7098
        %v8705 = vmax.f32 %v8689, %v7104
        %v8706 = vmax.f32 %v8690, %v7108
        %v8707 = vmax.f32 %v8691, %v7114
        %v8708 = vmax.f32 %v8692, %v7118
        %v8709 = vmax.f32 %v8693, %v7124
        %v8710 = vmax.f32 %v8694, %v7128
        %v8711 = vmax.f32 %v8695, %v7165
        %v8712 = vmax.f32 %v8696, %v7169
        %v8713 = vmax.f32 %v8697, %v7175
        %v8714 = vmax.f32 %v8698, %v7179
        %v8715 = vmax.f32 %v8699, %v7185
        %v8716 = vmax.f32 %v8700, %v7189
        %v8717 = vmax.f32 %v8701, %v7195
        %v8718 = vmax.f32 %v8702, %v7199
        %v8719 = vmax.f32 %v8703, %v7205
        %v8720 = vmax.f32 %v8704, %v7209
        %v8721 = vmax.f32 %v8705, %v7215
        %v8722 = vmax.f32 %v8706, %v7219
        %v8723 = vmax.f32 %v8707, %v7225
        %v8724 = vmax.f32 %v8708, %v7229
        %v8725 = vmax.f32 %v8709, %v7235
        %v8726 = vmax.f32 %v8710, %v7239
        %v8727 = vmax.f32 %v8711, %v7167
        %v8728 = vmax.f32 %v8712, %v7171
        %v8729 = vmax.f32 %v8713, %v7177
        %v8730 = vmax.f32 %v8714, %v7181
        %v8731 = vmax.f32 %v8715, %v7187
        %v8732 = vmax.f32 %v8716, %v7191
        %v8733 = vmax.f32 %v8717, %v7197
        %v8734 = vmax.f32 %v8718, %v7201
        %v8735 = vmax.f32 %v8719, %v7207
        %v8736 = vmax.f32 %v8720, %v7211
        %v8737 = vmax.f32 %v8721, %v7217
        %v8738 = vmax.f32 %v8722, %v7221
        %v8739 = vmax.f32 %v8723, %v7227
        %v8740 = vmax.f32 %v8724, %v7231
        %v8741 = vmax.f32 %v8725, %v7237
        %v8742 = vmax.f32 %v8726, %v7241
        %v8743 = vmax.f32 %v8727, %v7278
        %v8744 = vmax.f32 %v8728, %v7282
        %v8745 = vmax.f32 %v8729, %v7288
        %v8746 = vmax.f32 %v8730, %v7292
        %v8747 = vmax.f32 %v8731, %v7298
        %v8748 = vmax.f32 %v8732, %v7302
        %v8749 = vmax.f32 %v8733, %v7308
        %v8750 = vmax.f32 %v8734, %v7312
        %v8751 = vmax.f32 %v8735, %v7318
        %v8752 = vmax.f32 %v8736, %v7322
        %v8753 = vmax.f32 %v8737, %v7328
        %v8754 = vmax.f32 %v8738, %v7332
        %v8755 = vmax.f32 %v8739, %v7338
        %v8756 = vmax.f32 %v8740, %v7342
        %v8757 = vmax.f32 %v8741, %v7348
        %v8758 = vmax.f32 %v8742, %v7352
        %v8759 = vmax.f32 %v8743, %v7280
        %v8760 = vmax.f32 %v8744, %v7284
        %v8761 = vmax.f32 %v8745, %v7290
        %v8762 = vmax.f32 %v8746, %v7294
        %v8763 = vmax.f32 %v8747, %v7300
        %v8764 = vmax.f32 %v8748, %v7304
        %v8765 = vmax.f32 %v8749, %v7310
        %v8766 = vmax.f32 %v8750, %v7314
        %v8767 = vmax.f32 %v8751, %v7320
        %v8768 = vmax.f32 %v8752, %v7324
        %v8769 = vmax.f32 %v8753, %v7330
        %v8770 = vmax.f32 %v8754, %v7334
        %v8771 = vmax.f32 %v8755, %v7340
        %v8772 = vmax.f32 %v8756, %v7344
        %v8773 = vmax.f32 %v8757, %v7350
        %v8774 = vmax.f32 %v8758, %v7354
        %v8775 = vmax.f32 %v8759, %v7391
        %v8776 = vmax.f32 %v8760, %v7395
        %v8777 = vmax.f32 %v8761, %v7401
        %v8778 = vmax.f32 %v8762, %v7405
        %v8779 = vmax.f32 %v8763, %v7411
        %v8780 = vmax.f32 %v8764, %v7415
        %v8781 = vmax.f32 %v8765, %v7421
        %v8782 = vmax.f32 %v8766, %v7425
        %v8783 = vmax.f32 %v8767, %v7431
        %v8784 = vmax.f32 %v8768, %v7435
        %v8785 = vmax.f32 %v8769, %v7441
        %v8786 = vmax.f32 %v8770, %v7445
        %v8787 = vmax.f32 %v8771, %v7451
        %v8788 = vmax.f32 %v8772, %v7455
        %v8789 = vmax.f32 %v8773, %v7461
        %v8790 = vmax.f32 %v8774, %v7465
        %v8791 = vmax.f32 %v8775, %v7393
        %v8792 = vmax.f32 %v8776, %v7397
        %v8793 = vmax.f32 %v8777, %v7403
        %v8794 = vmax.f32 %v8778, %v7407
        %v8795 = vmax.f32 %v8779, %v7413
        %v8796 = vmax.f32 %v8780, %v7417
        %v8797 = vmax.f32 %v8781, %v7423
        %v8798 = vmax.f32 %v8782, %v7427
        %v8799 = vmax.f32 %v8783, %v7433
        %v8800 = vmax.f32 %v8784, %v7437
        %v8801 = vmax.f32 %v8785, %v7443
        %v8802 = vmax.f32 %v8786, %v7447
        %v8803 = vmax.f32 %v8787, %v7453
        %v8804 = vmax.f32 %v8788, %v7457
        %v8805 = vmax.f32 %v8789, %v7463
        %v8806 = vmax.f32 %v8790, %v7467
        %v8807 = vmax.f32 %v8791, %v7504
        %v8808 = vmax.f32 %v8792, %v7508
        %v8809 = vmax.f32 %v8793, %v7514
        %v8810 = vmax.f32 %v8794, %v7518
        %v8811 = vmax.f32 %v8795, %v7524
        %v8812 = vmax.f32 %v8796, %v7528
        %v8813 = vmax.f32 %v8797, %v7534
        %v8814 = vmax.f32 %v8798, %v7538
        %v8815 = vmax.f32 %v8799, %v7544
        %v8816 = vmax.f32 %v8800, %v7548
        %v8817 = vmax.f32 %v8801, %v7554
        %v8818 = vmax.f32 %v8802, %v7558
        %v8819 = vmax.f32 %v8803, %v7564
        %v8820 = vmax.f32 %v8804, %v7568
        %v8821 = vmax.f32 %v8805, %v7574
        %v8822 = vmax.f32 %v8806, %v7578
        %v8823 = vmax.f32 %v8807, %v7506
        %v8824 = vmax.f32 %v8808, %v7510
        %v8825 = vmax.f32 %v8809, %v7516
        %v8826 = vmax.f32 %v8810, %v7520
        %v8827 = vmax.f32 %v8811, %v7526
        %v8828 = vmax.f32 %v8812, %v7530
        %v8829 = vmax.f32 %v8813, %v7536
        %v8830 = vmax.f32 %v8814, %v7540
        %v8831 = vmax.f32 %v8815, %v7546
        %v8832 = vmax.f32 %v8816, %v7550
        %v8833 = vmax.f32 %v8817, %v7556
        %v8834 = vmax.f32 %v8818, %v7560
        %v8835 = vmax.f32 %v8819, %v7566
        %v8836 = vmax.f32 %v8820, %v7570
        %v8837 = vmax.f32 %v8821, %v7576
        %v8838 = vmax.f32 %v8822, %v7580
        %v8839 = vmax.f32 %v8823, %v7617
        %v8840 = vmax.f32 %v8824, %v7621
        %v8841 = vmax.f32 %v8825, %v7627
        %v8842 = vmax.f32 %v8826, %v7631
        %v8843 = vmax.f32 %v8827, %v7637
        %v8844 = vmax.f32 %v8828, %v7641
        %v8845 = vmax.f32 %v8829, %v7647
        %v8846 = vmax.f32 %v8830, %v7651
        %v8847 = vmax.f32 %v8831, %v7657
        %v8848 = vmax.f32 %v8832, %v7661
        %v8849 = vmax.f32 %v8833, %v7667
        %v8850 = vmax.f32 %v8834, %v7671
        %v8851 = vmax.f32 %v8835, %v7677
        %v8852 = vmax.f32 %v8836, %v7681
        %v8853 = vmax.f32 %v8837, %v7687
        %v8854 = vmax.f32 %v8838, %v7691
        %v8855 = vmax.f32 %v8839, %v7619
        %v8856 = vmax.f32 %v8840, %v7623
        %v8857 = vmax.f32 %v8841, %v7629
        %v8858 = vmax.f32 %v8842, %v7633
        %v8859 = vmax.f32 %v8843, %v7639
        %v8860 = vmax.f32 %v8844, %v7643
        %v8861 = vmax.f32 %v8845, %v7649
        %v8862 = vmax.f32 %v8846, %v7653
        %v8863 = vmax.f32 %v8847, %v7659
        %v8864 = vmax.f32 %v8848, %v7663
        %v8865 = vmax.f32 %v8849, %v7669
        %v8866 = vmax.f32 %v8850, %v7673
        %v8867 = vmax.f32 %v8851, %v7679
        %v8868 = vmax.f32 %v8852, %v7683
        %v8869 = vmax.f32 %v8853, %v7689
        %v8870 = vmax.f32 %v8854, %v7693
        %v8871 = vmax.f32 %v8855, %v7730
        %v8872 = vmax.f32 %v8856, %v7734
        %v8873 = vmax.f32 %v8857, %v7740
        %v8874 = vmax.f32 %v8858, %v7744
        %v8875 = vmax.f32 %v8859, %v7750
        %v8876 = vmax.f32 %v8860, %v7754
        %v8877 = vmax.f32 %v8861, %v7760
        %v8878 = vmax.f32 %v8862, %v7764
        %v8879 = vmax.f32 %v8863, %v7770
        %v8880 = vmax.f32 %v8864, %v7774
        %v8881 = vmax.f32 %v8865, %v7780
        %v8882 = vmax.f32 %v8866, %v7784
        %v8883 = vmax.f32 %v8867, %v7790
        %v8884 = vmax.f32 %v8868, %v7794
        %v8885 = vmax.f32 %v8869, %v7800
        %v8886 = vmax.f32 %v8870, %v7804
        %v8887 = vmax.f32 %v8871, %v7732
        %v8888 = vmax.f32 %v8872, %v7736
        %v8889 = vmax.f32 %v8873, %v7742
        %v8890 = vmax.f32 %v8874, %v7746
        %v8891 = vmax.f32 %v8875, %v7752
        %v8892 = vmax.f32 %v8876, %v7756
        %v8893 = vmax.f32 %v8877, %v7762
        %v8894 = vmax.f32 %v8878, %v7766
        %v8895 = vmax.f32 %v8879, %v7772
        %v8896 = vmax.f32 %v8880, %v7776
        %v8897 = vmax.f32 %v8881, %v7782
        %v8898 = vmax.f32 %v8882, %v7786
        %v8899 = vmax.f32 %v8883, %v7792
        %v8900 = vmax.f32 %v8884, %v7796
        %v8901 = vmax.f32 %v8885, %v7802
        %v8902 = vmax.f32 %v8886, %v7806
        %v8903 = vmax.f32 %v8887, %v7843
        %v8904 = vmax.f32 %v8888, %v7847
        %v8905 = vmax.f32 %v8889, %v7853
        %v8906 = vmax.f32 %v8890, %v7857
        %v8907 = vmax.f32 %v8891, %v7863
        %v8908 = vmax.f32 %v8892, %v7867
        %v8909 = vmax.f32 %v8893, %v7873
        %v8910 = vmax.f32 %v8894, %v7877
        %v8911 = vmax.f32 %v8895, %v7883
        %v8912 = vmax.f32 %v8896, %v7887
        %v8913 = vmax.f32 %v8897, %v7893
        %v8914 = vmax.f32 %v8898, %v7897
        %v8915 = vmax.f32 %v8899, %v7903
        %v8916 = vmax.f32 %v8900, %v7907
        %v8917 = vmax.f32 %v8901, %v7913
        %v8918 = vmax.f32 %v8902, %v7917
        %v8919 = vmax.f32 %v8903, %v7845
        %v8920 = vmax.f32 %v8904, %v7849
        %v8921 = vmax.f32 %v8905, %v7855
        %v8922 = vmax.f32 %v8906, %v7859
        %v8923 = vmax.f32 %v8907, %v7865
        %v8924 = vmax.f32 %v8908, %v7869
        %v8925 = vmax.f32 %v8909, %v7875
        %v8926 = vmax.f32 %v8910, %v7879
        %v8927 = vmax.f32 %v8911, %v7885
        %v8928 = vmax.f32 %v8912, %v7889
        %v8929 = vmax.f32 %v8913, %v7895
        %v8930 = vmax.f32 %v8914, %v7899
        %v8931 = vmax.f32 %v8915, %v7905
        %v8932 = vmax.f32 %v8916, %v7909
        %v8933 = vmax.f32 %v8917, %v7915
        %v8934 = vmax.f32 %v8918, %v7919
        %v8935 = vmax.f32 %v8919, %v7956
        %v8936 = vmax.f32 %v8920, %v7960
        %v8937 = vmax.f32 %v8921, %v7966
        %v8938 = vmax.f32 %v8922, %v7970
        %v8939 = vmax.f32 %v8923, %v7976
        %v8940 = vmax.f32 %v8924, %v7980
        %v8941 = vmax.f32 %v8925, %v7986
        %v8942 = vmax.f32 %v8926, %v7990
        %v8943 = vmax.f32 %v8927, %v7996
        %v8944 = vmax.f32 %v8928, %v8000
        %v8945 = vmax.f32 %v8929, %v8006
        %v8946 = vmax.f32 %v8930, %v8010
        %v8947 = vmax.f32 %v8931, %v8016
        %v8948 = vmax.f32 %v8932, %v8020
        %v8949 = vmax.f32 %v8933, %v8026
        %v8950 = vmax.f32 %v8934, %v8030
        %v8951 = vmax.f32 %v8935, %v7958
        %v8952 = vmax.f32 %v8936, %v7962
        %v8953 = vmax.f32 %v8937, %v7968
        %v8954 = vmax.f32 %v8938, %v7972
        %v8955 = vmax.f32 %v8939, %v7978
        %v8956 = vmax.f32 %v8940, %v7982
        %v8957 = vmax.f32 %v8941, %v7988
        %v8958 = vmax.f32 %v8942, %v7992
        %v8959 = vmax.f32 %v8943, %v7998
        %v8960 = vmax.f32 %v8944, %v8002
        %v8961 = vmax.f32 %v8945, %v8008
        %v8962 = vmax.f32 %v8946, %v8012
        %v8963 = vmax.f32 %v8947, %v8018
        %v8964 = vmax.f32 %v8948, %v8022
        %v8965 = vmax.f32 %v8949, %v8028
        %v8966 = vmax.f32 %v8950, %v8032
        %v8967 = vmax.f32 %v8951, %v8069
        %v8968 = vmax.f32 %v8952, %v8073
        %v8969 = vmax.f32 %v8953, %v8079
        %v8970 = vmax.f32 %v8954, %v8083
        %v8971 = vmax.f32 %v8955, %v8089
        %v8972 = vmax.f32 %v8956, %v8093
        %v8973 = vmax.f32 %v8957, %v8099
        %v8974 = vmax.f32 %v8958, %v8103
        %v8975 = vmax.f32 %v8959, %v8109
        %v8976 = vmax.f32 %v8960, %v8113
        %v8977 = vmax.f32 %v8961, %v8119
        %v8978 = vmax.f32 %v8962, %v8123
        %v8979 = vmax.f32 %v8963, %v8129
        %v8980 = vmax.f32 %v8964, %v8133
        %v8981 = vmax.f32 %v8965, %v8139
        %v8982 = vmax.f32 %v8966, %v8143
        %v8983 = vmax.f32 %v8967, %v8071
        %v8984 = vmax.f32 %v8968, %v8075
        %v8985 = vmax.f32 %v8969, %v8081
        %v8986 = vmax.f32 %v8970, %v8085
        %v8987 = vmax.f32 %v8971, %v8091
        %v8988 = vmax.f32 %v8972, %v8095
        %v8989 = vmax.f32 %v8973, %v8101
        %v8990 = vmax.f32 %v8974, %v8105
        %v8991 = vmax.f32 %v8975, %v8111
        %v8992 = vmax.f32 %v8976, %v8115
        %v8993 = vmax.f32 %v8977, %v8121
        %v8994 = vmax.f32 %v8978, %v8125
        %v8995 = vmax.f32 %v8979, %v8131
        %v8996 = vmax.f32 %v8980, %v8135
        %v8997 = vmax.f32 %v8981, %v8141
        %v8998 = vmax.f32 %v8982, %v8145
        %v8999 = vmax.f32 %v8983, %v8182
        %v9000 = vmax.f32 %v8984, %v8186
        %v9001 = vmax.f32 %v8985, %v8192
        %v9002 = vmax.f32 %v8986, %v8196
        %v9003 = vmax.f32 %v8987, %v8202
        %v9004 = vmax.f32 %v8988, %v8206
        %v9005 = vmax.f32 %v8989, %v8212
        %v9006 = vmax.f32 %v8990, %v8216
        %v9007 = vmax.f32 %v8991, %v8222
        %v9008 = vmax.f32 %v8992, %v8226
        %v9009 = vmax.f32 %v8993, %v8232
        %v9010 = vmax.f32 %v8994, %v8236
        %v9011 = vmax.f32 %v8995, %v8242
        %v9012 = vmax.f32 %v8996, %v8246
        %v9013 = vmax.f32 %v8997, %v8252
        %v9014 = vmax.f32 %v8998, %v8256
        %v9015 = vmax.f32 %v8999, %v8184
        %v9016 = vmax.f32 %v9000, %v8188
        %v9017 = vmax.f32 %v9001, %v8194
        %v9018 = vmax.f32 %v9002, %v8198
        %v9019 = vmax.f32 %v9003, %v8204
        %v9020 = vmax.f32 %v9004, %v8208
        %v9021 = vmax.f32 %v9005, %v8214
        %v9022 = vmax.f32 %v9006, %v8218
        %v9023 = vmax.f32 %v9007, %v8224
        %v9024 = vmax.f32 %v9008, %v8228
        %v9025 = vmax.f32 %v9009, %v8234
        %v9026 = vmax.f32 %v9010, %v8238
        %v9027 = vmax.f32 %v9011, %v8244
        %v9028 = vmax.f32 %v9012, %v8248
        %v9029 = vmax.f32 %v9013, %v8254
        %v9030 = vmax.f32 %v9014, %v8258
        %v9031 = vmax.f32 %v9015, %v8295
        %v9032 = vmax.f32 %v9016, %v8299
        %v9033 = vmax.f32 %v9017, %v8305
        %v9034 = vmax.f32 %v9018, %v8309
        %v9035 = vmax.f32 %v9019, %v8315
        %v9036 = vmax.f32 %v9020, %v8319
        %v9037 = vmax.f32 %v9021, %v8325
        %v9038 = vmax.f32 %v9022, %v8329
        %v9039 = vmax.f32 %v9023, %v8335
        %v9040 = vmax.f32 %v9024, %v8339
        %v9041 = vmax.f32 %v9025, %v8345
        %v9042 = vmax.f32 %v9026, %v8349
        %v9043 = vmax.f32 %v9027, %v8355
        %v9044 = vmax.f32 %v9028, %v8359
        %v9045 = vmax.f32 %v9029, %v8365
        %v9046 = vmax.f32 %v9030, %v8369
        %v9047 = vmax.f32 %v9031, %v8297
        %v9048 = vmax.f32 %v9032, %v8301
        %v9049 = vmax.f32 %v9033, %v8307
        %v9050 = vmax.f32 %v9034, %v8311
        %v9051 = vmax.f32 %v9035, %v8317
        %v9052 = vmax.f32 %v9036, %v8321
        %v9053 = vmax.f32 %v9037, %v8327
        %v9054 = vmax.f32 %v9038, %v8331
        %v9055 = vmax.f32 %v9039, %v8337
        %v9056 = vmax.f32 %v9040, %v8341
        %v9057 = vmax.f32 %v9041, %v8347
        %v9058 = vmax.f32 %v9042, %v8351
        %v9059 = vmax.f32 %v9043, %v8357
        %v9060 = vmax.f32 %v9044, %v8361
        %v9061 = vmax.f32 %v9045, %v8367
        %v9062 = vmax.f32 %v9046, %v8371
        %v9063 = vmax.f32 %v9047, %v8408
        %v9064 = vmax.f32 %v9048, %v8412
        %v9065 = vmax.f32 %v9049, %v8418
        %v9066 = vmax.f32 %v9050, %v8422
        %v9067 = vmax.f32 %v9051, %v8428
        %v9068 = vmax.f32 %v9052, %v8432
        %v9069 = vmax.f32 %v9053, %v8438
        %v9070 = vmax.f32 %v9054, %v8442
        %v9071 = vmax.f32 %v9055, %v8448
        %v9072 = vmax.f32 %v9056, %v8452
        %v9073 = vmax.f32 %v9057, %v8458
        %v9074 = vmax.f32 %v9058, %v8462
        %v9075 = vmax.f32 %v9059, %v8468
        %v9076 = vmax.f32 %v9060, %v8472
        %v9077 = vmax.f32 %v9061, %v8478
        %v9078 = vmax.f32 %v9062, %v8482
        %v9079 = vmax.f32 %v9063, %v8410
        %v9080 = vmax.f32 %v9064, %v8414
        %v9081 = vmax.f32 %v9065, %v8420
        %v9082 = vmax.f32 %v9066, %v8424
        %v9083 = vmax.f32 %v9067, %v8430
        %v9084 = vmax.f32 %v9068, %v8434
        %v9085 = vmax.f32 %v9069, %v8440
        %v9086 = vmax.f32 %v9070, %v8444
        %v9087 = vmax.f32 %v9071, %v8450
        %v9088 = vmax.f32 %v9072, %v8454
        %v9089 = vmax.f32 %v9073, %v8460
        %v9090 = vmax.f32 %v9074, %v8464
        %v9091 = vmax.f32 %v9075, %v8470
        %v9092 = vmax.f32 %v9076, %v8474
        %v9093 = vmax.f32 %v9077, %v8480
        %v9094 = vmax.f32 %v9078, %v8484
        %v9095 = vmax.f32 %v9079, %v8521
        %v9096 = vmax.f32 %v9080, %v8525
        %v9097 = vmax.f32 %v9081, %v8531
        %v9098 = vmax.f32 %v9082, %v8535
        %v9099 = vmax.f32 %v9083, %v8541
        %v9100 = vmax.f32 %v9084, %v8545
        %v9101 = vmax.f32 %v9085, %v8551
        %v9102 = vmax.f32 %v9086, %v8555
        %v9103 = vmax.f32 %v9087, %v8561
        %v9104 = vmax.f32 %v9088, %v8565
        %v9105 = vmax.f32 %v9089, %v8571
        %v9106 = vmax.f32 %v9090, %v8575
        %v9107 = vmax.f32 %v9091, %v8581
        %v9108 = vmax.f32 %v9092, %v8585
        %v9109 = vmax.f32 %v9093, %v8591
        %v9110 = vmax.f32 %v9094, %v8595
        %v9111 = vmax.f32 %v9095, %v8523
        %v9112 = vmax.f32 %v9096, %v8527
        %v9113 = vmax.f32 %v9097, %v8533
        %v9114 = vmax.f32 %v9098, %v8537
        %v9115 = vmax.f32 %v9099, %v8543
        %v9116 = vmax.f32 %v9100, %v8547
        %v9117 = vmax.f32 %v9101, %v8553
        %v9118 = vmax.f32 %v9102, %v8557
        %v9119 = vmax.f32 %v9103, %v8563
        %v9120 = vmax.f32 %v9104, %v8567
        %v9121 = vmax.f32 %v9105, %v8573
        %v9122 = vmax.f32 %v9106, %v8577
        %v9123 = vmax.f32 %v9107, %v8583
        %v9124 = vmax.f32 %v9108, %v8587
        %v9125 = vmax.f32 %v9109, %v8593
        %v9126 = vmax.f32 %v9110, %v8597
        %9127 = vst [vmem:[#allocation2] sm:$0xff] %v9111
        %9128 = vst [vmem:[#allocation2 + $0x8] sm:$0xff] %v9112
        %9129 = vst [vmem:[#allocation2 + $0x10] sm:$0xff] %v9113
        %9130 = vst [vmem:[#allocation2 + $0x18] sm:$0xff] %v9114
        %9131 = vst [vmem:[#allocation2 + $0x20] sm:$0xff] %v9115
        %9132 = vst [vmem:[#allocation2 + $0x28] sm:$0xff] %v9116
        %9133 = vst [vmem:[#allocation2 + $0x30] sm:$0xff] %v9117
        %9134 = vst [vmem:[#allocation2 + $0x38] sm:$0xff] %v9118
        %9135 = vst [vmem:[#allocation2 + $0x40] sm:$0xff] %v9119
        %9136 = vst [vmem:[#allocation2 + $0x48] sm:$0xff] %v9120
        %9137 = vst [vmem:[#allocation2 + $0x50] sm:$0xff] %v9121
        %9138 = vst [vmem:[#allocation2 + $0x58] sm:$0xff] %v9122
        %9139 = vst [vmem:[#allocation2 + $0x60] sm:$0xff] %v9123
        %9140 = vst [vmem:[#allocation2 + $0x68] sm:$0xff] %v9124
        %9141 = vst [vmem:[#allocation2 + $0x70] sm:$0xff] %v9125
        %9142 = vst [vmem:[#allocation2 + $0x78] sm:$0xff] %v9126
        %p9143 = scmp.eq.s32.totalorder %s29, 1
        // Predicated region
        $region49: #{tpu_custom_call.1} parent=39 // pred_check
          %p9144 = pneg %p9143
        $region50: #{tpu_custom_call.1} parent=39 // pred_check_branch
          %9146 = sbr.rel (%p9144) target = $region52
        $region51: #{tpu_custom_call.1} parent=39 // pred_region
          %v9147 = vld [vmem:[#allocation2] sm:$0xff]
          %v9148 = vld [vmem:[#allocation2 + $0x8] sm:$0xff]
          %v9149 = vld [vmem:[#allocation2 + $0x10] sm:$0xff]
          %v9150 = vld [vmem:[#allocation2 + $0x18] sm:$0xff]
          %v9151 = vld [vmem:[#allocation2 + $0x20] sm:$0xff]
          %v9152 = vld [vmem:[#allocation2 + $0x28] sm:$0xff]
          %v9153 = vld [vmem:[#allocation2 + $0x30] sm:$0xff]
          %v9154 = vld [vmem:[#allocation2 + $0x38] sm:$0xff]
          %v9155 = vld [vmem:[#allocation2 + $0x40] sm:$0xff]
          %v9156 = vld [vmem:[#allocation2 + $0x48] sm:$0xff]
          %v9157 = vld [vmem:[#allocation2 + $0x50] sm:$0xff]
          %v9158 = vld [vmem:[#allocation2 + $0x58] sm:$0xff]
          %v9159 = vld [vmem:[#allocation2 + $0x60] sm:$0xff]
          %v9160 = vld [vmem:[#allocation2 + $0x68] sm:$0xff]
          %v9161 = vld [vmem:[#allocation2 + $0x70] sm:$0xff]
          %v9162 = vld [vmem:[#allocation2 + $0x78] sm:$0xff]
          %9163 = vxpose.xlu0.b32.start [1/16] %v9147, 128
          %9164 = vxpose.xlu0.b32.cont [2/16] %v9148, 128
          %9165 = vxpose.xlu0.b32.cont [3/16] %v9149, 128
          %9166 = vxpose.xlu0.b32.cont [4/16] %v9150, 128
          %9167 = vxpose.xlu0.b32.cont [5/16] %v9151, 128
          %9168 = vxpose.xlu0.b32.cont [6/16] %v9152, 128
          %9169 = vxpose.xlu0.b32.cont [7/16] %v9153, 128
          %9170 = vxpose.xlu0.b32.cont [8/16] %v9154, 128
          %9171 = vxpose.xlu0.b32.cont [9/16] %v9155, 128
          %9172 = vxpose.xlu0.b32.cont [10/16] %v9156, 128
          %9173 = vxpose.xlu0.b32.cont [11/16] %v9157, 128
          %9174 = vxpose.xlu0.b32.cont [12/16] %v9158, 128
          %9175 = vxpose.xlu0.b32.cont [13/16] %v9159, 128
          %9176 = vxpose.xlu0.b32.cont [14/16] %v9160, 128
          %9177 = vxpose.xlu0.b32.cont [15/16] %v9161, 128
          %9178 = vxpose.xlu0.b32.end [16/16] %v9162, 128
          %v9179 = vpop.trf.xlu0
          %v9180 = vpop.trf.xlu0
          %v9181 = vpop.trf.xlu0
          %v9182 = vpop.trf.xlu0
          %v9183 = vpop.trf.xlu0
          %v9184 = vpop.trf.xlu0
          %v9185 = vpop.trf.xlu0
          %v9186 = vpop.trf.xlu0
          %v9187 = vpop.trf.xlu0
          %v9188 = vpop.trf.xlu0
          %v9189 = vpop.trf.xlu0
          %v9190 = vpop.trf.xlu0
          %v9191 = vpop.trf.xlu0
          %v9192 = vpop.trf.xlu0
          %v9193 = vpop.trf.xlu0
          %v9194 = vpop.trf.xlu0
          %v9195 = vmax.f32 %v9179, %v9183
          %v9196 = vmax.f32 %v9180, %v9184
          %v9197 = vmax.f32 %v9181, %v9185
          %v9198 = vmax.f32 %v9182, %v9186
          %v9199 = vmax.f32 %v9195, %v9187
          %v9200 = vmax.f32 %v9196, %v9188
          %v9201 = vmax.f32 %v9197, %v9189
          %v9202 = vmax.f32 %v9198, %v9190
          %v9203 = vmax.f32 %v9199, %v9191
          %v9204 = vmax.f32 %v9200, %v9192
          %v9205 = vmax.f32 %v9201, %v9193
          %v9206 = vmax.f32 %v9202, %v9194
          %v9207 = vmax.f32 %v9203, %v9204
          %v9208 = vmax.f32 %v9205, %v9206
          %v9209 = vmax.f32 %v9207, %v9208
          %v9210 = vrot.slane %v9209, 4
          %v9211 = vmax.f32 %v9209, %v9210
          %v9212 = vrot.slane %v9211, 2
          %v9213 = vmax.f32 %v9211, %v9212
          %v9214 = vrot.slane %v9213, 1
          %v9215 = vmax.f32 %v9213, %v9214
          %v9216 = vld [vmem:[%s4] sm:$0x1]
          %v9217 = vadd.f32 %v9215, %v9216
          %9218 = vst [vmem:[%s270] sm:$0x1] %v9217
        $region52: #{tpu_custom_call.1} parent=39 // pred_fallthru
          _
        %s9219 = sand.u32 %s167, 1
        %s9220 = scalar_lea.sflag [#allocation5], %s9219
        %s9221 = sand.u32 %s167, 1
        %s9222 = scalar_lea.vmem [#allocation6], %s9221
        // Predicated region
        $region53: #{tpu_custom_call.1} parent=39 // pred_check
          %p9223 = pneg %p177
        $region54: #{tpu_custom_call.1} parent=39 // pred_check_branch
          %9225 = sbr.rel (%p9223) target = $region56
        $region55: #{tpu_custom_call.1} parent=39 // pred_region
          %s9227 = ssub.s32 16, 16
          %9228 = vsyncadd %s9220, %s9227
          %s9229 = sadd.s32 %s28, %s27
          %s9230 = smul.addr %s9229, 16
          %s9231 = scalar_lea.hbm %s5, %s9230
          %s9233 = sshll.u32 %s9222, 4
          %s9234 = int_to_ptr.vmem [resolvable:$true] %s9233
          %9236 = dma.vmem_to_hbm [thread:$0]  %s9234, 16, %s9231, %s9220
        $region56: #{tpu_custom_call.1} parent=39 // pred_fallthru
          _
      $region40: #{tpu_custom_call.1} parent=5 // pred_fallthru
        _
      %p9237 = scmp.le.s32.totalorder 2, %s17
      // Predicated region
      $region57: #{tpu_custom_call.1} parent=5 // pred_check
        %p9238 = pneg %p9237
      $region58: #{tpu_custom_call.1} parent=5 // pred_check_branch
        %9240 = sbr.rel (%p9238) target = $region60
      $region59: #{tpu_custom_call.1} parent=5 // pred_region
        %s9241 = ssub.s32 %s17, 2
        // Predicated region
        $region61: #{tpu_custom_call.1} parent=59 // pred_check
          %p9242 = pneg %p183
        $region62: #{tpu_custom_call.1} parent=59 // pred_check_branch
          %9244 = sbr.rel (%p9242) target = $region64
        $region63: #{tpu_custom_call.1} parent=59 // pred_region
          %s9245 = sand.u32 %s168, 1
          %s9246 = scalar_lea.sflag [#allocation5], %s9245
          %s9247 = sand.u32 %s168, 1
          %s9248 = scalar_lea.vmem [#allocation6], %s9247
          %9249 = dma.done %s9246, 16
        $region64: #{tpu_custom_call.1} parent=59 // pred_fallthru
          _
      $region60: #{tpu_custom_call.1} parent=5 // pred_fallthru
        _
    $region6: #{tpu_custom_call.1} parent=1 // loop_footer
      %s21 = sadd.s32 1, %s17
    $region7: #{tpu_custom_call.1} parent=1 // loop_footer_branch
      %16 = sbr.rel target = $region3
    $region8: #{tpu_custom_call.1} parent=1 // loop_exit
      _
    %9250 = vsyncpa [#allocation4], 1
    %s9251 = scalar_lea.sflag [#allocation4], 1
    %9252 = vsyncpa %s9251, 1
    %9253 = vsyncpa [#allocation5], 1
    %s9254 = scalar_lea.sflag [#allocation5], 1
    %9255 = vsyncpa %s9254, 1

</llo_original>
